<compile_context>
chip_gen: v7x
topology: tpu7x:2x2x1
jax: 0.10.0
libtpu: 0.0.40
codegen_flags: <defaults>
</compile_context>

<pallas_src>
import numpy as np
import jax
import jax.numpy as jnp
from jax import lax
from jax.experimental import pallas as pl
from jax.experimental.pallas import tpu as pltpu


# ----------------------------- fused Pallas kernel -----------------------------

def _deepnet_fused_kernel(p1_ref, w1_ref, b1_ref,
                          s2_ref, w2_ref, b2_ref,
                          s3_ref, w3_ref, b3_ref,
                          wf_ref, bf_ref, wo_ref, bo_ref,
                          o_ref):
    f32 = jnp.float32

    # conv1 (8x8 / s4 / p2) + ReLU + 2x2 max-pool, fused.
    # p1_ref[0]: (4, 100, 256) = 4 pool offsets x 100 pooled positions x patch.
    w1 = w1_ref[...]                                                  # (256, 32)
    m = jnp.dot(p1_ref[0, 0], w1, preferred_element_type=f32)         # (100, 32)
    for k in range(1, 4):
        m = jnp.maximum(m, jnp.dot(p1_ref[0, k], w1, preferred_element_type=f32))
    x1 = jnp.maximum(m + b1_ref[...], 0.0)                            # (100, 32) == NHWC (10,10,32)

    # conv2 (4x4 / s2 / p1) + ReLU: sum of 16 shift-matmul taps.
    acc2 = jnp.dot(jnp.dot(s2_ref[0], x1, preferred_element_type=f32),
                   w2_ref[0], preferred_element_type=f32)             # (25, 64)
    for t in range(1, 16):
        acc2 = acc2 + jnp.dot(jnp.dot(s2_ref[t], x1, preferred_element_type=f32),
                              w2_ref[t], preferred_element_type=f32)
    x2 = jnp.maximum(acc2 + b2_ref[...], 0.0)                         # (25, 64)

    # conv3 (3x3 / s1 / p1) + ReLU: sum of 9 shift-matmul taps.
    acc3 = jnp.dot(jnp.dot(s3_ref[0], x2, preferred_element_type=f32),
                   w3_ref[0], preferred_element_type=f32)             # (25, 64)
    for t in range(1, 9):
        acc3 = acc3 + jnp.dot(jnp.dot(s3_ref[t], x2, preferred_element_type=f32),
                              w3_ref[t], preferred_element_type=f32)
    x3 = jnp.maximum(acc3 + b3_ref[...], 0.0)                         # (25, 64)

    # fc1 (1600 -> 256) + ReLU, accumulated over the 25 spatial positions
    # (weight rows pre-permuted so NHWC ordering feeds it directly).
    h = jnp.dot(x3[0:1, :], wf_ref[0], preferred_element_type=f32)    # (1, 256)
    for p in range(1, 25):
        h = h + jnp.dot(x3[p:p + 1, :], wf_ref[p], preferred_element_type=f32)
    h = jnp.maximum(h + bf_ref[...], 0.0)                             # (1, 256)

    # output head (256 -> 2), written exactly once at the end.
    o_ref[0] = jnp.dot(h, wo_ref[...], preferred_element_type=f32) + bo_ref[...]


# ----------------------------- host-side helpers -----------------------------

def _shift_matrices(out_hw, in_hw, ksize, stride, pad):
    """S[t, out_pos, in_pos]: 0/1 matrices turning one conv tap's shift +
    zero-padding into an MXU matmul (built once in numpy)."""
    s = np.zeros((ksize * ksize, out_hw * out_hw, in_hw * in_hw), np.float32)
    for kh in range(ksize):
        for kw in range(ksize):
            t = kh * ksize + kw
            for oh in range(out_hw):
                for ow in range(out_hw):
                    ih = oh * stride + kh - pad
                    iw = ow * stride + kw - pad
                    if 0 <= ih < in_hw and 0 <= iw < in_hw:
                        s[t, oh * out_hw + ow, ih * in_hw + iw] = 1.0
    return jnp.asarray(s)


def _conv1_pool_patches(x_nhwc):
    """im2col for conv1 (8x8/s4/p2), pre-grouped by the four 2x2-pool offsets.
    x: (B, 80, 80, 4) -> (B, 4, 100, 256); patch entries ordered (kh, kw, ci)."""
    b = x_nhwc.shape[0]
    xp = jnp.pad(x_nhwc, ((0, 0), (2, 2), (2, 2), (0, 0)))            # (B, 84, 84, 4)
    cols = []
    for kh in range(8):
        for kw in range(8):
            cols.append(xp[:, kh:kh + 80:4, kw:kw + 80:4, :])         # (B, 20, 20, 4)
    p = jnp.stack(cols, axis=3).reshape(b, 20, 20, 256)
    p = p.reshape(b, 10, 2, 10, 2, 256).transpose(0, 2, 4, 1, 3, 5)   # (B, dy, dx, 10, 10, 256)
    return p.reshape(b, 4, 100, 256)


def init_torch_params(key):
    """Synthetic init matching the PyTorch module: weights ~ N(0, 0.01^2), biases 0."""
    ks = jax.random.split(key, 5)
    std = 0.01
    f32 = jnp.float32
    return {
        "w1": jax.random.normal(ks[0], (32, 4, 8, 8), f32) * std,
        "b1": jnp.zeros((32,), f32),
        "w2": jax.random.normal(ks[1], (64, 32, 4, 4), f32) * std,
        "b2": jnp.zeros((64,), f32),
        "w3": jax.random.normal(ks[2], (64, 64, 3, 3), f32) * std,
        "b3": jnp.zeros((64,), f32),
        "w_fc1": jax.random.normal(ks[3], (256, 1600), f32) * std,
        "b_fc1": jnp.zeros((256,), f32),
        "w_out": jax.random.normal(ks[4], (2, 256), f32) * std,
        "b_out": jnp.zeros((2,), f32),
    }


def prepare_kernel_params(tp):
    """One-time re-layout of the PyTorch-layout weights into kernel layouts
    (runs once, outside the jitted forward — no per-step transposes)."""
    return {
        "w1": jnp.transpose(tp["w1"], (2, 3, 1, 0)).reshape(256, 32),   # (kh,kw,ci)-major
        "b1": tp["b1"].reshape(1, 32),
        "w2": jnp.transpose(tp["w2"], (2, 3, 1, 0)).reshape(16, 32, 64),
        "b2": tp["b2"].reshape(1, 64),
        "w3": jnp.transpose(tp["w3"], (2, 3, 1, 0)).reshape(9, 64, 64),
        "b3": tp["b3"].reshape(1, 64),
        # fc1 rows permuted from NCHW-flat (c*25+p) to (p, c): (25, 64, 256).
        "wf": jnp.transpose(tp["w_fc1"].T.reshape(64, 25, 256), (1, 0, 2)),
        "bf": tp["b_fc1"].reshape(1, 256),
        "wo": tp["w_out"].T,                                            # (256, 2)
        "bo": tp["b_out"].reshape(1, 2),
        "s2": _shift_matrices(5, 10, 4, 2, 1),                          # (16, 25, 100)
        "s3": _shift_matrices(5, 5, 3, 1, 1),                           # (9, 25, 25)
    }


# ----------------------------- forward -----------------------------

@jax.jit
def deep_network_forward(kp, x_nchw):
    """x_nchw: (B, 4, 80, 80) float32 -> (B, 2).  (fc1's 1600 = 64*5*5 fixes 80x80.)"""
    b = x_nchw.shape[0]
    x = jnp.transpose(x_nchw, (0, 2, 3, 1))                             # NHWC
    # TODO(synk): for training-scale batches, move the conv1 im2col into the
    # kernel (tap accumulation over a KH*KW grid axis) to avoid the ~4x patch
    # inflation in HBM; at inference batch sizes it is negligible.
    p1 = _conv1_pool_patches(x)                                         # (B, 4, 100, 256)

    out = pl.pallas_call(
        _deepnet_fused_kernel,
        out_shape=jax.ShapeDtypeStruct((b, 1, 2), jnp.float32),
        grid=(b,),
        in_specs=[
            pl.BlockSpec((1, 4, 100, 256), lambda i: (i, 0, 0, 0)),     # conv1 patches
            pl.BlockSpec((256, 32), lambda i: (0, 0)),                  # w1
            pl.BlockSpec((1, 32), lambda i: (0, 0)),                    # b1
            pl.BlockSpec((16, 25, 100), lambda i: (0, 0, 0)),           # s2 (shift mats)
            pl.BlockSpec((16, 32, 64), lambda i: (0, 0, 0)),            # w2
            pl.BlockSpec((1, 64), lambda i: (0, 0)),                    # b2
            pl.BlockSpec((9, 25, 25), lambda i: (0, 0, 0)),             # s3 (shift mats)
            pl.BlockSpec((9, 64, 64), lambda i: (0, 0, 0)),             # w3
            pl.BlockSpec((1, 64), lambda i: (0, 0)),                    # b3
            pl.BlockSpec((25, 64, 256), lambda i: (0, 0, 0)),           # w_fc1 (permuted)
            pl.BlockSpec((1, 256), lambda i: (0, 0)),                   # b_fc1
            pl.BlockSpec((256, 2), lambda i: (0, 0)),                   # w_out (K,N)
            pl.BlockSpec((1, 2), lambda i: (0, 0)),                     # b_out
        ],
        out_specs=pl.BlockSpec((1, 1, 2), lambda i: (i, 0, 0)),
        compiler_params=pltpu.CompilerParams(
            dimension_semantics=("parallel",),       # megacore: shard images (v7x)
            vmem_limit_bytes=32 * 1024 * 1024,       # explicit (v5e default is 16 MiB)
        ),
    )(p1, kp["w1"], kp["b1"], kp["s2"], kp["w2"], kp["b2"],
      kp["s3"], kp["w3"], kp["b3"], kp["wf"], kp["bf"], kp["wo"], kp["bo"])
    return out.reshape(b, 2)


# ----------------------------- pure-JAX reference -----------------------------

def reference_forward(tp, x_nchw):
    """XLA reference mirroring the PyTorch module exactly (NCHW / OIHW)."""
    def conv(x, w, stride, pad):
        dn = lax.conv_dimension_numbers(x.shape, w.shape, ("NCHW", "OIHW", "NCHW"))
        return lax.conv_general_dilated(x, w, (stride, stride),
                                        [(pad, pad), (pad, pad)],
                                        dimension_numbers=dn)
    x = jax.nn.relu(conv(x_nchw, tp["w1"], 4, 2) + tp["b1"].reshape(1, -1, 1, 1))
    x = lax.reduce_window(x, -jnp.inf, lax.max, (1, 1, 2, 2), (1, 1, 2, 2), "VALID")
    x = jax.nn.relu(conv(x, tp["w2"], 2, 1) + tp["b2"].reshape(1, -1, 1, 1))
    x = jax.nn.relu(conv(x, tp["w3"], 1, 1) + tp["b3"].reshape(1, -1, 1, 1))
    x = x.reshape(x.shape[0], -1)
    x = jax.nn.relu(x @ tp["w_fc1"].T + tp["b_fc1"])
    return x @ tp["w_out"].T + tp["b_out"]


# ----------------------------- demo -----------------------------

if __name__ == "__main__":
    key = jax.random.PRNGKey(0)
    pkey, xkey = jax.random.split(key)
    torch_params = init_torch_params(pkey)
    kernel_params = prepare_kernel_params(torch_params)

    x = jax.random.uniform(xkey, (2, 4, 80, 80), dtype=jnp.float32)

    out = jax.block_until_ready(deep_network_forward(kernel_params, x))
    assert out.shape == (2, 2) and out.dtype == jnp.float32

    ref = jax.block_until_ready(reference_forward(torch_params, x))
    assert jnp.allclose(out, ref, rtol=2e-2, atol=1e-5), (
        "max abs diff %e" % float(jnp.max(jnp.abs(out - ref))))

    print("KERNEL_OK")
</pallas_src>

<mosaic_0001>
module attributes {stable_mosaic.version = 11 : i64} {
  func.func @_deepnet_fused_kernel(%arg0: i32, %arg1: memref<1x4x100x256xf32, #tpu.memory_space<vmem>>, %arg2: memref<256x32xf32, #tpu.memory_space<vmem>>, %arg3: memref<1x32xf32, #tpu.memory_space<vmem>>, %arg4: memref<16x25x100xf32, #tpu.memory_space<vmem>>, %arg5: memref<16x32x64xf32, #tpu.memory_space<vmem>>, %arg6: memref<1x64xf32, #tpu.memory_space<vmem>>, %arg7: memref<9x25x25xf32, #tpu.memory_space<vmem>>, %arg8: memref<9x64x64xf32, #tpu.memory_space<vmem>>, %arg9: memref<1x64xf32, #tpu.memory_space<vmem>>, %arg10: memref<25x64x256xf32, #tpu.memory_space<vmem>>, %arg11: memref<1x256xf32, #tpu.memory_space<vmem>>, %arg12: memref<256x2xf32, #tpu.memory_space<vmem>>, %arg13: memref<1x2xf32, #tpu.memory_space<vmem>>, %arg14: memref<1x1x2xf32, #tpu.memory_space<vmem>>) attributes {dimension_semantics = [#tpu.dimension_semantics<parallel>], iteration_bounds = array<i64: 2>, scalar_prefetch = 0 : i64, scratch_operands = 0 : i64, tpu.core_type = #tpu.core_type<tc>, window_params = [{transform_indices = @transform_0, window_bounds = array<i64: 1, 4, 100, 256>}, {pipeline_mode = #tpu.pipeline_mode<synchronous>, transform_indices = @transform_1, window_bounds = array<i64: 256, 32>}, {pipeline_mode = #tpu.pipeline_mode<synchronous>, transform_indices = @transform_2, window_bounds = array<i64: 1, 32>}, {pipeline_mode = #tpu.pipeline_mode<synchronous>, transform_indices = @transform_3, window_bounds = array<i64: 16, 25, 100>}, {pipeline_mode = #tpu.pipeline_mode<synchronous>, transform_indices = @transform_4, window_bounds = array<i64: 16, 32, 64>}, {pipeline_mode = #tpu.pipeline_mode<synchronous>, transform_indices = @transform_5, window_bounds = array<i64: 1, 64>}, {pipeline_mode = #tpu.pipeline_mode<synchronous>, transform_indices = @transform_6, window_bounds = array<i64: 9, 25, 25>}, {pipeline_mode = #tpu.pipeline_mode<synchronous>, transform_indices = @transform_7, window_bounds = array<i64: 9, 64, 64>}, {pipeline_mode = #tpu.pipeline_mode<synchronous>, transform_indices = @transform_8, window_bounds = array<i64: 1, 64>}, {pipeline_mode = #tpu.pipeline_mode<synchronous>, transform_indices = @transform_9, window_bounds = array<i64: 25, 64, 256>}, {pipeline_mode = #tpu.pipeline_mode<synchronous>, transform_indices = @transform_10, window_bounds = array<i64: 1, 256>}, {pipeline_mode = #tpu.pipeline_mode<synchronous>, transform_indices = @transform_11, window_bounds = array<i64: 256, 2>}, {pipeline_mode = #tpu.pipeline_mode<synchronous>, transform_indices = @transform_12, window_bounds = array<i64: 1, 2>}, {transform_indices = @transform_13, window_bounds = array<i64: 1, 1, 2>}]} {
    %c0 = arith.constant 0 : index
    %c0_0 = arith.constant 0 : index
    %0 = vector.load %arg2[%c0, %c0_0] : memref<256x32xf32, #tpu.memory_space<vmem>>, vector<256x32xf32>
    %c0_1 = arith.constant 0 : index
    %c0_2 = arith.constant 0 : index
    %c0_3 = arith.constant 0 : index
    %c0_4 = arith.constant 0 : index
    %1 = vector.load %arg1[%c0_1, %c0_2, %c0_3, %c0_4] : memref<1x4x100x256xf32, #tpu.memory_space<vmem>>, vector<1x1x100x256xf32>
    %2 = vector.shape_cast %1 : vector<1x1x100x256xf32> to vector<100x256xf32>
    %cst = arith.constant dense<0.000000e+00> : vector<100x32xf32>
    %3 = tpu.matmul %2, %0, %cst {dimension_numbers = #tpu.dot_dimension_numbers<[1], [0], [0], [1], [0, 0, 1, 1], [], []>} : vector<100x256xf32>, vector<256x32xf32>, vector<100x32xf32> -> vector<100x32xf32>
    %c0_5 = arith.constant 0 : index
    %c1 = arith.constant 1 : index
    %c0_6 = arith.constant 0 : index
    %c0_7 = arith.constant 0 : index
    %4 = vector.load %arg1[%c0_5, %c1, %c0_6, %c0_7] : memref<1x4x100x256xf32, #tpu.memory_space<vmem>>, vector<1x1x100x256xf32>
    %5 = vector.shape_cast %4 : vector<1x1x100x256xf32> to vector<100x256xf32>
    %cst_8 = arith.constant dense<0.000000e+00> : vector<100x32xf32>
    %6 = tpu.matmul %5, %0, %cst_8 {dimension_numbers = #tpu.dot_dimension_numbers<[1], [0], [0], [1], [0, 0, 1, 1], [], []>} : vector<100x256xf32>, vector<256x32xf32>, vector<100x32xf32> -> vector<100x32xf32>
    %7 = arith.maximumf %3, %6 : vector<100x32xf32>
    %c0_9 = arith.constant 0 : index
    %c2 = arith.constant 2 : index
    %c0_10 = arith.constant 0 : index
    %c0_11 = arith.constant 0 : index
    %8 = vector.load %arg1[%c0_9, %c2, %c0_10, %c0_11] : memref<1x4x100x256xf32, #tpu.memory_space<vmem>>, vector<1x1x100x256xf32>
    %9 = vector.shape_cast %8 : vector<1x1x100x256xf32> to vector<100x256xf32>
    %cst_12 = arith.constant dense<0.000000e+00> : vector<100x32xf32>
    %10 = tpu.matmul %9, %0, %cst_12 {dimension_numbers = #tpu.dot_dimension_numbers<[1], [0], [0], [1], [0, 0, 1, 1], [], []>} : vector<100x256xf32>, vector<256x32xf32>, vector<100x32xf32> -> vector<100x32xf32>
    %11 = arith.maximumf %7, %10 : vector<100x32xf32>
    %c0_13 = arith.constant 0 : index
    %c3 = arith.constant 3 : index
    %c0_14 = arith.constant 0 : index
    %c0_15 = arith.constant 0 : index
    %12 = vector.load %arg1[%c0_13, %c3, %c0_14, %c0_15] : memref<1x4x100x256xf32, #tpu.memory_space<vmem>>, vector<1x1x100x256xf32>
    %13 = vector.shape_cast %12 : vector<1x1x100x256xf32> to vector<100x256xf32>
    %cst_16 = arith.constant dense<0.000000e+00> : vector<100x32xf32>
    %14 = tpu.matmul %13, %0, %cst_16 {dimension_numbers = #tpu.dot_dimension_numbers<[1], [0], [0], [1], [0, 0, 1, 1], [], []>} : vector<100x256xf32>, vector<256x32xf32>, vector<100x32xf32> -> vector<100x32xf32>
    %15 = arith.maximumf %11, %14 : vector<100x32xf32>
    %c0_17 = arith.constant 0 : index
    %c0_18 = arith.constant 0 : index
    %16 = vector.load %arg3[%c0_17, %c0_18] : memref<1x32xf32, #tpu.memory_space<vmem>>, vector<1x32xf32>
    %17 = vector.broadcast %16 : vector<1x32xf32> to vector<100x32xf32>
    %18 = arith.addf %15, %17 : vector<100x32xf32>
    %cst_19 = arith.constant 0.000000e+00 : f32
    %19 = vector.broadcast %cst_19 : f32 to vector<100x32xf32>
    %20 = arith.maximumf %18, %19 : vector<100x32xf32>
    %c0_20 = arith.constant 0 : index
    %c0_21 = arith.constant 0 : index
    %c0_22 = arith.constant 0 : index
    %21 = vector.load %arg4[%c0_20, %c0_21, %c0_22] : memref<16x25x100xf32, #tpu.memory_space<vmem>>, vector<1x25x100xf32>
    %22 = vector.shape_cast %21 : vector<1x25x100xf32> to vector<25x100xf32>
    %cst_23 = arith.constant dense<0.000000e+00> : vector<25x32xf32>
    %23 = tpu.matmul %22, %20, %cst_23 {dimension_numbers = #tpu.dot_dimension_numbers<[1], [0], [0], [1], [0, 0, 1, 1], [], []>} : vector<25x100xf32>, vector<100x32xf32>, vector<25x32xf32> -> vector<25x32xf32>
    %c0_24 = arith.constant 0 : index
    %c0_25 = arith.constant 0 : index
    %c0_26 = arith.constant 0 : index
    %24 = vector.load %arg5[%c0_24, %c0_25, %c0_26] : memref<16x32x64xf32, #tpu.memory_space<vmem>>, vector<1x32x64xf32>
    %25 = vector.shape_cast %24 : vector<1x32x64xf32> to vector<32x64xf32>
    %cst_27 = arith.constant dense<0.000000e+00> : vector<25x64xf32>
    %26 = tpu.matmul %23, %25, %cst_27 {dimension_numbers = #tpu.dot_dimension_numbers<[1], [0], [0], [1], [0, 0, 1, 1], [], []>} : vector<25x32xf32>, vector<32x64xf32>, vector<25x64xf32> -> vector<25x64xf32>
    %c1_28 = arith.constant 1 : index
    %c0_29 = arith.constant 0 : index
    %c0_30 = arith.constant 0 : index
    %27 = vector.load %arg4[%c1_28, %c0_29, %c0_30] : memref<16x25x100xf32, #tpu.memory_space<vmem>>, vector<1x25x100xf32>
    %28 = vector.shape_cast %27 : vector<1x25x100xf32> to vector<25x100xf32>
    %cst_31 = arith.constant dense<0.000000e+00> : vector<25x32xf32>
    %29 = tpu.matmul %28, %20, %cst_31 {dimension_numbers = #tpu.dot_dimension_numbers<[1], [0], [0], [1], [0, 0, 1, 1], [], []>} : vector<25x100xf32>, vector<100x32xf32>, vector<25x32xf32> -> vector<25x32xf32>
    %c1_32 = arith.constant 1 : index
    %c0_33 = arith.constant 0 : index
    %c0_34 = arith.constant 0 : index
    %30 = vector.load %arg5[%c1_32, %c0_33, %c0_34] : memref<16x32x64xf32, #tpu.memory_space<vmem>>, vector<1x32x64xf32>
    %31 = vector.shape_cast %30 : vector<1x32x64xf32> to vector<32x64xf32>
    %cst_35 = arith.constant dense<0.000000e+00> : vector<25x64xf32>
    %32 = tpu.matmul %29, %31, %cst_35 {dimension_numbers = #tpu.dot_dimension_numbers<[1], [0], [0], [1], [0, 0, 1, 1], [], []>} : vector<25x32xf32>, vector<32x64xf32>, vector<25x64xf32> -> vector<25x64xf32>
    %33 = arith.addf %26, %32 : vector<25x64xf32>
    %c2_36 = arith.constant 2 : index
    %c0_37 = arith.constant 0 : index
    %c0_38 = arith.constant 0 : index
    %34 = vector.load %arg4[%c2_36, %c0_37, %c0_38] : memref<16x25x100xf32, #tpu.memory_space<vmem>>, vector<1x25x100xf32>
    %35 = vector.shape_cast %34 : vector<1x25x100xf32> to vector<25x100xf32>
    %cst_39 = arith.constant dense<0.000000e+00> : vector<25x32xf32>
    %36 = tpu.matmul %35, %20, %cst_39 {dimension_numbers = #tpu.dot_dimension_numbers<[1], [0], [0], [1], [0, 0, 1, 1], [], []>} : vector<25x100xf32>, vector<100x32xf32>, vector<25x32xf32> -> vector<25x32xf32>
    %c2_40 = arith.constant 2 : index
    %c0_41 = arith.constant 0 : index
    %c0_42 = arith.constant 0 : index
    %37 = vector.load %arg5[%c2_40, %c0_41, %c0_42] : memref<16x32x64xf32, #tpu.memory_space<vmem>>, vector<1x32x64xf32>
    %38 = vector.shape_cast %37 : vector<1x32x64xf32> to vector<32x64xf32>
    %cst_43 = arith.constant dense<0.000000e+00> : vector<25x64xf32>
    %39 = tpu.matmul %36, %38, %cst_43 {dimension_numbers = #tpu.dot_dimension_numbers<[1], [0], [0], [1], [0, 0, 1, 1], [], []>} : vector<25x32xf32>, vector<32x64xf32>, vector<25x64xf32> -> vector<25x64xf32>
    %40 = arith.addf %33, %39 : vector<25x64xf32>
    %c3_44 = arith.constant 3 : index
    %c0_45 = arith.constant 0 : index
    %c0_46 = arith.constant 0 : index
    %41 = vector.load %arg4[%c3_44, %c0_45, %c0_46] : memref<16x25x100xf32, #tpu.memory_space<vmem>>, vector<1x25x100xf32>
    %42 = vector.shape_cast %41 : vector<1x25x100xf32> to vector<25x100xf32>
    %cst_47 = arith.constant dense<0.000000e+00> : vector<25x32xf32>
    %43 = tpu.matmul %42, %20, %cst_47 {dimension_numbers = #tpu.dot_dimension_numbers<[1], [0], [0], [1], [0, 0, 1, 1], [], []>} : vector<25x100xf32>, vector<100x32xf32>, vector<25x32xf32> -> vector<25x32xf32>
    %c3_48 = arith.constant 3 : index
    %c0_49 = arith.constant 0 : index
    %c0_50 = arith.constant 0 : index
    %44 = vector.load %arg5[%c3_48, %c0_49, %c0_50] : memref<16x32x64xf32, #tpu.memory_space<vmem>>, vector<1x32x64xf32>
    %45 = vector.shape_cast %44 : vector<1x32x64xf32> to vector<32x64xf32>
    %cst_51 = arith.constant dense<0.000000e+00> : vector<25x64xf32>
    %46 = tpu.matmul %43, %45, %cst_51 {dimension_numbers = #tpu.dot_dimension_numbers<[1], [0], [0], [1], [0, 0, 1, 1], [], []>} : vector<25x32xf32>, vector<32x64xf32>, vector<25x64xf32> -> vector<25x64xf32>
    %47 = arith.addf %40, %46 : vector<25x64xf32>
    %c4 = arith.constant 4 : index
    %c0_52 = arith.constant 0 : index
    %c0_53 = arith.constant 0 : index
    %48 = vector.load %arg4[%c4, %c0_52, %c0_53] : memref<16x25x100xf32, #tpu.memory_space<vmem>>, vector<1x25x100xf32>
    %49 = vector.shape_cast %48 : vector<1x25x100xf32> to vector<25x100xf32>
    %cst_54 = arith.constant dense<0.000000e+00> : vector<25x32xf32>
    %50 = tpu.matmul %49, %20, %cst_54 {dimension_numbers = #tpu.dot_dimension_numbers<[1], [0], [0], [1], [0, 0, 1, 1], [], []>} : vector<25x100xf32>, vector<100x32xf32>, vector<25x32xf32> -> vector<25x32xf32>
    %c4_55 = arith.constant 4 : index
    %c0_56 = arith.constant 0 : index
    %c0_57 = arith.constant 0 : index
    %51 = vector.load %arg5[%c4_55, %c0_56, %c0_57] : memref<16x32x64xf32, #tpu.memory_space<vmem>>, vector<1x32x64xf32>
    %52 = vector.shape_cast %51 : vector<1x32x64xf32> to vector<32x64xf32>
    %cst_58 = arith.constant dense<0.000000e+00> : vector<25x64xf32>
    %53 = tpu.matmul %50, %52, %cst_58 {dimension_numbers = #tpu.dot_dimension_numbers<[1], [0], [0], [1], [0, 0, 1, 1], [], []>} : vector<25x32xf32>, vector<32x64xf32>, vector<25x64xf32> -> vector<25x64xf32>
    %54 = arith.addf %47, %53 : vector<25x64xf32>
    %c5 = arith.constant 5 : index
    %c0_59 = arith.constant 0 : index
    %c0_60 = arith.constant 0 : index
    %55 = vector.load %arg4[%c5, %c0_59, %c0_60] : memref<16x25x100xf32, #tpu.memory_space<vmem>>, vector<1x25x100xf32>
    %56 = vector.shape_cast %55 : vector<1x25x100xf32> to vector<25x100xf32>
    %cst_61 = arith.constant dense<0.000000e+00> : vector<25x32xf32>
    %57 = tpu.matmul %56, %20, %cst_61 {dimension_numbers = #tpu.dot_dimension_numbers<[1], [0], [0], [1], [0, 0, 1, 1], [], []>} : vector<25x100xf32>, vector<100x32xf32>, vector<25x32xf32> -> vector<25x32xf32>
    %c5_62 = arith.constant 5 : index
    %c0_63 = arith.constant 0 : index
    %c0_64 = arith.constant 0 : index
    %58 = vector.load %arg5[%c5_62, %c0_63, %c0_64] : memref<16x32x64xf32, #tpu.memory_space<vmem>>, vector<1x32x64xf32>
    %59 = vector.shape_cast %58 : vector<1x32x64xf32> to vector<32x64xf32>
    %cst_65 = arith.constant dense<0.000000e+00> : vector<25x64xf32>
    %60 = tpu.matmul %57, %59, %cst_65 {dimension_numbers = #tpu.dot_dimension_numbers<[1], [0], [0], [1], [0, 0, 1, 1], [], []>} : vector<25x32xf32>, vector<32x64xf32>, vector<25x64xf32> -> vector<25x64xf32>
    %61 = arith.addf %54, %60 : vector<25x64xf32>
    %c6 = arith.constant 6 : index
    %c0_66 = arith.constant 0 : index
    %c0_67 = arith.constant 0 : index
    %62 = vector.load %arg4[%c6, %c0_66, %c0_67] : memref<16x25x100xf32, #tpu.memory_space<vmem>>, vector<1x25x100xf32>
    %63 = vector.shape_cast %62 : vector<1x25x100xf32> to vector<25x100xf32>
    %cst_68 = arith.constant dense<0.000000e+00> : vector<25x32xf32>
    %64 = tpu.matmul %63, %20, %cst_68 {dimension_numbers = #tpu.dot_dimension_numbers<[1], [0], [0], [1], [0, 0, 1, 1], [], []>} : vector<25x100xf32>, vector<100x32xf32>, vector<25x32xf32> -> vector<25x32xf32>
    %c6_69 = arith.constant 6 : index
    %c0_70 = arith.constant 0 : index
    %c0_71 = arith.constant 0 : index
    %65 = vector.load %arg5[%c6_69, %c0_70, %c0_71] : memref<16x32x64xf32, #tpu.memory_space<vmem>>, vector<1x32x64xf32>
    %66 = vector.shape_cast %65 : vector<1x32x64xf32> to vector<32x64xf32>
    %cst_72 = arith.constant dense<0.000000e+00> : vector<25x64xf32>
    %67 = tpu.matmul %64, %66, %cst_72 {dimension_numbers = #tpu.dot_dimension_numbers<[1], [0], [0], [1], [0, 0, 1, 1], [], []>} : vector<25x32xf32>, vector<32x64xf32>, vector<25x64xf32> -> vector<25x64xf32>
    %68 = arith.addf %61, %67 : vector<25x64xf32>
    %c7 = arith.constant 7 : index
    %c0_73 = arith.constant 0 : index
    %c0_74 = arith.constant 0 : index
    %69 = vector.load %arg4[%c7, %c0_73, %c0_74] : memref<16x25x100xf32, #tpu.memory_space<vmem>>, vector<1x25x100xf32>
    %70 = vector.shape_cast %69 : vector<1x25x100xf32> to vector<25x100xf32>
    %cst_75 = arith.constant dense<0.000000e+00> : vector<25x32xf32>
    %71 = tpu.matmul %70, %20, %cst_75 {dimension_numbers = #tpu.dot_dimension_numbers<[1], [0], [0], [1], [0, 0, 1, 1], [], []>} : vector<25x100xf32>, vector<100x32xf32>, vector<25x32xf32> -> vector<25x32xf32>
    %c7_76 = arith.constant 7 : index
    %c0_77 = arith.constant 0 : index
    %c0_78 = arith.constant 0 : index
    %72 = vector.load %arg5[%c7_76, %c0_77, %c0_78] : memref<16x32x64xf32, #tpu.memory_space<vmem>>, vector<1x32x64xf32>
    %73 = vector.shape_cast %72 : vector<1x32x64xf32> to vector<32x64xf32>
    %cst_79 = arith.constant dense<0.000000e+00> : vector<25x64xf32>
    %74 = tpu.matmul %71, %73, %cst_79 {dimension_numbers = #tpu.dot_dimension_numbers<[1], [0], [0], [1], [0, 0, 1, 1], [], []>} : vector<25x32xf32>, vector<32x64xf32>, vector<25x64xf32> -> vector<25x64xf32>
    %75 = arith.addf %68, %74 : vector<25x64xf32>
    %c8 = arith.constant 8 : index
    %c0_80 = arith.constant 0 : index
    %c0_81 = arith.constant 0 : index
    %76 = vector.load %arg4[%c8, %c0_80, %c0_81] : memref<16x25x100xf32, #tpu.memory_space<vmem>>, vector<1x25x100xf32>
    %77 = vector.shape_cast %76 : vector<1x25x100xf32> to vector<25x100xf32>
    %cst_82 = arith.constant dense<0.000000e+00> : vector<25x32xf32>
    %78 = tpu.matmul %77, %20, %cst_82 {dimension_numbers = #tpu.dot_dimension_numbers<[1], [0], [0], [1], [0, 0, 1, 1], [], []>} : vector<25x100xf32>, vector<100x32xf32>, vector<25x32xf32> -> vector<25x32xf32>
    %c8_83 = arith.constant 8 : index
    %c0_84 = arith.constant 0 : index
    %c0_85 = arith.constant 0 : index
    %79 = vector.load %arg5[%c8_83, %c0_84, %c0_85] : memref<16x32x64xf32, #tpu.memory_space<vmem>>, vector<1x32x64xf32>
    %80 = vector.shape_cast %79 : vector<1x32x64xf32> to vector<32x64xf32>
    %cst_86 = arith.constant dense<0.000000e+00> : vector<25x64xf32>
    %81 = tpu.matmul %78, %80, %cst_86 {dimension_numbers = #tpu.dot_dimension_numbers<[1], [0], [0], [1], [0, 0, 1, 1], [], []>} : vector<25x32xf32>, vector<32x64xf32>, vector<25x64xf32> -> vector<25x64xf32>
    %82 = arith.addf %75, %81 : vector<25x64xf32>
    %c9 = arith.constant 9 : index
    %c0_87 = arith.constant 0 : index
    %c0_88 = arith.constant 0 : index
    %83 = vector.load %arg4[%c9, %c0_87, %c0_88] : memref<16x25x100xf32, #tpu.memory_space<vmem>>, vector<1x25x100xf32>
    %84 = vector.shape_cast %83 : vector<1x25x100xf32> to vector<25x100xf32>
    %cst_89 = arith.constant dense<0.000000e+00> : vector<25x32xf32>
    %85 = tpu.matmul %84, %20, %cst_89 {dimension_numbers = #tpu.dot_dimension_numbers<[1], [0], [0], [1], [0, 0, 1, 1], [], []>} : vector<25x100xf32>, vector<100x32xf32>, vector<25x32xf32> -> vector<25x32xf32>
    %c9_90 = arith.constant 9 : index
    %c0_91 = arith.constant 0 : index
    %c0_92 = arith.constant 0 : index
    %86 = vector.load %arg5[%c9_90, %c0_91, %c0_92] : memref<16x32x64xf32, #tpu.memory_space<vmem>>, vector<1x32x64xf32>
    %87 = vector.shape_cast %86 : vector<1x32x64xf32> to vector<32x64xf32>
    %cst_93 = arith.constant dense<0.000000e+00> : vector<25x64xf32>
    %88 = tpu.matmul %85, %87, %cst_93 {dimension_numbers = #tpu.dot_dimension_numbers<[1], [0], [0], [1], [0, 0, 1, 1], [], []>} : vector<25x32xf32>, vector<32x64xf32>, vector<25x64xf32> -> vector<25x64xf32>
    %89 = arith.addf %82, %88 : vector<25x64xf32>
    %c10 = arith.constant 10 : index
    %c0_94 = arith.constant 0 : index
    %c0_95 = arith.constant 0 : index
    %90 = vector.load %arg4[%c10, %c0_94, %c0_95] : memref<16x25x100xf32, #tpu.memory_space<vmem>>, vector<1x25x100xf32>
    %91 = vector.shape_cast %90 : vector<1x25x100xf32> to vector<25x100xf32>
    %cst_96 = arith.constant dense<0.000000e+00> : vector<25x32xf32>
    %92 = tpu.matmul %91, %20, %cst_96 {dimension_numbers = #tpu.dot_dimension_numbers<[1], [0], [0], [1], [0, 0, 1, 1], [], []>} : vector<25x100xf32>, vector<100x32xf32>, vector<25x32xf32> -> vector<25x32xf32>
    %c10_97 = arith.constant 10 : index
    %c0_98 = arith.constant 0 : index
    %c0_99 = arith.constant 0 : index
    %93 = vector.load %arg5[%c10_97, %c0_98, %c0_99] : memref<16x32x64xf32, #tpu.memory_space<vmem>>, vector<1x32x64xf32>
    %94 = vector.shape_cast %93 : vector<1x32x64xf32> to vector<32x64xf32>
    %cst_100 = arith.constant dense<0.000000e+00> : vector<25x64xf32>
    %95 = tpu.matmul %92, %94, %cst_100 {dimension_numbers = #tpu.dot_dimension_numbers<[1], [0], [0], [1], [0, 0, 1, 1], [], []>} : vector<25x32xf32>, vector<32x64xf32>, vector<25x64xf32> -> vector<25x64xf32>
    %96 = arith.addf %89, %95 : vector<25x64xf32>
    %c11 = arith.constant 11 : index
    %c0_101 = arith.constant 0 : index
    %c0_102 = arith.constant 0 : index
    %97 = vector.load %arg4[%c11, %c0_101, %c0_102] : memref<16x25x100xf32, #tpu.memory_space<vmem>>, vector<1x25x100xf32>
    %98 = vector.shape_cast %97 : vector<1x25x100xf32> to vector<25x100xf32>
    %cst_103 = arith.constant dense<0.000000e+00> : vector<25x32xf32>
    %99 = tpu.matmul %98, %20, %cst_103 {dimension_numbers = #tpu.dot_dimension_numbers<[1], [0], [0], [1], [0, 0, 1, 1], [], []>} : vector<25x100xf32>, vector<100x32xf32>, vector<25x32xf32> -> vector<25x32xf32>
    %c11_104 = arith.constant 11 : index
    %c0_105 = arith.constant 0 : index
    %c0_106 = arith.constant 0 : index
    %100 = vector.load %arg5[%c11_104, %c0_105, %c0_106] : memref<16x32x64xf32, #tpu.memory_space<vmem>>, vector<1x32x64xf32>
    %101 = vector.shape_cast %100 : vector<1x32x64xf32> to vector<32x64xf32>
    %cst_107 = arith.constant dense<0.000000e+00> : vector<25x64xf32>
    %102 = tpu.matmul %99, %101, %cst_107 {dimension_numbers = #tpu.dot_dimension_numbers<[1], [0], [0], [1], [0, 0, 1, 1], [], []>} : vector<25x32xf32>, vector<32x64xf32>, vector<25x64xf32> -> vector<25x64xf32>
    %103 = arith.addf %96, %102 : vector<25x64xf32>
    %c12 = arith.constant 12 : index
    %c0_108 = arith.constant 0 : index
    %c0_109 = arith.constant 0 : index
    %104 = vector.load %arg4[%c12, %c0_108, %c0_109] : memref<16x25x100xf32, #tpu.memory_space<vmem>>, vector<1x25x100xf32>
    %105 = vector.shape_cast %104 : vector<1x25x100xf32> to vector<25x100xf32>
    %cst_110 = arith.constant dense<0.000000e+00> : vector<25x32xf32>
    %106 = tpu.matmul %105, %20, %cst_110 {dimension_numbers = #tpu.dot_dimension_numbers<[1], [0], [0], [1], [0, 0, 1, 1], [], []>} : vector<25x100xf32>, vector<100x32xf32>, vector<25x32xf32> -> vector<25x32xf32>
    %c12_111 = arith.constant 12 : index
    %c0_112 = arith.constant 0 : index
    %c0_113 = arith.constant 0 : index
    %107 = vector.load %arg5[%c12_111, %c0_112, %c0_113] : memref<16x32x64xf32, #tpu.memory_space<vmem>>, vector<1x32x64xf32>
    %108 = vector.shape_cast %107 : vector<1x32x64xf32> to vector<32x64xf32>
    %cst_114 = arith.constant dense<0.000000e+00> : vector<25x64xf32>
    %109 = tpu.matmul %106, %108, %cst_114 {dimension_numbers = #tpu.dot_dimension_numbers<[1], [0], [0], [1], [0, 0, 1, 1], [], []>} : vector<25x32xf32>, vector<32x64xf32>, vector<25x64xf32> -> vector<25x64xf32>
    %110 = arith.addf %103, %109 : vector<25x64xf32>
    %c13 = arith.constant 13 : index
    %c0_115 = arith.constant 0 : index
    %c0_116 = arith.constant 0 : index
    %111 = vector.load %arg4[%c13, %c0_115, %c0_116] : memref<16x25x100xf32, #tpu.memory_space<vmem>>, vector<1x25x100xf32>
    %112 = vector.shape_cast %111 : vector<1x25x100xf32> to vector<25x100xf32>
    %cst_117 = arith.constant dense<0.000000e+00> : vector<25x32xf32>
    %113 = tpu.matmul %112, %20, %cst_117 {dimension_numbers = #tpu.dot_dimension_numbers<[1], [0], [0], [1], [0, 0, 1, 1], [], []>} : vector<25x100xf32>, vector<100x32xf32>, vector<25x32xf32> -> vector<25x32xf32>
    %c13_118 = arith.constant 13 : index
    %c0_119 = arith.constant 0 : index
    %c0_120 = arith.constant 0 : index
    %114 = vector.load %arg5[%c13_118, %c0_119, %c0_120] : memref<16x32x64xf32, #tpu.memory_space<vmem>>, vector<1x32x64xf32>
    %115 = vector.shape_cast %114 : vector<1x32x64xf32> to vector<32x64xf32>
    %cst_121 = arith.constant dense<0.000000e+00> : vector<25x64xf32>
    %116 = tpu.matmul %113, %115, %cst_121 {dimension_numbers = #tpu.dot_dimension_numbers<[1], [0], [0], [1], [0, 0, 1, 1], [], []>} : vector<25x32xf32>, vector<32x64xf32>, vector<25x64xf32> -> vector<25x64xf32>
    %117 = arith.addf %110, %116 : vector<25x64xf32>
    %c14 = arith.constant 14 : index
    %c0_122 = arith.constant 0 : index
    %c0_123 = arith.constant 0 : index
    %118 = vector.load %arg4[%c14, %c0_122, %c0_123] : memref<16x25x100xf32, #tpu.memory_space<vmem>>, vector<1x25x100xf32>
    %119 = vector.shape_cast %118 : vector<1x25x100xf32> to vector<25x100xf32>
    %cst_124 = arith.constant dense<0.000000e+00> : vector<25x32xf32>
    %120 = tpu.matmul %119, %20, %cst_124 {dimension_numbers = #tpu.dot_dimension_numbers<[1], [0], [0], [1], [0, 0, 1, 1], [], []>} : vector<25x100xf32>, vector<100x32xf32>, vector<25x32xf32> -> vector<25x32xf32>
    %c14_125 = arith.constant 14 : index
    %c0_126 = arith.constant 0 : index
    %c0_127 = arith.constant 0 : index
    %121 = vector.load %arg5[%c14_125, %c0_126, %c0_127] : memref<16x32x64xf32, #tpu.memory_space<vmem>>, vector<1x32x64xf32>
    %122 = vector.shape_cast %121 : vector<1x32x64xf32> to vector<32x64xf32>
    %cst_128 = arith.constant dense<0.000000e+00> : vector<25x64xf32>
    %123 = tpu.matmul %120, %122, %cst_128 {dimension_numbers = #tpu.dot_dimension_numbers<[1], [0], [0], [1], [0, 0, 1, 1], [], []>} : vector<25x32xf32>, vector<32x64xf32>, vector<25x64xf32> -> vector<25x64xf32>
    %124 = arith.addf %117, %123 : vector<25x64xf32>
    %c15 = arith.constant 15 : index
    %c0_129 = arith.constant 0 : index
    %c0_130 = arith.constant 0 : index
    %125 = vector.load %arg4[%c15, %c0_129, %c0_130] : memref<16x25x100xf32, #tpu.memory_space<vmem>>, vector<1x25x100xf32>
    %126 = vector.shape_cast %125 : vector<1x25x100xf32> to vector<25x100xf32>
    %cst_131 = arith.constant dense<0.000000e+00> : vector<25x32xf32>
    %127 = tpu.matmul %126, %20, %cst_131 {dimension_numbers = #tpu.dot_dimension_numbers<[1], [0], [0], [1], [0, 0, 1, 1], [], []>} : vector<25x100xf32>, vector<100x32xf32>, vector<25x32xf32> -> vector<25x32xf32>
    %c15_132 = arith.constant 15 : index
    %c0_133 = arith.constant 0 : index
    %c0_134 = arith.constant 0 : index
    %128 = vector.load %arg5[%c15_132, %c0_133, %c0_134] : memref<16x32x64xf32, #tpu.memory_space<vmem>>, vector<1x32x64xf32>
    %129 = vector.shape_cast %128 : vector<1x32x64xf32> to vector<32x64xf32>
    %cst_135 = arith.constant dense<0.000000e+00> : vector<25x64xf32>
    %130 = tpu.matmul %127, %129, %cst_135 {dimension_numbers = #tpu.dot_dimension_numbers<[1], [0], [0], [1], [0, 0, 1, 1], [], []>} : vector<25x32xf32>, vector<32x64xf32>, vector<25x64xf32> -> vector<25x64xf32>
    %131 = arith.addf %124, %130 : vector<25x64xf32>
    %c0_136 = arith.constant 0 : index
    %c0_137 = arith.constant 0 : index
    %132 = vector.load %arg6[%c0_136, %c0_137] : memref<1x64xf32, #tpu.memory_space<vmem>>, vector<1x64xf32>
    %133 = vector.broadcast %132 : vector<1x64xf32> to vector<25x64xf32>
    %134 = arith.addf %131, %133 : vector<25x64xf32>
    %cst_138 = arith.constant 0.000000e+00 : f32
    %135 = vector.broadcast %cst_138 : f32 to vector<25x64xf32>
    %136 = arith.maximumf %134, %135 : vector<25x64xf32>
    %c0_139 = arith.constant 0 : index
    %c0_140 = arith.constant 0 : index
    %c0_141 = arith.constant 0 : index
    %137 = vector.load %arg7[%c0_139, %c0_140, %c0_141] : memref<9x25x25xf32, #tpu.memory_space<vmem>>, vector<1x25x25xf32>
    %138 = vector.shape_cast %137 : vector<1x25x25xf32> to vector<25x25xf32>
    %cst_142 = arith.constant dense<0.000000e+00> : vector<25x64xf32>
    %139 = tpu.matmul %138, %136, %cst_142 {dimension_numbers = #tpu.dot_dimension_numbers<[1], [0], [0], [1], [0, 0, 1, 1], [], []>} : vector<25x25xf32>, vector<25x64xf32>, vector<25x64xf32> -> vector<25x64xf32>
    %c0_143 = arith.constant 0 : index
    %c0_144 = arith.constant 0 : index
    %c0_145 = arith.constant 0 : index
    %140 = vector.load %arg8[%c0_143, %c0_144, %c0_145] : memref<9x64x64xf32, #tpu.memory_space<vmem>>, vector<1x64x64xf32>
    %141 = vector.shape_cast %140 : vector<1x64x64xf32> to vector<64x64xf32>
    %cst_146 = arith.constant dense<0.000000e+00> : vector<25x64xf32>
    %142 = tpu.matmul %139, %141, %cst_146 {dimension_numbers = #tpu.dot_dimension_numbers<[1], [0], [0], [1], [0, 0, 1, 1], [], []>} : vector<25x64xf32>, vector<64x64xf32>, vector<25x64xf32> -> vector<25x64xf32>
    %c1_147 = arith.constant 1 : index
    %c0_148 = arith.constant 0 : index
    %c0_149 = arith.constant 0 : index
    %143 = vector.load %arg7[%c1_147, %c0_148, %c0_149] : memref<9x25x25xf32, #tpu.memory_space<vmem>>, vector<1x25x25xf32>
    %144 = vector.shape_cast %143 : vector<1x25x25xf32> to vector<25x25xf32>
    %cst_150 = arith.constant dense<0.000000e+00> : vector<25x64xf32>
    %145 = tpu.matmul %144, %136, %cst_150 {dimension_numbers = #tpu.dot_dimension_numbers<[1], [0], [0], [1], [0, 0, 1, 1], [], []>} : vector<25x25xf32>, vector<25x64xf32>, vector<25x64xf32> -> vector<25x64xf32>
    %c1_151 = arith.constant 1 : index
    %c0_152 = arith.constant 0 : index
    %c0_153 = arith.constant 0 : index
    %146 = vector.load %arg8[%c1_151, %c0_152, %c0_153] : memref<9x64x64xf32, #tpu.memory_space<vmem>>, vector<1x64x64xf32>
    %147 = vector.shape_cast %146 : vector<1x64x64xf32> to vector<64x64xf32>
    %cst_154 = arith.constant dense<0.000000e+00> : vector<25x64xf32>
    %148 = tpu.matmul %145, %147, %cst_154 {dimension_numbers = #tpu.dot_dimension_numbers<[1], [0], [0], [1], [0, 0, 1, 1], [], []>} : vector<25x64xf32>, vector<64x64xf32>, vector<25x64xf32> -> vector<25x64xf32>
    %149 = arith.addf %142, %148 : vector<25x64xf32>
    %c2_155 = arith.constant 2 : index
    %c0_156 = arith.constant 0 : index
    %c0_157 = arith.constant 0 : index
    %150 = vector.load %arg7[%c2_155, %c0_156, %c0_157] : memref<9x25x25xf32, #tpu.memory_space<vmem>>, vector<1x25x25xf32>
    %151 = vector.shape_cast %150 : vector<1x25x25xf32> to vector<25x25xf32>
    %cst_158 = arith.constant dense<0.000000e+00> : vector<25x64xf32>
    %152 = tpu.matmul %151, %136, %cst_158 {dimension_numbers = #tpu.dot_dimension_numbers<[1], [0], [0], [1], [0, 0, 1, 1], [], []>} : vector<25x25xf32>, vector<25x64xf32>, vector<25x64xf32> -> vector<25x64xf32>
    %c2_159 = arith.constant 2 : index
    %c0_160 = arith.constant 0 : index
    %c0_161 = arith.constant 0 : index
    %153 = vector.load %arg8[%c2_159, %c0_160, %c0_161] : memref<9x64x64xf32, #tpu.memory_space<vmem>>, vector<1x64x64xf32>
    %154 = vector.shape_cast %153 : vector<1x64x64xf32> to vector<64x64xf32>
    %cst_162 = arith.constant dense<0.000000e+00> : vector<25x64xf32>
    %155 = tpu.matmul %152, %154, %cst_162 {dimension_numbers = #tpu.dot_dimension_numbers<[1], [0], [0], [1], [0, 0, 1, 1], [], []>} : vector<25x64xf32>, vector<64x64xf32>, vector<25x64xf32> -> vector<25x64xf32>
    %156 = arith.addf %149, %155 : vector<25x64xf32>
    %c3_163 = arith.constant 3 : index
    %c0_164 = arith.constant 0 : index
    %c0_165 = arith.constant 0 : index
    %157 = vector.load %arg7[%c3_163, %c0_164, %c0_165] : memref<9x25x25xf32, #tpu.memory_space<vmem>>, vector<1x25x25xf32>
    %158 = vector.shape_cast %157 : vector<1x25x25xf32> to vector<25x25xf32>
    %cst_166 = arith.constant dense<0.000000e+00> : vector<25x64xf32>
    %159 = tpu.matmul %158, %136, %cst_166 {dimension_numbers = #tpu.dot_dimension_numbers<[1], [0], [0], [1], [0, 0, 1, 1], [], []>} : vector<25x25xf32>, vector<25x64xf32>, vector<25x64xf32> -> vector<25x64xf32>
    %c3_167 = arith.constant 3 : index
    %c0_168 = arith.constant 0 : index
    %c0_169 = arith.constant 0 : index
    %160 = vector.load %arg8[%c3_167, %c0_168, %c0_169] : memref<9x64x64xf32, #tpu.memory_space<vmem>>, vector<1x64x64xf32>
    %161 = vector.shape_cast %160 : vector<1x64x64xf32> to vector<64x64xf32>
    %cst_170 = arith.constant dense<0.000000e+00> : vector<25x64xf32>
    %162 = tpu.matmul %159, %161, %cst_170 {dimension_numbers = #tpu.dot_dimension_numbers<[1], [0], [0], [1], [0, 0, 1, 1], [], []>} : vector<25x64xf32>, vector<64x64xf32>, vector<25x64xf32> -> vector<25x64xf32>
    %163 = arith.addf %156, %162 : vector<25x64xf32>
    %c4_171 = arith.constant 4 : index
    %c0_172 = arith.constant 0 : index
    %c0_173 = arith.constant 0 : index
    %164 = vector.load %arg7[%c4_171, %c0_172, %c0_173] : memref<9x25x25xf32, #tpu.memory_space<vmem>>, vector<1x25x25xf32>
    %165 = vector.shape_cast %164 : vector<1x25x25xf32> to vector<25x25xf32>
    %cst_174 = arith.constant dense<0.000000e+00> : vector<25x64xf32>
    %166 = tpu.matmul %165, %136, %cst_174 {dimension_numbers = #tpu.dot_dimension_numbers<[1], [0], [0], [1], [0, 0, 1, 1], [], []>} : vector<25x25xf32>, vector<25x64xf32>, vector<25x64xf32> -> vector<25x64xf32>
    %c4_175 = arith.constant 4 : index
    %c0_176 = arith.constant 0 : index
    %c0_177 = arith.constant 0 : index
    %167 = vector.load %arg8[%c4_175, %c0_176, %c0_177] : memref<9x64x64xf32, #tpu.memory_space<vmem>>, vector<1x64x64xf32>
    %168 = vector.shape_cast %167 : vector<1x64x64xf32> to vector<64x64xf32>
    %cst_178 = arith.constant dense<0.000000e+00> : vector<25x64xf32>
    %169 = tpu.matmul %166, %168, %cst_178 {dimension_numbers = #tpu.dot_dimension_numbers<[1], [0], [0], [1], [0, 0, 1, 1], [], []>} : vector<25x64xf32>, vector<64x64xf32>, vector<25x64xf32> -> vector<25x64xf32>
    %170 = arith.addf %163, %169 : vector<25x64xf32>
    %c5_179 = arith.constant 5 : index
    %c0_180 = arith.constant 0 : index
    %c0_181 = arith.constant 0 : index
    %171 = vector.load %arg7[%c5_179, %c0_180, %c0_181] : memref<9x25x25xf32, #tpu.memory_space<vmem>>, vector<1x25x25xf32>
    %172 = vector.shape_cast %171 : vector<1x25x25xf32> to vector<25x25xf32>
    %cst_182 = arith.constant dense<0.000000e+00> : vector<25x64xf32>
    %173 = tpu.matmul %172, %136, %cst_182 {dimension_numbers = #tpu.dot_dimension_numbers<[1], [0], [0], [1], [0, 0, 1, 1], [], []>} : vector<25x25xf32>, vector<25x64xf32>, vector<25x64xf32> -> vector<25x64xf32>
    %c5_183 = arith.constant 5 : index
    %c0_184 = arith.constant 0 : index
    %c0_185 = arith.constant 0 : index
    %174 = vector.load %arg8[%c5_183, %c0_184, %c0_185] : memref<9x64x64xf32, #tpu.memory_space<vmem>>, vector<1x64x64xf32>
    %175 = vector.shape_cast %174 : vector<1x64x64xf32> to vector<64x64xf32>
    %cst_186 = arith.constant dense<0.000000e+00> : vector<25x64xf32>
    %176 = tpu.matmul %173, %175, %cst_186 {dimension_numbers = #tpu.dot_dimension_numbers<[1], [0], [0], [1], [0, 0, 1, 1], [], []>} : vector<25x64xf32>, vector<64x64xf32>, vector<25x64xf32> -> vector<25x64xf32>
    %177 = arith.addf %170, %176 : vector<25x64xf32>
    %c6_187 = arith.constant 6 : index
    %c0_188 = arith.constant 0 : index
    %c0_189 = arith.constant 0 : index
    %178 = vector.load %arg7[%c6_187, %c0_188, %c0_189] : memref<9x25x25xf32, #tpu.memory_space<vmem>>, vector<1x25x25xf32>
    %179 = vector.shape_cast %178 : vector<1x25x25xf32> to vector<25x25xf32>
    %cst_190 = arith.constant dense<0.000000e+00> : vector<25x64xf32>
    %180 = tpu.matmul %179, %136, %cst_190 {dimension_numbers = #tpu.dot_dimension_numbers<[1], [0], [0], [1], [0, 0, 1, 1], [], []>} : vector<25x25xf32>, vector<25x64xf32>, vector<25x64xf32> -> vector<25x64xf32>
    %c6_191 = arith.constant 6 : index
    %c0_192 = arith.constant 0 : index
    %c0_193 = arith.constant 0 : index
    %181 = vector.load %arg8[%c6_191, %c0_192, %c0_193] : memref<9x64x64xf32, #tpu.memory_space<vmem>>, vector<1x64x64xf32>
    %182 = vector.shape_cast %181 : vector<1x64x64xf32> to vector<64x64xf32>
    %cst_194 = arith.constant dense<0.000000e+00> : vector<25x64xf32>
    %183 = tpu.matmul %180, %182, %cst_194 {dimension_numbers = #tpu.dot_dimension_numbers<[1], [0], [0], [1], [0, 0, 1, 1], [], []>} : vector<25x64xf32>, vector<64x64xf32>, vector<25x64xf32> -> vector<25x64xf32>
    %184 = arith.addf %177, %183 : vector<25x64xf32>
    %c7_195 = arith.constant 7 : index
    %c0_196 = arith.constant 0 : index
    %c0_197 = arith.constant 0 : index
    %185 = vector.load %arg7[%c7_195, %c0_196, %c0_197] : memref<9x25x25xf32, #tpu.memory_space<vmem>>, vector<1x25x25xf32>
    %186 = vector.shape_cast %185 : vector<1x25x25xf32> to vector<25x25xf32>
    %cst_198 = arith.constant dense<0.000000e+00> : vector<25x64xf32>
    %187 = tpu.matmul %186, %136, %cst_198 {dimension_numbers = #tpu.dot_dimension_numbers<[1], [0], [0], [1], [0, 0, 1, 1], [], []>} : vector<25x25xf32>, vector<25x64xf32>, vector<25x64xf32> -> vector<25x64xf32>
    %c7_199 = arith.constant 7 : index
    %c0_200 = arith.constant 0 : index
    %c0_201 = arith.constant 0 : index
    %188 = vector.load %arg8[%c7_199, %c0_200, %c0_201] : memref<9x64x64xf32, #tpu.memory_space<vmem>>, vector<1x64x64xf32>
    %189 = vector.shape_cast %188 : vector<1x64x64xf32> to vector<64x64xf32>
    %cst_202 = arith.constant dense<0.000000e+00> : vector<25x64xf32>
    %190 = tpu.matmul %187, %189, %cst_202 {dimension_numbers = #tpu.dot_dimension_numbers<[1], [0], [0], [1], [0, 0, 1, 1], [], []>} : vector<25x64xf32>, vector<64x64xf32>, vector<25x64xf32> -> vector<25x64xf32>
    %191 = arith.addf %184, %190 : vector<25x64xf32>
    %c8_203 = arith.constant 8 : index
    %c0_204 = arith.constant 0 : index
    %c0_205 = arith.constant 0 : index
    %192 = vector.load %arg7[%c8_203, %c0_204, %c0_205] : memref<9x25x25xf32, #tpu.memory_space<vmem>>, vector<1x25x25xf32>
    %193 = vector.shape_cast %192 : vector<1x25x25xf32> to vector<25x25xf32>
    %cst_206 = arith.constant dense<0.000000e+00> : vector<25x64xf32>
    %194 = tpu.matmul %193, %136, %cst_206 {dimension_numbers = #tpu.dot_dimension_numbers<[1], [0], [0], [1], [0, 0, 1, 1], [], []>} : vector<25x25xf32>, vector<25x64xf32>, vector<25x64xf32> -> vector<25x64xf32>
    %c8_207 = arith.constant 8 : index
    %c0_208 = arith.constant 0 : index
    %c0_209 = arith.constant 0 : index
    %195 = vector.load %arg8[%c8_207, %c0_208, %c0_209] : memref<9x64x64xf32, #tpu.memory_space<vmem>>, vector<1x64x64xf32>
    %196 = vector.shape_cast %195 : vector<1x64x64xf32> to vector<64x64xf32>
    %cst_210 = arith.constant dense<0.000000e+00> : vector<25x64xf32>
    %197 = tpu.matmul %194, %196, %cst_210 {dimension_numbers = #tpu.dot_dimension_numbers<[1], [0], [0], [1], [0, 0, 1, 1], [], []>} : vector<25x64xf32>, vector<64x64xf32>, vector<25x64xf32> -> vector<25x64xf32>
    %198 = arith.addf %191, %197 : vector<25x64xf32>
    %c0_211 = arith.constant 0 : index
    %c0_212 = arith.constant 0 : index
    %199 = vector.load %arg9[%c0_211, %c0_212] : memref<1x64xf32, #tpu.memory_space<vmem>>, vector<1x64xf32>
    %200 = vector.broadcast %199 : vector<1x64xf32> to vector<25x64xf32>
    %201 = arith.addf %198, %200 : vector<25x64xf32>
    %cst_213 = arith.constant 0.000000e+00 : f32
    %202 = vector.broadcast %cst_213 : f32 to vector<25x64xf32>
    %203 = arith.maximumf %201, %202 : vector<25x64xf32>
    %204 = vector.extract_strided_slice %203 {offsets = [0, 0], sizes = [1, 64], strides = [1, 1]} : vector<25x64xf32> to vector<1x64xf32>
    %c0_214 = arith.constant 0 : index
    %c0_215 = arith.constant 0 : index
    %c0_216 = arith.constant 0 : index
    %205 = vector.load %arg10[%c0_214, %c0_215, %c0_216] : memref<25x64x256xf32, #tpu.memory_space<vmem>>, vector<1x64x256xf32>
    %206 = vector.shape_cast %205 : vector<1x64x256xf32> to vector<64x256xf32>
    %cst_217 = arith.constant dense<0.000000e+00> : vector<1x256xf32>
    %207 = tpu.matmul %204, %206, %cst_217 {dimension_numbers = #tpu.dot_dimension_numbers<[1], [0], [0], [1], [0, 0, 1, 1], [], []>} : vector<1x64xf32>, vector<64x256xf32>, vector<1x256xf32> -> vector<1x256xf32>
    %208 = vector.extract_strided_slice %203 {offsets = [1, 0], sizes = [1, 64], strides = [1, 1]} : vector<25x64xf32> to vector<1x64xf32>
    %c1_218 = arith.constant 1 : index
    %c0_219 = arith.constant 0 : index
    %c0_220 = arith.constant 0 : index
    %209 = vector.load %arg10[%c1_218, %c0_219, %c0_220] : memref<25x64x256xf32, #tpu.memory_space<vmem>>, vector<1x64x256xf32>
    %210 = vector.shape_cast %209 : vector<1x64x256xf32> to vector<64x256xf32>
    %cst_221 = arith.constant dense<0.000000e+00> : vector<1x256xf32>
    %211 = tpu.matmul %208, %210, %cst_221 {dimension_numbers = #tpu.dot_dimension_numbers<[1], [0], [0], [1], [0, 0, 1, 1], [], []>} : vector<1x64xf32>, vector<64x256xf32>, vector<1x256xf32> -> vector<1x256xf32>
    %212 = arith.addf %207, %211 : vector<1x256xf32>
    %213 = vector.extract_strided_slice %203 {offsets = [2, 0], sizes = [1, 64], strides = [1, 1]} : vector<25x64xf32> to vector<1x64xf32>
    %c2_222 = arith.constant 2 : index
    %c0_223 = arith.constant 0 : index
    %c0_224 = arith.constant 0 : index
    %214 = vector.load %arg10[%c2_222, %c0_223, %c0_224] : memref<25x64x256xf32, #tpu.memory_space<vmem>>, vector<1x64x256xf32>
    %215 = vector.shape_cast %214 : vector<1x64x256xf32> to vector<64x256xf32>
    %cst_225 = arith.constant dense<0.000000e+00> : vector<1x256xf32>
    %216 = tpu.matmul %213, %215, %cst_225 {dimension_numbers = #tpu.dot_dimension_numbers<[1], [0], [0], [1], [0, 0, 1, 1], [], []>} : vector<1x64xf32>, vector<64x256xf32>, vector<1x256xf32> -> vector<1x256xf32>
    %217 = arith.addf %212, %216 : vector<1x256xf32>
    %218 = vector.extract_strided_slice %203 {offsets = [3, 0], sizes = [1, 64], strides = [1, 1]} : vector<25x64xf32> to vector<1x64xf32>
    %c3_226 = arith.constant 3 : index
    %c0_227 = arith.constant 0 : index
    %c0_228 = arith.constant 0 : index
    %219 = vector.load %arg10[%c3_226, %c0_227, %c0_228] : memref<25x64x256xf32, #tpu.memory_space<vmem>>, vector<1x64x256xf32>
    %220 = vector.shape_cast %219 : vector<1x64x256xf32> to vector<64x256xf32>
    %cst_229 = arith.constant dense<0.000000e+00> : vector<1x256xf32>
    %221 = tpu.matmul %218, %220, %cst_229 {dimension_numbers = #tpu.dot_dimension_numbers<[1], [0], [0], [1], [0, 0, 1, 1], [], []>} : vector<1x64xf32>, vector<64x256xf32>, vector<1x256xf32> -> vector<1x256xf32>
    %222 = arith.addf %217, %221 : vector<1x256xf32>
    %223 = vector.extract_strided_slice %203 {offsets = [4, 0], sizes = [1, 64], strides = [1, 1]} : vector<25x64xf32> to vector<1x64xf32>
    %c4_230 = arith.constant 4 : index
    %c0_231 = arith.constant 0 : index
    %c0_232 = arith.constant 0 : index
    %224 = vector.load %arg10[%c4_230, %c0_231, %c0_232] : memref<25x64x256xf32, #tpu.memory_space<vmem>>, vector<1x64x256xf32>
    %225 = vector.shape_cast %224 : vector<1x64x256xf32> to vector<64x256xf32>
    %cst_233 = arith.constant dense<0.000000e+00> : vector<1x256xf32>
    %226 = tpu.matmul %223, %225, %cst_233 {dimension_numbers = #tpu.dot_dimension_numbers<[1], [0], [0], [1], [0, 0, 1, 1], [], []>} : vector<1x64xf32>, vector<64x256xf32>, vector<1x256xf32> -> vector<1x256xf32>
    %227 = arith.addf %222, %226 : vector<1x256xf32>
    %228 = vector.extract_strided_slice %203 {offsets = [5, 0], sizes = [1, 64], strides = [1, 1]} : vector<25x64xf32> to vector<1x64xf32>
    %c5_234 = arith.constant 5 : index
    %c0_235 = arith.constant 0 : index
    %c0_236 = arith.constant 0 : index
    %229 = vector.load %arg10[%c5_234, %c0_235, %c0_236] : memref<25x64x256xf32, #tpu.memory_space<vmem>>, vector<1x64x256xf32>
    %230 = vector.shape_cast %229 : vector<1x64x256xf32> to vector<64x256xf32>
    %cst_237 = arith.constant dense<0.000000e+00> : vector<1x256xf32>
    %231 = tpu.matmul %228, %230, %cst_237 {dimension_numbers = #tpu.dot_dimension_numbers<[1], [0], [0], [1], [0, 0, 1, 1], [], []>} : vector<1x64xf32>, vector<64x256xf32>, vector<1x256xf32> -> vector<1x256xf32>
    %232 = arith.addf %227, %231 : vector<1x256xf32>
    %233 = vector.extract_strided_slice %203 {offsets = [6, 0], sizes = [1, 64], strides = [1, 1]} : vector<25x64xf32> to vector<1x64xf32>
    %c6_238 = arith.constant 6 : index
    %c0_239 = arith.constant 0 : index
    %c0_240 = arith.constant 0 : index
    %234 = vector.load %arg10[%c6_238, %c0_239, %c0_240] : memref<25x64x256xf32, #tpu.memory_space<vmem>>, vector<1x64x256xf32>
    %235 = vector.shape_cast %234 : vector<1x64x256xf32> to vector<64x256xf32>
    %cst_241 = arith.constant dense<0.000000e+00> : vector<1x256xf32>
    %236 = tpu.matmul %233, %235, %cst_241 {dimension_numbers = #tpu.dot_dimension_numbers<[1], [0], [0], [1], [0, 0, 1, 1], [], []>} : vector<1x64xf32>, vector<64x256xf32>, vector<1x256xf32> -> vector<1x256xf32>
    %237 = arith.addf %232, %236 : vector<1x256xf32>
    %238 = vector.extract_strided_slice %203 {offsets = [7, 0], sizes = [1, 64], strides = [1, 1]} : vector<25x64xf32> to vector<1x64xf32>
    %c7_242 = arith.constant 7 : index
    %c0_243 = arith.constant 0 : index
    %c0_244 = arith.constant 0 : index
    %239 = vector.load %arg10[%c7_242, %c0_243, %c0_244] : memref<25x64x256xf32, #tpu.memory_space<vmem>>, vector<1x64x256xf32>
    %240 = vector.shape_cast %239 : vector<1x64x256xf32> to vector<64x256xf32>
    %cst_245 = arith.constant dense<0.000000e+00> : vector<1x256xf32>
    %241 = tpu.matmul %238, %240, %cst_245 {dimension_numbers = #tpu.dot_dimension_numbers<[1], [0], [0], [1], [0, 0, 1, 1], [], []>} : vector<1x64xf32>, vector<64x256xf32>, vector<1x256xf32> -> vector<1x256xf32>
    %242 = arith.addf %237, %241 : vector<1x256xf32>
    %243 = vector.extract_strided_slice %203 {offsets = [8, 0], sizes = [1, 64], strides = [1, 1]} : vector<25x64xf32> to vector<1x64xf32>
    %c8_246 = arith.constant 8 : index
    %c0_247 = arith.constant 0 : index
    %c0_248 = arith.constant 0 : index
    %244 = vector.load %arg10[%c8_246, %c0_247, %c0_248] : memref<25x64x256xf32, #tpu.memory_space<vmem>>, vector<1x64x256xf32>
    %245 = vector.shape_cast %244 : vector<1x64x256xf32> to vector<64x256xf32>
    %cst_249 = arith.constant dense<0.000000e+00> : vector<1x256xf32>
    %246 = tpu.matmul %243, %245, %cst_249 {dimension_numbers = #tpu.dot_dimension_numbers<[1], [0], [0], [1], [0, 0, 1, 1], [], []>} : vector<1x64xf32>, vector<64x256xf32>, vector<1x256xf32> -> vector<1x256xf32>
    %247 = arith.addf %242, %246 : vector<1x256xf32>
    %248 = vector.extract_strided_slice %203 {offsets = [9, 0], sizes = [1, 64], strides = [1, 1]} : vector<25x64xf32> to vector<1x64xf32>
    %c9_250 = arith.constant 9 : index
    %c0_251 = arith.constant 0 : index
    %c0_252 = arith.constant 0 : index
    %249 = vector.load %arg10[%c9_250, %c0_251, %c0_252] : memref<25x64x256xf32, #tpu.memory_space<vmem>>, vector<1x64x256xf32>
    %250 = vector.shape_cast %249 : vector<1x64x256xf32> to vector<64x256xf32>
    %cst_253 = arith.constant dense<0.000000e+00> : vector<1x256xf32>
    %251 = tpu.matmul %248, %250, %cst_253 {dimension_numbers = #tpu.dot_dimension_numbers<[1], [0], [0], [1], [0, 0, 1, 1], [], []>} : vector<1x64xf32>, vector<64x256xf32>, vector<1x256xf32> -> vector<1x256xf32>
    %252 = arith.addf %247, %251 : vector<1x256xf32>
    %253 = vector.extract_strided_slice %203 {offsets = [10, 0], sizes = [1, 64], strides = [1, 1]} : vector<25x64xf32> to vector<1x64xf32>
    %c10_254 = arith.constant 10 : index
    %c0_255 = arith.constant 0 : index
    %c0_256 = arith.constant 0 : index
    %254 = vector.load %arg10[%c10_254, %c0_255, %c0_256] : memref<25x64x256xf32, #tpu.memory_space<vmem>>, vector<1x64x256xf32>
    %255 = vector.shape_cast %254 : vector<1x64x256xf32> to vector<64x256xf32>
    %cst_257 = arith.constant dense<0.000000e+00> : vector<1x256xf32>
    %256 = tpu.matmul %253, %255, %cst_257 {dimension_numbers = #tpu.dot_dimension_numbers<[1], [0], [0], [1], [0, 0, 1, 1], [], []>} : vector<1x64xf32>, vector<64x256xf32>, vector<1x256xf32> -> vector<1x256xf32>
    %257 = arith.addf %252, %256 : vector<1x256xf32>
    %258 = vector.extract_strided_slice %203 {offsets = [11, 0], sizes = [1, 64], strides = [1, 1]} : vector<25x64xf32> to vector<1x64xf32>
    %c11_258 = arith.constant 11 : index
    %c0_259 = arith.constant 0 : index
    %c0_260 = arith.constant 0 : index
    %259 = vector.load %arg10[%c11_258, %c0_259, %c0_260] : memref<25x64x256xf32, #tpu.memory_space<vmem>>, vector<1x64x256xf32>
    %260 = vector.shape_cast %259 : vector<1x64x256xf32> to vector<64x256xf32>
    %cst_261 = arith.constant dense<0.000000e+00> : vector<1x256xf32>
    %261 = tpu.matmul %258, %260, %cst_261 {dimension_numbers = #tpu.dot_dimension_numbers<[1], [0], [0], [1], [0, 0, 1, 1], [], []>} : vector<1x64xf32>, vector<64x256xf32>, vector<1x256xf32> -> vector<1x256xf32>
    %262 = arith.addf %257, %261 : vector<1x256xf32>
    %263 = vector.extract_strided_slice %203 {offsets = [12, 0], sizes = [1, 64], strides = [1, 1]} : vector<25x64xf32> to vector<1x64xf32>
    %c12_262 = arith.constant 12 : index
    %c0_263 = arith.constant 0 : index
    %c0_264 = arith.constant 0 : index
    %264 = vector.load %arg10[%c12_262, %c0_263, %c0_264] : memref<25x64x256xf32, #tpu.memory_space<vmem>>, vector<1x64x256xf32>
    %265 = vector.shape_cast %264 : vector<1x64x256xf32> to vector<64x256xf32>
    %cst_265 = arith.constant dense<0.000000e+00> : vector<1x256xf32>
    %266 = tpu.matmul %263, %265, %cst_265 {dimension_numbers = #tpu.dot_dimension_numbers<[1], [0], [0], [1], [0, 0, 1, 1], [], []>} : vector<1x64xf32>, vector<64x256xf32>, vector<1x256xf32> -> vector<1x256xf32>
    %267 = arith.addf %262, %266 : vector<1x256xf32>
    %268 = vector.extract_strided_slice %203 {offsets = [13, 0], sizes = [1, 64], strides = [1, 1]} : vector<25x64xf32> to vector<1x64xf32>
    %c13_266 = arith.constant 13 : index
    %c0_267 = arith.constant 0 : index
    %c0_268 = arith.constant 0 : index
    %269 = vector.load %arg10[%c13_266, %c0_267, %c0_268] : memref<25x64x256xf32, #tpu.memory_space<vmem>>, vector<1x64x256xf32>
    %270 = vector.shape_cast %269 : vector<1x64x256xf32> to vector<64x256xf32>
    %cst_269 = arith.constant dense<0.000000e+00> : vector<1x256xf32>
    %271 = tpu.matmul %268, %270, %cst_269 {dimension_numbers = #tpu.dot_dimension_numbers<[1], [0], [0], [1], [0, 0, 1, 1], [], []>} : vector<1x64xf32>, vector<64x256xf32>, vector<1x256xf32> -> vector<1x256xf32>
    %272 = arith.addf %267, %271 : vector<1x256xf32>
    %273 = vector.extract_strided_slice %203 {offsets = [14, 0], sizes = [1, 64], strides = [1, 1]} : vector<25x64xf32> to vector<1x64xf32>
    %c14_270 = arith.constant 14 : index
    %c0_271 = arith.constant 0 : index
    %c0_272 = arith.constant 0 : index
    %274 = vector.load %arg10[%c14_270, %c0_271, %c0_272] : memref<25x64x256xf32, #tpu.memory_space<vmem>>, vector<1x64x256xf32>
    %275 = vector.shape_cast %274 : vector<1x64x256xf32> to vector<64x256xf32>
    %cst_273 = arith.constant dense<0.000000e+00> : vector<1x256xf32>
    %276 = tpu.matmul %273, %275, %cst_273 {dimension_numbers = #tpu.dot_dimension_numbers<[1], [0], [0], [1], [0, 0, 1, 1], [], []>} : vector<1x64xf32>, vector<64x256xf32>, vector<1x256xf32> -> vector<1x256xf32>
    %277 = arith.addf %272, %276 : vector<1x256xf32>
    %278 = vector.extract_strided_slice %203 {offsets = [15, 0], sizes = [1, 64], strides = [1, 1]} : vector<25x64xf32> to vector<1x64xf32>
    %c15_274 = arith.constant 15 : index
    %c0_275 = arith.constant 0 : index
    %c0_276 = arith.constant 0 : index
    %279 = vector.load %arg10[%c15_274, %c0_275, %c0_276] : memref<25x64x256xf32, #tpu.memory_space<vmem>>, vector<1x64x256xf32>
    %280 = vector.shape_cast %279 : vector<1x64x256xf32> to vector<64x256xf32>
    %cst_277 = arith.constant dense<0.000000e+00> : vector<1x256xf32>
    %281 = tpu.matmul %278, %280, %cst_277 {dimension_numbers = #tpu.dot_dimension_numbers<[1], [0], [0], [1], [0, 0, 1, 1], [], []>} : vector<1x64xf32>, vector<64x256xf32>, vector<1x256xf32> -> vector<1x256xf32>
    %282 = arith.addf %277, %281 : vector<1x256xf32>
    %283 = vector.extract_strided_slice %203 {offsets = [16, 0], sizes = [1, 64], strides = [1, 1]} : vector<25x64xf32> to vector<1x64xf32>
    %c16 = arith.constant 16 : index
    %c0_278 = arith.constant 0 : index
    %c0_279 = arith.constant 0 : index
    %284 = vector.load %arg10[%c16, %c0_278, %c0_279] : memref<25x64x256xf32, #tpu.memory_space<vmem>>, vector<1x64x256xf32>
    %285 = vector.shape_cast %284 : vector<1x64x256xf32> to vector<64x256xf32>
    %cst_280 = arith.constant dense<0.000000e+00> : vector<1x256xf32>
    %286 = tpu.matmul %283, %285, %cst_280 {dimension_numbers = #tpu.dot_dimension_numbers<[1], [0], [0], [1], [0, 0, 1, 1], [], []>} : vector<1x64xf32>, vector<64x256xf32>, vector<1x256xf32> -> vector<1x256xf32>
    %287 = arith.addf %282, %286 : vector<1x256xf32>
    %288 = vector.extract_strided_slice %203 {offsets = [17, 0], sizes = [1, 64], strides = [1, 1]} : vector<25x64xf32> to vector<1x64xf32>
    %c17 = arith.constant 17 : index
    %c0_281 = arith.constant 0 : index
    %c0_282 = arith.constant 0 : index
    %289 = vector.load %arg10[%c17, %c0_281, %c0_282] : memref<25x64x256xf32, #tpu.memory_space<vmem>>, vector<1x64x256xf32>
    %290 = vector.shape_cast %289 : vector<1x64x256xf32> to vector<64x256xf32>
    %cst_283 = arith.constant dense<0.000000e+00> : vector<1x256xf32>
    %291 = tpu.matmul %288, %290, %cst_283 {dimension_numbers = #tpu.dot_dimension_numbers<[1], [0], [0], [1], [0, 0, 1, 1], [], []>} : vector<1x64xf32>, vector<64x256xf32>, vector<1x256xf32> -> vector<1x256xf32>
    %292 = arith.addf %287, %291 : vector<1x256xf32>
    %293 = vector.extract_strided_slice %203 {offsets = [18, 0], sizes = [1, 64], strides = [1, 1]} : vector<25x64xf32> to vector<1x64xf32>
    %c18 = arith.constant 18 : index
    %c0_284 = arith.constant 0 : index
    %c0_285 = arith.constant 0 : index
    %294 = vector.load %arg10[%c18, %c0_284, %c0_285] : memref<25x64x256xf32, #tpu.memory_space<vmem>>, vector<1x64x256xf32>
    %295 = vector.shape_cast %294 : vector<1x64x256xf32> to vector<64x256xf32>
    %cst_286 = arith.constant dense<0.000000e+00> : vector<1x256xf32>
    %296 = tpu.matmul %293, %295, %cst_286 {dimension_numbers = #tpu.dot_dimension_numbers<[1], [0], [0], [1], [0, 0, 1, 1], [], []>} : vector<1x64xf32>, vector<64x256xf32>, vector<1x256xf32> -> vector<1x256xf32>
    %297 = arith.addf %292, %296 : vector<1x256xf32>
    %298 = vector.extract_strided_slice %203 {offsets = [19, 0], sizes = [1, 64], strides = [1, 1]} : vector<25x64xf32> to vector<1x64xf32>
    %c19 = arith.constant 19 : index
    %c0_287 = arith.constant 0 : index
    %c0_288 = arith.constant 0 : index
    %299 = vector.load %arg10[%c19, %c0_287, %c0_288] : memref<25x64x256xf32, #tpu.memory_space<vmem>>, vector<1x64x256xf32>
    %300 = vector.shape_cast %299 : vector<1x64x256xf32> to vector<64x256xf32>
    %cst_289 = arith.constant dense<0.000000e+00> : vector<1x256xf32>
    %301 = tpu.matmul %298, %300, %cst_289 {dimension_numbers = #tpu.dot_dimension_numbers<[1], [0], [0], [1], [0, 0, 1, 1], [], []>} : vector<1x64xf32>, vector<64x256xf32>, vector<1x256xf32> -> vector<1x256xf32>
    %302 = arith.addf %297, %301 : vector<1x256xf32>
    %303 = vector.extract_strided_slice %203 {offsets = [20, 0], sizes = [1, 64], strides = [1, 1]} : vector<25x64xf32> to vector<1x64xf32>
    %c20 = arith.constant 20 : index
    %c0_290 = arith.constant 0 : index
    %c0_291 = arith.constant 0 : index
    %304 = vector.load %arg10[%c20, %c0_290, %c0_291] : memref<25x64x256xf32, #tpu.memory_space<vmem>>, vector<1x64x256xf32>
    %305 = vector.shape_cast %304 : vector<1x64x256xf32> to vector<64x256xf32>
    %cst_292 = arith.constant dense<0.000000e+00> : vector<1x256xf32>
    %306 = tpu.matmul %303, %305, %cst_292 {dimension_numbers = #tpu.dot_dimension_numbers<[1], [0], [0], [1], [0, 0, 1, 1], [], []>} : vector<1x64xf32>, vector<64x256xf32>, vector<1x256xf32> -> vector<1x256xf32>
    %307 = arith.addf %302, %306 : vector<1x256xf32>
    %308 = vector.extract_strided_slice %203 {offsets = [21, 0], sizes = [1, 64], strides = [1, 1]} : vector<25x64xf32> to vector<1x64xf32>
    %c21 = arith.constant 21 : index
    %c0_293 = arith.constant 0 : index
    %c0_294 = arith.constant 0 : index
    %309 = vector.load %arg10[%c21, %c0_293, %c0_294] : memref<25x64x256xf32, #tpu.memory_space<vmem>>, vector<1x64x256xf32>
    %310 = vector.shape_cast %309 : vector<1x64x256xf32> to vector<64x256xf32>
    %cst_295 = arith.constant dense<0.000000e+00> : vector<1x256xf32>
    %311 = tpu.matmul %308, %310, %cst_295 {dimension_numbers = #tpu.dot_dimension_numbers<[1], [0], [0], [1], [0, 0, 1, 1], [], []>} : vector<1x64xf32>, vector<64x256xf32>, vector<1x256xf32> -> vector<1x256xf32>
    %312 = arith.addf %307, %311 : vector<1x256xf32>
    %313 = vector.extract_strided_slice %203 {offsets = [22, 0], sizes = [1, 64], strides = [1, 1]} : vector<25x64xf32> to vector<1x64xf32>
    %c22 = arith.constant 22 : index
    %c0_296 = arith.constant 0 : index
    %c0_297 = arith.constant 0 : index
    %314 = vector.load %arg10[%c22, %c0_296, %c0_297] : memref<25x64x256xf32, #tpu.memory_space<vmem>>, vector<1x64x256xf32>
    %315 = vector.shape_cast %314 : vector<1x64x256xf32> to vector<64x256xf32>
    %cst_298 = arith.constant dense<0.000000e+00> : vector<1x256xf32>
    %316 = tpu.matmul %313, %315, %cst_298 {dimension_numbers = #tpu.dot_dimension_numbers<[1], [0], [0], [1], [0, 0, 1, 1], [], []>} : vector<1x64xf32>, vector<64x256xf32>, vector<1x256xf32> -> vector<1x256xf32>
    %317 = arith.addf %312, %316 : vector<1x256xf32>
    %318 = vector.extract_strided_slice %203 {offsets = [23, 0], sizes = [1, 64], strides = [1, 1]} : vector<25x64xf32> to vector<1x64xf32>
    %c23 = arith.constant 23 : index
    %c0_299 = arith.constant 0 : index
    %c0_300 = arith.constant 0 : index
    %319 = vector.load %arg10[%c23, %c0_299, %c0_300] : memref<25x64x256xf32, #tpu.memory_space<vmem>>, vector<1x64x256xf32>
    %320 = vector.shape_cast %319 : vector<1x64x256xf32> to vector<64x256xf32>
    %cst_301 = arith.constant dense<0.000000e+00> : vector<1x256xf32>
    %321 = tpu.matmul %318, %320, %cst_301 {dimension_numbers = #tpu.dot_dimension_numbers<[1], [0], [0], [1], [0, 0, 1, 1], [], []>} : vector<1x64xf32>, vector<64x256xf32>, vector<1x256xf32> -> vector<1x256xf32>
    %322 = arith.addf %317, %321 : vector<1x256xf32>
    %323 = vector.extract_strided_slice %203 {offsets = [24, 0], sizes = [1, 64], strides = [1, 1]} : vector<25x64xf32> to vector<1x64xf32>
    %c24 = arith.constant 24 : index
    %c0_302 = arith.constant 0 : index
    %c0_303 = arith.constant 0 : index
    %324 = vector.load %arg10[%c24, %c0_302, %c0_303] : memref<25x64x256xf32, #tpu.memory_space<vmem>>, vector<1x64x256xf32>
    %325 = vector.shape_cast %324 : vector<1x64x256xf32> to vector<64x256xf32>
    %cst_304 = arith.constant dense<0.000000e+00> : vector<1x256xf32>
    %326 = tpu.matmul %323, %325, %cst_304 {dimension_numbers = #tpu.dot_dimension_numbers<[1], [0], [0], [1], [0, 0, 1, 1], [], []>} : vector<1x64xf32>, vector<64x256xf32>, vector<1x256xf32> -> vector<1x256xf32>
    %327 = arith.addf %322, %326 : vector<1x256xf32>
    %c0_305 = arith.constant 0 : index
    %c0_306 = arith.constant 0 : index
    %328 = vector.load %arg11[%c0_305, %c0_306] : memref<1x256xf32, #tpu.memory_space<vmem>>, vector<1x256xf32>
    %329 = arith.addf %327, %328 : vector<1x256xf32>
    %cst_307 = arith.constant 0.000000e+00 : f32
    %330 = vector.broadcast %cst_307 : f32 to vector<1x256xf32>
    %331 = arith.maximumf %329, %330 : vector<1x256xf32>
    %c0_308 = arith.constant 0 : index
    %c0_309 = arith.constant 0 : index
    %332 = vector.load %arg12[%c0_308, %c0_309] : memref<256x2xf32, #tpu.memory_space<vmem>>, vector<256x2xf32>
    %cst_310 = arith.constant dense<0.000000e+00> : vector<1x2xf32>
    %333 = tpu.matmul %331, %332, %cst_310 {dimension_numbers = #tpu.dot_dimension_numbers<[1], [0], [0], [1], [0, 0, 1, 1], [], []>} : vector<1x256xf32>, vector<256x2xf32>, vector<1x2xf32> -> vector<1x2xf32>
    %c0_311 = arith.constant 0 : index
    %c0_312 = arith.constant 0 : index
    %334 = vector.load %arg13[%c0_311, %c0_312] : memref<1x2xf32, #tpu.memory_space<vmem>>, vector<1x2xf32>
    %335 = arith.addf %333, %334 : vector<1x2xf32>
    %c0_313 = arith.constant 0 : index
    %c0_314 = arith.constant 0 : index
    %c0_315 = arith.constant 0 : index
    %336 = vector.load %arg14[%c0_313, %c0_314, %c0_315] : memref<1x1x2xf32, #tpu.memory_space<vmem>>, vector<1x1x2xf32>
    %337 = vector.shape_cast %336 : vector<1x1x2xf32> to vector<1x2xf32>
    %338 = vector.shape_cast %335 : vector<1x2xf32> to vector<1x1x2xf32>
    tpu.vector_store %arg14[%c0_313, %c0_314, %c0_315], %338 {strides = array<i32>} : memref<1x1x2xf32, #tpu.memory_space<vmem>>, vector<1x1x2xf32>,
    return
  }
  func.func @transform_0(%arg0: i32) -> (i32, i32, i32, i32) {
    %c0_i32 = arith.constant 0 : i32
    %c0_i32_0 = arith.constant 0 : i32
    %c0_i32_1 = arith.constant 0 : i32
    %c0_i32_2 = arith.constant 0 : i32
    return %arg0, %c0_i32, %c0_i32_0, %c0_i32_1 : i32, i32, i32, i32
  }
  func.func @transform_1(%arg0: i32) -> (i32, i32) {
    %c0_i32 = arith.constant 0 : i32
    %c0_i32_0 = arith.constant 0 : i32
    %c0_i32_1 = arith.constant 0 : i32
    return %c0_i32, %c0_i32_0 : i32, i32
  }
  func.func @transform_2(%arg0: i32) -> (i32, i32) {
    %c0_i32 = arith.constant 0 : i32
    %c0_i32_0 = arith.constant 0 : i32
    %c0_i32_1 = arith.constant 0 : i32
    return %c0_i32, %c0_i32_0 : i32, i32
  }
  func.func @transform_3(%arg0: i32) -> (i32, i32, i32) {
    %c0_i32 = arith.constant 0 : i32
    %c0_i32_0 = arith.constant 0 : i32
    %c0_i32_1 = arith.constant 0 : i32
    %c0_i32_2 = arith.constant 0 : i32
    return %c0_i32, %c0_i32_0, %c0_i32_1 : i32, i32, i32
  }
  func.func @transform_4(%arg0: i32) -> (i32, i32, i32) {
    %c0_i32 = arith.constant 0 : i32
    %c0_i32_0 = arith.constant 0 : i32
    %c0_i32_1 = arith.constant 0 : i32
    %c0_i32_2 = arith.constant 0 : i32
    return %c0_i32, %c0_i32_0, %c0_i32_1 : i32, i32, i32
  }
  func.func @transform_5(%arg0: i32) -> (i32, i32) {
    %c0_i32 = arith.constant 0 : i32
    %c0_i32_0 = arith.constant 0 : i32
    %c0_i32_1 = arith.constant 0 : i32
    return %c0_i32, %c0_i32_0 : i32, i32
  }
  func.func @transform_6(%arg0: i32) -> (i32, i32, i32) {
    %c0_i32 = arith.constant 0 : i32
    %c0_i32_0 = arith.constant 0 : i32
    %c0_i32_1 = arith.constant 0 : i32
    %c0_i32_2 = arith.constant 0 : i32
    return %c0_i32, %c0_i32_0, %c0_i32_1 : i32, i32, i32
  }
  func.func @transform_7(%arg0: i32) -> (i32, i32, i32) {
    %c0_i32 = arith.constant 0 : i32
    %c0_i32_0 = arith.constant 0 : i32
    %c0_i32_1 = arith.constant 0 : i32
    %c0_i32_2 = arith.constant 0 : i32
    return %c0_i32, %c0_i32_0, %c0_i32_1 : i32, i32, i32
  }
  func.func @transform_8(%arg0: i32) -> (i32, i32) {
    %c0_i32 = arith.constant 0 : i32
    %c0_i32_0 = arith.constant 0 : i32
    %c0_i32_1 = arith.constant 0 : i32
    return %c0_i32, %c0_i32_0 : i32, i32
  }
  func.func @transform_9(%arg0: i32) -> (i32, i32, i32) {
    %c0_i32 = arith.constant 0 : i32
    %c0_i32_0 = arith.constant 0 : i32
    %c0_i32_1 = arith.constant 0 : i32
    %c0_i32_2 = arith.constant 0 : i32
    return %c0_i32, %c0_i32_0, %c0_i32_1 : i32, i32, i32
  }
  func.func @transform_10(%arg0: i32) -> (i32, i32) {
    %c0_i32 = arith.constant 0 : i32
    %c0_i32_0 = arith.constant 0 : i32
    %c0_i32_1 = arith.constant 0 : i32
    return %c0_i32, %c0_i32_0 : i32, i32
  }
  func.func @transform_11(%arg0: i32) -> (i32, i32) {
    %c0_i32 = arith.constant 0 : i32
    %c0_i32_0 = arith.constant 0 : i32
    %c0_i32_1 = arith.constant 0 : i32
    return %c0_i32, %c0_i32_0 : i32, i32
  }
  func.func @transform_12(%arg0: i32) -> (i32, i32) {
    %c0_i32 = arith.constant 0 : i32
    %c0_i32_0 = arith.constant 0 : i32
    %c0_i32_1 = arith.constant 0 : i32
    return %c0_i32, %c0_i32_0 : i32, i32
  }
  func.func @transform_13(%arg0: i32) -> (i32, i32, i32) {
    %c0_i32 = arith.constant 0 : i32
    %c0_i32_0 = arith.constant 0 : i32
    %c0_i32_1 = arith.constant 0 : i32
    return %arg0, %c0_i32, %c0_i32_0 : i32, i32, i32
  }
}

</mosaic_0001>

<llo_original>
// kernel: deep_network_forward.1
$region0: #{deep_network_forward.1}
  #allocation0 [shape = 'u32[]', space=smem, size = 0x4, offset = 0x4, fixed_abs, tag = 'smem constant byte address 0x4 - core index']
  #allocation1 [shape = 'u32[144,128]{1,0:T(1,128)}', space=vmem, size = 0x12000, scoped, tag = 'internal scratch']
  %s0 = inlined_call_operand.vmem [shape: f32[2,4,100,256], index: 0, kind: input, shape index: {}]
  %s1 = inlined_call_operand.vmem [shape: f32[256,32], index: 1, kind: input, shape index: {}]
  %s2 = inlined_call_operand.vmem [shape: f32[1,32], index: 2, kind: input, shape index: {}]
  %s3 = inlined_call_operand.vmem [shape: f32[16,25,100], index: 3, kind: input, shape index: {}]
  %s4 = inlined_call_operand.vmem [shape: f32[16,32,64], index: 4, kind: input, shape index: {}]
  %s5 = inlined_call_operand.vmem [shape: f32[1,64], index: 5, kind: input, shape index: {}]
  %s6 = inlined_call_operand.vmem [shape: f32[9,25,25], index: 6, kind: input, shape index: {}]
  %s7 = inlined_call_operand.vmem [shape: f32[9,64,64], index: 7, kind: input, shape index: {}]
  %s8 = inlined_call_operand.vmem [shape: f32[1,64], index: 8, kind: input, shape index: {}]
  %s9 = inlined_call_operand.vmem [shape: f32[25,64,256], index: 9, kind: input, shape index: {}]
  %s10 = inlined_call_operand.vmem [shape: f32[1,256], index: 10, kind: input, shape index: {}]
  %s11 = inlined_call_operand.vmem [shape: f32[256,2], index: 11, kind: input, shape index: {}]
  %s12 = inlined_call_operand.vmem [shape: f32[1,2], index: 12, kind: input, shape index: {}]
  %s13 = inlined_call_operand.hbm [shape: f32[2,1,2], index: 13, kind: output, shape index: {}]
  %s14 = sld [smem:[#allocation0]]
  $region85: #{deep_network_forward.1} parent=0
    _
  %s16 = ssub.s32 1, %s14
  %s17 = scalar_select 0, %s16, %s14
  $region1: #{deep_network_forward.1} parent=0
    #allocation2 [shape = 'u8[1024]{0}', space=vmem, size = 0x400, scoped, tag = 'output window, operand 0']
    #allocation3 [shape = 's32[2]{0}', space=sflag, size = 0x8, scoped, tag = 'scoped memory for deep_network_forward.1']
    %18 = vsyncpa [#allocation3], 0
    %s19 = scalar_lea.sflag [#allocation3], 1
    %20 = vsyncpa %s19, 0
    loop: start=0, step=1, limit=4
    $region2: #{deep_network_forward.1} parent=1 // loop_pre_header
      _
    $region3: #{deep_network_forward.1} parent=1 // loop_header
      %s22 = sphi 0, %s26
      %p23 = scmp.ge.s32.totalorder %s22, 4
      %s32 = sphi 0, %s34
      %s35 = sphi 0, %s32
      %s36 = sphi 0, %s35
      %s52 = sphi 0, %s36
      %s56 = sphi 0, %s56
      %s58 = sphi 0, %s56
      %s59 = sphi 0, %s58
      %s73 = sphi 0, %s59
      %s77 = sphi 0, %s77
      %s79 = sphi 0, %s77
      %s80 = sphi 0, %s79
      %s94 = sphi 0, %s80
      %s98 = sphi 0, %s98
      %s100 = sphi 0, %s98
      %s101 = sphi 0, %s100
      %s115 = sphi 0, %s101
      %s119 = sphi 0, %s119
      %s121 = sphi 0, %s119
      %s122 = sphi 0, %s121
      %s136 = sphi 0, %s122
      %s140 = sphi 0, %s140
      %s142 = sphi 0, %s140
      %s143 = sphi 0, %s142
      %s157 = sphi 0, %s143
      %s161 = sphi 0, %s161
      %s163 = sphi 0, %s161
      %s164 = sphi 0, %s163
      %s178 = sphi 0, %s164
      %s182 = sphi 0, %s182
      %s184 = sphi 0, %s182
      %s185 = sphi 0, %s184
      %s199 = sphi 0, %s185
      %s203 = sphi 0, %s203
      %s205 = sphi 0, %s203
      %s206 = sphi 0, %s205
      %s220 = sphi 0, %s206
      %s224 = sphi 0, %s224
      %s226 = sphi 0, %s224
      %s227 = sphi 0, %s226
      %s241 = sphi 0, %s227
      %s245 = sphi 0, %s245
      %s247 = sphi 0, %s245
      %s248 = sphi 0, %s247
      %s262 = sphi 0, %s248
      %s266 = sphi 0, %s266
      %s268 = sphi 0, %s266
      %s269 = sphi 0, %s268
      %s283 = sphi 0, %s269
      %s287 = sphi 0, %s287
      %s289 = sphi 0, %s287
      %s290 = sphi 0, %s289
      %s304 = sphi 0, %s290
      %s310 = sphi 0, %s312
      %s313 = sphi 0, %s310
      %s314 = sphi 0, %s313
      %s330 = sphi 0, %s314
    $region4: #{deep_network_forward.1} parent=1 // loop_header_branch
      %25 = sbr.rel (%p23) target = $region8
    $region5: #{deep_network_forward.1} parent=1 // loop_body
      %s27 = ssub.s32 %s22, 1
      %s28 = ssub.s32 %s22, 2
      %s29 = sadd.s32 %s22, 1
      %s30 = ssub.s32 %s22, %s29
      %p31 = scmp.eq.s32.totalorder %s30, 0
      %s33 = sadd.s32 %s32, 1
      %s34 = scalar_select %p31, %s32, %s33
      %p37 = pneg %p31
      %p38 = scmp.eq.s32.totalorder %s22, 1
      %p39 = por %p37, %p38
      %p40 = scmp.ne.s32.totalorder %s32, %s35
      %p41 = scmp.eq.s32.totalorder %s22, 0
      %p42 = por %p40, %p41
      %p43 = scmp.ne.s32.totalorder %s32, %s35
      %p44 = scmp.eq.s32.totalorder %s27, 1
      %p45 = por %p43, %p44
      %p46 = scmp.ne.s32.totalorder %s35, %s36
      %p47 = scmp.eq.s32.totalorder %s27, 0
      %p48 = por %p46, %p47
      %p49 = scmp.ne.s32.totalorder %s35, %s36
      %p50 = scmp.eq.s32.totalorder %s28, 1
      %p51 = por %p49, %p50
      %p53 = scmp.ne.s32.totalorder %s36, %s52
      %p54 = scmp.eq.s32.totalorder %s28, 0
      %p55 = por %p53, %p54
      %s57 = sadd.s32 %s56, 1
      %p60 = scmp.eq.s32.totalorder %s22, 1
      %p61 = scmp.ne.s32.totalorder %s56, %s58
      %p62 = scmp.eq.s32.totalorder %s22, 0
      %p63 = por %p61, %p62
      %p64 = scmp.ne.s32.totalorder %s56, %s58
      %p65 = scmp.eq.s32.totalorder %s27, 1
      %p66 = por %p64, %p65
      %p67 = scmp.ne.s32.totalorder %s58, %s59
      %p68 = scmp.eq.s32.totalorder %s27, 0
      %p69 = por %p67, %p68
      %p70 = scmp.ne.s32.totalorder %s58, %s59
      %p71 = scmp.eq.s32.totalorder %s28, 1
      %p72 = por %p70, %p71
      %p74 = scmp.ne.s32.totalorder %s59, %s73
      %p75 = scmp.eq.s32.totalorder %s28, 0
      %p76 = por %p74, %p75
      %s78 = sadd.s32 %s77, 1
      %p81 = scmp.eq.s32.totalorder %s22, 1
      %p82 = scmp.ne.s32.totalorder %s77, %s79
      %p83 = scmp.eq.s32.totalorder %s22, 0
      %p84 = por %p82, %p83
      %p85 = scmp.ne.s32.totalorder %s77, %s79
      %p86 = scmp.eq.s32.totalorder %s27, 1
      %p87 = por %p85, %p86
      %p88 = scmp.ne.s32.totalorder %s79, %s80
      %p89 = scmp.eq.s32.totalorder %s27, 0
      %p90 = por %p88, %p89
      %p91 = scmp.ne.s32.totalorder %s79, %s80
      %p92 = scmp.eq.s32.totalorder %s28, 1
      %p93 = por %p91, %p92
      %p95 = scmp.ne.s32.totalorder %s80, %s94
      %p96 = scmp.eq.s32.totalorder %s28, 0
      %p97 = por %p95, %p96
      %s99 = sadd.s32 %s98, 1
      %p102 = scmp.eq.s32.totalorder %s22, 1
      %p103 = scmp.ne.s32.totalorder %s98, %s100
      %p104 = scmp.eq.s32.totalorder %s22, 0
      %p105 = por %p103, %p104
      %p106 = scmp.ne.s32.totalorder %s98, %s100
      %p107 = scmp.eq.s32.totalorder %s27, 1
      %p108 = por %p106, %p107
      %p109 = scmp.ne.s32.totalorder %s100, %s101
      %p110 = scmp.eq.s32.totalorder %s27, 0
      %p111 = por %p109, %p110
      %p112 = scmp.ne.s32.totalorder %s100, %s101
      %p113 = scmp.eq.s32.totalorder %s28, 1
      %p114 = por %p112, %p113
      %p116 = scmp.ne.s32.totalorder %s101, %s115
      %p117 = scmp.eq.s32.totalorder %s28, 0
      %p118 = por %p116, %p117
      %s120 = sadd.s32 %s119, 1
      %p123 = scmp.eq.s32.totalorder %s22, 1
      %p124 = scmp.ne.s32.totalorder %s119, %s121
      %p125 = scmp.eq.s32.totalorder %s22, 0
      %p126 = por %p124, %p125
      %p127 = scmp.ne.s32.totalorder %s119, %s121
      %p128 = scmp.eq.s32.totalorder %s27, 1
      %p129 = por %p127, %p128
      %p130 = scmp.ne.s32.totalorder %s121, %s122
      %p131 = scmp.eq.s32.totalorder %s27, 0
      %p132 = por %p130, %p131
      %p133 = scmp.ne.s32.totalorder %s121, %s122
      %p134 = scmp.eq.s32.totalorder %s28, 1
      %p135 = por %p133, %p134
      %p137 = scmp.ne.s32.totalorder %s122, %s136
      %p138 = scmp.eq.s32.totalorder %s28, 0
      %p139 = por %p137, %p138
      %s141 = sadd.s32 %s140, 1
      %p144 = scmp.eq.s32.totalorder %s22, 1
      %p145 = scmp.ne.s32.totalorder %s140, %s142
      %p146 = scmp.eq.s32.totalorder %s22, 0
      %p147 = por %p145, %p146
      %p148 = scmp.ne.s32.totalorder %s140, %s142
      %p149 = scmp.eq.s32.totalorder %s27, 1
      %p150 = por %p148, %p149
      %p151 = scmp.ne.s32.totalorder %s142, %s143
      %p152 = scmp.eq.s32.totalorder %s27, 0
      %p153 = por %p151, %p152
      %p154 = scmp.ne.s32.totalorder %s142, %s143
      %p155 = scmp.eq.s32.totalorder %s28, 1
      %p156 = por %p154, %p155
      %p158 = scmp.ne.s32.totalorder %s143, %s157
      %p159 = scmp.eq.s32.totalorder %s28, 0
      %p160 = por %p158, %p159
      %s162 = sadd.s32 %s161, 1
      %p165 = scmp.eq.s32.totalorder %s22, 1
      %p166 = scmp.ne.s32.totalorder %s161, %s163
      %p167 = scmp.eq.s32.totalorder %s22, 0
      %p168 = por %p166, %p167
      %p169 = scmp.ne.s32.totalorder %s161, %s163
      %p170 = scmp.eq.s32.totalorder %s27, 1
      %p171 = por %p169, %p170
      %p172 = scmp.ne.s32.totalorder %s163, %s164
      %p173 = scmp.eq.s32.totalorder %s27, 0
      %p174 = por %p172, %p173
      %p175 = scmp.ne.s32.totalorder %s163, %s164
      %p176 = scmp.eq.s32.totalorder %s28, 1
      %p177 = por %p175, %p176
      %p179 = scmp.ne.s32.totalorder %s164, %s178
      %p180 = scmp.eq.s32.totalorder %s28, 0
      %p181 = por %p179, %p180
      %s183 = sadd.s32 %s182, 1
      %p186 = scmp.eq.s32.totalorder %s22, 1
      %p187 = scmp.ne.s32.totalorder %s182, %s184
      %p188 = scmp.eq.s32.totalorder %s22, 0
      %p189 = por %p187, %p188
      %p190 = scmp.ne.s32.totalorder %s182, %s184
      %p191 = scmp.eq.s32.totalorder %s27, 1
      %p192 = por %p190, %p191
      %p193 = scmp.ne.s32.totalorder %s184, %s185
      %p194 = scmp.eq.s32.totalorder %s27, 0
      %p195 = por %p193, %p194
      %p196 = scmp.ne.s32.totalorder %s184, %s185
      %p197 = scmp.eq.s32.totalorder %s28, 1
      %p198 = por %p196, %p197
      %p200 = scmp.ne.s32.totalorder %s185, %s199
      %p201 = scmp.eq.s32.totalorder %s28, 0
      %p202 = por %p200, %p201
      %s204 = sadd.s32 %s203, 1
      %p207 = scmp.eq.s32.totalorder %s22, 1
      %p208 = scmp.ne.s32.totalorder %s203, %s205
      %p209 = scmp.eq.s32.totalorder %s22, 0
      %p210 = por %p208, %p209
      %p211 = scmp.ne.s32.totalorder %s203, %s205
      %p212 = scmp.eq.s32.totalorder %s27, 1
      %p213 = por %p211, %p212
      %p214 = scmp.ne.s32.totalorder %s205, %s206
      %p215 = scmp.eq.s32.totalorder %s27, 0
      %p216 = por %p214, %p215
      %p217 = scmp.ne.s32.totalorder %s205, %s206
      %p218 = scmp.eq.s32.totalorder %s28, 1
      %p219 = por %p217, %p218
      %p221 = scmp.ne.s32.totalorder %s206, %s220
      %p222 = scmp.eq.s32.totalorder %s28, 0
      %p223 = por %p221, %p222
      %s225 = sadd.s32 %s224, 1
      %p228 = scmp.eq.s32.totalorder %s22, 1
      %p229 = scmp.ne.s32.totalorder %s224, %s226
      %p230 = scmp.eq.s32.totalorder %s22, 0
      %p231 = por %p229, %p230
      %p232 = scmp.ne.s32.totalorder %s224, %s226
      %p233 = scmp.eq.s32.totalorder %s27, 1
      %p234 = por %p232, %p233
      %p235 = scmp.ne.s32.totalorder %s226, %s227
      %p236 = scmp.eq.s32.totalorder %s27, 0
      %p237 = por %p235, %p236
      %p238 = scmp.ne.s32.totalorder %s226, %s227
      %p239 = scmp.eq.s32.totalorder %s28, 1
      %p240 = por %p238, %p239
      %p242 = scmp.ne.s32.totalorder %s227, %s241
      %p243 = scmp.eq.s32.totalorder %s28, 0
      %p244 = por %p242, %p243
      %s246 = sadd.s32 %s245, 1
      %p249 = scmp.eq.s32.totalorder %s22, 1
      %p250 = scmp.ne.s32.totalorder %s245, %s247
      %p251 = scmp.eq.s32.totalorder %s22, 0
      %p252 = por %p250, %p251
      %p253 = scmp.ne.s32.totalorder %s245, %s247
      %p254 = scmp.eq.s32.totalorder %s27, 1
      %p255 = por %p253, %p254
      %p256 = scmp.ne.s32.totalorder %s247, %s248
      %p257 = scmp.eq.s32.totalorder %s27, 0
      %p258 = por %p256, %p257
      %p259 = scmp.ne.s32.totalorder %s247, %s248
      %p260 = scmp.eq.s32.totalorder %s28, 1
      %p261 = por %p259, %p260
      %p263 = scmp.ne.s32.totalorder %s248, %s262
      %p264 = scmp.eq.s32.totalorder %s28, 0
      %p265 = por %p263, %p264
      %s267 = sadd.s32 %s266, 1
      %p270 = scmp.eq.s32.totalorder %s22, 1
      %p271 = scmp.ne.s32.totalorder %s266, %s268
      %p272 = scmp.eq.s32.totalorder %s22, 0
      %p273 = por %p271, %p272
      %p274 = scmp.ne.s32.totalorder %s266, %s268
      %p275 = scmp.eq.s32.totalorder %s27, 1
      %p276 = por %p274, %p275
      %p277 = scmp.ne.s32.totalorder %s268, %s269
      %p278 = scmp.eq.s32.totalorder %s27, 0
      %p279 = por %p277, %p278
      %p280 = scmp.ne.s32.totalorder %s268, %s269
      %p281 = scmp.eq.s32.totalorder %s28, 1
      %p282 = por %p280, %p281
      %p284 = scmp.ne.s32.totalorder %s269, %s283
      %p285 = scmp.eq.s32.totalorder %s28, 0
      %p286 = por %p284, %p285
      %s288 = sadd.s32 %s287, 1
      %p291 = scmp.eq.s32.totalorder %s22, 1
      %p292 = scmp.ne.s32.totalorder %s287, %s289
      %p293 = scmp.eq.s32.totalorder %s22, 0
      %p294 = por %p292, %p293
      %p295 = scmp.ne.s32.totalorder %s287, %s289
      %p296 = scmp.eq.s32.totalorder %s27, 1
      %p297 = por %p295, %p296
      %p298 = scmp.ne.s32.totalorder %s289, %s290
      %p299 = scmp.eq.s32.totalorder %s27, 0
      %p300 = por %p298, %p299
      %p301 = scmp.ne.s32.totalorder %s289, %s290
      %p302 = scmp.eq.s32.totalorder %s28, 1
      %p303 = por %p301, %p302
      %p305 = scmp.ne.s32.totalorder %s290, %s304
      %p306 = scmp.eq.s32.totalorder %s28, 0
      %p307 = por %p305, %p306
      %s308 = ssub.s32 %s22, %s29
      %p309 = scmp.eq.s32.totalorder %s308, 0
      %s311 = sadd.s32 %s310, 1
      %s312 = scalar_select %p309, %s310, %s311
      %p315 = pneg %p309
      %p316 = scmp.eq.s32.totalorder %s22, 1
      %p317 = por %p315, %p316
      %p318 = scmp.ne.s32.totalorder %s310, %s313
      %p319 = scmp.eq.s32.totalorder %s22, 0
      %p320 = por %p318, %p319
      %p321 = scmp.ne.s32.totalorder %s310, %s313
      %p322 = scmp.eq.s32.totalorder %s27, 1
      %p323 = por %p321, %p322
      %p324 = scmp.ne.s32.totalorder %s313, %s314
      %p325 = scmp.eq.s32.totalorder %s27, 0
      %p326 = por %p324, %p325
      %p327 = scmp.ne.s32.totalorder %s313, %s314
      %p328 = scmp.eq.s32.totalorder %s28, 1
      %p329 = por %p327, %p328
      %p331 = scmp.ne.s32.totalorder %s314, %s330
      %p332 = scmp.eq.s32.totalorder %s28, 0
      %p333 = por %p331, %p332
      %p334 = scmp.le.s32.totalorder 1, %s22
      %p335 = scmp.lt.s32.totalorder %s22, 3
      %p336 = pnand %p334, %p335
      %p337 = pneg %p336
      // Predicated region
      $region9: #{deep_network_forward.1} parent=5 // pred_check
        _
      $region10: #{deep_network_forward.1} parent=5 // pred_check_branch
        %339 = sbr.rel (%p336) target = $region12
      $region11: #{deep_network_forward.1} parent=5 // pred_region
        %s340 = ssub.s32 %s22, 1
        // Predicated region
        $region13: #{deep_network_forward.1} parent=11 // pred_check
          %p341 = pneg %p69
        $region14: #{deep_network_forward.1} parent=11 // pred_check_branch
          %343 = sbr.rel (%p341) target = $region16
        $region15: #{deep_network_forward.1} parent=11 // pred_region
          _
        $region16: #{deep_network_forward.1} parent=11 // pred_fallthru
          _
        // Predicated region
        $region17: #{deep_network_forward.1} parent=11 // pred_check
          %p344 = pneg %p90
        $region18: #{deep_network_forward.1} parent=11 // pred_check_branch
          %346 = sbr.rel (%p344) target = $region20
        $region19: #{deep_network_forward.1} parent=11 // pred_region
          _
        $region20: #{deep_network_forward.1} parent=11 // pred_fallthru
          _
        // Predicated region
        $region21: #{deep_network_forward.1} parent=11 // pred_check
          %p347 = pneg %p111
        $region22: #{deep_network_forward.1} parent=11 // pred_check_branch
          %349 = sbr.rel (%p347) target = $region24
        $region23: #{deep_network_forward.1} parent=11 // pred_region
          _
        $region24: #{deep_network_forward.1} parent=11 // pred_fallthru
          _
        // Predicated region
        $region25: #{deep_network_forward.1} parent=11 // pred_check
          %p350 = pneg %p132
        $region26: #{deep_network_forward.1} parent=11 // pred_check_branch
          %352 = sbr.rel (%p350) target = $region28
        $region27: #{deep_network_forward.1} parent=11 // pred_region
          _
        $region28: #{deep_network_forward.1} parent=11 // pred_fallthru
          _
        // Predicated region
        $region29: #{deep_network_forward.1} parent=11 // pred_check
          %p353 = pneg %p153
        $region30: #{deep_network_forward.1} parent=11 // pred_check_branch
          %355 = sbr.rel (%p353) target = $region32
        $region31: #{deep_network_forward.1} parent=11 // pred_region
          _
        $region32: #{deep_network_forward.1} parent=11 // pred_fallthru
          _
        // Predicated region
        $region33: #{deep_network_forward.1} parent=11 // pred_check
          %p356 = pneg %p174
        $region34: #{deep_network_forward.1} parent=11 // pred_check_branch
          %358 = sbr.rel (%p356) target = $region36
        $region35: #{deep_network_forward.1} parent=11 // pred_region
          _
        $region36: #{deep_network_forward.1} parent=11 // pred_fallthru
          _
        // Predicated region
        $region37: #{deep_network_forward.1} parent=11 // pred_check
          %p359 = pneg %p195
        $region38: #{deep_network_forward.1} parent=11 // pred_check_branch
          %361 = sbr.rel (%p359) target = $region40
        $region39: #{deep_network_forward.1} parent=11 // pred_region
          _
        $region40: #{deep_network_forward.1} parent=11 // pred_fallthru
          _
        // Predicated region
        $region41: #{deep_network_forward.1} parent=11 // pred_check
          %p362 = pneg %p216
        $region42: #{deep_network_forward.1} parent=11 // pred_check_branch
          %364 = sbr.rel (%p362) target = $region44
        $region43: #{deep_network_forward.1} parent=11 // pred_region
          _
        $region44: #{deep_network_forward.1} parent=11 // pred_fallthru
          _
        // Predicated region
        $region45: #{deep_network_forward.1} parent=11 // pred_check
          %p365 = pneg %p237
        $region46: #{deep_network_forward.1} parent=11 // pred_check_branch
          %367 = sbr.rel (%p365) target = $region48
        $region47: #{deep_network_forward.1} parent=11 // pred_region
          _
        $region48: #{deep_network_forward.1} parent=11 // pred_fallthru
          _
        // Predicated region
        $region49: #{deep_network_forward.1} parent=11 // pred_check
          %p368 = pneg %p258
        $region50: #{deep_network_forward.1} parent=11 // pred_check_branch
          %370 = sbr.rel (%p368) target = $region52
        $region51: #{deep_network_forward.1} parent=11 // pred_region
          _
        $region52: #{deep_network_forward.1} parent=11 // pred_fallthru
          _
        // Predicated region
        $region53: #{deep_network_forward.1} parent=11 // pred_check
          %p371 = pneg %p279
        $region54: #{deep_network_forward.1} parent=11 // pred_check_branch
          %373 = sbr.rel (%p371) target = $region56
        $region55: #{deep_network_forward.1} parent=11 // pred_region
          _
        $region56: #{deep_network_forward.1} parent=11 // pred_fallthru
          _
        // Predicated region
        $region57: #{deep_network_forward.1} parent=11 // pred_check
          %p374 = pneg %p300
        $region58: #{deep_network_forward.1} parent=11 // pred_check_branch
          %376 = sbr.rel (%p374) target = $region60
        $region59: #{deep_network_forward.1} parent=11 // pred_region
          _
        $region60: #{deep_network_forward.1} parent=11 // pred_fallthru
          _
      $region12: #{deep_network_forward.1} parent=5 // pred_fallthru
        _
      %p377 = scmp.lt.s32.totalorder %s22, 2
      // Predicated region
      $region61: #{deep_network_forward.1} parent=5 // pred_check
        %p378 = pneg %p377
      $region62: #{deep_network_forward.1} parent=5 // pred_check_branch
        %380 = sbr.rel (%p378) target = $region64
      $region63: #{deep_network_forward.1} parent=5 // pred_region
        // Predicated region
        $region65: #{deep_network_forward.1} parent=63 // pred_check
          %p381 = pneg %p42
        $region66: #{deep_network_forward.1} parent=63 // pred_check_branch
          %383 = sbr.rel (%p381) target = $region68
        $region67: #{deep_network_forward.1} parent=63 // pred_region
          %p384 = scmp.lt.s32.totalorder %s22, 1
          %s385 = scalar_select %p384, %s22, 1
          %s386 = smul.addr %s385, 104
          %s387 = smul.addr %s386, 8
          %s388 = scalar_lea.vmem %s0, %s387
        $region68: #{deep_network_forward.1} parent=63 // pred_fallthru
          _
      $region64: #{deep_network_forward.1} parent=5 // pred_fallthru
        _
      %p389 = scmp.le.s32.totalorder 1, %s22
      %p390 = scmp.lt.s32.totalorder %s22, 3
      %p391 = pnand %p389, %p390
      %p392 = pneg %p391
      // Predicated region
      $region69: #{deep_network_forward.1} parent=5 // pred_check
        _
      $region70: #{deep_network_forward.1} parent=5 // pred_check_branch
        %394 = sbr.rel (%p391) target = $region72
      $region71: #{deep_network_forward.1} parent=5 // pred_region
        %s395 = ssub.s32 %s22, 1
        %p396 = scmp.lt.s32.totalorder %s27, 1
        %s397 = scalar_select %p396, %s27, 1
        %s398 = smul.addr %s397, 104
        %s399 = smul.addr %s398, 8
        %s400 = scalar_lea.vmem %s0, %s399
        %p401 = pneg %p48
        %p402 = pneg %p45
        %p403 = pneg %p69
        %p404 = pneg %p66
        %p405 = pneg %p90
        %p406 = pneg %p87
        %p407 = pneg %p111
        %p408 = pneg %p108
        %p409 = pneg %p132
        %p410 = pneg %p129
        %p411 = pneg %p153
        %p412 = pneg %p150
        %p413 = pneg %p174
        %p414 = pneg %p171
        %p415 = pneg %p195
        %p416 = pneg %p192
        %p417 = pneg %p216
        %p418 = pneg %p213
        %p419 = pneg %p237
        %p420 = pneg %p234
        %p421 = pneg %p258
        %p422 = pneg %p255
        %p423 = pneg %p279
        %p424 = pneg %p276
        %p425 = pneg %p300
        %p426 = pneg %p297
        %p427 = pneg %p326
        %p428 = pneg %p323
        %s429 = sand.u32 %s313, 1
        %s430 = scalar_lea.sflag [#allocation3], %s429
        %s431 = sand.u32 %s313, 1
        %s432 = scalar_lea.vmem [#allocation2], %s431
        %p433 = scmp.lt.s32.totalorder %s27, 1
        %s434 = scalar_select %p433, %s27, 1
        %s435 = smul.addr %s434, 104
        %s436 = smul.addr %s435, 8
        %s437 = scalar_lea.vmem %s0, %s436
        %v438 = vld [vmem:[%s1] sm:$0xff]
        %v439 = vld [vmem:[%s1 + $0x8] sm:$0xff]
        %v440 = vld [vmem:[%s1 + $0x10] sm:$0xff]
        %v441 = vld [vmem:[%s1 + $0x18] sm:$0xff]
        %v442 = vld [vmem:[%s1 + $0x20] sm:$0xff]
        %v443 = vld [vmem:[%s1 + $0x28] sm:$0xff]
        %v444 = vld [vmem:[%s1 + $0x30] sm:$0xff]
        %v445 = vld [vmem:[%s1 + $0x38] sm:$0xff]
        %v446 = vld [vmem:[%s1 + $0x40] sm:$0xff]
        %v447 = vld [vmem:[%s1 + $0x48] sm:$0xff]
        %v448 = vld [vmem:[%s1 + $0x50] sm:$0xff]
        %v449 = vld [vmem:[%s1 + $0x58] sm:$0xff]
        %v450 = vld [vmem:[%s1 + $0x60] sm:$0xff]
        %v451 = vld [vmem:[%s1 + $0x68] sm:$0xff]
        %v452 = vld [vmem:[%s1 + $0x70] sm:$0xff]
        %v453 = vld [vmem:[%s1 + $0x78] sm:$0xff]
        %v454 = vld [vmem:[%s1 + $0x80] sm:$0xff]
        %v455 = vld [vmem:[%s1 + $0x88] sm:$0xff]
        %v456 = vld [vmem:[%s1 + $0x90] sm:$0xff]
        %v457 = vld [vmem:[%s1 + $0x98] sm:$0xff]
        %v458 = vld [vmem:[%s1 + $0xa0] sm:$0xff]
        %v459 = vld [vmem:[%s1 + $0xa8] sm:$0xff]
        %v460 = vld [vmem:[%s1 + $0xb0] sm:$0xff]
        %v461 = vld [vmem:[%s1 + $0xb8] sm:$0xff]
        %v462 = vld [vmem:[%s1 + $0xc0] sm:$0xff]
        %v463 = vld [vmem:[%s1 + $0xc8] sm:$0xff]
        %v464 = vld [vmem:[%s1 + $0xd0] sm:$0xff]
        %v465 = vld [vmem:[%s1 + $0xd8] sm:$0xff]
        %v466 = vld [vmem:[%s1 + $0xe0] sm:$0xff]
        %v467 = vld [vmem:[%s1 + $0xe8] sm:$0xff]
        %v468 = vld [vmem:[%s1 + $0xf0] sm:$0xff]
        %v469 = vld [vmem:[%s1 + $0xf8] sm:$0xff]
        %v470 = vld [vmem:[%s437] sm:$0xff]
        %v471 = vld [vmem:[%s437 + $0x8] sm:$0xff]
        %v472 = vld [vmem:[%s437 + $0x10] sm:$0xff]
        %v473 = vld [vmem:[%s437 + $0x18] sm:$0xff]
        %v474 = vld [vmem:[%s437 + $0x20] sm:$0xff]
        %v475 = vld [vmem:[%s437 + $0x28] sm:$0xff]
        %v476 = vld [vmem:[%s437 + $0x30] sm:$0xff]
        %v477 = vld [vmem:[%s437 + $0x38] sm:$0xff]
        %v478 = vld [vmem:[%s437 + $0x40] sm:$0xff]
        %v479 = vld [vmem:[%s437 + $0x48] sm:$0xff]
        %v480 = vld [vmem:[%s437 + $0x50] sm:$0xff]
        %v481 = vld [vmem:[%s437 + $0x58] sm:$0xff]
        %v482 = vld [vmem:[%s437 + $0x60] sm:$0xff]
        %v483 = vld [vmem:[%s437 + $0x68] sm:$0xff]
        %v484 = vld [vmem:[%s437 + $0x70] sm:$0xff]
        %v485 = vld [vmem:[%s437 + $0x78] sm:$0xff]
        %v486 = vld [vmem:[%s437 + $0x80] sm:$0xff]
        %v487 = vld [vmem:[%s437 + $0x88] sm:$0xff]
        %v488 = vld [vmem:[%s437 + $0x90] sm:$0xff]
        %v489 = vld [vmem:[%s437 + $0x98] sm:$0xff]
        %v490 = vld [vmem:[%s437 + $0xa0] sm:$0xff]
        %v491 = vld [vmem:[%s437 + $0xa8] sm:$0xff]
        %v492 = vld [vmem:[%s437 + $0xb0] sm:$0xff]
        %v493 = vld [vmem:[%s437 + $0xb8] sm:$0xff]
        %v494 = vld [vmem:[%s437 + $0xc0] sm:$0xf]
        %v495 = vld [vmem:[%s437 + $0xc8] sm:$0xf]
        %496 = vmatprep.subr.mxu0 0.0
        %497 = vmatpush1.msra.mxu0 %v438
        %498 = vmatprep.subr.mxu0 0.0
        %499 = vmatpush1.msra.mxu0 %v439
        %500 = vmatprep.subr.mxu0 0.0
        %501 = vmatpush1.msra.mxu0 %v440
        %502 = vmatprep.subr.mxu0 0.0
        %503 = vmatpush1.msra.mxu0 %v441
        %504 = vmatprep.subr.mxu0 0.0
        %505 = vmatpush1.msra.mxu0 %v442
        %506 = vmatprep.subr.mxu0 0.0
        %507 = vmatpush1.msra.mxu0 %v443
        %508 = vmatprep.subr.mxu0 0.0
        %509 = vmatpush1.msra.mxu0 %v444
        %510 = vmatprep.subr.mxu0 0.0
        %511 = vmatpush1.msra.mxu0 %v445
        %512 = vmatprep.subr.mxu0 0.0
        %513 = vmatpush1.msra.mxu0 %v446
        %514 = vmatprep.subr.mxu0 0.0
        %515 = vmatpush1.msra.mxu0 %v447
        %516 = vmatprep.subr.mxu0 0.0
        %517 = vmatpush1.msra.mxu0 %v448
        %518 = vmatprep.subr.mxu0 0.0
        %519 = vmatpush1.msra.mxu0 %v449
        %520 = vmatprep.subr.mxu0 0.0
        %521 = vmatpush1.msra.mxu0 %v450
        %522 = vmatprep.subr.mxu0 0.0
        %523 = vmatpush1.msra.mxu0 %v451
        %524 = vmatprep.subr.mxu0 0.0
        %525 = vmatpush1.msra.mxu0 %v452
        %526 = vmatprep.subr.mxu0 0.0
        %527 = vmatpush1.msra.mxu0 %v453
        %528 = vmatprep.subr.mxu0 0.0
        %529 = vmatpush1.msra.mxu0 %v454
        %530 = vmatprep.subr.mxu0 0.0
        %531 = vmatpush1.msra.mxu0 %v455
        %532 = vmatprep.subr.mxu0 0.0
        %533 = vmatpush1.msra.mxu0 %v456
        %534 = vmatprep.subr.mxu0 0.0
        %535 = vmatpush1.msra.mxu0 %v457
        %536 = vmatprep.subr.mxu0 0.0
        %537 = vmatpush1.msra.mxu0 %v458
        %538 = vmatprep.subr.mxu0 0.0
        %539 = vmatpush1.msra.mxu0 %v459
        %540 = vmatprep.subr.mxu0 0.0
        %541 = vmatpush1.msra.mxu0 %v460
        %542 = vmatprep.subr.mxu0 0.0
        %543 = vmatpush1.msra.mxu0 %v461
        %544 = vmatprep.subr.mxu0 0.0
        %545 = vmatpush1.msra.mxu0 %v462
        %546 = vmatprep.subr.mxu0 0.0
        %547 = vmatpush1.msra.mxu0 %v463
        %548 = vmatprep.subr.mxu0 0.0
        %549 = vmatpush1.msra.mxu0 %v464
        %550 = vmatprep.subr.mxu0 0.0
        %551 = vmatpush1.msra.mxu0 %v465
        %552 = vmatprep.subr.mxu0 0.0
        %553 = vmatpush1.msra.mxu0 %v466
        %554 = vmatprep.subr.mxu0 0.0
        %555 = vmatpush1.msra.mxu0 %v467
        %556 = vmatprep.subr.mxu0 0.0
        %557 = vmatpush1.msra.mxu0 %v468
        %558 = vmatprep.subr.mxu0 0.0
        %559 = vmatpush1.msra.mxu0 %v469
        %560 = vmatprep.mubr.f32.mxu0 %v471
        %561 = vmatmul.mubr.f32.gmra.mrb[0].mxu0 %v470
        %v562 = vpop.f32.mrb[0].mxu0
        %v563 = vadd.f32 0.0, %v562
        %v564 = vpop.f32.mrb[0].mxu0
        %565 = vmatprep.mubr.f32.mxu0 %v473
        %566 = vmatmul.mubr.f32.gmra.mrb[0].mxu0 %v472
        %v567 = vpop.f32.mrb[0].mxu0
        %v568 = vadd.f32 0.0, %v567
        %v569 = vpop.f32.mrb[0].mxu0
        %570 = vmatprep.mubr.f32.mxu0 %v475
        %571 = vmatmul.mubr.f32.gmra.mrb[0].mxu0 %v474
        %v572 = vpop.f32.mrb[0].mxu0
        %v573 = vadd.f32 0.0, %v572
        %v574 = vpop.f32.mrb[0].mxu0
        %575 = vmatprep.mubr.f32.mxu0 %v477
        %576 = vmatmul.mubr.f32.gmra.mrb[0].mxu0 %v476
        %v577 = vpop.f32.mrb[0].mxu0
        %v578 = vadd.f32 0.0, %v577
        %v579 = vpop.f32.mrb[0].mxu0
        %580 = vmatprep.mubr.f32.mxu0 %v479
        %581 = vmatmul.mubr.f32.gmra.mrb[0].mxu0 %v478
        %v582 = vpop.f32.mrb[0].mxu0
        %v583 = vadd.f32 0.0, %v582
        %v584 = vpop.f32.mrb[0].mxu0
        %585 = vmatprep.mubr.f32.mxu0 %v481
        %586 = vmatmul.mubr.f32.gmra.mrb[0].mxu0 %v480
        %v587 = vpop.f32.mrb[0].mxu0
        %v588 = vadd.f32 0.0, %v587
        %v589 = vpop.f32.mrb[0].mxu0
        %590 = vmatprep.mubr.f32.mxu0 %v483
        %591 = vmatmul.mubr.f32.gmra.mrb[0].mxu0 %v482
        %v592 = vpop.f32.mrb[0].mxu0
        %v593 = vadd.f32 0.0, %v592
        %v594 = vpop.f32.mrb[0].mxu0
        %595 = vmatprep.mubr.f32.mxu0 %v485
        %596 = vmatmul.mubr.f32.gmra.mrb[0].mxu0 %v484
        %v597 = vpop.f32.mrb[0].mxu0
        %v598 = vadd.f32 0.0, %v597
        %v599 = vpop.f32.mrb[0].mxu0
        %600 = vmatprep.mubr.f32.mxu0 %v487
        %601 = vmatmul.mubr.f32.gmra.mrb[0].mxu0 %v486
        %v602 = vpop.f32.mrb[0].mxu0
        %v603 = vadd.f32 0.0, %v602
        %v604 = vpop.f32.mrb[0].mxu0
        %605 = vmatprep.mubr.f32.mxu0 %v489
        %606 = vmatmul.mubr.f32.gmra.mrb[0].mxu0 %v488
        %v607 = vpop.f32.mrb[0].mxu0
        %v608 = vadd.f32 0.0, %v607
        %v609 = vpop.f32.mrb[0].mxu0
        %610 = vmatprep.mubr.f32.mxu0 %v491
        %611 = vmatmul.mubr.f32.gmra.mrb[0].mxu0 %v490
        %v612 = vpop.f32.mrb[0].mxu0
        %v613 = vadd.f32 0.0, %v612
        %v614 = vpop.f32.mrb[0].mxu0
        %615 = vmatprep.mubr.f32.mxu0 %v493
        %616 = vmatmul.mubr.f32.gmra.mrb[0].mxu0 %v492
        %v617 = vpop.f32.mrb[0].mxu0
        %v618 = vadd.f32 0.0, %v617
        %v619 = vpop.f32.mrb[0].mxu0
        %620 = vmatprep.mubr.f32.mxu0 %v495
        %621 = vmatmul.mubr.f32.gmra.mrb[0].mxu0 %v494
        %v622 = vpop.f32.mrb[0].mxu0
        %v623 = vadd.f32 0.0, %v622
        %v624 = vpop.f32.mrb[0].mxu0
        %625 = vdwg.mxu0
        %s626 = scalar_lea.vmem %s437, 208
        %v627 = vld [vmem:[%s626] sm:$0xff]
        %v628 = vld [vmem:[%s626 + $0x8] sm:$0xff]
        %v629 = vld [vmem:[%s626 + $0x10] sm:$0xff]
        %v630 = vld [vmem:[%s626 + $0x18] sm:$0xff]
        %v631 = vld [vmem:[%s626 + $0x20] sm:$0xff]
        %v632 = vld [vmem:[%s626 + $0x28] sm:$0xff]
        %v633 = vld [vmem:[%s626 + $0x30] sm:$0xff]
        %v634 = vld [vmem:[%s626 + $0x38] sm:$0xff]
        %v635 = vld [vmem:[%s626 + $0x40] sm:$0xff]
        %v636 = vld [vmem:[%s626 + $0x48] sm:$0xff]
        %v637 = vld [vmem:[%s626 + $0x50] sm:$0xff]
        %v638 = vld [vmem:[%s626 + $0x58] sm:$0xff]
        %v639 = vld [vmem:[%s626 + $0x60] sm:$0xff]
        %v640 = vld [vmem:[%s626 + $0x68] sm:$0xff]
        %v641 = vld [vmem:[%s626 + $0x70] sm:$0xff]
        %v642 = vld [vmem:[%s626 + $0x78] sm:$0xff]
        %v643 = vld [vmem:[%s626 + $0x80] sm:$0xff]
        %v644 = vld [vmem:[%s626 + $0x88] sm:$0xff]
        %v645 = vld [vmem:[%s626 + $0x90] sm:$0xff]
        %v646 = vld [vmem:[%s626 + $0x98] sm:$0xff]
        %v647 = vld [vmem:[%s626 + $0xa0] sm:$0xff]
        %v648 = vld [vmem:[%s626 + $0xa8] sm:$0xff]
        %v649 = vld [vmem:[%s626 + $0xb0] sm:$0xff]
        %v650 = vld [vmem:[%s626 + $0xb8] sm:$0xff]
        %v651 = vld [vmem:[%s626 + $0xc0] sm:$0xf]
        %v652 = vld [vmem:[%s626 + $0xc8] sm:$0xf]
        %653 = vmatprep.subr.mxu0 0.0
        %654 = vmatpush1.msra.mxu0 %v438
        %655 = vmatprep.subr.mxu0 0.0
        %656 = vmatpush1.msra.mxu0 %v439
        %657 = vmatprep.subr.mxu0 0.0
        %658 = vmatpush1.msra.mxu0 %v440
        %659 = vmatprep.subr.mxu0 0.0
        %660 = vmatpush1.msra.mxu0 %v441
        %661 = vmatprep.subr.mxu0 0.0
        %662 = vmatpush1.msra.mxu0 %v442
        %663 = vmatprep.subr.mxu0 0.0
        %664 = vmatpush1.msra.mxu0 %v443
        %665 = vmatprep.subr.mxu0 0.0
        %666 = vmatpush1.msra.mxu0 %v444
        %667 = vmatprep.subr.mxu0 0.0
        %668 = vmatpush1.msra.mxu0 %v445
        %669 = vmatprep.subr.mxu0 0.0
        %670 = vmatpush1.msra.mxu0 %v446
        %671 = vmatprep.subr.mxu0 0.0
        %672 = vmatpush1.msra.mxu0 %v447
        %673 = vmatprep.subr.mxu0 0.0
        %674 = vmatpush1.msra.mxu0 %v448
        %675 = vmatprep.subr.mxu0 0.0
        %676 = vmatpush1.msra.mxu0 %v449
        %677 = vmatprep.subr.mxu0 0.0
        %678 = vmatpush1.msra.mxu0 %v450
        %679 = vmatprep.subr.mxu0 0.0
        %680 = vmatpush1.msra.mxu0 %v451
        %681 = vmatprep.subr.mxu0 0.0
        %682 = vmatpush1.msra.mxu0 %v452
        %683 = vmatprep.subr.mxu0 0.0
        %684 = vmatpush1.msra.mxu0 %v453
        %685 = vmatprep.subr.mxu0 0.0
        %686 = vmatpush1.msra.mxu0 %v454
        %687 = vmatprep.subr.mxu0 0.0
        %688 = vmatpush1.msra.mxu0 %v455
        %689 = vmatprep.subr.mxu0 0.0
        %690 = vmatpush1.msra.mxu0 %v456
        %691 = vmatprep.subr.mxu0 0.0
        %692 = vmatpush1.msra.mxu0 %v457
        %693 = vmatprep.subr.mxu0 0.0
        %694 = vmatpush1.msra.mxu0 %v458
        %695 = vmatprep.subr.mxu0 0.0
        %696 = vmatpush1.msra.mxu0 %v459
        %697 = vmatprep.subr.mxu0 0.0
        %698 = vmatpush1.msra.mxu0 %v460
        %699 = vmatprep.subr.mxu0 0.0
        %700 = vmatpush1.msra.mxu0 %v461
        %701 = vmatprep.subr.mxu0 0.0
        %702 = vmatpush1.msra.mxu0 %v462
        %703 = vmatprep.subr.mxu0 0.0
        %704 = vmatpush1.msra.mxu0 %v463
        %705 = vmatprep.subr.mxu0 0.0
        %706 = vmatpush1.msra.mxu0 %v464
        %707 = vmatprep.subr.mxu0 0.0
        %708 = vmatpush1.msra.mxu0 %v465
        %709 = vmatprep.subr.mxu0 0.0
        %710 = vmatpush1.msra.mxu0 %v466
        %711 = vmatprep.subr.mxu0 0.0
        %712 = vmatpush1.msra.mxu0 %v467
        %713 = vmatprep.subr.mxu0 0.0
        %714 = vmatpush1.msra.mxu0 %v468
        %715 = vmatprep.subr.mxu0 0.0
        %716 = vmatpush1.msra.mxu0 %v469
        %717 = vmatprep.mubr.f32.mxu0 %v628
        %718 = vmatmul.mubr.f32.gmra.mrb[0].mxu0 %v627
        %v719 = vpop.f32.mrb[0].mxu0
        %v720 = vadd.f32 0.0, %v719
        %v721 = vpop.f32.mrb[0].mxu0
        %722 = vmatprep.mubr.f32.mxu0 %v630
        %723 = vmatmul.mubr.f32.gmra.mrb[0].mxu0 %v629
        %v724 = vpop.f32.mrb[0].mxu0
        %v725 = vadd.f32 0.0, %v724
        %v726 = vpop.f32.mrb[0].mxu0
        %727 = vmatprep.mubr.f32.mxu0 %v632
        %728 = vmatmul.mubr.f32.gmra.mrb[0].mxu0 %v631
        %v729 = vpop.f32.mrb[0].mxu0
        %v730 = vadd.f32 0.0, %v729
        %v731 = vpop.f32.mrb[0].mxu0
        %732 = vmatprep.mubr.f32.mxu0 %v634
        %733 = vmatmul.mubr.f32.gmra.mrb[0].mxu0 %v633
        %v734 = vpop.f32.mrb[0].mxu0
        %v735 = vadd.f32 0.0, %v734
        %v736 = vpop.f32.mrb[0].mxu0
        %737 = vmatprep.mubr.f32.mxu0 %v636
        %738 = vmatmul.mubr.f32.gmra.mrb[0].mxu0 %v635
        %v739 = vpop.f32.mrb[0].mxu0
        %v740 = vadd.f32 0.0, %v739
        %v741 = vpop.f32.mrb[0].mxu0
        %742 = vmatprep.mubr.f32.mxu0 %v638
        %743 = vmatmul.mubr.f32.gmra.mrb[0].mxu0 %v637
        %v744 = vpop.f32.mrb[0].mxu0
        %v745 = vadd.f32 0.0, %v744
        %v746 = vpop.f32.mrb[0].mxu0
        %747 = vmatprep.mubr.f32.mxu0 %v640
        %748 = vmatmul.mubr.f32.gmra.mrb[0].mxu0 %v639
        %v749 = vpop.f32.mrb[0].mxu0
        %v750 = vadd.f32 0.0, %v749
        %v751 = vpop.f32.mrb[0].mxu0
        %752 = vmatprep.mubr.f32.mxu0 %v642
        %753 = vmatmul.mubr.f32.gmra.mrb[0].mxu0 %v641
        %v754 = vpop.f32.mrb[0].mxu0
        %v755 = vadd.f32 0.0, %v754
        %v756 = vpop.f32.mrb[0].mxu0
        %757 = vmatprep.mubr.f32.mxu0 %v644
        %758 = vmatmul.mubr.f32.gmra.mrb[0].mxu0 %v643
        %v759 = vpop.f32.mrb[0].mxu0
        %v760 = vadd.f32 0.0, %v759
        %v761 = vpop.f32.mrb[0].mxu0
        %762 = vmatprep.mubr.f32.mxu0 %v646
        %763 = vmatmul.mubr.f32.gmra.mrb[0].mxu0 %v645
        %v764 = vpop.f32.mrb[0].mxu0
        %v765 = vadd.f32 0.0, %v764
        %v766 = vpop.f32.mrb[0].mxu0
        %767 = vmatprep.mubr.f32.mxu0 %v648
        %768 = vmatmul.mubr.f32.gmra.mrb[0].mxu0 %v647
        %v769 = vpop.f32.mrb[0].mxu0
        %v770 = vadd.f32 0.0, %v769
        %v771 = vpop.f32.mrb[0].mxu0
        %772 = vmatprep.mubr.f32.mxu0 %v650
        %773 = vmatmul.mubr.f32.gmra.mrb[0].mxu0 %v649
        %v774 = vpop.f32.mrb[0].mxu0
        %v775 = vadd.f32 0.0, %v774
        %v776 = vpop.f32.mrb[0].mxu0
        %777 = vmatprep.mubr.f32.mxu0 %v652
        %778 = vmatmul.mubr.f32.gmra.mrb[0].mxu0 %v651
        %v779 = vpop.f32.mrb[0].mxu0
        %v780 = vadd.f32 0.0, %v779
        %v781 = vpop.f32.mrb[0].mxu0
        %782 = vdwg.mxu0
        %v783 = vmax.f32 %v563, %v720
        %v784 = vmax.f32 %v568, %v725
        %v785 = vmax.f32 %v573, %v730
        %v786 = vmax.f32 %v578, %v735
        %v787 = vmax.f32 %v583, %v740
        %v788 = vmax.f32 %v588, %v745
        %v789 = vmax.f32 %v593, %v750
        %v790 = vmax.f32 %v598, %v755
        %v791 = vmax.f32 %v603, %v760
        %v792 = vmax.f32 %v608, %v765
        %v793 = vmax.f32 %v613, %v770
        %v794 = vmax.f32 %v618, %v775
        %v795 = vmax.f32 %v623, %v780
        %s796 = scalar_lea.vmem %s437, 416
        %v797 = vld [vmem:[%s796] sm:$0xff]
        %v798 = vld [vmem:[%s796 + $0x8] sm:$0xff]
        %v799 = vld [vmem:[%s796 + $0x10] sm:$0xff]
        %v800 = vld [vmem:[%s796 + $0x18] sm:$0xff]
        %v801 = vld [vmem:[%s796 + $0x20] sm:$0xff]
        %v802 = vld [vmem:[%s796 + $0x28] sm:$0xff]
        %v803 = vld [vmem:[%s796 + $0x30] sm:$0xff]
        %v804 = vld [vmem:[%s796 + $0x38] sm:$0xff]
        %v805 = vld [vmem:[%s796 + $0x40] sm:$0xff]
        %v806 = vld [vmem:[%s796 + $0x48] sm:$0xff]
        %v807 = vld [vmem:[%s796 + $0x50] sm:$0xff]
        %v808 = vld [vmem:[%s796 + $0x58] sm:$0xff]
        %v809 = vld [vmem:[%s796 + $0x60] sm:$0xff]
        %v810 = vld [vmem:[%s796 + $0x68] sm:$0xff]
        %v811 = vld [vmem:[%s796 + $0x70] sm:$0xff]
        %v812 = vld [vmem:[%s796 + $0x78] sm:$0xff]
        %v813 = vld [vmem:[%s796 + $0x80] sm:$0xff]
        %v814 = vld [vmem:[%s796 + $0x88] sm:$0xff]
        %v815 = vld [vmem:[%s796 + $0x90] sm:$0xff]
        %v816 = vld [vmem:[%s796 + $0x98] sm:$0xff]
        %v817 = vld [vmem:[%s796 + $0xa0] sm:$0xff]
        %v818 = vld [vmem:[%s796 + $0xa8] sm:$0xff]
        %v819 = vld [vmem:[%s796 + $0xb0] sm:$0xff]
        %v820 = vld [vmem:[%s796 + $0xb8] sm:$0xff]
        %v821 = vld [vmem:[%s796 + $0xc0] sm:$0xf]
        %v822 = vld [vmem:[%s796 + $0xc8] sm:$0xf]
        %823 = vmatprep.subr.mxu0 0.0
        %824 = vmatpush1.msra.mxu0 %v438
        %825 = vmatprep.subr.mxu0 0.0
        %826 = vmatpush1.msra.mxu0 %v439
        %827 = vmatprep.subr.mxu0 0.0
        %828 = vmatpush1.msra.mxu0 %v440
        %829 = vmatprep.subr.mxu0 0.0
        %830 = vmatpush1.msra.mxu0 %v441
        %831 = vmatprep.subr.mxu0 0.0
        %832 = vmatpush1.msra.mxu0 %v442
        %833 = vmatprep.subr.mxu0 0.0
        %834 = vmatpush1.msra.mxu0 %v443
        %835 = vmatprep.subr.mxu0 0.0
        %836 = vmatpush1.msra.mxu0 %v444
        %837 = vmatprep.subr.mxu0 0.0
        %838 = vmatpush1.msra.mxu0 %v445
        %839 = vmatprep.subr.mxu0 0.0
        %840 = vmatpush1.msra.mxu0 %v446
        %841 = vmatprep.subr.mxu0 0.0
        %842 = vmatpush1.msra.mxu0 %v447
        %843 = vmatprep.subr.mxu0 0.0
        %844 = vmatpush1.msra.mxu0 %v448
        %845 = vmatprep.subr.mxu0 0.0
        %846 = vmatpush1.msra.mxu0 %v449
        %847 = vmatprep.subr.mxu0 0.0
        %848 = vmatpush1.msra.mxu0 %v450
        %849 = vmatprep.subr.mxu0 0.0
        %850 = vmatpush1.msra.mxu0 %v451
        %851 = vmatprep.subr.mxu0 0.0
        %852 = vmatpush1.msra.mxu0 %v452
        %853 = vmatprep.subr.mxu0 0.0
        %854 = vmatpush1.msra.mxu0 %v453
        %855 = vmatprep.subr.mxu0 0.0
        %856 = vmatpush1.msra.mxu0 %v454
        %857 = vmatprep.subr.mxu0 0.0
        %858 = vmatpush1.msra.mxu0 %v455
        %859 = vmatprep.subr.mxu0 0.0
        %860 = vmatpush1.msra.mxu0 %v456
        %861 = vmatprep.subr.mxu0 0.0
        %862 = vmatpush1.msra.mxu0 %v457
        %863 = vmatprep.subr.mxu0 0.0
        %864 = vmatpush1.msra.mxu0 %v458
        %865 = vmatprep.subr.mxu0 0.0
        %866 = vmatpush1.msra.mxu0 %v459
        %867 = vmatprep.subr.mxu0 0.0
        %868 = vmatpush1.msra.mxu0 %v460
        %869 = vmatprep.subr.mxu0 0.0
        %870 = vmatpush1.msra.mxu0 %v461
        %871 = vmatprep.subr.mxu0 0.0
        %872 = vmatpush1.msra.mxu0 %v462
        %873 = vmatprep.subr.mxu0 0.0
        %874 = vmatpush1.msra.mxu0 %v463
        %875 = vmatprep.subr.mxu0 0.0
        %876 = vmatpush1.msra.mxu0 %v464
        %877 = vmatprep.subr.mxu0 0.0
        %878 = vmatpush1.msra.mxu0 %v465
        %879 = vmatprep.subr.mxu0 0.0
        %880 = vmatpush1.msra.mxu0 %v466
        %881 = vmatprep.subr.mxu0 0.0
        %882 = vmatpush1.msra.mxu0 %v467
        %883 = vmatprep.subr.mxu0 0.0
        %884 = vmatpush1.msra.mxu0 %v468
        %885 = vmatprep.subr.mxu0 0.0
        %886 = vmatpush1.msra.mxu0 %v469
        %887 = vmatprep.mubr.f32.mxu0 %v798
        %888 = vmatmul.mubr.f32.gmra.mrb[0].mxu0 %v797
        %v889 = vpop.f32.mrb[0].mxu0
        %v890 = vadd.f32 0.0, %v889
        %v891 = vpop.f32.mrb[0].mxu0
        %892 = vmatprep.mubr.f32.mxu0 %v800
        %893 = vmatmul.mubr.f32.gmra.mrb[0].mxu0 %v799
        %v894 = vpop.f32.mrb[0].mxu0
        %v895 = vadd.f32 0.0, %v894
        %v896 = vpop.f32.mrb[0].mxu0
        %897 = vmatprep.mubr.f32.mxu0 %v802
        %898 = vmatmul.mubr.f32.gmra.mrb[0].mxu0 %v801
        %v899 = vpop.f32.mrb[0].mxu0
        %v900 = vadd.f32 0.0, %v899
        %v901 = vpop.f32.mrb[0].mxu0
        %902 = vmatprep.mubr.f32.mxu0 %v804
        %903 = vmatmul.mubr.f32.gmra.mrb[0].mxu0 %v803
        %v904 = vpop.f32.mrb[0].mxu0
        %v905 = vadd.f32 0.0, %v904
        %v906 = vpop.f32.mrb[0].mxu0
        %907 = vmatprep.mubr.f32.mxu0 %v806
        %908 = vmatmul.mubr.f32.gmra.mrb[0].mxu0 %v805
        %v909 = vpop.f32.mrb[0].mxu0
        %v910 = vadd.f32 0.0, %v909
        %v911 = vpop.f32.mrb[0].mxu0
        %912 = vmatprep.mubr.f32.mxu0 %v808
        %913 = vmatmul.mubr.f32.gmra.mrb[0].mxu0 %v807
        %v914 = vpop.f32.mrb[0].mxu0
        %v915 = vadd.f32 0.0, %v914
        %v916 = vpop.f32.mrb[0].mxu0
        %917 = vmatprep.mubr.f32.mxu0 %v810
        %918 = vmatmul.mubr.f32.gmra.mrb[0].mxu0 %v809
        %v919 = vpop.f32.mrb[0].mxu0
        %v920 = vadd.f32 0.0, %v919
        %v921 = vpop.f32.mrb[0].mxu0
        %922 = vmatprep.mubr.f32.mxu0 %v812
        %923 = vmatmul.mubr.f32.gmra.mrb[0].mxu0 %v811
        %v924 = vpop.f32.mrb[0].mxu0
        %v925 = vadd.f32 0.0, %v924
        %v926 = vpop.f32.mrb[0].mxu0
        %927 = vmatprep.mubr.f32.mxu0 %v814
        %928 = vmatmul.mubr.f32.gmra.mrb[0].mxu0 %v813
        %v929 = vpop.f32.mrb[0].mxu0
        %v930 = vadd.f32 0.0, %v929
        %v931 = vpop.f32.mrb[0].mxu0
        %932 = vmatprep.mubr.f32.mxu0 %v816
        %933 = vmatmul.mubr.f32.gmra.mrb[0].mxu0 %v815
        %v934 = vpop.f32.mrb[0].mxu0
        %v935 = vadd.f32 0.0, %v934
        %v936 = vpop.f32.mrb[0].mxu0
        %937 = vmatprep.mubr.f32.mxu0 %v818
        %938 = vmatmul.mubr.f32.gmra.mrb[0].mxu0 %v817
        %v939 = vpop.f32.mrb[0].mxu0
        %v940 = vadd.f32 0.0, %v939
        %v941 = vpop.f32.mrb[0].mxu0
        %942 = vmatprep.mubr.f32.mxu0 %v820
        %943 = vmatmul.mubr.f32.gmra.mrb[0].mxu0 %v819
        %v944 = vpop.f32.mrb[0].mxu0
        %v945 = vadd.f32 0.0, %v944
        %v946 = vpop.f32.mrb[0].mxu0
        %947 = vmatprep.mubr.f32.mxu0 %v822
        %948 = vmatmul.mubr.f32.gmra.mrb[0].mxu0 %v821
        %v949 = vpop.f32.mrb[0].mxu0
        %v950 = vadd.f32 0.0, %v949
        %v951 = vpop.f32.mrb[0].mxu0
        %952 = vdwg.mxu0
        %v953 = vmax.f32 %v783, %v890
        %v954 = vmax.f32 %v784, %v895
        %v955 = vmax.f32 %v785, %v900
        %v956 = vmax.f32 %v786, %v905
        %v957 = vmax.f32 %v787, %v910
        %v958 = vmax.f32 %v788, %v915
        %v959 = vmax.f32 %v789, %v920
        %v960 = vmax.f32 %v790, %v925
        %v961 = vmax.f32 %v791, %v930
        %v962 = vmax.f32 %v792, %v935
        %v963 = vmax.f32 %v793, %v940
        %v964 = vmax.f32 %v794, %v945
        %v965 = vmax.f32 %v795, %v950
        %s966 = scalar_lea.vmem %s437, 624
        %v967 = vld [vmem:[%s966] sm:$0xff]
        %v968 = vld [vmem:[%s966 + $0x8] sm:$0xff]
        %v969 = vld [vmem:[%s966 + $0x10] sm:$0xff]
        %v970 = vld [vmem:[%s966 + $0x18] sm:$0xff]
        %v971 = vld [vmem:[%s966 + $0x20] sm:$0xff]
        %v972 = vld [vmem:[%s966 + $0x28] sm:$0xff]
        %v973 = vld [vmem:[%s966 + $0x30] sm:$0xff]
        %v974 = vld [vmem:[%s966 + $0x38] sm:$0xff]
        %v975 = vld [vmem:[%s966 + $0x40] sm:$0xff]
        %v976 = vld [vmem:[%s966 + $0x48] sm:$0xff]
        %v977 = vld [vmem:[%s966 + $0x50] sm:$0xff]
        %v978 = vld [vmem:[%s966 + $0x58] sm:$0xff]
        %v979 = vld [vmem:[%s966 + $0x60] sm:$0xff]
        %v980 = vld [vmem:[%s966 + $0x68] sm:$0xff]
        %v981 = vld [vmem:[%s966 + $0x70] sm:$0xff]
        %v982 = vld [vmem:[%s966 + $0x78] sm:$0xff]
        %v983 = vld [vmem:[%s966 + $0x80] sm:$0xff]
        %v984 = vld [vmem:[%s966 + $0x88] sm:$0xff]
        %v985 = vld [vmem:[%s966 + $0x90] sm:$0xff]
        %v986 = vld [vmem:[%s966 + $0x98] sm:$0xff]
        %v987 = vld [vmem:[%s966 + $0xa0] sm:$0xff]
        %v988 = vld [vmem:[%s966 + $0xa8] sm:$0xff]
        %v989 = vld [vmem:[%s966 + $0xb0] sm:$0xff]
        %v990 = vld [vmem:[%s966 + $0xb8] sm:$0xff]
        %v991 = vld [vmem:[%s966 + $0xc0] sm:$0xf]
        %v992 = vld [vmem:[%s966 + $0xc8] sm:$0xf]
        %993 = vmatprep.subr.mxu0 0.0
        %994 = vmatpush1.msra.mxu0 %v438
        %995 = vmatprep.subr.mxu0 0.0
        %996 = vmatpush1.msra.mxu0 %v439
        %997 = vmatprep.subr.mxu0 0.0
        %998 = vmatpush1.msra.mxu0 %v440
        %999 = vmatprep.subr.mxu0 0.0
        %1000 = vmatpush1.msra.mxu0 %v441
        %1001 = vmatprep.subr.mxu0 0.0
        %1002 = vmatpush1.msra.mxu0 %v442
        %1003 = vmatprep.subr.mxu0 0.0
        %1004 = vmatpush1.msra.mxu0 %v443
        %1005 = vmatprep.subr.mxu0 0.0
        %1006 = vmatpush1.msra.mxu0 %v444
        %1007 = vmatprep.subr.mxu0 0.0
        %1008 = vmatpush1.msra.mxu0 %v445
        %1009 = vmatprep.subr.mxu0 0.0
        %1010 = vmatpush1.msra.mxu0 %v446
        %1011 = vmatprep.subr.mxu0 0.0
        %1012 = vmatpush1.msra.mxu0 %v447
        %1013 = vmatprep.subr.mxu0 0.0
        %1014 = vmatpush1.msra.mxu0 %v448
        %1015 = vmatprep.subr.mxu0 0.0
        %1016 = vmatpush1.msra.mxu0 %v449
        %1017 = vmatprep.subr.mxu0 0.0
        %1018 = vmatpush1.msra.mxu0 %v450
        %1019 = vmatprep.subr.mxu0 0.0
        %1020 = vmatpush1.msra.mxu0 %v451
        %1021 = vmatprep.subr.mxu0 0.0
        %1022 = vmatpush1.msra.mxu0 %v452
        %1023 = vmatprep.subr.mxu0 0.0
        %1024 = vmatpush1.msra.mxu0 %v453
        %1025 = vmatprep.subr.mxu0 0.0
        %1026 = vmatpush1.msra.mxu0 %v454
        %1027 = vmatprep.subr.mxu0 0.0
        %1028 = vmatpush1.msra.mxu0 %v455
        %1029 = vmatprep.subr.mxu0 0.0
        %1030 = vmatpush1.msra.mxu0 %v456
        %1031 = vmatprep.subr.mxu0 0.0
        %1032 = vmatpush1.msra.mxu0 %v457
        %1033 = vmatprep.subr.mxu0 0.0
        %1034 = vmatpush1.msra.mxu0 %v458
        %1035 = vmatprep.subr.mxu0 0.0
        %1036 = vmatpush1.msra.mxu0 %v459
        %1037 = vmatprep.subr.mxu0 0.0
        %1038 = vmatpush1.msra.mxu0 %v460
        %1039 = vmatprep.subr.mxu0 0.0
        %1040 = vmatpush1.msra.mxu0 %v461
        %1041 = vmatprep.subr.mxu0 0.0
        %1042 = vmatpush1.msra.mxu0 %v462
        %1043 = vmatprep.subr.mxu0 0.0
        %1044 = vmatpush1.msra.mxu0 %v463
        %1045 = vmatprep.subr.mxu0 0.0
        %1046 = vmatpush1.msra.mxu0 %v464
        %1047 = vmatprep.subr.mxu0 0.0
        %1048 = vmatpush1.msra.mxu0 %v465
        %1049 = vmatprep.subr.mxu0 0.0
        %1050 = vmatpush1.msra.mxu0 %v466
        %1051 = vmatprep.subr.mxu0 0.0
        %1052 = vmatpush1.msra.mxu0 %v467
        %1053 = vmatprep.subr.mxu0 0.0
        %1054 = vmatpush1.msra.mxu0 %v468
        %1055 = vmatprep.subr.mxu0 0.0
        %1056 = vmatpush1.msra.mxu0 %v469
        %1057 = vmatprep.mubr.f32.mxu0 %v968
        %1058 = vmatmul.mubr.f32.gmra.mrb[0].mxu0 %v967
        %v1059 = vpop.f32.mrb[0].mxu0
        %v1060 = vadd.f32 0.0, %v1059
        %v1061 = vpop.f32.mrb[0].mxu0
        %1062 = vmatprep.mubr.f32.mxu0 %v970
        %1063 = vmatmul.mubr.f32.gmra.mrb[0].mxu0 %v969
        %v1064 = vpop.f32.mrb[0].mxu0
        %v1065 = vadd.f32 0.0, %v1064
        %v1066 = vpop.f32.mrb[0].mxu0
        %1067 = vmatprep.mubr.f32.mxu0 %v972
        %1068 = vmatmul.mubr.f32.gmra.mrb[0].mxu0 %v971
        %v1069 = vpop.f32.mrb[0].mxu0
        %v1070 = vadd.f32 0.0, %v1069
        %v1071 = vpop.f32.mrb[0].mxu0
        %1072 = vmatprep.mubr.f32.mxu0 %v974
        %1073 = vmatmul.mubr.f32.gmra.mrb[0].mxu0 %v973
        %v1074 = vpop.f32.mrb[0].mxu0
        %v1075 = vadd.f32 0.0, %v1074
        %v1076 = vpop.f32.mrb[0].mxu0
        %1077 = vmatprep.mubr.f32.mxu0 %v976
        %1078 = vmatmul.mubr.f32.gmra.mrb[0].mxu0 %v975
        %v1079 = vpop.f32.mrb[0].mxu0
        %v1080 = vadd.f32 0.0, %v1079
        %v1081 = vpop.f32.mrb[0].mxu0
        %1082 = vmatprep.mubr.f32.mxu0 %v978
        %1083 = vmatmul.mubr.f32.gmra.mrb[0].mxu0 %v977
        %v1084 = vpop.f32.mrb[0].mxu0
        %v1085 = vadd.f32 0.0, %v1084
        %v1086 = vpop.f32.mrb[0].mxu0
        %1087 = vmatprep.mubr.f32.mxu0 %v980
        %1088 = vmatmul.mubr.f32.gmra.mrb[0].mxu0 %v979
        %v1089 = vpop.f32.mrb[0].mxu0
        %v1090 = vadd.f32 0.0, %v1089
        %v1091 = vpop.f32.mrb[0].mxu0
        %1092 = vmatprep.mubr.f32.mxu0 %v982
        %1093 = vmatmul.mubr.f32.gmra.mrb[0].mxu0 %v981
        %v1094 = vpop.f32.mrb[0].mxu0
        %v1095 = vadd.f32 0.0, %v1094
        %v1096 = vpop.f32.mrb[0].mxu0
        %1097 = vmatprep.mubr.f32.mxu0 %v984
        %1098 = vmatmul.mubr.f32.gmra.mrb[0].mxu0 %v983
        %v1099 = vpop.f32.mrb[0].mxu0
        %v1100 = vadd.f32 0.0, %v1099
        %v1101 = vpop.f32.mrb[0].mxu0
        %1102 = vmatprep.mubr.f32.mxu0 %v986
        %1103 = vmatmul.mubr.f32.gmra.mrb[0].mxu0 %v985
        %v1104 = vpop.f32.mrb[0].mxu0
        %v1105 = vadd.f32 0.0, %v1104
        %v1106 = vpop.f32.mrb[0].mxu0
        %1107 = vmatprep.mubr.f32.mxu0 %v988
        %1108 = vmatmul.mubr.f32.gmra.mrb[0].mxu0 %v987
        %v1109 = vpop.f32.mrb[0].mxu0
        %v1110 = vadd.f32 0.0, %v1109
        %v1111 = vpop.f32.mrb[0].mxu0
        %1112 = vmatprep.mubr.f32.mxu0 %v990
        %1113 = vmatmul.mubr.f32.gmra.mrb[0].mxu0 %v989
        %v1114 = vpop.f32.mrb[0].mxu0
        %v1115 = vadd.f32 0.0, %v1114
        %v1116 = vpop.f32.mrb[0].mxu0
        %1117 = vmatprep.mubr.f32.mxu0 %v992
        %1118 = vmatmul.mubr.f32.gmra.mrb[0].mxu0 %v991
        %v1119 = vpop.f32.mrb[0].mxu0
        %v1120 = vadd.f32 0.0, %v1119
        %v1121 = vpop.f32.mrb[0].mxu0
        %1122 = vdwg.mxu0
        %v1123 = vmax.f32 %v953, %v1060
        %v1124 = vmax.f32 %v954, %v1065
        %v1125 = vmax.f32 %v955, %v1070
        %v1126 = vmax.f32 %v956, %v1075
        %v1127 = vmax.f32 %v957, %v1080
        %v1128 = vmax.f32 %v958, %v1085
        %v1129 = vmax.f32 %v959, %v1090
        %v1130 = vmax.f32 %v960, %v1095
        %v1131 = vmax.f32 %v961, %v1100
        %v1132 = vmax.f32 %v962, %v1105
        %v1133 = vmax.f32 %v963, %v1110
        %v1134 = vmax.f32 %v964, %v1115
        %v1135 = vmax.f32 %v965, %v1120
        %v1136 = vld [vmem:[%s2] sm:$0x1]
        %v1138 = vlaneseq
        %v1139 = vshrl.u32 %v1138, 7
        %v1140 = vsub.s32 0, %v1139
        %v1141 = vrot.slane %v1136, %v1140
        %v1143 = vadd.f32 %v1123, %v1141
        %v1144 = vadd.f32 %v1124, %v1141
        %v1145 = vadd.f32 %v1125, %v1141
        %v1146 = vadd.f32 %v1126, %v1141
        %v1147 = vadd.f32 %v1127, %v1141
        %v1148 = vadd.f32 %v1128, %v1141
        %v1149 = vadd.f32 %v1129, %v1141
        %v1150 = vadd.f32 %v1130, %v1141
        %v1151 = vadd.f32 %v1131, %v1141
        %v1152 = vadd.f32 %v1132, %v1141
        %v1153 = vadd.f32 %v1133, %v1141
        %v1154 = vadd.f32 %v1134, %v1141
        %v1155 = vadd.f32 %v1135, %v1141
        %v1156 = vmax.f32 %v1143, 0.0
        %v1157 = vmax.f32 %v1144, 0.0
        %v1158 = vmax.f32 %v1145, 0.0
        %v1159 = vmax.f32 %v1146, 0.0
        %v1160 = vmax.f32 %v1147, 0.0
        %v1161 = vmax.f32 %v1148, 0.0
        %v1162 = vmax.f32 %v1149, 0.0
        %v1163 = vmax.f32 %v1150, 0.0
        %v1164 = vmax.f32 %v1151, 0.0
        %v1165 = vmax.f32 %v1152, 0.0
        %v1166 = vmax.f32 %v1153, 0.0
        %v1167 = vmax.f32 %v1154, 0.0
        %v1168 = vmax.f32 %v1155, 0.0
        %v1169 = vld [vmem:[%s3] sm:$0xff]
        %v1170 = vld [vmem:[%s3 + $0x8] sm:$0xff]
        %v1171 = vld [vmem:[%s3 + $0x10] sm:$0xff]
        %v1172 = vld [vmem:[%s3 + $0x18] sm:$0x1]
        %vm1173 = vcmask 818176
        %v1175 = vsel %vm1173, %v1169, 0
        %v1178 = vsel %vm1173, %v1170, 0
        %v1181 = vsel %vm1173, %v1171, 0
        %v1184 = vsel %vm1173, %v1172, 0
        %vm1186 = vcmask 1043456
        %v1188 = vsel %vm1186, %v1168, 0
        %1190 = vmatprep.subr.mxu0 0.0
        %1191 = vmatpush1.msra.mxu0 %v1156
        %1192 = vmatprep.subr.mxu0 0.0
        %1193 = vmatpush1.msra.mxu0 %v1157
        %1194 = vmatprep.subr.mxu0 0.0
        %1195 = vmatpush1.msra.mxu0 %v1158
        %1196 = vmatprep.subr.mxu0 0.0
        %1197 = vmatpush1.msra.mxu0 %v1159
        %1198 = vmatprep.subr.mxu0 0.0
        %1199 = vmatpush1.msra.mxu0 %v1160
        %1200 = vmatprep.subr.mxu0 0.0
        %1201 = vmatpush1.msra.mxu0 %v1161
        %1202 = vmatprep.subr.mxu0 0.0
        %1203 = vmatpush1.msra.mxu0 %v1162
        %1204 = vmatprep.subr.mxu0 0.0
        %1205 = vmatpush1.msra.mxu0 %v1163
        %1206 = vmatprep.subr.mxu0 0.0
        %1207 = vmatpush1.msra.mxu0 %v1164
        %1208 = vmatprep.subr.mxu0 0.0
        %1209 = vmatpush1.msra.mxu0 %v1165
        %1210 = vmatprep.subr.mxu0 0.0
        %1211 = vmatpush1.msra.mxu0 %v1166
        %1212 = vmatprep.subr.mxu0 0.0
        %1213 = vmatpush1.msra.mxu0 %v1167
        %1214 = vmatprep.subr.mxu0 0.0
        %1215 = vmatpush1.msra.mxu0 %v1188
        %1216 = vmatprep.subr.mxu0 0.0
        %1217 = vmatpush1.msra.mxu0 0.0
        %1218 = vmatprep.subr.mxu0 0.0
        %1219 = vmatpush1.msra.mxu0 0.0
        %1220 = vmatprep.subr.mxu0 0.0
        %1221 = vmatpush1.msra.mxu0 0.0
        %1222 = vmatprep.subr.mxu0 0.0
        %1223 = vmatpush1.msra.mxu0 0.0
        %1224 = vmatprep.subr.mxu0 0.0
        %1225 = vmatpush1.msra.mxu0 0.0
        %1226 = vmatprep.subr.mxu0 0.0
        %1227 = vmatpush1.msra.mxu0 0.0
        %1228 = vmatprep.subr.mxu0 0.0
        %1229 = vmatpush1.msra.mxu0 0.0
        %1230 = vmatprep.subr.mxu0 0.0
        %1231 = vmatpush1.msra.mxu0 0.0
        %1232 = vmatprep.subr.mxu0 0.0
        %1233 = vmatpush1.msra.mxu0 0.0
        %1234 = vmatprep.subr.mxu0 0.0
        %1235 = vmatpush1.msra.mxu0 0.0
        %1236 = vmatprep.subr.mxu0 0.0
        %1237 = vmatpush1.msra.mxu0 0.0
        %1238 = vmatprep.subr.mxu0 0.0
        %1239 = vmatpush1.msra.mxu0 0.0
        %1240 = vmatprep.subr.mxu0 0.0
        %1241 = vmatpush1.msra.mxu0 0.0
        %1242 = vmatprep.subr.mxu0 0.0
        %1243 = vmatpush1.msra.mxu0 0.0
        %1244 = vmatprep.subr.mxu0 0.0
        %1245 = vmatpush1.msra.mxu0 0.0
        %1246 = vmatprep.subr.mxu0 0.0
        %1247 = vmatpush1.msra.mxu0 0.0
        %1248 = vmatprep.subr.mxu0 0.0
        %1249 = vmatpush1.msra.mxu0 0.0
        %1250 = vmatprep.subr.mxu0 0.0
        %1251 = vmatpush1.msra.mxu0 0.0
        %1252 = vmatprep.subr.mxu0 0.0
        %1253 = vmatpush1.msra.mxu0 0.0
        %1254 = vmatprep.mubr.f32.mxu0 0.0
        %1255 = vmatmul.mubr.f32.gmra.mrb[0].mxu0 %v1175
        %v1256 = vpop.f32.mrb[0].mxu0
        %v1257 = vadd.f32 0.0, %v1256
        %v1258 = vpop.f32.mrb[0].mxu0
        %1259 = vmatprep.mubr.f32.mxu0 0.0
        %1260 = vmatmul.mubr.f32.gmra.mrb[0].mxu0 %v1178
        %v1261 = vpop.f32.mrb[0].mxu0
        %v1262 = vadd.f32 0.0, %v1261
        %v1263 = vpop.f32.mrb[0].mxu0
        %1264 = vmatprep.mubr.f32.mxu0 0.0
        %1265 = vmatmul.mubr.f32.gmra.mrb[0].mxu0 %v1181
        %v1266 = vpop.f32.mrb[0].mxu0
        %v1267 = vadd.f32 0.0, %v1266
        %v1268 = vpop.f32.mrb[0].mxu0
        %1269 = vmatprep.mubr.f32.mxu0 0.0
        %1270 = vmatmul.mubr.f32.gmra.mrb[0].mxu0 %v1184
        %v1271 = vpop.f32.mrb[0].mxu0
        %v1272 = vadd.f32 0.0, %v1271
        %v1273 = vpop.f32.mrb[0].mxu0
        %1274 = vdwg.mxu0
        %v1275 = vld [vmem:[%s4] sm:$0xff]
        %v1276 = vld [vmem:[%s4 + $0x8] sm:$0xff]
        %v1277 = vld [vmem:[%s4 + $0x10] sm:$0xff]
        %v1278 = vld [vmem:[%s4 + $0x18] sm:$0xff]
        %s1279 = scalar_lea.vmem %s3, 32
        %v1280 = vld [vmem:[%s1279] sm:$0xff]
        %v1281 = vld [vmem:[%s1279 + $0x8] sm:$0xff]
        %v1282 = vld [vmem:[%s1279 + $0x10] sm:$0xff]
        %v1283 = vld [vmem:[%s1279 + $0x18] sm:$0x1]
        %v1285 = vsel %vm1173, %v1280, 0
        %v1288 = vsel %vm1173, %v1281, 0
        %v1291 = vsel %vm1173, %v1282, 0
        %v1294 = vsel %vm1173, %v1283, 0
        %1296 = vmatprep.subr.mxu0 0.0
        %1297 = vmatpush1.msra.mxu0 %v1156
        %1298 = vmatprep.subr.mxu0 0.0
        %1299 = vmatpush1.msra.mxu0 %v1157
        %1300 = vmatprep.subr.mxu0 0.0
        %1301 = vmatpush1.msra.mxu0 %v1158
        %1302 = vmatprep.subr.mxu0 0.0
        %1303 = vmatpush1.msra.mxu0 %v1159
        %1304 = vmatprep.subr.mxu0 0.0
        %1305 = vmatpush1.msra.mxu0 %v1160
        %1306 = vmatprep.subr.mxu0 0.0
        %1307 = vmatpush1.msra.mxu0 %v1161
        %1308 = vmatprep.subr.mxu0 0.0
        %1309 = vmatpush1.msra.mxu0 %v1162
        %1310 = vmatprep.subr.mxu0 0.0
        %1311 = vmatpush1.msra.mxu0 %v1163
        %1312 = vmatprep.subr.mxu0 0.0
        %1313 = vmatpush1.msra.mxu0 %v1164
        %1314 = vmatprep.subr.mxu0 0.0
        %1315 = vmatpush1.msra.mxu0 %v1165
        %1316 = vmatprep.subr.mxu0 0.0
        %1317 = vmatpush1.msra.mxu0 %v1166
        %1318 = vmatprep.subr.mxu0 0.0
        %1319 = vmatpush1.msra.mxu0 %v1167
        %1320 = vmatprep.subr.mxu0 0.0
        %1321 = vmatpush1.msra.mxu0 %v1188
        %1322 = vmatprep.subr.mxu0 0.0
        %1323 = vmatpush1.msra.mxu0 0.0
        %1324 = vmatprep.subr.mxu0 0.0
        %1325 = vmatpush1.msra.mxu0 0.0
        %1326 = vmatprep.subr.mxu0 0.0
        %1327 = vmatpush1.msra.mxu0 0.0
        %1328 = vmatprep.subr.mxu0 0.0
        %1329 = vmatpush1.msra.mxu0 0.0
        %1330 = vmatprep.subr.mxu0 0.0
        %1331 = vmatpush1.msra.mxu0 0.0
        %1332 = vmatprep.subr.mxu0 0.0
        %1333 = vmatpush1.msra.mxu0 0.0
        %1334 = vmatprep.subr.mxu0 0.0
        %1335 = vmatpush1.msra.mxu0 0.0
        %1336 = vmatprep.subr.mxu0 0.0
        %1337 = vmatpush1.msra.mxu0 0.0
        %1338 = vmatprep.subr.mxu0 0.0
        %1339 = vmatpush1.msra.mxu0 0.0
        %1340 = vmatprep.subr.mxu0 0.0
        %1341 = vmatpush1.msra.mxu0 0.0
        %1342 = vmatprep.subr.mxu0 0.0
        %1343 = vmatpush1.msra.mxu0 0.0
        %1344 = vmatprep.subr.mxu0 0.0
        %1345 = vmatpush1.msra.mxu0 0.0
        %1346 = vmatprep.subr.mxu0 0.0
        %1347 = vmatpush1.msra.mxu0 0.0
        %1348 = vmatprep.subr.mxu0 0.0
        %1349 = vmatpush1.msra.mxu0 0.0
        %1350 = vmatprep.subr.mxu0 0.0
        %1351 = vmatpush1.msra.mxu0 0.0
        %1352 = vmatprep.subr.mxu0 0.0
        %1353 = vmatpush1.msra.mxu0 0.0
        %1354 = vmatprep.subr.mxu0 0.0
        %1355 = vmatpush1.msra.mxu0 0.0
        %1356 = vmatprep.subr.mxu0 0.0
        %1357 = vmatpush1.msra.mxu0 0.0
        %1358 = vmatprep.subr.mxu0 0.0
        %1359 = vmatpush1.msra.mxu0 0.0
        %1360 = vmatprep.mubr.f32.mxu0 0.0
        %1361 = vmatmul.mubr.f32.gmra.mrb[0].mxu0 %v1285
        %v1362 = vpop.f32.mrb[0].mxu0
        %v1363 = vadd.f32 0.0, %v1362
        %v1364 = vpop.f32.mrb[0].mxu0
        %1365 = vmatprep.mubr.f32.mxu0 0.0
        %1366 = vmatmul.mubr.f32.gmra.mrb[0].mxu0 %v1288
        %v1367 = vpop.f32.mrb[0].mxu0
        %v1368 = vadd.f32 0.0, %v1367
        %v1369 = vpop.f32.mrb[0].mxu0
        %1370 = vmatprep.mubr.f32.mxu0 0.0
        %1371 = vmatmul.mubr.f32.gmra.mrb[0].mxu0 %v1291
        %v1372 = vpop.f32.mrb[0].mxu0
        %v1373 = vadd.f32 0.0, %v1372
        %v1374 = vpop.f32.mrb[0].mxu0
        %1375 = vmatprep.mubr.f32.mxu0 0.0
        %1376 = vmatmul.mubr.f32.gmra.mrb[0].mxu0 %v1294
        %v1377 = vpop.f32.mrb[0].mxu0
        %v1378 = vadd.f32 0.0, %v1377
        %v1379 = vpop.f32.mrb[0].mxu0
        %1380 = vdwg.mxu0
        %s1381 = scalar_lea.vmem %s4, 32
        %v1382 = vld [vmem:[%s1381] sm:$0xff]
        %v1383 = vld [vmem:[%s1381 + $0x8] sm:$0xff]
        %v1384 = vld [vmem:[%s1381 + $0x10] sm:$0xff]
        %v1385 = vld [vmem:[%s1381 + $0x18] sm:$0xff]
        %vm1386 = vcmask 261120
        %v1388 = vsel %vm1386, %v1363, 0
        %v1391 = vsel %vm1386, %v1368, 0
        %v1394 = vsel %vm1386, %v1373, 0
        %v1397 = vsel %vm1386, %v1378, 0
        %1399 = vmatprep.subr.mxu0 0.0
        %1400 = vmatpush1.msra.mxu0 %v1382
        %1401 = vmatprep.subr.mxu0 0.0
        %1402 = vmatpush1.msra.mxu0 %v1383
        %1403 = vmatprep.subr.mxu0 0.0
        %1404 = vmatpush1.msra.mxu0 %v1384
        %1405 = vmatprep.subr.mxu0 0.0
        %1406 = vmatpush1.msra.mxu0 %v1385
        %1407 = vmatprep.subr.mxu0 0.0
        %1408 = vmatpush1.msra.mxu0 0.0
        %1409 = vmatprep.subr.mxu0 0.0
        %1410 = vmatpush1.msra.mxu0 0.0
        %1411 = vmatprep.subr.mxu0 0.0
        %1412 = vmatpush1.msra.mxu0 0.0
        %1413 = vmatprep.subr.mxu0 0.0
        %1414 = vmatpush1.msra.mxu0 0.0
        %1415 = vmatprep.subr.mxu0 0.0
        %1416 = vmatpush1.msra.mxu0 0.0
        %1417 = vmatprep.subr.mxu0 0.0
        %1418 = vmatpush1.msra.mxu0 0.0
        %1419 = vmatprep.subr.mxu0 0.0
        %1420 = vmatpush1.msra.mxu0 0.0
        %1421 = vmatprep.subr.mxu0 0.0
        %1422 = vmatpush1.msra.mxu0 0.0
        %1423 = vmatprep.subr.mxu0 0.0
        %1424 = vmatpush1.msra.mxu0 0.0
        %1425 = vmatprep.subr.mxu0 0.0
        %1426 = vmatpush1.msra.mxu0 0.0
        %1427 = vmatprep.subr.mxu0 0.0
        %1428 = vmatpush1.msra.mxu0 0.0
        %1429 = vmatprep.subr.mxu0 0.0
        %1430 = vmatpush1.msra.mxu0 0.0
        %1431 = vmatprep.subr.mxu0 0.0
        %1432 = vmatpush1.msra.mxu0 0.0
        %1433 = vmatprep.subr.mxu0 0.0
        %1434 = vmatpush1.msra.mxu0 0.0
        %1435 = vmatprep.subr.mxu0 0.0
        %1436 = vmatpush1.msra.mxu0 0.0
        %1437 = vmatprep.subr.mxu0 0.0
        %1438 = vmatpush1.msra.mxu0 0.0
        %1439 = vmatprep.subr.mxu0 0.0
        %1440 = vmatpush1.msra.mxu0 0.0
        %1441 = vmatprep.subr.mxu0 0.0
        %1442 = vmatpush1.msra.mxu0 0.0
        %1443 = vmatprep.subr.mxu0 0.0
        %1444 = vmatpush1.msra.mxu0 0.0
        %1445 = vmatprep.subr.mxu0 0.0
        %1446 = vmatpush1.msra.mxu0 0.0
        %1447 = vmatprep.subr.mxu0 0.0
        %1448 = vmatpush1.msra.mxu0 0.0
        %1449 = vmatprep.subr.mxu0 0.0
        %1450 = vmatpush1.msra.mxu0 0.0
        %1451 = vmatprep.subr.mxu0 0.0
        %1452 = vmatpush1.msra.mxu0 0.0
        %1453 = vmatprep.subr.mxu0 0.0
        %1454 = vmatpush1.msra.mxu0 0.0
        %1455 = vmatprep.subr.mxu0 0.0
        %1456 = vmatpush1.msra.mxu0 0.0
        %1457 = vmatprep.subr.mxu0 0.0
        %1458 = vmatpush1.msra.mxu0 0.0
        %1459 = vmatprep.subr.mxu0 0.0
        %1460 = vmatpush1.msra.mxu0 0.0
        %1461 = vmatprep.subr.mxu0 0.0
        %1462 = vmatpush1.msra.mxu0 0.0
        %1463 = vmatprep.mubr.f32.mxu0 0.0
        %1464 = vmatmul.mubr.f32.gmra.mrb[0].mxu0 %v1388
        %v1465 = vpop.f32.mrb[0].mxu0
        %v1466 = vadd.f32 0.0, %v1465
        %v1467 = vpop.f32.mrb[0].mxu0
        %1468 = vmatprep.mubr.f32.mxu0 0.0
        %1469 = vmatmul.mubr.f32.gmra.mrb[0].mxu0 %v1391
        %v1470 = vpop.f32.mrb[0].mxu0
        %v1471 = vadd.f32 0.0, %v1470
        %v1472 = vpop.f32.mrb[0].mxu0
        %1473 = vmatprep.mubr.f32.mxu0 0.0
        %1474 = vmatmul.mubr.f32.gmra.mrb[0].mxu0 %v1394
        %v1475 = vpop.f32.mrb[0].mxu0
        %v1476 = vadd.f32 0.0, %v1475
        %v1477 = vpop.f32.mrb[0].mxu0
        %1478 = vmatprep.mubr.f32.mxu0 0.0
        %1479 = vmatmul.mubr.f32.gmra.mrb[0].mxu0 %v1397
        %v1480 = vpop.f32.mrb[0].mxu0
        %v1481 = vadd.f32 0.0, %v1480
        %v1482 = vpop.f32.mrb[0].mxu0
        %1483 = vdwg.mxu0
        %v1485 = vsel %vm1386, %v1257, 0
        %v1488 = vsel %vm1386, %v1262, 0
        %v1491 = vsel %vm1386, %v1267, 0
        %v1494 = vsel %vm1386, %v1272, 0
        %1496 = vmatprep.subr.mxu0 0.0
        %1497 = vmatpush1.msra.mxu0 %v1275
        %1498 = vmatprep.subr.mxu0 0.0
        %1499 = vmatpush1.msra.mxu0 %v1276
        %1500 = vmatprep.subr.mxu0 0.0
        %1501 = vmatpush1.msra.mxu0 %v1277
        %1502 = vmatprep.subr.mxu0 0.0
        %1503 = vmatpush1.msra.mxu0 %v1278
        %1504 = vmatprep.subr.mxu0 0.0
        %1505 = vmatpush1.msra.mxu0 0.0
        %1506 = vmatprep.subr.mxu0 0.0
        %1507 = vmatpush1.msra.mxu0 0.0
        %1508 = vmatprep.subr.mxu0 0.0
        %1509 = vmatpush1.msra.mxu0 0.0
        %1510 = vmatprep.subr.mxu0 0.0
        %1511 = vmatpush1.msra.mxu0 0.0
        %1512 = vmatprep.subr.mxu0 0.0
        %1513 = vmatpush1.msra.mxu0 0.0
        %1514 = vmatprep.subr.mxu0 0.0
        %1515 = vmatpush1.msra.mxu0 0.0
        %1516 = vmatprep.subr.mxu0 0.0
        %1517 = vmatpush1.msra.mxu0 0.0
        %1518 = vmatprep.subr.mxu0 0.0
        %1519 = vmatpush1.msra.mxu0 0.0
        %1520 = vmatprep.subr.mxu0 0.0
        %1521 = vmatpush1.msra.mxu0 0.0
        %1522 = vmatprep.subr.mxu0 0.0
        %1523 = vmatpush1.msra.mxu0 0.0
        %1524 = vmatprep.subr.mxu0 0.0
        %1525 = vmatpush1.msra.mxu0 0.0
        %1526 = vmatprep.subr.mxu0 0.0
        %1527 = vmatpush1.msra.mxu0 0.0
        %1528 = vmatprep.subr.mxu0 0.0
        %1529 = vmatpush1.msra.mxu0 0.0
        %1530 = vmatprep.subr.mxu0 0.0
        %1531 = vmatpush1.msra.mxu0 0.0
        %1532 = vmatprep.subr.mxu0 0.0
        %1533 = vmatpush1.msra.mxu0 0.0
        %1534 = vmatprep.subr.mxu0 0.0
        %1535 = vmatpush1.msra.mxu0 0.0
        %1536 = vmatprep.subr.mxu0 0.0
        %1537 = vmatpush1.msra.mxu0 0.0
        %1538 = vmatprep.subr.mxu0 0.0
        %1539 = vmatpush1.msra.mxu0 0.0
        %1540 = vmatprep.subr.mxu0 0.0
        %1541 = vmatpush1.msra.mxu0 0.0
        %1542 = vmatprep.subr.mxu0 0.0
        %1543 = vmatpush1.msra.mxu0 0.0
        %1544 = vmatprep.subr.mxu0 0.0
        %1545 = vmatpush1.msra.mxu0 0.0
        %1546 = vmatprep.subr.mxu0 0.0
        %1547 = vmatpush1.msra.mxu0 0.0
        %1548 = vmatprep.subr.mxu0 0.0
        %1549 = vmatpush1.msra.mxu0 0.0
        %1550 = vmatprep.subr.mxu0 0.0
        %1551 = vmatpush1.msra.mxu0 0.0
        %1552 = vmatprep.subr.mxu0 0.0
        %1553 = vmatpush1.msra.mxu0 0.0
        %1554 = vmatprep.subr.mxu0 0.0
        %1555 = vmatpush1.msra.mxu0 0.0
        %1556 = vmatprep.subr.mxu0 0.0
        %1557 = vmatpush1.msra.mxu0 0.0
        %1558 = vmatprep.subr.mxu0 0.0
        %1559 = vmatpush1.msra.mxu0 0.0
        %1560 = vmatprep.mubr.f32.mxu0 0.0
        %1561 = vmatmul.mubr.f32.gmra.mrb[0].mxu0 %v1485
        %v1562 = vpop.f32.mrb[0].mxu0
        %v1563 = vadd.f32 %v1466, %v1562
        %v1564 = vpop.f32.mrb[0].mxu0
        %1565 = vmatprep.mubr.f32.mxu0 0.0
        %1566 = vmatmul.mubr.f32.gmra.mrb[0].mxu0 %v1488
        %v1567 = vpop.f32.mrb[0].mxu0
        %v1568 = vadd.f32 %v1471, %v1567
        %v1569 = vpop.f32.mrb[0].mxu0
        %1570 = vmatprep.mubr.f32.mxu0 0.0
        %1571 = vmatmul.mubr.f32.gmra.mrb[0].mxu0 %v1491
        %v1572 = vpop.f32.mrb[0].mxu0
        %v1573 = vadd.f32 %v1476, %v1572
        %v1574 = vpop.f32.mrb[0].mxu0
        %1575 = vmatprep.mubr.f32.mxu0 0.0
        %1576 = vmatmul.mubr.f32.gmra.mrb[0].mxu0 %v1494
        %v1577 = vpop.f32.mrb[0].mxu0
        %v1578 = vadd.f32 %v1481, %v1577
        %v1579 = vpop.f32.mrb[0].mxu0
        %1580 = vdwg.mxu0
        %s1581 = scalar_lea.vmem %s3, 64
        %v1582 = vld [vmem:[%s1581] sm:$0xff]
        %v1583 = vld [vmem:[%s1581 + $0x8] sm:$0xff]
        %v1584 = vld [vmem:[%s1581 + $0x10] sm:$0xff]
        %v1585 = vld [vmem:[%s1581 + $0x18] sm:$0x1]
        %v1587 = vsel %vm1173, %v1582, 0
        %v1590 = vsel %vm1173, %v1583, 0
        %v1593 = vsel %vm1173, %v1584, 0
        %v1596 = vsel %vm1173, %v1585, 0
        %1598 = vmatprep.subr.mxu0 0.0
        %1599 = vmatpush1.msra.mxu0 %v1156
        %1600 = vmatprep.subr.mxu0 0.0
        %1601 = vmatpush1.msra.mxu0 %v1157
        %1602 = vmatprep.subr.mxu0 0.0
        %1603 = vmatpush1.msra.mxu0 %v1158
        %1604 = vmatprep.subr.mxu0 0.0
        %1605 = vmatpush1.msra.mxu0 %v1159
        %1606 = vmatprep.subr.mxu0 0.0
        %1607 = vmatpush1.msra.mxu0 %v1160
        %1608 = vmatprep.subr.mxu0 0.0
        %1609 = vmatpush1.msra.mxu0 %v1161
        %1610 = vmatprep.subr.mxu0 0.0
        %1611 = vmatpush1.msra.mxu0 %v1162
        %1612 = vmatprep.subr.mxu0 0.0
        %1613 = vmatpush1.msra.mxu0 %v1163
        %1614 = vmatprep.subr.mxu0 0.0
        %1615 = vmatpush1.msra.mxu0 %v1164
        %1616 = vmatprep.subr.mxu0 0.0
        %1617 = vmatpush1.msra.mxu0 %v1165
        %1618 = vmatprep.subr.mxu0 0.0
        %1619 = vmatpush1.msra.mxu0 %v1166
        %1620 = vmatprep.subr.mxu0 0.0
        %1621 = vmatpush1.msra.mxu0 %v1167
        %1622 = vmatprep.subr.mxu0 0.0
        %1623 = vmatpush1.msra.mxu0 %v1188
        %1624 = vmatprep.subr.mxu0 0.0
        %1625 = vmatpush1.msra.mxu0 0.0
        %1626 = vmatprep.subr.mxu0 0.0
        %1627 = vmatpush1.msra.mxu0 0.0
        %1628 = vmatprep.subr.mxu0 0.0
        %1629 = vmatpush1.msra.mxu0 0.0
        %1630 = vmatprep.subr.mxu0 0.0
        %1631 = vmatpush1.msra.mxu0 0.0
        %1632 = vmatprep.subr.mxu0 0.0
        %1633 = vmatpush1.msra.mxu0 0.0
        %1634 = vmatprep.subr.mxu0 0.0
        %1635 = vmatpush1.msra.mxu0 0.0
        %1636 = vmatprep.subr.mxu0 0.0
        %1637 = vmatpush1.msra.mxu0 0.0
        %1638 = vmatprep.subr.mxu0 0.0
        %1639 = vmatpush1.msra.mxu0 0.0
        %1640 = vmatprep.subr.mxu0 0.0
        %1641 = vmatpush1.msra.mxu0 0.0
        %1642 = vmatprep.subr.mxu0 0.0
        %1643 = vmatpush1.msra.mxu0 0.0
        %1644 = vmatprep.subr.mxu0 0.0
        %1645 = vmatpush1.msra.mxu0 0.0
        %1646 = vmatprep.subr.mxu0 0.0
        %1647 = vmatpush1.msra.mxu0 0.0
        %1648 = vmatprep.subr.mxu0 0.0
        %1649 = vmatpush1.msra.mxu0 0.0
        %1650 = vmatprep.subr.mxu0 0.0
        %1651 = vmatpush1.msra.mxu0 0.0
        %1652 = vmatprep.subr.mxu0 0.0
        %1653 = vmatpush1.msra.mxu0 0.0
        %1654 = vmatprep.subr.mxu0 0.0
        %1655 = vmatpush1.msra.mxu0 0.0
        %1656 = vmatprep.subr.mxu0 0.0
        %1657 = vmatpush1.msra.mxu0 0.0
        %1658 = vmatprep.subr.mxu0 0.0
        %1659 = vmatpush1.msra.mxu0 0.0
        %1660 = vmatprep.subr.mxu0 0.0
        %1661 = vmatpush1.msra.mxu0 0.0
        %1662 = vmatprep.mubr.f32.mxu0 0.0
        %1663 = vmatmul.mubr.f32.gmra.mrb[0].mxu0 %v1587
        %v1664 = vpop.f32.mrb[0].mxu0
        %v1665 = vadd.f32 0.0, %v1664
        %v1666 = vpop.f32.mrb[0].mxu0
        %1667 = vmatprep.mubr.f32.mxu0 0.0
        %1668 = vmatmul.mubr.f32.gmra.mrb[0].mxu0 %v1590
        %v1669 = vpop.f32.mrb[0].mxu0
        %v1670 = vadd.f32 0.0, %v1669
        %v1671 = vpop.f32.mrb[0].mxu0
        %1672 = vmatprep.mubr.f32.mxu0 0.0
        %1673 = vmatmul.mubr.f32.gmra.mrb[0].mxu0 %v1593
        %v1674 = vpop.f32.mrb[0].mxu0
        %v1675 = vadd.f32 0.0, %v1674
        %v1676 = vpop.f32.mrb[0].mxu0
        %1677 = vmatprep.mubr.f32.mxu0 0.0
        %1678 = vmatmul.mubr.f32.gmra.mrb[0].mxu0 %v1596
        %v1679 = vpop.f32.mrb[0].mxu0
        %v1680 = vadd.f32 0.0, %v1679
        %v1681 = vpop.f32.mrb[0].mxu0
        %1682 = vdwg.mxu0
        %s1683 = scalar_lea.vmem %s4, 64
        %v1684 = vld [vmem:[%s1683] sm:$0xff]
        %v1685 = vld [vmem:[%s1683 + $0x8] sm:$0xff]
        %v1686 = vld [vmem:[%s1683 + $0x10] sm:$0xff]
        %v1687 = vld [vmem:[%s1683 + $0x18] sm:$0xff]
        %v1689 = vsel %vm1386, %v1665, 0
        %v1692 = vsel %vm1386, %v1670, 0
        %v1695 = vsel %vm1386, %v1675, 0
        %v1698 = vsel %vm1386, %v1680, 0
        %1700 = vmatprep.subr.mxu0 0.0
        %1701 = vmatpush1.msra.mxu0 %v1684
        %1702 = vmatprep.subr.mxu0 0.0
        %1703 = vmatpush1.msra.mxu0 %v1685
        %1704 = vmatprep.subr.mxu0 0.0
        %1705 = vmatpush1.msra.mxu0 %v1686
        %1706 = vmatprep.subr.mxu0 0.0
        %1707 = vmatpush1.msra.mxu0 %v1687
        %1708 = vmatprep.subr.mxu0 0.0
        %1709 = vmatpush1.msra.mxu0 0.0
        %1710 = vmatprep.subr.mxu0 0.0
        %1711 = vmatpush1.msra.mxu0 0.0
        %1712 = vmatprep.subr.mxu0 0.0
        %1713 = vmatpush1.msra.mxu0 0.0
        %1714 = vmatprep.subr.mxu0 0.0
        %1715 = vmatpush1.msra.mxu0 0.0
        %1716 = vmatprep.subr.mxu0 0.0
        %1717 = vmatpush1.msra.mxu0 0.0
        %1718 = vmatprep.subr.mxu0 0.0
        %1719 = vmatpush1.msra.mxu0 0.0
        %1720 = vmatprep.subr.mxu0 0.0
        %1721 = vmatpush1.msra.mxu0 0.0
        %1722 = vmatprep.subr.mxu0 0.0
        %1723 = vmatpush1.msra.mxu0 0.0
        %1724 = vmatprep.subr.mxu0 0.0
        %1725 = vmatpush1.msra.mxu0 0.0
        %1726 = vmatprep.subr.mxu0 0.0
        %1727 = vmatpush1.msra.mxu0 0.0
        %1728 = vmatprep.subr.mxu0 0.0
        %1729 = vmatpush1.msra.mxu0 0.0
        %1730 = vmatprep.subr.mxu0 0.0
        %1731 = vmatpush1.msra.mxu0 0.0
        %1732 = vmatprep.subr.mxu0 0.0
        %1733 = vmatpush1.msra.mxu0 0.0
        %1734 = vmatprep.subr.mxu0 0.0
        %1735 = vmatpush1.msra.mxu0 0.0
        %1736 = vmatprep.subr.mxu0 0.0
        %1737 = vmatpush1.msra.mxu0 0.0
        %1738 = vmatprep.subr.mxu0 0.0
        %1739 = vmatpush1.msra.mxu0 0.0
        %1740 = vmatprep.subr.mxu0 0.0
        %1741 = vmatpush1.msra.mxu0 0.0
        %1742 = vmatprep.subr.mxu0 0.0
        %1743 = vmatpush1.msra.mxu0 0.0
        %1744 = vmatprep.subr.mxu0 0.0
        %1745 = vmatpush1.msra.mxu0 0.0
        %1746 = vmatprep.subr.mxu0 0.0
        %1747 = vmatpush1.msra.mxu0 0.0
        %1748 = vmatprep.subr.mxu0 0.0
        %1749 = vmatpush1.msra.mxu0 0.0
        %1750 = vmatprep.subr.mxu0 0.0
        %1751 = vmatpush1.msra.mxu0 0.0
        %1752 = vmatprep.subr.mxu0 0.0
        %1753 = vmatpush1.msra.mxu0 0.0
        %1754 = vmatprep.subr.mxu0 0.0
        %1755 = vmatpush1.msra.mxu0 0.0
        %1756 = vmatprep.subr.mxu0 0.0
        %1757 = vmatpush1.msra.mxu0 0.0
        %1758 = vmatprep.subr.mxu0 0.0
        %1759 = vmatpush1.msra.mxu0 0.0
        %1760 = vmatprep.subr.mxu0 0.0
        %1761 = vmatpush1.msra.mxu0 0.0
        %1762 = vmatprep.subr.mxu0 0.0
        %1763 = vmatpush1.msra.mxu0 0.0
        %1764 = vmatprep.mubr.f32.mxu0 0.0
        %1765 = vmatmul.mubr.f32.gmra.mrb[0].mxu0 %v1689
        %v1766 = vpop.f32.mrb[0].mxu0
        %v1767 = vadd.f32 0.0, %v1766
        %v1768 = vpop.f32.mrb[0].mxu0
        %1769 = vmatprep.mubr.f32.mxu0 0.0
        %1770 = vmatmul.mubr.f32.gmra.mrb[0].mxu0 %v1692
        %v1771 = vpop.f32.mrb[0].mxu0
        %v1772 = vadd.f32 0.0, %v1771
        %v1773 = vpop.f32.mrb[0].mxu0
        %1774 = vmatprep.mubr.f32.mxu0 0.0
        %1775 = vmatmul.mubr.f32.gmra.mrb[0].mxu0 %v1695
        %v1776 = vpop.f32.mrb[0].mxu0
        %v1777 = vadd.f32 0.0, %v1776
        %v1778 = vpop.f32.mrb[0].mxu0
        %1779 = vmatprep.mubr.f32.mxu0 0.0
        %1780 = vmatmul.mubr.f32.gmra.mrb[0].mxu0 %v1698
        %v1781 = vpop.f32.mrb[0].mxu0
        %v1782 = vadd.f32 0.0, %v1781
        %v1783 = vpop.f32.mrb[0].mxu0
        %1784 = vdwg.mxu0
        %v1785 = vadd.f32 %v1563, %v1767
        %v1786 = vadd.f32 %v1568, %v1772
        %v1787 = vadd.f32 %v1573, %v1777
        %v1788 = vadd.f32 %v1578, %v1782
        %s1789 = scalar_lea.vmem %s3, 96
        %v1790 = vld [vmem:[%s1789] sm:$0xff]
        %v1791 = vld [vmem:[%s1789 + $0x8] sm:$0xff]
        %v1792 = vld [vmem:[%s1789 + $0x10] sm:$0xff]
        %v1793 = vld [vmem:[%s1789 + $0x18] sm:$0x1]
        %v1795 = vsel %vm1173, %v1790, 0
        %v1798 = vsel %vm1173, %v1791, 0
        %v1801 = vsel %vm1173, %v1792, 0
        %v1804 = vsel %vm1173, %v1793, 0
        %1806 = vmatprep.subr.mxu0 0.0
        %1807 = vmatpush1.msra.mxu0 %v1156
        %1808 = vmatprep.subr.mxu0 0.0
        %1809 = vmatpush1.msra.mxu0 %v1157
        %1810 = vmatprep.subr.mxu0 0.0
        %1811 = vmatpush1.msra.mxu0 %v1158
        %1812 = vmatprep.subr.mxu0 0.0
        %1813 = vmatpush1.msra.mxu0 %v1159
        %1814 = vmatprep.subr.mxu0 0.0
        %1815 = vmatpush1.msra.mxu0 %v1160
        %1816 = vmatprep.subr.mxu0 0.0
        %1817 = vmatpush1.msra.mxu0 %v1161
        %1818 = vmatprep.subr.mxu0 0.0
        %1819 = vmatpush1.msra.mxu0 %v1162
        %1820 = vmatprep.subr.mxu0 0.0
        %1821 = vmatpush1.msra.mxu0 %v1163
        %1822 = vmatprep.subr.mxu0 0.0
        %1823 = vmatpush1.msra.mxu0 %v1164
        %1824 = vmatprep.subr.mxu0 0.0
        %1825 = vmatpush1.msra.mxu0 %v1165
        %1826 = vmatprep.subr.mxu0 0.0
        %1827 = vmatpush1.msra.mxu0 %v1166
        %1828 = vmatprep.subr.mxu0 0.0
        %1829 = vmatpush1.msra.mxu0 %v1167
        %1830 = vmatprep.subr.mxu0 0.0
        %1831 = vmatpush1.msra.mxu0 %v1188
        %1832 = vmatprep.subr.mxu0 0.0
        %1833 = vmatpush1.msra.mxu0 0.0
        %1834 = vmatprep.subr.mxu0 0.0
        %1835 = vmatpush1.msra.mxu0 0.0
        %1836 = vmatprep.subr.mxu0 0.0
        %1837 = vmatpush1.msra.mxu0 0.0
        %1838 = vmatprep.subr.mxu0 0.0
        %1839 = vmatpush1.msra.mxu0 0.0
        %1840 = vmatprep.subr.mxu0 0.0
        %1841 = vmatpush1.msra.mxu0 0.0
        %1842 = vmatprep.subr.mxu0 0.0
        %1843 = vmatpush1.msra.mxu0 0.0
        %1844 = vmatprep.subr.mxu0 0.0
        %1845 = vmatpush1.msra.mxu0 0.0
        %1846 = vmatprep.subr.mxu0 0.0
        %1847 = vmatpush1.msra.mxu0 0.0
        %1848 = vmatprep.subr.mxu0 0.0
        %1849 = vmatpush1.msra.mxu0 0.0
        %1850 = vmatprep.subr.mxu0 0.0
        %1851 = vmatpush1.msra.mxu0 0.0
        %1852 = vmatprep.subr.mxu0 0.0
        %1853 = vmatpush1.msra.mxu0 0.0
        %1854 = vmatprep.subr.mxu0 0.0
        %1855 = vmatpush1.msra.mxu0 0.0
        %1856 = vmatprep.subr.mxu0 0.0
        %1857 = vmatpush1.msra.mxu0 0.0
        %1858 = vmatprep.subr.mxu0 0.0
        %1859 = vmatpush1.msra.mxu0 0.0
        %1860 = vmatprep.subr.mxu0 0.0
        %1861 = vmatpush1.msra.mxu0 0.0
        %1862 = vmatprep.subr.mxu0 0.0
        %1863 = vmatpush1.msra.mxu0 0.0
        %1864 = vmatprep.subr.mxu0 0.0
        %1865 = vmatpush1.msra.mxu0 0.0
        %1866 = vmatprep.subr.mxu0 0.0
        %1867 = vmatpush1.msra.mxu0 0.0
        %1868 = vmatprep.subr.mxu0 0.0
        %1869 = vmatpush1.msra.mxu0 0.0
        %1870 = vmatprep.mubr.f32.mxu0 0.0
        %1871 = vmatmul.mubr.f32.gmra.mrb[0].mxu0 %v1795
        %v1872 = vpop.f32.mrb[0].mxu0
        %v1873 = vadd.f32 0.0, %v1872
        %v1874 = vpop.f32.mrb[0].mxu0
        %1875 = vmatprep.mubr.f32.mxu0 0.0
        %1876 = vmatmul.mubr.f32.gmra.mrb[0].mxu0 %v1798
        %v1877 = vpop.f32.mrb[0].mxu0
        %v1878 = vadd.f32 0.0, %v1877
        %v1879 = vpop.f32.mrb[0].mxu0
        %1880 = vmatprep.mubr.f32.mxu0 0.0
        %1881 = vmatmul.mubr.f32.gmra.mrb[0].mxu0 %v1801
        %v1882 = vpop.f32.mrb[0].mxu0
        %v1883 = vadd.f32 0.0, %v1882
        %v1884 = vpop.f32.mrb[0].mxu0
        %1885 = vmatprep.mubr.f32.mxu0 0.0
        %1886 = vmatmul.mubr.f32.gmra.mrb[0].mxu0 %v1804
        %v1887 = vpop.f32.mrb[0].mxu0
        %v1888 = vadd.f32 0.0, %v1887
        %v1889 = vpop.f32.mrb[0].mxu0
        %1890 = vdwg.mxu0
        %s1891 = scalar_lea.vmem %s4, 96
        %v1892 = vld [vmem:[%s1891] sm:$0xff]
        %v1893 = vld [vmem:[%s1891 + $0x8] sm:$0xff]
        %v1894 = vld [vmem:[%s1891 + $0x10] sm:$0xff]
        %v1895 = vld [vmem:[%s1891 + $0x18] sm:$0xff]
        %v1897 = vsel %vm1386, %v1873, 0
        %v1900 = vsel %vm1386, %v1878, 0
        %v1903 = vsel %vm1386, %v1883, 0
        %v1906 = vsel %vm1386, %v1888, 0
        %1908 = vmatprep.subr.mxu0 0.0
        %1909 = vmatpush1.msra.mxu0 %v1892
        %1910 = vmatprep.subr.mxu0 0.0
        %1911 = vmatpush1.msra.mxu0 %v1893
        %1912 = vmatprep.subr.mxu0 0.0
        %1913 = vmatpush1.msra.mxu0 %v1894
        %1914 = vmatprep.subr.mxu0 0.0
        %1915 = vmatpush1.msra.mxu0 %v1895
        %1916 = vmatprep.subr.mxu0 0.0
        %1917 = vmatpush1.msra.mxu0 0.0
        %1918 = vmatprep.subr.mxu0 0.0
        %1919 = vmatpush1.msra.mxu0 0.0
        %1920 = vmatprep.subr.mxu0 0.0
        %1921 = vmatpush1.msra.mxu0 0.0
        %1922 = vmatprep.subr.mxu0 0.0
        %1923 = vmatpush1.msra.mxu0 0.0
        %1924 = vmatprep.subr.mxu0 0.0
        %1925 = vmatpush1.msra.mxu0 0.0
        %1926 = vmatprep.subr.mxu0 0.0
        %1927 = vmatpush1.msra.mxu0 0.0
        %1928 = vmatprep.subr.mxu0 0.0
        %1929 = vmatpush1.msra.mxu0 0.0
        %1930 = vmatprep.subr.mxu0 0.0
        %1931 = vmatpush1.msra.mxu0 0.0
        %1932 = vmatprep.subr.mxu0 0.0
        %1933 = vmatpush1.msra.mxu0 0.0
        %1934 = vmatprep.subr.mxu0 0.0
        %1935 = vmatpush1.msra.mxu0 0.0
        %1936 = vmatprep.subr.mxu0 0.0
        %1937 = vmatpush1.msra.mxu0 0.0
        %1938 = vmatprep.subr.mxu0 0.0
        %1939 = vmatpush1.msra.mxu0 0.0
        %1940 = vmatprep.subr.mxu0 0.0
        %1941 = vmatpush1.msra.mxu0 0.0
        %1942 = vmatprep.subr.mxu0 0.0
        %1943 = vmatpush1.msra.mxu0 0.0
        %1944 = vmatprep.subr.mxu0 0.0
        %1945 = vmatpush1.msra.mxu0 0.0
        %1946 = vmatprep.subr.mxu0 0.0
        %1947 = vmatpush1.msra.mxu0 0.0
        %1948 = vmatprep.subr.mxu0 0.0
        %1949 = vmatpush1.msra.mxu0 0.0
        %1950 = vmatprep.subr.mxu0 0.0
        %1951 = vmatpush1.msra.mxu0 0.0
        %1952 = vmatprep.subr.mxu0 0.0
        %1953 = vmatpush1.msra.mxu0 0.0
        %1954 = vmatprep.subr.mxu0 0.0
        %1955 = vmatpush1.msra.mxu0 0.0
        %1956 = vmatprep.subr.mxu0 0.0
        %1957 = vmatpush1.msra.mxu0 0.0
        %1958 = vmatprep.subr.mxu0 0.0
        %1959 = vmatpush1.msra.mxu0 0.0
        %1960 = vmatprep.subr.mxu0 0.0
        %1961 = vmatpush1.msra.mxu0 0.0
        %1962 = vmatprep.subr.mxu0 0.0
        %1963 = vmatpush1.msra.mxu0 0.0
        %1964 = vmatprep.subr.mxu0 0.0
        %1965 = vmatpush1.msra.mxu0 0.0
        %1966 = vmatprep.subr.mxu0 0.0
        %1967 = vmatpush1.msra.mxu0 0.0
        %1968 = vmatprep.subr.mxu0 0.0
        %1969 = vmatpush1.msra.mxu0 0.0
        %1970 = vmatprep.subr.mxu0 0.0
        %1971 = vmatpush1.msra.mxu0 0.0
        %1972 = vmatprep.mubr.f32.mxu0 0.0
        %1973 = vmatmul.mubr.f32.gmra.mrb[0].mxu0 %v1897
        %v1974 = vpop.f32.mrb[0].mxu0
        %v1975 = vadd.f32 0.0, %v1974
        %v1976 = vpop.f32.mrb[0].mxu0
        %1977 = vmatprep.mubr.f32.mxu0 0.0
        %1978 = vmatmul.mubr.f32.gmra.mrb[0].mxu0 %v1900
        %v1979 = vpop.f32.mrb[0].mxu0
        %v1980 = vadd.f32 0.0, %v1979
        %v1981 = vpop.f32.mrb[0].mxu0
        %1982 = vmatprep.mubr.f32.mxu0 0.0
        %1983 = vmatmul.mubr.f32.gmra.mrb[0].mxu0 %v1903
        %v1984 = vpop.f32.mrb[0].mxu0
        %v1985 = vadd.f32 0.0, %v1984
        %v1986 = vpop.f32.mrb[0].mxu0
        %1987 = vmatprep.mubr.f32.mxu0 0.0
        %1988 = vmatmul.mubr.f32.gmra.mrb[0].mxu0 %v1906
        %v1989 = vpop.f32.mrb[0].mxu0
        %v1990 = vadd.f32 0.0, %v1989
        %v1991 = vpop.f32.mrb[0].mxu0
        %1992 = vdwg.mxu0
        %v1993 = vadd.f32 %v1785, %v1975
        %v1994 = vadd.f32 %v1786, %v1980
        %v1995 = vadd.f32 %v1787, %v1985
        %v1996 = vadd.f32 %v1788, %v1990
        %s1997 = scalar_lea.vmem %s3, 128
        %v1998 = vld [vmem:[%s1997] sm:$0xff]
        %v1999 = vld [vmem:[%s1997 + $0x8] sm:$0xff]
        %v2000 = vld [vmem:[%s1997 + $0x10] sm:$0xff]
        %v2001 = vld [vmem:[%s1997 + $0x18] sm:$0x1]
        %v2003 = vsel %vm1173, %v1998, 0
        %v2006 = vsel %vm1173, %v1999, 0
        %v2009 = vsel %vm1173, %v2000, 0
        %v2012 = vsel %vm1173, %v2001, 0
        %2014 = vmatprep.subr.mxu0 0.0
        %2015 = vmatpush1.msra.mxu0 %v1156
        %2016 = vmatprep.subr.mxu0 0.0
        %2017 = vmatpush1.msra.mxu0 %v1157
        %2018 = vmatprep.subr.mxu0 0.0
        %2019 = vmatpush1.msra.mxu0 %v1158
        %2020 = vmatprep.subr.mxu0 0.0
        %2021 = vmatpush1.msra.mxu0 %v1159
        %2022 = vmatprep.subr.mxu0 0.0
        %2023 = vmatpush1.msra.mxu0 %v1160
        %2024 = vmatprep.subr.mxu0 0.0
        %2025 = vmatpush1.msra.mxu0 %v1161
        %2026 = vmatprep.subr.mxu0 0.0
        %2027 = vmatpush1.msra.mxu0 %v1162
        %2028 = vmatprep.subr.mxu0 0.0
        %2029 = vmatpush1.msra.mxu0 %v1163
        %2030 = vmatprep.subr.mxu0 0.0
        %2031 = vmatpush1.msra.mxu0 %v1164
        %2032 = vmatprep.subr.mxu0 0.0
        %2033 = vmatpush1.msra.mxu0 %v1165
        %2034 = vmatprep.subr.mxu0 0.0
        %2035 = vmatpush1.msra.mxu0 %v1166
        %2036 = vmatprep.subr.mxu0 0.0
        %2037 = vmatpush1.msra.mxu0 %v1167
        %2038 = vmatprep.subr.mxu0 0.0
        %2039 = vmatpush1.msra.mxu0 %v1188
        %2040 = vmatprep.subr.mxu0 0.0
        %2041 = vmatpush1.msra.mxu0 0.0
        %2042 = vmatprep.subr.mxu0 0.0
        %2043 = vmatpush1.msra.mxu0 0.0
        %2044 = vmatprep.subr.mxu0 0.0
        %2045 = vmatpush1.msra.mxu0 0.0
        %2046 = vmatprep.subr.mxu0 0.0
        %2047 = vmatpush1.msra.mxu0 0.0
        %2048 = vmatprep.subr.mxu0 0.0
        %2049 = vmatpush1.msra.mxu0 0.0
        %2050 = vmatprep.subr.mxu0 0.0
        %2051 = vmatpush1.msra.mxu0 0.0
        %2052 = vmatprep.subr.mxu0 0.0
        %2053 = vmatpush1.msra.mxu0 0.0
        %2054 = vmatprep.subr.mxu0 0.0
        %2055 = vmatpush1.msra.mxu0 0.0
        %2056 = vmatprep.subr.mxu0 0.0
        %2057 = vmatpush1.msra.mxu0 0.0
        %2058 = vmatprep.subr.mxu0 0.0
        %2059 = vmatpush1.msra.mxu0 0.0
        %2060 = vmatprep.subr.mxu0 0.0
        %2061 = vmatpush1.msra.mxu0 0.0
        %2062 = vmatprep.subr.mxu0 0.0
        %2063 = vmatpush1.msra.mxu0 0.0
        %2064 = vmatprep.subr.mxu0 0.0
        %2065 = vmatpush1.msra.mxu0 0.0
        %2066 = vmatprep.subr.mxu0 0.0
        %2067 = vmatpush1.msra.mxu0 0.0
        %2068 = vmatprep.subr.mxu0 0.0
        %2069 = vmatpush1.msra.mxu0 0.0
        %2070 = vmatprep.subr.mxu0 0.0
        %2071 = vmatpush1.msra.mxu0 0.0
        %2072 = vmatprep.subr.mxu0 0.0
        %2073 = vmatpush1.msra.mxu0 0.0
        %2074 = vmatprep.subr.mxu0 0.0
        %2075 = vmatpush1.msra.mxu0 0.0
        %2076 = vmatprep.subr.mxu0 0.0
        %2077 = vmatpush1.msra.mxu0 0.0
        %2078 = vmatprep.mubr.f32.mxu0 0.0
        %2079 = vmatmul.mubr.f32.gmra.mrb[0].mxu0 %v2003
        %v2080 = vpop.f32.mrb[0].mxu0
        %v2081 = vadd.f32 0.0, %v2080
        %v2082 = vpop.f32.mrb[0].mxu0
        %2083 = vmatprep.mubr.f32.mxu0 0.0
        %2084 = vmatmul.mubr.f32.gmra.mrb[0].mxu0 %v2006
        %v2085 = vpop.f32.mrb[0].mxu0
        %v2086 = vadd.f32 0.0, %v2085
        %v2087 = vpop.f32.mrb[0].mxu0
        %2088 = vmatprep.mubr.f32.mxu0 0.0
        %2089 = vmatmul.mubr.f32.gmra.mrb[0].mxu0 %v2009
        %v2090 = vpop.f32.mrb[0].mxu0
        %v2091 = vadd.f32 0.0, %v2090
        %v2092 = vpop.f32.mrb[0].mxu0
        %2093 = vmatprep.mubr.f32.mxu0 0.0
        %2094 = vmatmul.mubr.f32.gmra.mrb[0].mxu0 %v2012
        %v2095 = vpop.f32.mrb[0].mxu0
        %v2096 = vadd.f32 0.0, %v2095
        %v2097 = vpop.f32.mrb[0].mxu0
        %2098 = vdwg.mxu0
        %s2099 = scalar_lea.vmem %s4, 128
        %v2100 = vld [vmem:[%s2099] sm:$0xff]
        %v2101 = vld [vmem:[%s2099 + $0x8] sm:$0xff]
        %v2102 = vld [vmem:[%s2099 + $0x10] sm:$0xff]
        %v2103 = vld [vmem:[%s2099 + $0x18] sm:$0xff]
        %v2105 = vsel %vm1386, %v2081, 0
        %v2108 = vsel %vm1386, %v2086, 0
        %v2111 = vsel %vm1386, %v2091, 0
        %v2114 = vsel %vm1386, %v2096, 0
        %2116 = vmatprep.subr.mxu0 0.0
        %2117 = vmatpush1.msra.mxu0 %v2100
        %2118 = vmatprep.subr.mxu0 0.0
        %2119 = vmatpush1.msra.mxu0 %v2101
        %2120 = vmatprep.subr.mxu0 0.0
        %2121 = vmatpush1.msra.mxu0 %v2102
        %2122 = vmatprep.subr.mxu0 0.0
        %2123 = vmatpush1.msra.mxu0 %v2103
        %2124 = vmatprep.subr.mxu0 0.0
        %2125 = vmatpush1.msra.mxu0 0.0
        %2126 = vmatprep.subr.mxu0 0.0
        %2127 = vmatpush1.msra.mxu0 0.0
        %2128 = vmatprep.subr.mxu0 0.0
        %2129 = vmatpush1.msra.mxu0 0.0
        %2130 = vmatprep.subr.mxu0 0.0
        %2131 = vmatpush1.msra.mxu0 0.0
        %2132 = vmatprep.subr.mxu0 0.0
        %2133 = vmatpush1.msra.mxu0 0.0
        %2134 = vmatprep.subr.mxu0 0.0
        %2135 = vmatpush1.msra.mxu0 0.0
        %2136 = vmatprep.subr.mxu0 0.0
        %2137 = vmatpush1.msra.mxu0 0.0
        %2138 = vmatprep.subr.mxu0 0.0
        %2139 = vmatpush1.msra.mxu0 0.0
        %2140 = vmatprep.subr.mxu0 0.0
        %2141 = vmatpush1.msra.mxu0 0.0
        %2142 = vmatprep.subr.mxu0 0.0
        %2143 = vmatpush1.msra.mxu0 0.0
        %2144 = vmatprep.subr.mxu0 0.0
        %2145 = vmatpush1.msra.mxu0 0.0
        %2146 = vmatprep.subr.mxu0 0.0
        %2147 = vmatpush1.msra.mxu0 0.0
        %2148 = vmatprep.subr.mxu0 0.0
        %2149 = vmatpush1.msra.mxu0 0.0
        %2150 = vmatprep.subr.mxu0 0.0
        %2151 = vmatpush1.msra.mxu0 0.0
        %2152 = vmatprep.subr.mxu0 0.0
        %2153 = vmatpush1.msra.mxu0 0.0
        %2154 = vmatprep.subr.mxu0 0.0
        %2155 = vmatpush1.msra.mxu0 0.0
        %2156 = vmatprep.subr.mxu0 0.0
        %2157 = vmatpush1.msra.mxu0 0.0
        %2158 = vmatprep.subr.mxu0 0.0
        %2159 = vmatpush1.msra.mxu0 0.0
        %2160 = vmatprep.subr.mxu0 0.0
        %2161 = vmatpush1.msra.mxu0 0.0
        %2162 = vmatprep.subr.mxu0 0.0
        %2163 = vmatpush1.msra.mxu0 0.0
        %2164 = vmatprep.subr.mxu0 0.0
        %2165 = vmatpush1.msra.mxu0 0.0
        %2166 = vmatprep.subr.mxu0 0.0
        %2167 = vmatpush1.msra.mxu0 0.0
        %2168 = vmatprep.subr.mxu0 0.0
        %2169 = vmatpush1.msra.mxu0 0.0
        %2170 = vmatprep.subr.mxu0 0.0
        %2171 = vmatpush1.msra.mxu0 0.0
        %2172 = vmatprep.subr.mxu0 0.0
        %2173 = vmatpush1.msra.mxu0 0.0
        %2174 = vmatprep.subr.mxu0 0.0
        %2175 = vmatpush1.msra.mxu0 0.0
        %2176 = vmatprep.subr.mxu0 0.0
        %2177 = vmatpush1.msra.mxu0 0.0
        %2178 = vmatprep.subr.mxu0 0.0
        %2179 = vmatpush1.msra.mxu0 0.0
        %2180 = vmatprep.mubr.f32.mxu0 0.0
        %2181 = vmatmul.mubr.f32.gmra.mrb[0].mxu0 %v2105
        %v2182 = vpop.f32.mrb[0].mxu0
        %v2183 = vadd.f32 0.0, %v2182
        %v2184 = vpop.f32.mrb[0].mxu0
        %2185 = vmatprep.mubr.f32.mxu0 0.0
        %2186 = vmatmul.mubr.f32.gmra.mrb[0].mxu0 %v2108
        %v2187 = vpop.f32.mrb[0].mxu0
        %v2188 = vadd.f32 0.0, %v2187
        %v2189 = vpop.f32.mrb[0].mxu0
        %2190 = vmatprep.mubr.f32.mxu0 0.0
        %2191 = vmatmul.mubr.f32.gmra.mrb[0].mxu0 %v2111
        %v2192 = vpop.f32.mrb[0].mxu0
        %v2193 = vadd.f32 0.0, %v2192
        %v2194 = vpop.f32.mrb[0].mxu0
        %2195 = vmatprep.mubr.f32.mxu0 0.0
        %2196 = vmatmul.mubr.f32.gmra.mrb[0].mxu0 %v2114
        %v2197 = vpop.f32.mrb[0].mxu0
        %v2198 = vadd.f32 0.0, %v2197
        %v2199 = vpop.f32.mrb[0].mxu0
        %2200 = vdwg.mxu0
        %v2201 = vadd.f32 %v1993, %v2183
        %v2202 = vadd.f32 %v1994, %v2188
        %v2203 = vadd.f32 %v1995, %v2193
        %v2204 = vadd.f32 %v1996, %v2198
        %s2205 = scalar_lea.vmem %s3, 160
        %v2206 = vld [vmem:[%s2205] sm:$0xff]
        %v2207 = vld [vmem:[%s2205 + $0x8] sm:$0xff]
        %v2208 = vld [vmem:[%s2205 + $0x10] sm:$0xff]
        %v2209 = vld [vmem:[%s2205 + $0x18] sm:$0x1]
        %v2211 = vsel %vm1173, %v2206, 0
        %v2214 = vsel %vm1173, %v2207, 0
        %v2217 = vsel %vm1173, %v2208, 0
        %v2220 = vsel %vm1173, %v2209, 0
        %2222 = vmatprep.subr.mxu0 0.0
        %2223 = vmatpush1.msra.mxu0 %v1156
        %2224 = vmatprep.subr.mxu0 0.0
        %2225 = vmatpush1.msra.mxu0 %v1157
        %2226 = vmatprep.subr.mxu0 0.0
        %2227 = vmatpush1.msra.mxu0 %v1158
        %2228 = vmatprep.subr.mxu0 0.0
        %2229 = vmatpush1.msra.mxu0 %v1159
        %2230 = vmatprep.subr.mxu0 0.0
        %2231 = vmatpush1.msra.mxu0 %v1160
        %2232 = vmatprep.subr.mxu0 0.0
        %2233 = vmatpush1.msra.mxu0 %v1161
        %2234 = vmatprep.subr.mxu0 0.0
        %2235 = vmatpush1.msra.mxu0 %v1162
        %2236 = vmatprep.subr.mxu0 0.0
        %2237 = vmatpush1.msra.mxu0 %v1163
        %2238 = vmatprep.subr.mxu0 0.0
        %2239 = vmatpush1.msra.mxu0 %v1164
        %2240 = vmatprep.subr.mxu0 0.0
        %2241 = vmatpush1.msra.mxu0 %v1165
        %2242 = vmatprep.subr.mxu0 0.0
        %2243 = vmatpush1.msra.mxu0 %v1166
        %2244 = vmatprep.subr.mxu0 0.0
        %2245 = vmatpush1.msra.mxu0 %v1167
        %2246 = vmatprep.subr.mxu0 0.0
        %2247 = vmatpush1.msra.mxu0 %v1188
        %2248 = vmatprep.subr.mxu0 0.0
        %2249 = vmatpush1.msra.mxu0 0.0
        %2250 = vmatprep.subr.mxu0 0.0
        %2251 = vmatpush1.msra.mxu0 0.0
        %2252 = vmatprep.subr.mxu0 0.0
        %2253 = vmatpush1.msra.mxu0 0.0
        %2254 = vmatprep.subr.mxu0 0.0
        %2255 = vmatpush1.msra.mxu0 0.0
        %2256 = vmatprep.subr.mxu0 0.0
        %2257 = vmatpush1.msra.mxu0 0.0
        %2258 = vmatprep.subr.mxu0 0.0
        %2259 = vmatpush1.msra.mxu0 0.0
        %2260 = vmatprep.subr.mxu0 0.0
        %2261 = vmatpush1.msra.mxu0 0.0
        %2262 = vmatprep.subr.mxu0 0.0
        %2263 = vmatpush1.msra.mxu0 0.0
        %2264 = vmatprep.subr.mxu0 0.0
        %2265 = vmatpush1.msra.mxu0 0.0
        %2266 = vmatprep.subr.mxu0 0.0
        %2267 = vmatpush1.msra.mxu0 0.0
        %2268 = vmatprep.subr.mxu0 0.0
        %2269 = vmatpush1.msra.mxu0 0.0
        %2270 = vmatprep.subr.mxu0 0.0
        %2271 = vmatpush1.msra.mxu0 0.0
        %2272 = vmatprep.subr.mxu0 0.0
        %2273 = vmatpush1.msra.mxu0 0.0
        %2274 = vmatprep.subr.mxu0 0.0
        %2275 = vmatpush1.msra.mxu0 0.0
        %2276 = vmatprep.subr.mxu0 0.0
        %2277 = vmatpush1.msra.mxu0 0.0
        %2278 = vmatprep.subr.mxu0 0.0
        %2279 = vmatpush1.msra.mxu0 0.0
        %2280 = vmatprep.subr.mxu0 0.0
        %2281 = vmatpush1.msra.mxu0 0.0
        %2282 = vmatprep.subr.mxu0 0.0
        %2283 = vmatpush1.msra.mxu0 0.0
        %2284 = vmatprep.subr.mxu0 0.0
        %2285 = vmatpush1.msra.mxu0 0.0
        %2286 = vmatprep.mubr.f32.mxu0 0.0
        %2287 = vmatmul.mubr.f32.gmra.mrb[0].mxu0 %v2211
        %v2288 = vpop.f32.mrb[0].mxu0
        %v2289 = vadd.f32 0.0, %v2288
        %v2290 = vpop.f32.mrb[0].mxu0
        %2291 = vmatprep.mubr.f32.mxu0 0.0
        %2292 = vmatmul.mubr.f32.gmra.mrb[0].mxu0 %v2214
        %v2293 = vpop.f32.mrb[0].mxu0
        %v2294 = vadd.f32 0.0, %v2293
        %v2295 = vpop.f32.mrb[0].mxu0
        %2296 = vmatprep.mubr.f32.mxu0 0.0
        %2297 = vmatmul.mubr.f32.gmra.mrb[0].mxu0 %v2217
        %v2298 = vpop.f32.mrb[0].mxu0
        %v2299 = vadd.f32 0.0, %v2298
        %v2300 = vpop.f32.mrb[0].mxu0
        %2301 = vmatprep.mubr.f32.mxu0 0.0
        %2302 = vmatmul.mubr.f32.gmra.mrb[0].mxu0 %v2220
        %v2303 = vpop.f32.mrb[0].mxu0
        %v2304 = vadd.f32 0.0, %v2303
        %v2305 = vpop.f32.mrb[0].mxu0
        %2306 = vdwg.mxu0
        %s2307 = scalar_lea.vmem %s4, 160
        %v2308 = vld [vmem:[%s2307] sm:$0xff]
        %v2309 = vld [vmem:[%s2307 + $0x8] sm:$0xff]
        %v2310 = vld [vmem:[%s2307 + $0x10] sm:$0xff]
        %v2311 = vld [vmem:[%s2307 + $0x18] sm:$0xff]
        %v2313 = vsel %vm1386, %v2289, 0
        %v2316 = vsel %vm1386, %v2294, 0
        %v2319 = vsel %vm1386, %v2299, 0
        %v2322 = vsel %vm1386, %v2304, 0
        %2324 = vmatprep.subr.mxu0 0.0
        %2325 = vmatpush1.msra.mxu0 %v2308
        %2326 = vmatprep.subr.mxu0 0.0
        %2327 = vmatpush1.msra.mxu0 %v2309
        %2328 = vmatprep.subr.mxu0 0.0
        %2329 = vmatpush1.msra.mxu0 %v2310
        %2330 = vmatprep.subr.mxu0 0.0
        %2331 = vmatpush1.msra.mxu0 %v2311
        %2332 = vmatprep.subr.mxu0 0.0
        %2333 = vmatpush1.msra.mxu0 0.0
        %2334 = vmatprep.subr.mxu0 0.0
        %2335 = vmatpush1.msra.mxu0 0.0
        %2336 = vmatprep.subr.mxu0 0.0
        %2337 = vmatpush1.msra.mxu0 0.0
        %2338 = vmatprep.subr.mxu0 0.0
        %2339 = vmatpush1.msra.mxu0 0.0
        %2340 = vmatprep.subr.mxu0 0.0
        %2341 = vmatpush1.msra.mxu0 0.0
        %2342 = vmatprep.subr.mxu0 0.0
        %2343 = vmatpush1.msra.mxu0 0.0
        %2344 = vmatprep.subr.mxu0 0.0
        %2345 = vmatpush1.msra.mxu0 0.0
        %2346 = vmatprep.subr.mxu0 0.0
        %2347 = vmatpush1.msra.mxu0 0.0
        %2348 = vmatprep.subr.mxu0 0.0
        %2349 = vmatpush1.msra.mxu0 0.0
        %2350 = vmatprep.subr.mxu0 0.0
        %2351 = vmatpush1.msra.mxu0 0.0
        %2352 = vmatprep.subr.mxu0 0.0
        %2353 = vmatpush1.msra.mxu0 0.0
        %2354 = vmatprep.subr.mxu0 0.0
        %2355 = vmatpush1.msra.mxu0 0.0
        %2356 = vmatprep.subr.mxu0 0.0
        %2357 = vmatpush1.msra.mxu0 0.0
        %2358 = vmatprep.subr.mxu0 0.0
        %2359 = vmatpush1.msra.mxu0 0.0
        %2360 = vmatprep.subr.mxu0 0.0
        %2361 = vmatpush1.msra.mxu0 0.0
        %2362 = vmatprep.subr.mxu0 0.0
        %2363 = vmatpush1.msra.mxu0 0.0
        %2364 = vmatprep.subr.mxu0 0.0
        %2365 = vmatpush1.msra.mxu0 0.0
        %2366 = vmatprep.subr.mxu0 0.0
        %2367 = vmatpush1.msra.mxu0 0.0
        %2368 = vmatprep.subr.mxu0 0.0
        %2369 = vmatpush1.msra.mxu0 0.0
        %2370 = vmatprep.subr.mxu0 0.0
        %2371 = vmatpush1.msra.mxu0 0.0
        %2372 = vmatprep.subr.mxu0 0.0
        %2373 = vmatpush1.msra.mxu0 0.0
        %2374 = vmatprep.subr.mxu0 0.0
        %2375 = vmatpush1.msra.mxu0 0.0
        %2376 = vmatprep.subr.mxu0 0.0
        %2377 = vmatpush1.msra.mxu0 0.0
        %2378 = vmatprep.subr.mxu0 0.0
        %2379 = vmatpush1.msra.mxu0 0.0
        %2380 = vmatprep.subr.mxu0 0.0
        %2381 = vmatpush1.msra.mxu0 0.0
        %2382 = vmatprep.subr.mxu0 0.0
        %2383 = vmatpush1.msra.mxu0 0.0
        %2384 = vmatprep.subr.mxu0 0.0
        %2385 = vmatpush1.msra.mxu0 0.0
        %2386 = vmatprep.subr.mxu0 0.0
        %2387 = vmatpush1.msra.mxu0 0.0
        %2388 = vmatprep.mubr.f32.mxu0 0.0
        %2389 = vmatmul.mubr.f32.gmra.mrb[0].mxu0 %v2313
        %v2390 = vpop.f32.mrb[0].mxu0
        %v2391 = vadd.f32 0.0, %v2390
        %v2392 = vpop.f32.mrb[0].mxu0
        %2393 = vmatprep.mubr.f32.mxu0 0.0
        %2394 = vmatmul.mubr.f32.gmra.mrb[0].mxu0 %v2316
        %v2395 = vpop.f32.mrb[0].mxu0
        %v2396 = vadd.f32 0.0, %v2395
        %v2397 = vpop.f32.mrb[0].mxu0
        %2398 = vmatprep.mubr.f32.mxu0 0.0
        %2399 = vmatmul.mubr.f32.gmra.mrb[0].mxu0 %v2319
        %v2400 = vpop.f32.mrb[0].mxu0
        %v2401 = vadd.f32 0.0, %v2400
        %v2402 = vpop.f32.mrb[0].mxu0
        %2403 = vmatprep.mubr.f32.mxu0 0.0
        %2404 = vmatmul.mubr.f32.gmra.mrb[0].mxu0 %v2322
        %v2405 = vpop.f32.mrb[0].mxu0
        %v2406 = vadd.f32 0.0, %v2405
        %v2407 = vpop.f32.mrb[0].mxu0
        %2408 = vdwg.mxu0
        %v2409 = vadd.f32 %v2201, %v2391
        %v2410 = vadd.f32 %v2202, %v2396
        %v2411 = vadd.f32 %v2203, %v2401
        %v2412 = vadd.f32 %v2204, %v2406
        %s2413 = scalar_lea.vmem %s3, 192
        %v2414 = vld [vmem:[%s2413] sm:$0xff]
        %v2415 = vld [vmem:[%s2413 + $0x8] sm:$0xff]
        %v2416 = vld [vmem:[%s2413 + $0x10] sm:$0xff]
        %v2417 = vld [vmem:[%s2413 + $0x18] sm:$0x1]
        %v2419 = vsel %vm1173, %v2414, 0
        %v2422 = vsel %vm1173, %v2415, 0
        %v2425 = vsel %vm1173, %v2416, 0
        %v2428 = vsel %vm1173, %v2417, 0
        %2430 = vmatprep.subr.mxu0 0.0
        %2431 = vmatpush1.msra.mxu0 %v1156
        %2432 = vmatprep.subr.mxu0 0.0
        %2433 = vmatpush1.msra.mxu0 %v1157
        %2434 = vmatprep.subr.mxu0 0.0
        %2435 = vmatpush1.msra.mxu0 %v1158
        %2436 = vmatprep.subr.mxu0 0.0
        %2437 = vmatpush1.msra.mxu0 %v1159
        %2438 = vmatprep.subr.mxu0 0.0
        %2439 = vmatpush1.msra.mxu0 %v1160
        %2440 = vmatprep.subr.mxu0 0.0
        %2441 = vmatpush1.msra.mxu0 %v1161
        %2442 = vmatprep.subr.mxu0 0.0
        %2443 = vmatpush1.msra.mxu0 %v1162
        %2444 = vmatprep.subr.mxu0 0.0
        %2445 = vmatpush1.msra.mxu0 %v1163
        %2446 = vmatprep.subr.mxu0 0.0
        %2447 = vmatpush1.msra.mxu0 %v1164
        %2448 = vmatprep.subr.mxu0 0.0
        %2449 = vmatpush1.msra.mxu0 %v1165
        %2450 = vmatprep.subr.mxu0 0.0
        %2451 = vmatpush1.msra.mxu0 %v1166
        %2452 = vmatprep.subr.mxu0 0.0
        %2453 = vmatpush1.msra.mxu0 %v1167
        %2454 = vmatprep.subr.mxu0 0.0
        %2455 = vmatpush1.msra.mxu0 %v1188
        %2456 = vmatprep.subr.mxu0 0.0
        %2457 = vmatpush1.msra.mxu0 0.0
        %2458 = vmatprep.subr.mxu0 0.0
        %2459 = vmatpush1.msra.mxu0 0.0
        %2460 = vmatprep.subr.mxu0 0.0
        %2461 = vmatpush1.msra.mxu0 0.0
        %2462 = vmatprep.subr.mxu0 0.0
        %2463 = vmatpush1.msra.mxu0 0.0
        %2464 = vmatprep.subr.mxu0 0.0
        %2465 = vmatpush1.msra.mxu0 0.0
        %2466 = vmatprep.subr.mxu0 0.0
        %2467 = vmatpush1.msra.mxu0 0.0
        %2468 = vmatprep.subr.mxu0 0.0
        %2469 = vmatpush1.msra.mxu0 0.0
        %2470 = vmatprep.subr.mxu0 0.0
        %2471 = vmatpush1.msra.mxu0 0.0
        %2472 = vmatprep.subr.mxu0 0.0
        %2473 = vmatpush1.msra.mxu0 0.0
        %2474 = vmatprep.subr.mxu0 0.0
        %2475 = vmatpush1.msra.mxu0 0.0
        %2476 = vmatprep.subr.mxu0 0.0
        %2477 = vmatpush1.msra.mxu0 0.0
        %2478 = vmatprep.subr.mxu0 0.0
        %2479 = vmatpush1.msra.mxu0 0.0
        %2480 = vmatprep.subr.mxu0 0.0
        %2481 = vmatpush1.msra.mxu0 0.0
        %2482 = vmatprep.subr.mxu0 0.0
        %2483 = vmatpush1.msra.mxu0 0.0
        %2484 = vmatprep.subr.mxu0 0.0
        %2485 = vmatpush1.msra.mxu0 0.0
        %2486 = vmatprep.subr.mxu0 0.0
        %2487 = vmatpush1.msra.mxu0 0.0
        %2488 = vmatprep.subr.mxu0 0.0
        %2489 = vmatpush1.msra.mxu0 0.0
        %2490 = vmatprep.subr.mxu0 0.0
        %2491 = vmatpush1.msra.mxu0 0.0
        %2492 = vmatprep.subr.mxu0 0.0
        %2493 = vmatpush1.msra.mxu0 0.0
        %2494 = vmatprep.mubr.f32.mxu0 0.0
        %2495 = vmatmul.mubr.f32.gmra.mrb[0].mxu0 %v2419
        %v2496 = vpop.f32.mrb[0].mxu0
        %v2497 = vadd.f32 0.0, %v2496
        %v2498 = vpop.f32.mrb[0].mxu0
        %2499 = vmatprep.mubr.f32.mxu0 0.0
        %2500 = vmatmul.mubr.f32.gmra.mrb[0].mxu0 %v2422
        %v2501 = vpop.f32.mrb[0].mxu0
        %v2502 = vadd.f32 0.0, %v2501
        %v2503 = vpop.f32.mrb[0].mxu0
        %2504 = vmatprep.mubr.f32.mxu0 0.0
        %2505 = vmatmul.mubr.f32.gmra.mrb[0].mxu0 %v2425
        %v2506 = vpop.f32.mrb[0].mxu0
        %v2507 = vadd.f32 0.0, %v2506
        %v2508 = vpop.f32.mrb[0].mxu0
        %2509 = vmatprep.mubr.f32.mxu0 0.0
        %2510 = vmatmul.mubr.f32.gmra.mrb[0].mxu0 %v2428
        %v2511 = vpop.f32.mrb[0].mxu0
        %v2512 = vadd.f32 0.0, %v2511
        %v2513 = vpop.f32.mrb[0].mxu0
        %2514 = vdwg.mxu0
        %s2515 = scalar_lea.vmem %s4, 192
        %v2516 = vld [vmem:[%s2515] sm:$0xff]
        %v2517 = vld [vmem:[%s2515 + $0x8] sm:$0xff]
        %v2518 = vld [vmem:[%s2515 + $0x10] sm:$0xff]
        %v2519 = vld [vmem:[%s2515 + $0x18] sm:$0xff]
        %v2521 = vsel %vm1386, %v2497, 0
        %v2524 = vsel %vm1386, %v2502, 0
        %v2527 = vsel %vm1386, %v2507, 0
        %v2530 = vsel %vm1386, %v2512, 0
        %2532 = vmatprep.subr.mxu0 0.0
        %2533 = vmatpush1.msra.mxu0 %v2516
        %2534 = vmatprep.subr.mxu0 0.0
        %2535 = vmatpush1.msra.mxu0 %v2517
        %2536 = vmatprep.subr.mxu0 0.0
        %2537 = vmatpush1.msra.mxu0 %v2518
        %2538 = vmatprep.subr.mxu0 0.0
        %2539 = vmatpush1.msra.mxu0 %v2519
        %2540 = vmatprep.subr.mxu0 0.0
        %2541 = vmatpush1.msra.mxu0 0.0
        %2542 = vmatprep.subr.mxu0 0.0
        %2543 = vmatpush1.msra.mxu0 0.0
        %2544 = vmatprep.subr.mxu0 0.0
        %2545 = vmatpush1.msra.mxu0 0.0
        %2546 = vmatprep.subr.mxu0 0.0
        %2547 = vmatpush1.msra.mxu0 0.0
        %2548 = vmatprep.subr.mxu0 0.0
        %2549 = vmatpush1.msra.mxu0 0.0
        %2550 = vmatprep.subr.mxu0 0.0
        %2551 = vmatpush1.msra.mxu0 0.0
        %2552 = vmatprep.subr.mxu0 0.0
        %2553 = vmatpush1.msra.mxu0 0.0
        %2554 = vmatprep.subr.mxu0 0.0
        %2555 = vmatpush1.msra.mxu0 0.0
        %2556 = vmatprep.subr.mxu0 0.0
        %2557 = vmatpush1.msra.mxu0 0.0
        %2558 = vmatprep.subr.mxu0 0.0
        %2559 = vmatpush1.msra.mxu0 0.0
        %2560 = vmatprep.subr.mxu0 0.0
        %2561 = vmatpush1.msra.mxu0 0.0
        %2562 = vmatprep.subr.mxu0 0.0
        %2563 = vmatpush1.msra.mxu0 0.0
        %2564 = vmatprep.subr.mxu0 0.0
        %2565 = vmatpush1.msra.mxu0 0.0
        %2566 = vmatprep.subr.mxu0 0.0
        %2567 = vmatpush1.msra.mxu0 0.0
        %2568 = vmatprep.subr.mxu0 0.0
        %2569 = vmatpush1.msra.mxu0 0.0
        %2570 = vmatprep.subr.mxu0 0.0
        %2571 = vmatpush1.msra.mxu0 0.0
        %2572 = vmatprep.subr.mxu0 0.0
        %2573 = vmatpush1.msra.mxu0 0.0
        %2574 = vmatprep.subr.mxu0 0.0
        %2575 = vmatpush1.msra.mxu0 0.0
        %2576 = vmatprep.subr.mxu0 0.0
        %2577 = vmatpush1.msra.mxu0 0.0
        %2578 = vmatprep.subr.mxu0 0.0
        %2579 = vmatpush1.msra.mxu0 0.0
        %2580 = vmatprep.subr.mxu0 0.0
        %2581 = vmatpush1.msra.mxu0 0.0
        %2582 = vmatprep.subr.mxu0 0.0
        %2583 = vmatpush1.msra.mxu0 0.0
        %2584 = vmatprep.subr.mxu0 0.0
        %2585 = vmatpush1.msra.mxu0 0.0
        %2586 = vmatprep.subr.mxu0 0.0
        %2587 = vmatpush1.msra.mxu0 0.0
        %2588 = vmatprep.subr.mxu0 0.0
        %2589 = vmatpush1.msra.mxu0 0.0
        %2590 = vmatprep.subr.mxu0 0.0
        %2591 = vmatpush1.msra.mxu0 0.0
        %2592 = vmatprep.subr.mxu0 0.0
        %2593 = vmatpush1.msra.mxu0 0.0
        %2594 = vmatprep.subr.mxu0 0.0
        %2595 = vmatpush1.msra.mxu0 0.0
        %2596 = vmatprep.mubr.f32.mxu0 0.0
        %2597 = vmatmul.mubr.f32.gmra.mrb[0].mxu0 %v2521
        %v2598 = vpop.f32.mrb[0].mxu0
        %v2599 = vadd.f32 0.0, %v2598
        %v2600 = vpop.f32.mrb[0].mxu0
        %2601 = vmatprep.mubr.f32.mxu0 0.0
        %2602 = vmatmul.mubr.f32.gmra.mrb[0].mxu0 %v2524
        %v2603 = vpop.f32.mrb[0].mxu0
        %v2604 = vadd.f32 0.0, %v2603
        %v2605 = vpop.f32.mrb[0].mxu0
        %2606 = vmatprep.mubr.f32.mxu0 0.0
        %2607 = vmatmul.mubr.f32.gmra.mrb[0].mxu0 %v2527
        %v2608 = vpop.f32.mrb[0].mxu0
        %v2609 = vadd.f32 0.0, %v2608
        %v2610 = vpop.f32.mrb[0].mxu0
        %2611 = vmatprep.mubr.f32.mxu0 0.0
        %2612 = vmatmul.mubr.f32.gmra.mrb[0].mxu0 %v2530
        %v2613 = vpop.f32.mrb[0].mxu0
        %v2614 = vadd.f32 0.0, %v2613
        %v2615 = vpop.f32.mrb[0].mxu0
        %2616 = vdwg.mxu0
        %v2617 = vadd.f32 %v2409, %v2599
        %v2618 = vadd.f32 %v2410, %v2604
        %v2619 = vadd.f32 %v2411, %v2609
        %v2620 = vadd.f32 %v2412, %v2614
        %s2621 = scalar_lea.vmem %s3, 224
        %v2622 = vld [vmem:[%s2621] sm:$0xff]
        %v2623 = vld [vmem:[%s2621 + $0x8] sm:$0xff]
        %v2624 = vld [vmem:[%s2621 + $0x10] sm:$0xff]
        %v2625 = vld [vmem:[%s2621 + $0x18] sm:$0x1]
        %v2627 = vsel %vm1173, %v2622, 0
        %v2630 = vsel %vm1173, %v2623, 0
        %v2633 = vsel %vm1173, %v2624, 0
        %v2636 = vsel %vm1173, %v2625, 0
        %2638 = vmatprep.subr.mxu0 0.0
        %2639 = vmatpush1.msra.mxu0 %v1156
        %2640 = vmatprep.subr.mxu0 0.0
        %2641 = vmatpush1.msra.mxu0 %v1157
        %2642 = vmatprep.subr.mxu0 0.0
        %2643 = vmatpush1.msra.mxu0 %v1158
        %2644 = vmatprep.subr.mxu0 0.0
        %2645 = vmatpush1.msra.mxu0 %v1159
        %2646 = vmatprep.subr.mxu0 0.0
        %2647 = vmatpush1.msra.mxu0 %v1160
        %2648 = vmatprep.subr.mxu0 0.0
        %2649 = vmatpush1.msra.mxu0 %v1161
        %2650 = vmatprep.subr.mxu0 0.0
        %2651 = vmatpush1.msra.mxu0 %v1162
        %2652 = vmatprep.subr.mxu0 0.0
        %2653 = vmatpush1.msra.mxu0 %v1163
        %2654 = vmatprep.subr.mxu0 0.0
        %2655 = vmatpush1.msra.mxu0 %v1164
        %2656 = vmatprep.subr.mxu0 0.0
        %2657 = vmatpush1.msra.mxu0 %v1165
        %2658 = vmatprep.subr.mxu0 0.0
        %2659 = vmatpush1.msra.mxu0 %v1166
        %2660 = vmatprep.subr.mxu0 0.0
        %2661 = vmatpush1.msra.mxu0 %v1167
        %2662 = vmatprep.subr.mxu0 0.0
        %2663 = vmatpush1.msra.mxu0 %v1188
        %2664 = vmatprep.subr.mxu0 0.0
        %2665 = vmatpush1.msra.mxu0 0.0
        %2666 = vmatprep.subr.mxu0 0.0
        %2667 = vmatpush1.msra.mxu0 0.0
        %2668 = vmatprep.subr.mxu0 0.0
        %2669 = vmatpush1.msra.mxu0 0.0
        %2670 = vmatprep.subr.mxu0 0.0
        %2671 = vmatpush1.msra.mxu0 0.0
        %2672 = vmatprep.subr.mxu0 0.0
        %2673 = vmatpush1.msra.mxu0 0.0
        %2674 = vmatprep.subr.mxu0 0.0
        %2675 = vmatpush1.msra.mxu0 0.0
        %2676 = vmatprep.subr.mxu0 0.0
        %2677 = vmatpush1.msra.mxu0 0.0
        %2678 = vmatprep.subr.mxu0 0.0
        %2679 = vmatpush1.msra.mxu0 0.0
        %2680 = vmatprep.subr.mxu0 0.0
        %2681 = vmatpush1.msra.mxu0 0.0
        %2682 = vmatprep.subr.mxu0 0.0
        %2683 = vmatpush1.msra.mxu0 0.0
        %2684 = vmatprep.subr.mxu0 0.0
        %2685 = vmatpush1.msra.mxu0 0.0
        %2686 = vmatprep.subr.mxu0 0.0
        %2687 = vmatpush1.msra.mxu0 0.0
        %2688 = vmatprep.subr.mxu0 0.0
        %2689 = vmatpush1.msra.mxu0 0.0
        %2690 = vmatprep.subr.mxu0 0.0
        %2691 = vmatpush1.msra.mxu0 0.0
        %2692 = vmatprep.subr.mxu0 0.0
        %2693 = vmatpush1.msra.mxu0 0.0
        %2694 = vmatprep.subr.mxu0 0.0
        %2695 = vmatpush1.msra.mxu0 0.0
        %2696 = vmatprep.subr.mxu0 0.0
        %2697 = vmatpush1.msra.mxu0 0.0
        %2698 = vmatprep.subr.mxu0 0.0
        %2699 = vmatpush1.msra.mxu0 0.0
        %2700 = vmatprep.subr.mxu0 0.0
        %2701 = vmatpush1.msra.mxu0 0.0
        %2702 = vmatprep.mubr.f32.mxu0 0.0
        %2703 = vmatmul.mubr.f32.gmra.mrb[0].mxu0 %v2627
        %v2704 = vpop.f32.mrb[0].mxu0
        %v2705 = vadd.f32 0.0, %v2704
        %v2706 = vpop.f32.mrb[0].mxu0
        %2707 = vmatprep.mubr.f32.mxu0 0.0
        %2708 = vmatmul.mubr.f32.gmra.mrb[0].mxu0 %v2630
        %v2709 = vpop.f32.mrb[0].mxu0
        %v2710 = vadd.f32 0.0, %v2709
        %v2711 = vpop.f32.mrb[0].mxu0
        %2712 = vmatprep.mubr.f32.mxu0 0.0
        %2713 = vmatmul.mubr.f32.gmra.mrb[0].mxu0 %v2633
        %v2714 = vpop.f32.mrb[0].mxu0
        %v2715 = vadd.f32 0.0, %v2714
        %v2716 = vpop.f32.mrb[0].mxu0
        %2717 = vmatprep.mubr.f32.mxu0 0.0
        %2718 = vmatmul.mubr.f32.gmra.mrb[0].mxu0 %v2636
        %v2719 = vpop.f32.mrb[0].mxu0
        %v2720 = vadd.f32 0.0, %v2719
        %v2721 = vpop.f32.mrb[0].mxu0
        %2722 = vdwg.mxu0
        %s2723 = scalar_lea.vmem %s4, 224
        %v2724 = vld [vmem:[%s2723] sm:$0xff]
        %v2725 = vld [vmem:[%s2723 + $0x8] sm:$0xff]
        %v2726 = vld [vmem:[%s2723 + $0x10] sm:$0xff]
        %v2727 = vld [vmem:[%s2723 + $0x18] sm:$0xff]
        %v2729 = vsel %vm1386, %v2705, 0
        %v2732 = vsel %vm1386, %v2710, 0
        %v2735 = vsel %vm1386, %v2715, 0
        %v2738 = vsel %vm1386, %v2720, 0
        %2740 = vmatprep.subr.mxu0 0.0
        %2741 = vmatpush1.msra.mxu0 %v2724
        %2742 = vmatprep.subr.mxu0 0.0
        %2743 = vmatpush1.msra.mxu0 %v2725
        %2744 = vmatprep.subr.mxu0 0.0
        %2745 = vmatpush1.msra.mxu0 %v2726
        %2746 = vmatprep.subr.mxu0 0.0
        %2747 = vmatpush1.msra.mxu0 %v2727
        %2748 = vmatprep.subr.mxu0 0.0
        %2749 = vmatpush1.msra.mxu0 0.0
        %2750 = vmatprep.subr.mxu0 0.0
        %2751 = vmatpush1.msra.mxu0 0.0
        %2752 = vmatprep.subr.mxu0 0.0
        %2753 = vmatpush1.msra.mxu0 0.0
        %2754 = vmatprep.subr.mxu0 0.0
        %2755 = vmatpush1.msra.mxu0 0.0
        %2756 = vmatprep.subr.mxu0 0.0
        %2757 = vmatpush1.msra.mxu0 0.0
        %2758 = vmatprep.subr.mxu0 0.0
        %2759 = vmatpush1.msra.mxu0 0.0
        %2760 = vmatprep.subr.mxu0 0.0
        %2761 = vmatpush1.msra.mxu0 0.0
        %2762 = vmatprep.subr.mxu0 0.0
        %2763 = vmatpush1.msra.mxu0 0.0
        %2764 = vmatprep.subr.mxu0 0.0
        %2765 = vmatpush1.msra.mxu0 0.0
        %2766 = vmatprep.subr.mxu0 0.0
        %2767 = vmatpush1.msra.mxu0 0.0
        %2768 = vmatprep.subr.mxu0 0.0
        %2769 = vmatpush1.msra.mxu0 0.0
        %2770 = vmatprep.subr.mxu0 0.0
        %2771 = vmatpush1.msra.mxu0 0.0
        %2772 = vmatprep.subr.mxu0 0.0
        %2773 = vmatpush1.msra.mxu0 0.0
        %2774 = vmatprep.subr.mxu0 0.0
        %2775 = vmatpush1.msra.mxu0 0.0
        %2776 = vmatprep.subr.mxu0 0.0
        %2777 = vmatpush1.msra.mxu0 0.0
        %2778 = vmatprep.subr.mxu0 0.0
        %2779 = vmatpush1.msra.mxu0 0.0
        %2780 = vmatprep.subr.mxu0 0.0
        %2781 = vmatpush1.msra.mxu0 0.0
        %2782 = vmatprep.subr.mxu0 0.0
        %2783 = vmatpush1.msra.mxu0 0.0
        %2784 = vmatprep.subr.mxu0 0.0
        %2785 = vmatpush1.msra.mxu0 0.0
        %2786 = vmatprep.subr.mxu0 0.0
        %2787 = vmatpush1.msra.mxu0 0.0
        %2788 = vmatprep.subr.mxu0 0.0
        %2789 = vmatpush1.msra.mxu0 0.0
        %2790 = vmatprep.subr.mxu0 0.0
        %2791 = vmatpush1.msra.mxu0 0.0
        %2792 = vmatprep.subr.mxu0 0.0
        %2793 = vmatpush1.msra.mxu0 0.0
        %2794 = vmatprep.subr.mxu0 0.0
        %2795 = vmatpush1.msra.mxu0 0.0
        %2796 = vmatprep.subr.mxu0 0.0
        %2797 = vmatpush1.msra.mxu0 0.0
        %2798 = vmatprep.subr.mxu0 0.0
        %2799 = vmatpush1.msra.mxu0 0.0
        %2800 = vmatprep.subr.mxu0 0.0
        %2801 = vmatpush1.msra.mxu0 0.0
        %2802 = vmatprep.subr.mxu0 0.0
        %2803 = vmatpush1.msra.mxu0 0.0
        %2804 = vmatprep.mubr.f32.mxu0 0.0
        %2805 = vmatmul.mubr.f32.gmra.mrb[0].mxu0 %v2729
        %v2806 = vpop.f32.mrb[0].mxu0
        %v2807 = vadd.f32 0.0, %v2806
        %v2808 = vpop.f32.mrb[0].mxu0
        %2809 = vmatprep.mubr.f32.mxu0 0.0
        %2810 = vmatmul.mubr.f32.gmra.mrb[0].mxu0 %v2732
        %v2811 = vpop.f32.mrb[0].mxu0
        %v2812 = vadd.f32 0.0, %v2811
        %v2813 = vpop.f32.mrb[0].mxu0
        %2814 = vmatprep.mubr.f32.mxu0 0.0
        %2815 = vmatmul.mubr.f32.gmra.mrb[0].mxu0 %v2735
        %v2816 = vpop.f32.mrb[0].mxu0
        %v2817 = vadd.f32 0.0, %v2816
        %v2818 = vpop.f32.mrb[0].mxu0
        %2819 = vmatprep.mubr.f32.mxu0 0.0
        %2820 = vmatmul.mubr.f32.gmra.mrb[0].mxu0 %v2738
        %v2821 = vpop.f32.mrb[0].mxu0
        %v2822 = vadd.f32 0.0, %v2821
        %v2823 = vpop.f32.mrb[0].mxu0
        %2824 = vdwg.mxu0
        %v2825 = vadd.f32 %v2617, %v2807
        %v2826 = vadd.f32 %v2618, %v2812
        %v2827 = vadd.f32 %v2619, %v2817
        %v2828 = vadd.f32 %v2620, %v2822
        %s2829 = scalar_lea.vmem %s3, 256
        %v2830 = vld [vmem:[%s2829] sm:$0xff]
        %v2831 = vld [vmem:[%s2829 + $0x8] sm:$0xff]
        %v2832 = vld [vmem:[%s2829 + $0x10] sm:$0xff]
        %v2833 = vld [vmem:[%s2829 + $0x18] sm:$0x1]
        %v2835 = vsel %vm1173, %v2830, 0
        %v2838 = vsel %vm1173, %v2831, 0
        %v2841 = vsel %vm1173, %v2832, 0
        %v2844 = vsel %vm1173, %v2833, 0
        %2846 = vmatprep.subr.mxu0 0.0
        %2847 = vmatpush1.msra.mxu0 %v1156
        %2848 = vmatprep.subr.mxu0 0.0
        %2849 = vmatpush1.msra.mxu0 %v1157
        %2850 = vmatprep.subr.mxu0 0.0
        %2851 = vmatpush1.msra.mxu0 %v1158
        %2852 = vmatprep.subr.mxu0 0.0
        %2853 = vmatpush1.msra.mxu0 %v1159
        %2854 = vmatprep.subr.mxu0 0.0
        %2855 = vmatpush1.msra.mxu0 %v1160
        %2856 = vmatprep.subr.mxu0 0.0
        %2857 = vmatpush1.msra.mxu0 %v1161
        %2858 = vmatprep.subr.mxu0 0.0
        %2859 = vmatpush1.msra.mxu0 %v1162
        %2860 = vmatprep.subr.mxu0 0.0
        %2861 = vmatpush1.msra.mxu0 %v1163
        %2862 = vmatprep.subr.mxu0 0.0
        %2863 = vmatpush1.msra.mxu0 %v1164
        %2864 = vmatprep.subr.mxu0 0.0
        %2865 = vmatpush1.msra.mxu0 %v1165
        %2866 = vmatprep.subr.mxu0 0.0
        %2867 = vmatpush1.msra.mxu0 %v1166
        %2868 = vmatprep.subr.mxu0 0.0
        %2869 = vmatpush1.msra.mxu0 %v1167
        %2870 = vmatprep.subr.mxu0 0.0
        %2871 = vmatpush1.msra.mxu0 %v1188
        %2872 = vmatprep.subr.mxu0 0.0
        %2873 = vmatpush1.msra.mxu0 0.0
        %2874 = vmatprep.subr.mxu0 0.0
        %2875 = vmatpush1.msra.mxu0 0.0
        %2876 = vmatprep.subr.mxu0 0.0
        %2877 = vmatpush1.msra.mxu0 0.0
        %2878 = vmatprep.subr.mxu0 0.0
        %2879 = vmatpush1.msra.mxu0 0.0
        %2880 = vmatprep.subr.mxu0 0.0
        %2881 = vmatpush1.msra.mxu0 0.0
        %2882 = vmatprep.subr.mxu0 0.0
        %2883 = vmatpush1.msra.mxu0 0.0
        %2884 = vmatprep.subr.mxu0 0.0
        %2885 = vmatpush1.msra.mxu0 0.0
        %2886 = vmatprep.subr.mxu0 0.0
        %2887 = vmatpush1.msra.mxu0 0.0
        %2888 = vmatprep.subr.mxu0 0.0
        %2889 = vmatpush1.msra.mxu0 0.0
        %2890 = vmatprep.subr.mxu0 0.0
        %2891 = vmatpush1.msra.mxu0 0.0
        %2892 = vmatprep.subr.mxu0 0.0
        %2893 = vmatpush1.msra.mxu0 0.0
        %2894 = vmatprep.subr.mxu0 0.0
        %2895 = vmatpush1.msra.mxu0 0.0
        %2896 = vmatprep.subr.mxu0 0.0
        %2897 = vmatpush1.msra.mxu0 0.0
        %2898 = vmatprep.subr.mxu0 0.0
        %2899 = vmatpush1.msra.mxu0 0.0
        %2900 = vmatprep.subr.mxu0 0.0
        %2901 = vmatpush1.msra.mxu0 0.0
        %2902 = vmatprep.subr.mxu0 0.0
        %2903 = vmatpush1.msra.mxu0 0.0
        %2904 = vmatprep.subr.mxu0 0.0
        %2905 = vmatpush1.msra.mxu0 0.0
        %2906 = vmatprep.subr.mxu0 0.0
        %2907 = vmatpush1.msra.mxu0 0.0
        %2908 = vmatprep.subr.mxu0 0.0
        %2909 = vmatpush1.msra.mxu0 0.0
        %2910 = vmatprep.mubr.f32.mxu0 0.0
        %2911 = vmatmul.mubr.f32.gmra.mrb[0].mxu0 %v2835
        %v2912 = vpop.f32.mrb[0].mxu0
        %v2913 = vadd.f32 0.0, %v2912
        %v2914 = vpop.f32.mrb[0].mxu0
        %2915 = vmatprep.mubr.f32.mxu0 0.0
        %2916 = vmatmul.mubr.f32.gmra.mrb[0].mxu0 %v2838
        %v2917 = vpop.f32.mrb[0].mxu0
        %v2918 = vadd.f32 0.0, %v2917
        %v2919 = vpop.f32.mrb[0].mxu0
        %2920 = vmatprep.mubr.f32.mxu0 0.0
        %2921 = vmatmul.mubr.f32.gmra.mrb[0].mxu0 %v2841
        %v2922 = vpop.f32.mrb[0].mxu0
        %v2923 = vadd.f32 0.0, %v2922
        %v2924 = vpop.f32.mrb[0].mxu0
        %2925 = vmatprep.mubr.f32.mxu0 0.0
        %2926 = vmatmul.mubr.f32.gmra.mrb[0].mxu0 %v2844
        %v2927 = vpop.f32.mrb[0].mxu0
        %v2928 = vadd.f32 0.0, %v2927
        %v2929 = vpop.f32.mrb[0].mxu0
        %2930 = vdwg.mxu0
        %s2931 = scalar_lea.vmem %s4, 256
        %v2932 = vld [vmem:[%s2931] sm:$0xff]
        %v2933 = vld [vmem:[%s2931 + $0x8] sm:$0xff]
        %v2934 = vld [vmem:[%s2931 + $0x10] sm:$0xff]
        %v2935 = vld [vmem:[%s2931 + $0x18] sm:$0xff]
        %v2937 = vsel %vm1386, %v2913, 0
        %v2940 = vsel %vm1386, %v2918, 0
        %v2943 = vsel %vm1386, %v2923, 0
        %v2946 = vsel %vm1386, %v2928, 0
        %2948 = vmatprep.subr.mxu0 0.0
        %2949 = vmatpush1.msra.mxu0 %v2932
        %2950 = vmatprep.subr.mxu0 0.0
        %2951 = vmatpush1.msra.mxu0 %v2933
        %2952 = vmatprep.subr.mxu0 0.0
        %2953 = vmatpush1.msra.mxu0 %v2934
        %2954 = vmatprep.subr.mxu0 0.0
        %2955 = vmatpush1.msra.mxu0 %v2935
        %2956 = vmatprep.subr.mxu0 0.0
        %2957 = vmatpush1.msra.mxu0 0.0
        %2958 = vmatprep.subr.mxu0 0.0
        %2959 = vmatpush1.msra.mxu0 0.0
        %2960 = vmatprep.subr.mxu0 0.0
        %2961 = vmatpush1.msra.mxu0 0.0
        %2962 = vmatprep.subr.mxu0 0.0
        %2963 = vmatpush1.msra.mxu0 0.0
        %2964 = vmatprep.subr.mxu0 0.0
        %2965 = vmatpush1.msra.mxu0 0.0
        %2966 = vmatprep.subr.mxu0 0.0
        %2967 = vmatpush1.msra.mxu0 0.0
        %2968 = vmatprep.subr.mxu0 0.0
        %2969 = vmatpush1.msra.mxu0 0.0
        %2970 = vmatprep.subr.mxu0 0.0
        %2971 = vmatpush1.msra.mxu0 0.0
        %2972 = vmatprep.subr.mxu0 0.0
        %2973 = vmatpush1.msra.mxu0 0.0
        %2974 = vmatprep.subr.mxu0 0.0
        %2975 = vmatpush1.msra.mxu0 0.0
        %2976 = vmatprep.subr.mxu0 0.0
        %2977 = vmatpush1.msra.mxu0 0.0
        %2978 = vmatprep.subr.mxu0 0.0
        %2979 = vmatpush1.msra.mxu0 0.0
        %2980 = vmatprep.subr.mxu0 0.0
        %2981 = vmatpush1.msra.mxu0 0.0
        %2982 = vmatprep.subr.mxu0 0.0
        %2983 = vmatpush1.msra.mxu0 0.0
        %2984 = vmatprep.subr.mxu0 0.0
        %2985 = vmatpush1.msra.mxu0 0.0
        %2986 = vmatprep.subr.mxu0 0.0
        %2987 = vmatpush1.msra.mxu0 0.0
        %2988 = vmatprep.subr.mxu0 0.0
        %2989 = vmatpush1.msra.mxu0 0.0
        %2990 = vmatprep.subr.mxu0 0.0
        %2991 = vmatpush1.msra.mxu0 0.0
        %2992 = vmatprep.subr.mxu0 0.0
        %2993 = vmatpush1.msra.mxu0 0.0
        %2994 = vmatprep.subr.mxu0 0.0
        %2995 = vmatpush1.msra.mxu0 0.0
        %2996 = vmatprep.subr.mxu0 0.0
        %2997 = vmatpush1.msra.mxu0 0.0
        %2998 = vmatprep.subr.mxu0 0.0
        %2999 = vmatpush1.msra.mxu0 0.0
        %3000 = vmatprep.subr.mxu0 0.0
        %3001 = vmatpush1.msra.mxu0 0.0
        %3002 = vmatprep.subr.mxu0 0.0
        %3003 = vmatpush1.msra.mxu0 0.0
        %3004 = vmatprep.subr.mxu0 0.0
        %3005 = vmatpush1.msra.mxu0 0.0
        %3006 = vmatprep.subr.mxu0 0.0
        %3007 = vmatpush1.msra.mxu0 0.0
        %3008 = vmatprep.subr.mxu0 0.0
        %3009 = vmatpush1.msra.mxu0 0.0
        %3010 = vmatprep.subr.mxu0 0.0
        %3011 = vmatpush1.msra.mxu0 0.0
        %3012 = vmatprep.mubr.f32.mxu0 0.0
        %3013 = vmatmul.mubr.f32.gmra.mrb[0].mxu0 %v2937
        %v3014 = vpop.f32.mrb[0].mxu0
        %v3015 = vadd.f32 0.0, %v3014
        %v3016 = vpop.f32.mrb[0].mxu0
        %3017 = vmatprep.mubr.f32.mxu0 0.0
        %3018 = vmatmul.mubr.f32.gmra.mrb[0].mxu0 %v2940
        %v3019 = vpop.f32.mrb[0].mxu0
        %v3020 = vadd.f32 0.0, %v3019
        %v3021 = vpop.f32.mrb[0].mxu0
        %3022 = vmatprep.mubr.f32.mxu0 0.0
        %3023 = vmatmul.mubr.f32.gmra.mrb[0].mxu0 %v2943
        %v3024 = vpop.f32.mrb[0].mxu0
        %v3025 = vadd.f32 0.0, %v3024
        %v3026 = vpop.f32.mrb[0].mxu0
        %3027 = vmatprep.mubr.f32.mxu0 0.0
        %3028 = vmatmul.mubr.f32.gmra.mrb[0].mxu0 %v2946
        %v3029 = vpop.f32.mrb[0].mxu0
        %v3030 = vadd.f32 0.0, %v3029
        %v3031 = vpop.f32.mrb[0].mxu0
        %3032 = vdwg.mxu0
        %v3033 = vadd.f32 %v2825, %v3015
        %v3034 = vadd.f32 %v2826, %v3020
        %v3035 = vadd.f32 %v2827, %v3025
        %v3036 = vadd.f32 %v2828, %v3030
        %s3037 = scalar_lea.vmem %s3, 288
        %v3038 = vld [vmem:[%s3037] sm:$0xff]
        %v3039 = vld [vmem:[%s3037 + $0x8] sm:$0xff]
        %v3040 = vld [vmem:[%s3037 + $0x10] sm:$0xff]
        %v3041 = vld [vmem:[%s3037 + $0x18] sm:$0x1]
        %v3043 = vsel %vm1173, %v3038, 0
        %v3046 = vsel %vm1173, %v3039, 0
        %v3049 = vsel %vm1173, %v3040, 0
        %v3052 = vsel %vm1173, %v3041, 0
        %3054 = vmatprep.subr.mxu0 0.0
        %3055 = vmatpush1.msra.mxu0 %v1156
        %3056 = vmatprep.subr.mxu0 0.0
        %3057 = vmatpush1.msra.mxu0 %v1157
        %3058 = vmatprep.subr.mxu0 0.0
        %3059 = vmatpush1.msra.mxu0 %v1158
        %3060 = vmatprep.subr.mxu0 0.0
        %3061 = vmatpush1.msra.mxu0 %v1159
        %3062 = vmatprep.subr.mxu0 0.0
        %3063 = vmatpush1.msra.mxu0 %v1160
        %3064 = vmatprep.subr.mxu0 0.0
        %3065 = vmatpush1.msra.mxu0 %v1161
        %3066 = vmatprep.subr.mxu0 0.0
        %3067 = vmatpush1.msra.mxu0 %v1162
        %3068 = vmatprep.subr.mxu0 0.0
        %3069 = vmatpush1.msra.mxu0 %v1163
        %3070 = vmatprep.subr.mxu0 0.0
        %3071 = vmatpush1.msra.mxu0 %v1164
        %3072 = vmatprep.subr.mxu0 0.0
        %3073 = vmatpush1.msra.mxu0 %v1165
        %3074 = vmatprep.subr.mxu0 0.0
        %3075 = vmatpush1.msra.mxu0 %v1166
        %3076 = vmatprep.subr.mxu0 0.0
        %3077 = vmatpush1.msra.mxu0 %v1167
        %3078 = vmatprep.subr.mxu0 0.0
        %3079 = vmatpush1.msra.mxu0 %v1188
        %3080 = vmatprep.subr.mxu0 0.0
        %3081 = vmatpush1.msra.mxu0 0.0
        %3082 = vmatprep.subr.mxu0 0.0
        %3083 = vmatpush1.msra.mxu0 0.0
        %3084 = vmatprep.subr.mxu0 0.0
        %3085 = vmatpush1.msra.mxu0 0.0
        %3086 = vmatprep.subr.mxu0 0.0
        %3087 = vmatpush1.msra.mxu0 0.0
        %3088 = vmatprep.subr.mxu0 0.0
        %3089 = vmatpush1.msra.mxu0 0.0
        %3090 = vmatprep.subr.mxu0 0.0
        %3091 = vmatpush1.msra.mxu0 0.0
        %3092 = vmatprep.subr.mxu0 0.0
        %3093 = vmatpush1.msra.mxu0 0.0
        %3094 = vmatprep.subr.mxu0 0.0
        %3095 = vmatpush1.msra.mxu0 0.0
        %3096 = vmatprep.subr.mxu0 0.0
        %3097 = vmatpush1.msra.mxu0 0.0
        %3098 = vmatprep.subr.mxu0 0.0
        %3099 = vmatpush1.msra.mxu0 0.0
        %3100 = vmatprep.subr.mxu0 0.0
        %3101 = vmatpush1.msra.mxu0 0.0
        %3102 = vmatprep.subr.mxu0 0.0
        %3103 = vmatpush1.msra.mxu0 0.0
        %3104 = vmatprep.subr.mxu0 0.0
        %3105 = vmatpush1.msra.mxu0 0.0
        %3106 = vmatprep.subr.mxu0 0.0
        %3107 = vmatpush1.msra.mxu0 0.0
        %3108 = vmatprep.subr.mxu0 0.0
        %3109 = vmatpush1.msra.mxu0 0.0
        %3110 = vmatprep.subr.mxu0 0.0
        %3111 = vmatpush1.msra.mxu0 0.0
        %3112 = vmatprep.subr.mxu0 0.0
        %3113 = vmatpush1.msra.mxu0 0.0
        %3114 = vmatprep.subr.mxu0 0.0
        %3115 = vmatpush1.msra.mxu0 0.0
        %3116 = vmatprep.subr.mxu0 0.0
        %3117 = vmatpush1.msra.mxu0 0.0
        %3118 = vmatprep.mubr.f32.mxu0 0.0
        %3119 = vmatmul.mubr.f32.gmra.mrb[0].mxu0 %v3043
        %v3120 = vpop.f32.mrb[0].mxu0
        %v3121 = vadd.f32 0.0, %v3120
        %v3122 = vpop.f32.mrb[0].mxu0
        %3123 = vmatprep.mubr.f32.mxu0 0.0
        %3124 = vmatmul.mubr.f32.gmra.mrb[0].mxu0 %v3046
        %v3125 = vpop.f32.mrb[0].mxu0
        %v3126 = vadd.f32 0.0, %v3125
        %v3127 = vpop.f32.mrb[0].mxu0
        %3128 = vmatprep.mubr.f32.mxu0 0.0
        %3129 = vmatmul.mubr.f32.gmra.mrb[0].mxu0 %v3049
        %v3130 = vpop.f32.mrb[0].mxu0
        %v3131 = vadd.f32 0.0, %v3130
        %v3132 = vpop.f32.mrb[0].mxu0
        %3133 = vmatprep.mubr.f32.mxu0 0.0
        %3134 = vmatmul.mubr.f32.gmra.mrb[0].mxu0 %v3052
        %v3135 = vpop.f32.mrb[0].mxu0
        %v3136 = vadd.f32 0.0, %v3135
        %v3137 = vpop.f32.mrb[0].mxu0
        %3138 = vdwg.mxu0
        %s3139 = scalar_lea.vmem %s4, 288
        %v3140 = vld [vmem:[%s3139] sm:$0xff]
        %v3141 = vld [vmem:[%s3139 + $0x8] sm:$0xff]
        %v3142 = vld [vmem:[%s3139 + $0x10] sm:$0xff]
        %v3143 = vld [vmem:[%s3139 + $0x18] sm:$0xff]
        %v3145 = vsel %vm1386, %v3121, 0
        %v3148 = vsel %vm1386, %v3126, 0
        %v3151 = vsel %vm1386, %v3131, 0
        %v3154 = vsel %vm1386, %v3136, 0
        %3156 = vmatprep.subr.mxu0 0.0
        %3157 = vmatpush1.msra.mxu0 %v3140
        %3158 = vmatprep.subr.mxu0 0.0
        %3159 = vmatpush1.msra.mxu0 %v3141
        %3160 = vmatprep.subr.mxu0 0.0
        %3161 = vmatpush1.msra.mxu0 %v3142
        %3162 = vmatprep.subr.mxu0 0.0
        %3163 = vmatpush1.msra.mxu0 %v3143
        %3164 = vmatprep.subr.mxu0 0.0
        %3165 = vmatpush1.msra.mxu0 0.0
        %3166 = vmatprep.subr.mxu0 0.0
        %3167 = vmatpush1.msra.mxu0 0.0
        %3168 = vmatprep.subr.mxu0 0.0
        %3169 = vmatpush1.msra.mxu0 0.0
        %3170 = vmatprep.subr.mxu0 0.0
        %3171 = vmatpush1.msra.mxu0 0.0
        %3172 = vmatprep.subr.mxu0 0.0
        %3173 = vmatpush1.msra.mxu0 0.0
        %3174 = vmatprep.subr.mxu0 0.0
        %3175 = vmatpush1.msra.mxu0 0.0
        %3176 = vmatprep.subr.mxu0 0.0
        %3177 = vmatpush1.msra.mxu0 0.0
        %3178 = vmatprep.subr.mxu0 0.0
        %3179 = vmatpush1.msra.mxu0 0.0
        %3180 = vmatprep.subr.mxu0 0.0
        %3181 = vmatpush1.msra.mxu0 0.0
        %3182 = vmatprep.subr.mxu0 0.0
        %3183 = vmatpush1.msra.mxu0 0.0
        %3184 = vmatprep.subr.mxu0 0.0
        %3185 = vmatpush1.msra.mxu0 0.0
        %3186 = vmatprep.subr.mxu0 0.0
        %3187 = vmatpush1.msra.mxu0 0.0
        %3188 = vmatprep.subr.mxu0 0.0
        %3189 = vmatpush1.msra.mxu0 0.0
        %3190 = vmatprep.subr.mxu0 0.0
        %3191 = vmatpush1.msra.mxu0 0.0
        %3192 = vmatprep.subr.mxu0 0.0
        %3193 = vmatpush1.msra.mxu0 0.0
        %3194 = vmatprep.subr.mxu0 0.0
        %3195 = vmatpush1.msra.mxu0 0.0
        %3196 = vmatprep.subr.mxu0 0.0
        %3197 = vmatpush1.msra.mxu0 0.0
        %3198 = vmatprep.subr.mxu0 0.0
        %3199 = vmatpush1.msra.mxu0 0.0
        %3200 = vmatprep.subr.mxu0 0.0
        %3201 = vmatpush1.msra.mxu0 0.0
        %3202 = vmatprep.subr.mxu0 0.0
        %3203 = vmatpush1.msra.mxu0 0.0
        %3204 = vmatprep.subr.mxu0 0.0
        %3205 = vmatpush1.msra.mxu0 0.0
        %3206 = vmatprep.subr.mxu0 0.0
        %3207 = vmatpush1.msra.mxu0 0.0
        %3208 = vmatprep.subr.mxu0 0.0
        %3209 = vmatpush1.msra.mxu0 0.0
        %3210 = vmatprep.subr.mxu0 0.0
        %3211 = vmatpush1.msra.mxu0 0.0
        %3212 = vmatprep.subr.mxu0 0.0
        %3213 = vmatpush1.msra.mxu0 0.0
        %3214 = vmatprep.subr.mxu0 0.0
        %3215 = vmatpush1.msra.mxu0 0.0
        %3216 = vmatprep.subr.mxu0 0.0
        %3217 = vmatpush1.msra.mxu0 0.0
        %3218 = vmatprep.subr.mxu0 0.0
        %3219 = vmatpush1.msra.mxu0 0.0
        %3220 = vmatprep.mubr.f32.mxu0 0.0
        %3221 = vmatmul.mubr.f32.gmra.mrb[0].mxu0 %v3145
        %v3222 = vpop.f32.mrb[0].mxu0
        %v3223 = vadd.f32 0.0, %v3222
        %v3224 = vpop.f32.mrb[0].mxu0
        %3225 = vmatprep.mubr.f32.mxu0 0.0
        %3226 = vmatmul.mubr.f32.gmra.mrb[0].mxu0 %v3148
        %v3227 = vpop.f32.mrb[0].mxu0
        %v3228 = vadd.f32 0.0, %v3227
        %v3229 = vpop.f32.mrb[0].mxu0
        %3230 = vmatprep.mubr.f32.mxu0 0.0
        %3231 = vmatmul.mubr.f32.gmra.mrb[0].mxu0 %v3151
        %v3232 = vpop.f32.mrb[0].mxu0
        %v3233 = vadd.f32 0.0, %v3232
        %v3234 = vpop.f32.mrb[0].mxu0
        %3235 = vmatprep.mubr.f32.mxu0 0.0
        %3236 = vmatmul.mubr.f32.gmra.mrb[0].mxu0 %v3154
        %v3237 = vpop.f32.mrb[0].mxu0
        %v3238 = vadd.f32 0.0, %v3237
        %v3239 = vpop.f32.mrb[0].mxu0
        %3240 = vdwg.mxu0
        %v3241 = vadd.f32 %v3033, %v3223
        %v3242 = vadd.f32 %v3034, %v3228
        %v3243 = vadd.f32 %v3035, %v3233
        %v3244 = vadd.f32 %v3036, %v3238
        %s3245 = scalar_lea.vmem %s3, 320
        %v3246 = vld [vmem:[%s3245] sm:$0xff]
        %v3247 = vld [vmem:[%s3245 + $0x8] sm:$0xff]
        %v3248 = vld [vmem:[%s3245 + $0x10] sm:$0xff]
        %v3249 = vld [vmem:[%s3245 + $0x18] sm:$0x1]
        %v3251 = vsel %vm1173, %v3246, 0
        %v3254 = vsel %vm1173, %v3247, 0
        %v3257 = vsel %vm1173, %v3248, 0
        %v3260 = vsel %vm1173, %v3249, 0
        %3262 = vmatprep.subr.mxu0 0.0
        %3263 = vmatpush1.msra.mxu0 %v1156
        %3264 = vmatprep.subr.mxu0 0.0
        %3265 = vmatpush1.msra.mxu0 %v1157
        %3266 = vmatprep.subr.mxu0 0.0
        %3267 = vmatpush1.msra.mxu0 %v1158
        %3268 = vmatprep.subr.mxu0 0.0
        %3269 = vmatpush1.msra.mxu0 %v1159
        %3270 = vmatprep.subr.mxu0 0.0
        %3271 = vmatpush1.msra.mxu0 %v1160
        %3272 = vmatprep.subr.mxu0 0.0
        %3273 = vmatpush1.msra.mxu0 %v1161
        %3274 = vmatprep.subr.mxu0 0.0
        %3275 = vmatpush1.msra.mxu0 %v1162
        %3276 = vmatprep.subr.mxu0 0.0
        %3277 = vmatpush1.msra.mxu0 %v1163
        %3278 = vmatprep.subr.mxu0 0.0
        %3279 = vmatpush1.msra.mxu0 %v1164
        %3280 = vmatprep.subr.mxu0 0.0
        %3281 = vmatpush1.msra.mxu0 %v1165
        %3282 = vmatprep.subr.mxu0 0.0
        %3283 = vmatpush1.msra.mxu0 %v1166
        %3284 = vmatprep.subr.mxu0 0.0
        %3285 = vmatpush1.msra.mxu0 %v1167
        %3286 = vmatprep.subr.mxu0 0.0
        %3287 = vmatpush1.msra.mxu0 %v1188
        %3288 = vmatprep.subr.mxu0 0.0
        %3289 = vmatpush1.msra.mxu0 0.0
        %3290 = vmatprep.subr.mxu0 0.0
        %3291 = vmatpush1.msra.mxu0 0.0
        %3292 = vmatprep.subr.mxu0 0.0
        %3293 = vmatpush1.msra.mxu0 0.0
        %3294 = vmatprep.subr.mxu0 0.0
        %3295 = vmatpush1.msra.mxu0 0.0
        %3296 = vmatprep.subr.mxu0 0.0
        %3297 = vmatpush1.msra.mxu0 0.0
        %3298 = vmatprep.subr.mxu0 0.0
        %3299 = vmatpush1.msra.mxu0 0.0
        %3300 = vmatprep.subr.mxu0 0.0
        %3301 = vmatpush1.msra.mxu0 0.0
        %3302 = vmatprep.subr.mxu0 0.0
        %3303 = vmatpush1.msra.mxu0 0.0
        %3304 = vmatprep.subr.mxu0 0.0
        %3305 = vmatpush1.msra.mxu0 0.0
        %3306 = vmatprep.subr.mxu0 0.0
        %3307 = vmatpush1.msra.mxu0 0.0
        %3308 = vmatprep.subr.mxu0 0.0
        %3309 = vmatpush1.msra.mxu0 0.0
        %3310 = vmatprep.subr.mxu0 0.0
        %3311 = vmatpush1.msra.mxu0 0.0
        %3312 = vmatprep.subr.mxu0 0.0
        %3313 = vmatpush1.msra.mxu0 0.0
        %3314 = vmatprep.subr.mxu0 0.0
        %3315 = vmatpush1.msra.mxu0 0.0
        %3316 = vmatprep.subr.mxu0 0.0
        %3317 = vmatpush1.msra.mxu0 0.0
        %3318 = vmatprep.subr.mxu0 0.0
        %3319 = vmatpush1.msra.mxu0 0.0
        %3320 = vmatprep.subr.mxu0 0.0
        %3321 = vmatpush1.msra.mxu0 0.0
        %3322 = vmatprep.subr.mxu0 0.0
        %3323 = vmatpush1.msra.mxu0 0.0
        %3324 = vmatprep.subr.mxu0 0.0
        %3325 = vmatpush1.msra.mxu0 0.0
        %3326 = vmatprep.mubr.f32.mxu0 0.0
        %3327 = vmatmul.mubr.f32.gmra.mrb[0].mxu0 %v3251
        %v3328 = vpop.f32.mrb[0].mxu0
        %v3329 = vadd.f32 0.0, %v3328
        %v3330 = vpop.f32.mrb[0].mxu0
        %3331 = vmatprep.mubr.f32.mxu0 0.0
        %3332 = vmatmul.mubr.f32.gmra.mrb[0].mxu0 %v3254
        %v3333 = vpop.f32.mrb[0].mxu0
        %v3334 = vadd.f32 0.0, %v3333
        %v3335 = vpop.f32.mrb[0].mxu0
        %3336 = vmatprep.mubr.f32.mxu0 0.0
        %3337 = vmatmul.mubr.f32.gmra.mrb[0].mxu0 %v3257
        %v3338 = vpop.f32.mrb[0].mxu0
        %v3339 = vadd.f32 0.0, %v3338
        %v3340 = vpop.f32.mrb[0].mxu0
        %3341 = vmatprep.mubr.f32.mxu0 0.0
        %3342 = vmatmul.mubr.f32.gmra.mrb[0].mxu0 %v3260
        %v3343 = vpop.f32.mrb[0].mxu0
        %v3344 = vadd.f32 0.0, %v3343
        %v3345 = vpop.f32.mrb[0].mxu0
        %3346 = vdwg.mxu0
        %s3347 = scalar_lea.vmem %s4, 320
        %v3348 = vld [vmem:[%s3347] sm:$0xff]
        %v3349 = vld [vmem:[%s3347 + $0x8] sm:$0xff]
        %v3350 = vld [vmem:[%s3347 + $0x10] sm:$0xff]
        %v3351 = vld [vmem:[%s3347 + $0x18] sm:$0xff]
        %v3353 = vsel %vm1386, %v3329, 0
        %v3356 = vsel %vm1386, %v3334, 0
        %v3359 = vsel %vm1386, %v3339, 0
        %v3362 = vsel %vm1386, %v3344, 0
        %3364 = vmatprep.subr.mxu0 0.0
        %3365 = vmatpush1.msra.mxu0 %v3348
        %3366 = vmatprep.subr.mxu0 0.0
        %3367 = vmatpush1.msra.mxu0 %v3349
        %3368 = vmatprep.subr.mxu0 0.0
        %3369 = vmatpush1.msra.mxu0 %v3350
        %3370 = vmatprep.subr.mxu0 0.0
        %3371 = vmatpush1.msra.mxu0 %v3351
        %3372 = vmatprep.subr.mxu0 0.0
        %3373 = vmatpush1.msra.mxu0 0.0
        %3374 = vmatprep.subr.mxu0 0.0
        %3375 = vmatpush1.msra.mxu0 0.0
        %3376 = vmatprep.subr.mxu0 0.0
        %3377 = vmatpush1.msra.mxu0 0.0
        %3378 = vmatprep.subr.mxu0 0.0
        %3379 = vmatpush1.msra.mxu0 0.0
        %3380 = vmatprep.subr.mxu0 0.0
        %3381 = vmatpush1.msra.mxu0 0.0
        %3382 = vmatprep.subr.mxu0 0.0
        %3383 = vmatpush1.msra.mxu0 0.0
        %3384 = vmatprep.subr.mxu0 0.0
        %3385 = vmatpush1.msra.mxu0 0.0
        %3386 = vmatprep.subr.mxu0 0.0
        %3387 = vmatpush1.msra.mxu0 0.0
        %3388 = vmatprep.subr.mxu0 0.0
        %3389 = vmatpush1.msra.mxu0 0.0
        %3390 = vmatprep.subr.mxu0 0.0
        %3391 = vmatpush1.msra.mxu0 0.0
        %3392 = vmatprep.subr.mxu0 0.0
        %3393 = vmatpush1.msra.mxu0 0.0
        %3394 = vmatprep.subr.mxu0 0.0
        %3395 = vmatpush1.msra.mxu0 0.0
        %3396 = vmatprep.subr.mxu0 0.0
        %3397 = vmatpush1.msra.mxu0 0.0
        %3398 = vmatprep.subr.mxu0 0.0
        %3399 = vmatpush1.msra.mxu0 0.0
        %3400 = vmatprep.subr.mxu0 0.0
        %3401 = vmatpush1.msra.mxu0 0.0
        %3402 = vmatprep.subr.mxu0 0.0
        %3403 = vmatpush1.msra.mxu0 0.0
        %3404 = vmatprep.subr.mxu0 0.0
        %3405 = vmatpush1.msra.mxu0 0.0
        %3406 = vmatprep.subr.mxu0 0.0
        %3407 = vmatpush1.msra.mxu0 0.0
        %3408 = vmatprep.subr.mxu0 0.0
        %3409 = vmatpush1.msra.mxu0 0.0
        %3410 = vmatprep.subr.mxu0 0.0
        %3411 = vmatpush1.msra.mxu0 0.0
        %3412 = vmatprep.subr.mxu0 0.0
        %3413 = vmatpush1.msra.mxu0 0.0
        %3414 = vmatprep.subr.mxu0 0.0
        %3415 = vmatpush1.msra.mxu0 0.0
        %3416 = vmatprep.subr.mxu0 0.0
        %3417 = vmatpush1.msra.mxu0 0.0
        %3418 = vmatprep.subr.mxu0 0.0
        %3419 = vmatpush1.msra.mxu0 0.0
        %3420 = vmatprep.subr.mxu0 0.0
        %3421 = vmatpush1.msra.mxu0 0.0
        %3422 = vmatprep.subr.mxu0 0.0
        %3423 = vmatpush1.msra.mxu0 0.0
        %3424 = vmatprep.subr.mxu0 0.0
        %3425 = vmatpush1.msra.mxu0 0.0
        %3426 = vmatprep.subr.mxu0 0.0
        %3427 = vmatpush1.msra.mxu0 0.0
        %3428 = vmatprep.mubr.f32.mxu0 0.0
        %3429 = vmatmul.mubr.f32.gmra.mrb[0].mxu0 %v3353
        %v3430 = vpop.f32.mrb[0].mxu0
        %v3431 = vadd.f32 0.0, %v3430
        %v3432 = vpop.f32.mrb[0].mxu0
        %3433 = vmatprep.mubr.f32.mxu0 0.0
        %3434 = vmatmul.mubr.f32.gmra.mrb[0].mxu0 %v3356
        %v3435 = vpop.f32.mrb[0].mxu0
        %v3436 = vadd.f32 0.0, %v3435
        %v3437 = vpop.f32.mrb[0].mxu0
        %3438 = vmatprep.mubr.f32.mxu0 0.0
        %3439 = vmatmul.mubr.f32.gmra.mrb[0].mxu0 %v3359
        %v3440 = vpop.f32.mrb[0].mxu0
        %v3441 = vadd.f32 0.0, %v3440
        %v3442 = vpop.f32.mrb[0].mxu0
        %3443 = vmatprep.mubr.f32.mxu0 0.0
        %3444 = vmatmul.mubr.f32.gmra.mrb[0].mxu0 %v3362
        %v3445 = vpop.f32.mrb[0].mxu0
        %v3446 = vadd.f32 0.0, %v3445
        %v3447 = vpop.f32.mrb[0].mxu0
        %3448 = vdwg.mxu0
        %v3449 = vadd.f32 %v3241, %v3431
        %v3450 = vadd.f32 %v3242, %v3436
        %v3451 = vadd.f32 %v3243, %v3441
        %v3452 = vadd.f32 %v3244, %v3446
        %s3453 = scalar_lea.vmem %s3, 352
        %v3454 = vld [vmem:[%s3453] sm:$0xff]
        %v3455 = vld [vmem:[%s3453 + $0x8] sm:$0xff]
        %v3456 = vld [vmem:[%s3453 + $0x10] sm:$0xff]
        %v3457 = vld [vmem:[%s3453 + $0x18] sm:$0x1]
        %v3459 = vsel %vm1173, %v3454, 0
        %v3462 = vsel %vm1173, %v3455, 0
        %v3465 = vsel %vm1173, %v3456, 0
        %v3468 = vsel %vm1173, %v3457, 0
        %3470 = vmatprep.subr.mxu0 0.0
        %3471 = vmatpush1.msra.mxu0 %v1156
        %3472 = vmatprep.subr.mxu0 0.0
        %3473 = vmatpush1.msra.mxu0 %v1157
        %3474 = vmatprep.subr.mxu0 0.0
        %3475 = vmatpush1.msra.mxu0 %v1158
        %3476 = vmatprep.subr.mxu0 0.0
        %3477 = vmatpush1.msra.mxu0 %v1159
        %3478 = vmatprep.subr.mxu0 0.0
        %3479 = vmatpush1.msra.mxu0 %v1160
        %3480 = vmatprep.subr.mxu0 0.0
        %3481 = vmatpush1.msra.mxu0 %v1161
        %3482 = vmatprep.subr.mxu0 0.0
        %3483 = vmatpush1.msra.mxu0 %v1162
        %3484 = vmatprep.subr.mxu0 0.0
        %3485 = vmatpush1.msra.mxu0 %v1163
        %3486 = vmatprep.subr.mxu0 0.0
        %3487 = vmatpush1.msra.mxu0 %v1164
        %3488 = vmatprep.subr.mxu0 0.0
        %3489 = vmatpush1.msra.mxu0 %v1165
        %3490 = vmatprep.subr.mxu0 0.0
        %3491 = vmatpush1.msra.mxu0 %v1166
        %3492 = vmatprep.subr.mxu0 0.0
        %3493 = vmatpush1.msra.mxu0 %v1167
        %3494 = vmatprep.subr.mxu0 0.0
        %3495 = vmatpush1.msra.mxu0 %v1188
        %3496 = vmatprep.subr.mxu0 0.0
        %3497 = vmatpush1.msra.mxu0 0.0
        %3498 = vmatprep.subr.mxu0 0.0
        %3499 = vmatpush1.msra.mxu0 0.0
        %3500 = vmatprep.subr.mxu0 0.0
        %3501 = vmatpush1.msra.mxu0 0.0
        %3502 = vmatprep.subr.mxu0 0.0
        %3503 = vmatpush1.msra.mxu0 0.0
        %3504 = vmatprep.subr.mxu0 0.0
        %3505 = vmatpush1.msra.mxu0 0.0
        %3506 = vmatprep.subr.mxu0 0.0
        %3507 = vmatpush1.msra.mxu0 0.0
        %3508 = vmatprep.subr.mxu0 0.0
        %3509 = vmatpush1.msra.mxu0 0.0
        %3510 = vmatprep.subr.mxu0 0.0
        %3511 = vmatpush1.msra.mxu0 0.0
        %3512 = vmatprep.subr.mxu0 0.0
        %3513 = vmatpush1.msra.mxu0 0.0
        %3514 = vmatprep.subr.mxu0 0.0
        %3515 = vmatpush1.msra.mxu0 0.0
        %3516 = vmatprep.subr.mxu0 0.0
        %3517 = vmatpush1.msra.mxu0 0.0
        %3518 = vmatprep.subr.mxu0 0.0
        %3519 = vmatpush1.msra.mxu0 0.0
        %3520 = vmatprep.subr.mxu0 0.0
        %3521 = vmatpush1.msra.mxu0 0.0
        %3522 = vmatprep.subr.mxu0 0.0
        %3523 = vmatpush1.msra.mxu0 0.0
        %3524 = vmatprep.subr.mxu0 0.0
        %3525 = vmatpush1.msra.mxu0 0.0
        %3526 = vmatprep.subr.mxu0 0.0
        %3527 = vmatpush1.msra.mxu0 0.0
        %3528 = vmatprep.subr.mxu0 0.0
        %3529 = vmatpush1.msra.mxu0 0.0
        %3530 = vmatprep.subr.mxu0 0.0
        %3531 = vmatpush1.msra.mxu0 0.0
        %3532 = vmatprep.subr.mxu0 0.0
        %3533 = vmatpush1.msra.mxu0 0.0
        %3534 = vmatprep.mubr.f32.mxu0 0.0
        %3535 = vmatmul.mubr.f32.gmra.mrb[0].mxu0 %v3459
        %v3536 = vpop.f32.mrb[0].mxu0
        %v3537 = vadd.f32 0.0, %v3536
        %v3538 = vpop.f32.mrb[0].mxu0
        %3539 = vmatprep.mubr.f32.mxu0 0.0
        %3540 = vmatmul.mubr.f32.gmra.mrb[0].mxu0 %v3462
        %v3541 = vpop.f32.mrb[0].mxu0
        %v3542 = vadd.f32 0.0, %v3541
        %v3543 = vpop.f32.mrb[0].mxu0
        %3544 = vmatprep.mubr.f32.mxu0 0.0
        %3545 = vmatmul.mubr.f32.gmra.mrb[0].mxu0 %v3465
        %v3546 = vpop.f32.mrb[0].mxu0
        %v3547 = vadd.f32 0.0, %v3546
        %v3548 = vpop.f32.mrb[0].mxu0
        %3549 = vmatprep.mubr.f32.mxu0 0.0
        %3550 = vmatmul.mubr.f32.gmra.mrb[0].mxu0 %v3468
        %v3551 = vpop.f32.mrb[0].mxu0
        %v3552 = vadd.f32 0.0, %v3551
        %v3553 = vpop.f32.mrb[0].mxu0
        %3554 = vdwg.mxu0
        %s3555 = scalar_lea.vmem %s4, 352
        %v3556 = vld [vmem:[%s3555] sm:$0xff]
        %v3557 = vld [vmem:[%s3555 + $0x8] sm:$0xff]
        %v3558 = vld [vmem:[%s3555 + $0x10] sm:$0xff]
        %v3559 = vld [vmem:[%s3555 + $0x18] sm:$0xff]
        %v3561 = vsel %vm1386, %v3537, 0
        %v3564 = vsel %vm1386, %v3542, 0
        %v3567 = vsel %vm1386, %v3547, 0
        %v3570 = vsel %vm1386, %v3552, 0
        %3572 = vmatprep.subr.mxu0 0.0
        %3573 = vmatpush1.msra.mxu0 %v3556
        %3574 = vmatprep.subr.mxu0 0.0
        %3575 = vmatpush1.msra.mxu0 %v3557
        %3576 = vmatprep.subr.mxu0 0.0
        %3577 = vmatpush1.msra.mxu0 %v3558
        %3578 = vmatprep.subr.mxu0 0.0
        %3579 = vmatpush1.msra.mxu0 %v3559
        %3580 = vmatprep.subr.mxu0 0.0
        %3581 = vmatpush1.msra.mxu0 0.0
        %3582 = vmatprep.subr.mxu0 0.0
        %3583 = vmatpush1.msra.mxu0 0.0
        %3584 = vmatprep.subr.mxu0 0.0
        %3585 = vmatpush1.msra.mxu0 0.0
        %3586 = vmatprep.subr.mxu0 0.0
        %3587 = vmatpush1.msra.mxu0 0.0
        %3588 = vmatprep.subr.mxu0 0.0
        %3589 = vmatpush1.msra.mxu0 0.0
        %3590 = vmatprep.subr.mxu0 0.0
        %3591 = vmatpush1.msra.mxu0 0.0
        %3592 = vmatprep.subr.mxu0 0.0
        %3593 = vmatpush1.msra.mxu0 0.0
        %3594 = vmatprep.subr.mxu0 0.0
        %3595 = vmatpush1.msra.mxu0 0.0
        %3596 = vmatprep.subr.mxu0 0.0
        %3597 = vmatpush1.msra.mxu0 0.0
        %3598 = vmatprep.subr.mxu0 0.0
        %3599 = vmatpush1.msra.mxu0 0.0
        %3600 = vmatprep.subr.mxu0 0.0
        %3601 = vmatpush1.msra.mxu0 0.0
        %3602 = vmatprep.subr.mxu0 0.0
        %3603 = vmatpush1.msra.mxu0 0.0
        %3604 = vmatprep.subr.mxu0 0.0
        %3605 = vmatpush1.msra.mxu0 0.0
        %3606 = vmatprep.subr.mxu0 0.0
        %3607 = vmatpush1.msra.mxu0 0.0
        %3608 = vmatprep.subr.mxu0 0.0
        %3609 = vmatpush1.msra.mxu0 0.0
        %3610 = vmatprep.subr.mxu0 0.0
        %3611 = vmatpush1.msra.mxu0 0.0
        %3612 = vmatprep.subr.mxu0 0.0
        %3613 = vmatpush1.msra.mxu0 0.0
        %3614 = vmatprep.subr.mxu0 0.0
        %3615 = vmatpush1.msra.mxu0 0.0
        %3616 = vmatprep.subr.mxu0 0.0
        %3617 = vmatpush1.msra.mxu0 0.0
        %3618 = vmatprep.subr.mxu0 0.0
        %3619 = vmatpush1.msra.mxu0 0.0
        %3620 = vmatprep.subr.mxu0 0.0
        %3621 = vmatpush1.msra.mxu0 0.0
        %3622 = vmatprep.subr.mxu0 0.0
        %3623 = vmatpush1.msra.mxu0 0.0
        %3624 = vmatprep.subr.mxu0 0.0
        %3625 = vmatpush1.msra.mxu0 0.0
        %3626 = vmatprep.subr.mxu0 0.0
        %3627 = vmatpush1.msra.mxu0 0.0
        %3628 = vmatprep.subr.mxu0 0.0
        %3629 = vmatpush1.msra.mxu0 0.0
        %3630 = vmatprep.subr.mxu0 0.0
        %3631 = vmatpush1.msra.mxu0 0.0
        %3632 = vmatprep.subr.mxu0 0.0
        %3633 = vmatpush1.msra.mxu0 0.0
        %3634 = vmatprep.subr.mxu0 0.0
        %3635 = vmatpush1.msra.mxu0 0.0
        %3636 = vmatprep.mubr.f32.mxu0 0.0
        %3637 = vmatmul.mubr.f32.gmra.mrb[0].mxu0 %v3561
        %v3638 = vpop.f32.mrb[0].mxu0
        %v3639 = vadd.f32 0.0, %v3638
        %v3640 = vpop.f32.mrb[0].mxu0
        %3641 = vmatprep.mubr.f32.mxu0 0.0
        %3642 = vmatmul.mubr.f32.gmra.mrb[0].mxu0 %v3564
        %v3643 = vpop.f32.mrb[0].mxu0
        %v3644 = vadd.f32 0.0, %v3643
        %v3645 = vpop.f32.mrb[0].mxu0
        %3646 = vmatprep.mubr.f32.mxu0 0.0
        %3647 = vmatmul.mubr.f32.gmra.mrb[0].mxu0 %v3567
        %v3648 = vpop.f32.mrb[0].mxu0
        %v3649 = vadd.f32 0.0, %v3648
        %v3650 = vpop.f32.mrb[0].mxu0
        %3651 = vmatprep.mubr.f32.mxu0 0.0
        %3652 = vmatmul.mubr.f32.gmra.mrb[0].mxu0 %v3570
        %v3653 = vpop.f32.mrb[0].mxu0
        %v3654 = vadd.f32 0.0, %v3653
        %v3655 = vpop.f32.mrb[0].mxu0
        %3656 = vdwg.mxu0
        %v3657 = vadd.f32 %v3449, %v3639
        %v3658 = vadd.f32 %v3450, %v3644
        %v3659 = vadd.f32 %v3451, %v3649
        %v3660 = vadd.f32 %v3452, %v3654
        %s3661 = scalar_lea.vmem %s3, 384
        %v3662 = vld [vmem:[%s3661] sm:$0xff]
        %v3663 = vld [vmem:[%s3661 + $0x8] sm:$0xff]
        %v3664 = vld [vmem:[%s3661 + $0x10] sm:$0xff]
        %v3665 = vld [vmem:[%s3661 + $0x18] sm:$0x1]
        %v3667 = vsel %vm1173, %v3662, 0
        %v3670 = vsel %vm1173, %v3663, 0
        %v3673 = vsel %vm1173, %v3664, 0
        %v3676 = vsel %vm1173, %v3665, 0
        %3678 = vmatprep.subr.mxu0 0.0
        %3679 = vmatpush1.msra.mxu0 %v1156
        %3680 = vmatprep.subr.mxu0 0.0
        %3681 = vmatpush1.msra.mxu0 %v1157
        %3682 = vmatprep.subr.mxu0 0.0
        %3683 = vmatpush1.msra.mxu0 %v1158
        %3684 = vmatprep.subr.mxu0 0.0
        %3685 = vmatpush1.msra.mxu0 %v1159
        %3686 = vmatprep.subr.mxu0 0.0
        %3687 = vmatpush1.msra.mxu0 %v1160
        %3688 = vmatprep.subr.mxu0 0.0
        %3689 = vmatpush1.msra.mxu0 %v1161
        %3690 = vmatprep.subr.mxu0 0.0
        %3691 = vmatpush1.msra.mxu0 %v1162
        %3692 = vmatprep.subr.mxu0 0.0
        %3693 = vmatpush1.msra.mxu0 %v1163
        %3694 = vmatprep.subr.mxu0 0.0
        %3695 = vmatpush1.msra.mxu0 %v1164
        %3696 = vmatprep.subr.mxu0 0.0
        %3697 = vmatpush1.msra.mxu0 %v1165
        %3698 = vmatprep.subr.mxu0 0.0
        %3699 = vmatpush1.msra.mxu0 %v1166
        %3700 = vmatprep.subr.mxu0 0.0
        %3701 = vmatpush1.msra.mxu0 %v1167
        %3702 = vmatprep.subr.mxu0 0.0
        %3703 = vmatpush1.msra.mxu0 %v1188
        %3704 = vmatprep.subr.mxu0 0.0
        %3705 = vmatpush1.msra.mxu0 0.0
        %3706 = vmatprep.subr.mxu0 0.0
        %3707 = vmatpush1.msra.mxu0 0.0
        %3708 = vmatprep.subr.mxu0 0.0
        %3709 = vmatpush1.msra.mxu0 0.0
        %3710 = vmatprep.subr.mxu0 0.0
        %3711 = vmatpush1.msra.mxu0 0.0
        %3712 = vmatprep.subr.mxu0 0.0
        %3713 = vmatpush1.msra.mxu0 0.0
        %3714 = vmatprep.subr.mxu0 0.0
        %3715 = vmatpush1.msra.mxu0 0.0
        %3716 = vmatprep.subr.mxu0 0.0
        %3717 = vmatpush1.msra.mxu0 0.0
        %3718 = vmatprep.subr.mxu0 0.0
        %3719 = vmatpush1.msra.mxu0 0.0
        %3720 = vmatprep.subr.mxu0 0.0
        %3721 = vmatpush1.msra.mxu0 0.0
        %3722 = vmatprep.subr.mxu0 0.0
        %3723 = vmatpush1.msra.mxu0 0.0
        %3724 = vmatprep.subr.mxu0 0.0
        %3725 = vmatpush1.msra.mxu0 0.0
        %3726 = vmatprep.subr.mxu0 0.0
        %3727 = vmatpush1.msra.mxu0 0.0
        %3728 = vmatprep.subr.mxu0 0.0
        %3729 = vmatpush1.msra.mxu0 0.0
        %3730 = vmatprep.subr.mxu0 0.0
        %3731 = vmatpush1.msra.mxu0 0.0
        %3732 = vmatprep.subr.mxu0 0.0
        %3733 = vmatpush1.msra.mxu0 0.0
        %3734 = vmatprep.subr.mxu0 0.0
        %3735 = vmatpush1.msra.mxu0 0.0
        %3736 = vmatprep.subr.mxu0 0.0
        %3737 = vmatpush1.msra.mxu0 0.0
        %3738 = vmatprep.subr.mxu0 0.0
        %3739 = vmatpush1.msra.mxu0 0.0
        %3740 = vmatprep.subr.mxu0 0.0
        %3741 = vmatpush1.msra.mxu0 0.0
        %3742 = vmatprep.mubr.f32.mxu0 0.0
        %3743 = vmatmul.mubr.f32.gmra.mrb[0].mxu0 %v3667
        %v3744 = vpop.f32.mrb[0].mxu0
        %v3745 = vadd.f32 0.0, %v3744
        %v3746 = vpop.f32.mrb[0].mxu0
        %3747 = vmatprep.mubr.f32.mxu0 0.0
        %3748 = vmatmul.mubr.f32.gmra.mrb[0].mxu0 %v3670
        %v3749 = vpop.f32.mrb[0].mxu0
        %v3750 = vadd.f32 0.0, %v3749
        %v3751 = vpop.f32.mrb[0].mxu0
        %3752 = vmatprep.mubr.f32.mxu0 0.0
        %3753 = vmatmul.mubr.f32.gmra.mrb[0].mxu0 %v3673
        %v3754 = vpop.f32.mrb[0].mxu0
        %v3755 = vadd.f32 0.0, %v3754
        %v3756 = vpop.f32.mrb[0].mxu0
        %3757 = vmatprep.mubr.f32.mxu0 0.0
        %3758 = vmatmul.mubr.f32.gmra.mrb[0].mxu0 %v3676
        %v3759 = vpop.f32.mrb[0].mxu0
        %v3760 = vadd.f32 0.0, %v3759
        %v3761 = vpop.f32.mrb[0].mxu0
        %3762 = vdwg.mxu0
        %s3763 = scalar_lea.vmem %s4, 384
        %v3764 = vld [vmem:[%s3763] sm:$0xff]
        %v3765 = vld [vmem:[%s3763 + $0x8] sm:$0xff]
        %v3766 = vld [vmem:[%s3763 + $0x10] sm:$0xff]
        %v3767 = vld [vmem:[%s3763 + $0x18] sm:$0xff]
        %v3769 = vsel %vm1386, %v3745, 0
        %v3772 = vsel %vm1386, %v3750, 0
        %v3775 = vsel %vm1386, %v3755, 0
        %v3778 = vsel %vm1386, %v3760, 0
        %3780 = vmatprep.subr.mxu0 0.0
        %3781 = vmatpush1.msra.mxu0 %v3764
        %3782 = vmatprep.subr.mxu0 0.0
        %3783 = vmatpush1.msra.mxu0 %v3765
        %3784 = vmatprep.subr.mxu0 0.0
        %3785 = vmatpush1.msra.mxu0 %v3766
        %3786 = vmatprep.subr.mxu0 0.0
        %3787 = vmatpush1.msra.mxu0 %v3767
        %3788 = vmatprep.subr.mxu0 0.0
        %3789 = vmatpush1.msra.mxu0 0.0
        %3790 = vmatprep.subr.mxu0 0.0
        %3791 = vmatpush1.msra.mxu0 0.0
        %3792 = vmatprep.subr.mxu0 0.0
        %3793 = vmatpush1.msra.mxu0 0.0
        %3794 = vmatprep.subr.mxu0 0.0
        %3795 = vmatpush1.msra.mxu0 0.0
        %3796 = vmatprep.subr.mxu0 0.0
        %3797 = vmatpush1.msra.mxu0 0.0
        %3798 = vmatprep.subr.mxu0 0.0
        %3799 = vmatpush1.msra.mxu0 0.0
        %3800 = vmatprep.subr.mxu0 0.0
        %3801 = vmatpush1.msra.mxu0 0.0
        %3802 = vmatprep.subr.mxu0 0.0
        %3803 = vmatpush1.msra.mxu0 0.0
        %3804 = vmatprep.subr.mxu0 0.0
        %3805 = vmatpush1.msra.mxu0 0.0
        %3806 = vmatprep.subr.mxu0 0.0
        %3807 = vmatpush1.msra.mxu0 0.0
        %3808 = vmatprep.subr.mxu0 0.0
        %3809 = vmatpush1.msra.mxu0 0.0
        %3810 = vmatprep.subr.mxu0 0.0
        %3811 = vmatpush1.msra.mxu0 0.0
        %3812 = vmatprep.subr.mxu0 0.0
        %3813 = vmatpush1.msra.mxu0 0.0
        %3814 = vmatprep.subr.mxu0 0.0
        %3815 = vmatpush1.msra.mxu0 0.0
        %3816 = vmatprep.subr.mxu0 0.0
        %3817 = vmatpush1.msra.mxu0 0.0
        %3818 = vmatprep.subr.mxu0 0.0
        %3819 = vmatpush1.msra.mxu0 0.0
        %3820 = vmatprep.subr.mxu0 0.0
        %3821 = vmatpush1.msra.mxu0 0.0
        %3822 = vmatprep.subr.mxu0 0.0
        %3823 = vmatpush1.msra.mxu0 0.0
        %3824 = vmatprep.subr.mxu0 0.0
        %3825 = vmatpush1.msra.mxu0 0.0
        %3826 = vmatprep.subr.mxu0 0.0
        %3827 = vmatpush1.msra.mxu0 0.0
        %3828 = vmatprep.subr.mxu0 0.0
        %3829 = vmatpush1.msra.mxu0 0.0
        %3830 = vmatprep.subr.mxu0 0.0
        %3831 = vmatpush1.msra.mxu0 0.0
        %3832 = vmatprep.subr.mxu0 0.0
        %3833 = vmatpush1.msra.mxu0 0.0
        %3834 = vmatprep.subr.mxu0 0.0
        %3835 = vmatpush1.msra.mxu0 0.0
        %3836 = vmatprep.subr.mxu0 0.0
        %3837 = vmatpush1.msra.mxu0 0.0
        %3838 = vmatprep.subr.mxu0 0.0
        %3839 = vmatpush1.msra.mxu0 0.0
        %3840 = vmatprep.subr.mxu0 0.0
        %3841 = vmatpush1.msra.mxu0 0.0
        %3842 = vmatprep.subr.mxu0 0.0
        %3843 = vmatpush1.msra.mxu0 0.0
        %3844 = vmatprep.mubr.f32.mxu0 0.0
        %3845 = vmatmul.mubr.f32.gmra.mrb[0].mxu0 %v3769
        %v3846 = vpop.f32.mrb[0].mxu0
        %v3847 = vadd.f32 0.0, %v3846
        %v3848 = vpop.f32.mrb[0].mxu0
        %3849 = vmatprep.mubr.f32.mxu0 0.0
        %3850 = vmatmul.mubr.f32.gmra.mrb[0].mxu0 %v3772
        %v3851 = vpop.f32.mrb[0].mxu0
        %v3852 = vadd.f32 0.0, %v3851
        %v3853 = vpop.f32.mrb[0].mxu0
        %3854 = vmatprep.mubr.f32.mxu0 0.0
        %3855 = vmatmul.mubr.f32.gmra.mrb[0].mxu0 %v3775
        %v3856 = vpop.f32.mrb[0].mxu0
        %v3857 = vadd.f32 0.0, %v3856
        %v3858 = vpop.f32.mrb[0].mxu0
        %3859 = vmatprep.mubr.f32.mxu0 0.0
        %3860 = vmatmul.mubr.f32.gmra.mrb[0].mxu0 %v3778
        %v3861 = vpop.f32.mrb[0].mxu0
        %v3862 = vadd.f32 0.0, %v3861
        %v3863 = vpop.f32.mrb[0].mxu0
        %3864 = vdwg.mxu0
        %v3865 = vadd.f32 %v3657, %v3847
        %v3866 = vadd.f32 %v3658, %v3852
        %v3867 = vadd.f32 %v3659, %v3857
        %v3868 = vadd.f32 %v3660, %v3862
        %s3869 = scalar_lea.vmem %s3, 416
        %v3870 = vld [vmem:[%s3869] sm:$0xff]
        %v3871 = vld [vmem:[%s3869 + $0x8] sm:$0xff]
        %v3872 = vld [vmem:[%s3869 + $0x10] sm:$0xff]
        %v3873 = vld [vmem:[%s3869 + $0x18] sm:$0x1]
        %v3875 = vsel %vm1173, %v3870, 0
        %v3878 = vsel %vm1173, %v3871, 0
        %v3881 = vsel %vm1173, %v3872, 0
        %v3884 = vsel %vm1173, %v3873, 0
        %3886 = vmatprep.subr.mxu0 0.0
        %3887 = vmatpush1.msra.mxu0 %v1156
        %3888 = vmatprep.subr.mxu0 0.0
        %3889 = vmatpush1.msra.mxu0 %v1157
        %3890 = vmatprep.subr.mxu0 0.0
        %3891 = vmatpush1.msra.mxu0 %v1158
        %3892 = vmatprep.subr.mxu0 0.0
        %3893 = vmatpush1.msra.mxu0 %v1159
        %3894 = vmatprep.subr.mxu0 0.0
        %3895 = vmatpush1.msra.mxu0 %v1160
        %3896 = vmatprep.subr.mxu0 0.0
        %3897 = vmatpush1.msra.mxu0 %v1161
        %3898 = vmatprep.subr.mxu0 0.0
        %3899 = vmatpush1.msra.mxu0 %v1162
        %3900 = vmatprep.subr.mxu0 0.0
        %3901 = vmatpush1.msra.mxu0 %v1163
        %3902 = vmatprep.subr.mxu0 0.0
        %3903 = vmatpush1.msra.mxu0 %v1164
        %3904 = vmatprep.subr.mxu0 0.0
        %3905 = vmatpush1.msra.mxu0 %v1165
        %3906 = vmatprep.subr.mxu0 0.0
        %3907 = vmatpush1.msra.mxu0 %v1166
        %3908 = vmatprep.subr.mxu0 0.0
        %3909 = vmatpush1.msra.mxu0 %v1167
        %3910 = vmatprep.subr.mxu0 0.0
        %3911 = vmatpush1.msra.mxu0 %v1188
        %3912 = vmatprep.subr.mxu0 0.0
        %3913 = vmatpush1.msra.mxu0 0.0
        %3914 = vmatprep.subr.mxu0 0.0
        %3915 = vmatpush1.msra.mxu0 0.0
        %3916 = vmatprep.subr.mxu0 0.0
        %3917 = vmatpush1.msra.mxu0 0.0
        %3918 = vmatprep.subr.mxu0 0.0
        %3919 = vmatpush1.msra.mxu0 0.0
        %3920 = vmatprep.subr.mxu0 0.0
        %3921 = vmatpush1.msra.mxu0 0.0
        %3922 = vmatprep.subr.mxu0 0.0
        %3923 = vmatpush1.msra.mxu0 0.0
        %3924 = vmatprep.subr.mxu0 0.0
        %3925 = vmatpush1.msra.mxu0 0.0
        %3926 = vmatprep.subr.mxu0 0.0
        %3927 = vmatpush1.msra.mxu0 0.0
        %3928 = vmatprep.subr.mxu0 0.0
        %3929 = vmatpush1.msra.mxu0 0.0
        %3930 = vmatprep.subr.mxu0 0.0
        %3931 = vmatpush1.msra.mxu0 0.0
        %3932 = vmatprep.subr.mxu0 0.0
        %3933 = vmatpush1.msra.mxu0 0.0
        %3934 = vmatprep.subr.mxu0 0.0
        %3935 = vmatpush1.msra.mxu0 0.0
        %3936 = vmatprep.subr.mxu0 0.0
        %3937 = vmatpush1.msra.mxu0 0.0
        %3938 = vmatprep.subr.mxu0 0.0
        %3939 = vmatpush1.msra.mxu0 0.0
        %3940 = vmatprep.subr.mxu0 0.0
        %3941 = vmatpush1.msra.mxu0 0.0
        %3942 = vmatprep.subr.mxu0 0.0
        %3943 = vmatpush1.msra.mxu0 0.0
        %3944 = vmatprep.subr.mxu0 0.0
        %3945 = vmatpush1.msra.mxu0 0.0
        %3946 = vmatprep.subr.mxu0 0.0
        %3947 = vmatpush1.msra.mxu0 0.0
        %3948 = vmatprep.subr.mxu0 0.0
        %3949 = vmatpush1.msra.mxu0 0.0
        %3950 = vmatprep.mubr.f32.mxu0 0.0
        %3951 = vmatmul.mubr.f32.gmra.mrb[0].mxu0 %v3875
        %v3952 = vpop.f32.mrb[0].mxu0
        %v3953 = vadd.f32 0.0, %v3952
        %v3954 = vpop.f32.mrb[0].mxu0
        %3955 = vmatprep.mubr.f32.mxu0 0.0
        %3956 = vmatmul.mubr.f32.gmra.mrb[0].mxu0 %v3878
        %v3957 = vpop.f32.mrb[0].mxu0
        %v3958 = vadd.f32 0.0, %v3957
        %v3959 = vpop.f32.mrb[0].mxu0
        %3960 = vmatprep.mubr.f32.mxu0 0.0
        %3961 = vmatmul.mubr.f32.gmra.mrb[0].mxu0 %v3881
        %v3962 = vpop.f32.mrb[0].mxu0
        %v3963 = vadd.f32 0.0, %v3962
        %v3964 = vpop.f32.mrb[0].mxu0
        %3965 = vmatprep.mubr.f32.mxu0 0.0
        %3966 = vmatmul.mubr.f32.gmra.mrb[0].mxu0 %v3884
        %v3967 = vpop.f32.mrb[0].mxu0
        %v3968 = vadd.f32 0.0, %v3967
        %v3969 = vpop.f32.mrb[0].mxu0
        %3970 = vdwg.mxu0
        %s3971 = scalar_lea.vmem %s4, 416
        %v3972 = vld [vmem:[%s3971] sm:$0xff]
        %v3973 = vld [vmem:[%s3971 + $0x8] sm:$0xff]
        %v3974 = vld [vmem:[%s3971 + $0x10] sm:$0xff]
        %v3975 = vld [vmem:[%s3971 + $0x18] sm:$0xff]
        %v3977 = vsel %vm1386, %v3953, 0
        %v3980 = vsel %vm1386, %v3958, 0
        %v3983 = vsel %vm1386, %v3963, 0
        %v3986 = vsel %vm1386, %v3968, 0
        %3988 = vmatprep.subr.mxu0 0.0
        %3989 = vmatpush1.msra.mxu0 %v3972
        %3990 = vmatprep.subr.mxu0 0.0
        %3991 = vmatpush1.msra.mxu0 %v3973
        %3992 = vmatprep.subr.mxu0 0.0
        %3993 = vmatpush1.msra.mxu0 %v3974
        %3994 = vmatprep.subr.mxu0 0.0
        %3995 = vmatpush1.msra.mxu0 %v3975
        %3996 = vmatprep.subr.mxu0 0.0
        %3997 = vmatpush1.msra.mxu0 0.0
        %3998 = vmatprep.subr.mxu0 0.0
        %3999 = vmatpush1.msra.mxu0 0.0
        %4000 = vmatprep.subr.mxu0 0.0
        %4001 = vmatpush1.msra.mxu0 0.0
        %4002 = vmatprep.subr.mxu0 0.0
        %4003 = vmatpush1.msra.mxu0 0.0
        %4004 = vmatprep.subr.mxu0 0.0
        %4005 = vmatpush1.msra.mxu0 0.0
        %4006 = vmatprep.subr.mxu0 0.0
        %4007 = vmatpush1.msra.mxu0 0.0
        %4008 = vmatprep.subr.mxu0 0.0
        %4009 = vmatpush1.msra.mxu0 0.0
        %4010 = vmatprep.subr.mxu0 0.0
        %4011 = vmatpush1.msra.mxu0 0.0
        %4012 = vmatprep.subr.mxu0 0.0
        %4013 = vmatpush1.msra.mxu0 0.0
        %4014 = vmatprep.subr.mxu0 0.0
        %4015 = vmatpush1.msra.mxu0 0.0
        %4016 = vmatprep.subr.mxu0 0.0
        %4017 = vmatpush1.msra.mxu0 0.0
        %4018 = vmatprep.subr.mxu0 0.0
        %4019 = vmatpush1.msra.mxu0 0.0
        %4020 = vmatprep.subr.mxu0 0.0
        %4021 = vmatpush1.msra.mxu0 0.0
        %4022 = vmatprep.subr.mxu0 0.0
        %4023 = vmatpush1.msra.mxu0 0.0
        %4024 = vmatprep.subr.mxu0 0.0
        %4025 = vmatpush1.msra.mxu0 0.0
        %4026 = vmatprep.subr.mxu0 0.0
        %4027 = vmatpush1.msra.mxu0 0.0
        %4028 = vmatprep.subr.mxu0 0.0
        %4029 = vmatpush1.msra.mxu0 0.0
        %4030 = vmatprep.subr.mxu0 0.0
        %4031 = vmatpush1.msra.mxu0 0.0
        %4032 = vmatprep.subr.mxu0 0.0
        %4033 = vmatpush1.msra.mxu0 0.0
        %4034 = vmatprep.subr.mxu0 0.0
        %4035 = vmatpush1.msra.mxu0 0.0
        %4036 = vmatprep.subr.mxu0 0.0
        %4037 = vmatpush1.msra.mxu0 0.0
        %4038 = vmatprep.subr.mxu0 0.0
        %4039 = vmatpush1.msra.mxu0 0.0
        %4040 = vmatprep.subr.mxu0 0.0
        %4041 = vmatpush1.msra.mxu0 0.0
        %4042 = vmatprep.subr.mxu0 0.0
        %4043 = vmatpush1.msra.mxu0 0.0
        %4044 = vmatprep.subr.mxu0 0.0
        %4045 = vmatpush1.msra.mxu0 0.0
        %4046 = vmatprep.subr.mxu0 0.0
        %4047 = vmatpush1.msra.mxu0 0.0
        %4048 = vmatprep.subr.mxu0 0.0
        %4049 = vmatpush1.msra.mxu0 0.0
        %4050 = vmatprep.subr.mxu0 0.0
        %4051 = vmatpush1.msra.mxu0 0.0
        %4052 = vmatprep.mubr.f32.mxu0 0.0
        %4053 = vmatmul.mubr.f32.gmra.mrb[0].mxu0 %v3977
        %v4054 = vpop.f32.mrb[0].mxu0
        %v4055 = vadd.f32 0.0, %v4054
        %v4056 = vpop.f32.mrb[0].mxu0
        %4057 = vmatprep.mubr.f32.mxu0 0.0
        %4058 = vmatmul.mubr.f32.gmra.mrb[0].mxu0 %v3980
        %v4059 = vpop.f32.mrb[0].mxu0
        %v4060 = vadd.f32 0.0, %v4059
        %v4061 = vpop.f32.mrb[0].mxu0
        %4062 = vmatprep.mubr.f32.mxu0 0.0
        %4063 = vmatmul.mubr.f32.gmra.mrb[0].mxu0 %v3983
        %v4064 = vpop.f32.mrb[0].mxu0
        %v4065 = vadd.f32 0.0, %v4064
        %v4066 = vpop.f32.mrb[0].mxu0
        %4067 = vmatprep.mubr.f32.mxu0 0.0
        %4068 = vmatmul.mubr.f32.gmra.mrb[0].mxu0 %v3986
        %v4069 = vpop.f32.mrb[0].mxu0
        %v4070 = vadd.f32 0.0, %v4069
        %v4071 = vpop.f32.mrb[0].mxu0
        %4072 = vdwg.mxu0
        %v4073 = vadd.f32 %v3865, %v4055
        %v4074 = vadd.f32 %v3866, %v4060
        %v4075 = vadd.f32 %v3867, %v4065
        %v4076 = vadd.f32 %v3868, %v4070
        %s4077 = scalar_lea.vmem %s3, 448
        %v4078 = vld [vmem:[%s4077] sm:$0xff]
        %v4079 = vld [vmem:[%s4077 + $0x8] sm:$0xff]
        %v4080 = vld [vmem:[%s4077 + $0x10] sm:$0xff]
        %v4081 = vld [vmem:[%s4077 + $0x18] sm:$0x1]
        %v4083 = vsel %vm1173, %v4078, 0
        %v4086 = vsel %vm1173, %v4079, 0
        %v4089 = vsel %vm1173, %v4080, 0
        %v4092 = vsel %vm1173, %v4081, 0
        %4094 = vmatprep.subr.mxu0 0.0
        %4095 = vmatpush1.msra.mxu0 %v1156
        %4096 = vmatprep.subr.mxu0 0.0
        %4097 = vmatpush1.msra.mxu0 %v1157
        %4098 = vmatprep.subr.mxu0 0.0
        %4099 = vmatpush1.msra.mxu0 %v1158
        %4100 = vmatprep.subr.mxu0 0.0
        %4101 = vmatpush1.msra.mxu0 %v1159
        %4102 = vmatprep.subr.mxu0 0.0
        %4103 = vmatpush1.msra.mxu0 %v1160
        %4104 = vmatprep.subr.mxu0 0.0
        %4105 = vmatpush1.msra.mxu0 %v1161
        %4106 = vmatprep.subr.mxu0 0.0
        %4107 = vmatpush1.msra.mxu0 %v1162
        %4108 = vmatprep.subr.mxu0 0.0
        %4109 = vmatpush1.msra.mxu0 %v1163
        %4110 = vmatprep.subr.mxu0 0.0
        %4111 = vmatpush1.msra.mxu0 %v1164
        %4112 = vmatprep.subr.mxu0 0.0
        %4113 = vmatpush1.msra.mxu0 %v1165
        %4114 = vmatprep.subr.mxu0 0.0
        %4115 = vmatpush1.msra.mxu0 %v1166
        %4116 = vmatprep.subr.mxu0 0.0
        %4117 = vmatpush1.msra.mxu0 %v1167
        %4118 = vmatprep.subr.mxu0 0.0
        %4119 = vmatpush1.msra.mxu0 %v1188
        %4120 = vmatprep.subr.mxu0 0.0
        %4121 = vmatpush1.msra.mxu0 0.0
        %4122 = vmatprep.subr.mxu0 0.0
        %4123 = vmatpush1.msra.mxu0 0.0
        %4124 = vmatprep.subr.mxu0 0.0
        %4125 = vmatpush1.msra.mxu0 0.0
        %4126 = vmatprep.subr.mxu0 0.0
        %4127 = vmatpush1.msra.mxu0 0.0
        %4128 = vmatprep.subr.mxu0 0.0
        %4129 = vmatpush1.msra.mxu0 0.0
        %4130 = vmatprep.subr.mxu0 0.0
        %4131 = vmatpush1.msra.mxu0 0.0
        %4132 = vmatprep.subr.mxu0 0.0
        %4133 = vmatpush1.msra.mxu0 0.0
        %4134 = vmatprep.subr.mxu0 0.0
        %4135 = vmatpush1.msra.mxu0 0.0
        %4136 = vmatprep.subr.mxu0 0.0
        %4137 = vmatpush1.msra.mxu0 0.0
        %4138 = vmatprep.subr.mxu0 0.0
        %4139 = vmatpush1.msra.mxu0 0.0
        %4140 = vmatprep.subr.mxu0 0.0
        %4141 = vmatpush1.msra.mxu0 0.0
        %4142 = vmatprep.subr.mxu0 0.0
        %4143 = vmatpush1.msra.mxu0 0.0
        %4144 = vmatprep.subr.mxu0 0.0
        %4145 = vmatpush1.msra.mxu0 0.0
        %4146 = vmatprep.subr.mxu0 0.0
        %4147 = vmatpush1.msra.mxu0 0.0
        %4148 = vmatprep.subr.mxu0 0.0
        %4149 = vmatpush1.msra.mxu0 0.0
        %4150 = vmatprep.subr.mxu0 0.0
        %4151 = vmatpush1.msra.mxu0 0.0
        %4152 = vmatprep.subr.mxu0 0.0
        %4153 = vmatpush1.msra.mxu0 0.0
        %4154 = vmatprep.subr.mxu0 0.0
        %4155 = vmatpush1.msra.mxu0 0.0
        %4156 = vmatprep.subr.mxu0 0.0
        %4157 = vmatpush1.msra.mxu0 0.0
        %4158 = vmatprep.mubr.f32.mxu0 0.0
        %4159 = vmatmul.mubr.f32.gmra.mrb[0].mxu0 %v4083
        %v4160 = vpop.f32.mrb[0].mxu0
        %v4161 = vadd.f32 0.0, %v4160
        %v4162 = vpop.f32.mrb[0].mxu0
        %4163 = vmatprep.mubr.f32.mxu0 0.0
        %4164 = vmatmul.mubr.f32.gmra.mrb[0].mxu0 %v4086
        %v4165 = vpop.f32.mrb[0].mxu0
        %v4166 = vadd.f32 0.0, %v4165
        %v4167 = vpop.f32.mrb[0].mxu0
        %4168 = vmatprep.mubr.f32.mxu0 0.0
        %4169 = vmatmul.mubr.f32.gmra.mrb[0].mxu0 %v4089
        %v4170 = vpop.f32.mrb[0].mxu0
        %v4171 = vadd.f32 0.0, %v4170
        %v4172 = vpop.f32.mrb[0].mxu0
        %4173 = vmatprep.mubr.f32.mxu0 0.0
        %4174 = vmatmul.mubr.f32.gmra.mrb[0].mxu0 %v4092
        %v4175 = vpop.f32.mrb[0].mxu0
        %v4176 = vadd.f32 0.0, %v4175
        %v4177 = vpop.f32.mrb[0].mxu0
        %4178 = vdwg.mxu0
        %s4179 = scalar_lea.vmem %s4, 448
        %v4180 = vld [vmem:[%s4179] sm:$0xff]
        %v4181 = vld [vmem:[%s4179 + $0x8] sm:$0xff]
        %v4182 = vld [vmem:[%s4179 + $0x10] sm:$0xff]
        %v4183 = vld [vmem:[%s4179 + $0x18] sm:$0xff]
        %v4185 = vsel %vm1386, %v4161, 0
        %v4188 = vsel %vm1386, %v4166, 0
        %v4191 = vsel %vm1386, %v4171, 0
        %v4194 = vsel %vm1386, %v4176, 0
        %4196 = vmatprep.subr.mxu0 0.0
        %4197 = vmatpush1.msra.mxu0 %v4180
        %4198 = vmatprep.subr.mxu0 0.0
        %4199 = vmatpush1.msra.mxu0 %v4181
        %4200 = vmatprep.subr.mxu0 0.0
        %4201 = vmatpush1.msra.mxu0 %v4182
        %4202 = vmatprep.subr.mxu0 0.0
        %4203 = vmatpush1.msra.mxu0 %v4183
        %4204 = vmatprep.subr.mxu0 0.0
        %4205 = vmatpush1.msra.mxu0 0.0
        %4206 = vmatprep.subr.mxu0 0.0
        %4207 = vmatpush1.msra.mxu0 0.0
        %4208 = vmatprep.subr.mxu0 0.0
        %4209 = vmatpush1.msra.mxu0 0.0
        %4210 = vmatprep.subr.mxu0 0.0
        %4211 = vmatpush1.msra.mxu0 0.0
        %4212 = vmatprep.subr.mxu0 0.0
        %4213 = vmatpush1.msra.mxu0 0.0
        %4214 = vmatprep.subr.mxu0 0.0
        %4215 = vmatpush1.msra.mxu0 0.0
        %4216 = vmatprep.subr.mxu0 0.0
        %4217 = vmatpush1.msra.mxu0 0.0
        %4218 = vmatprep.subr.mxu0 0.0
        %4219 = vmatpush1.msra.mxu0 0.0
        %4220 = vmatprep.subr.mxu0 0.0
        %4221 = vmatpush1.msra.mxu0 0.0
        %4222 = vmatprep.subr.mxu0 0.0
        %4223 = vmatpush1.msra.mxu0 0.0
        %4224 = vmatprep.subr.mxu0 0.0
        %4225 = vmatpush1.msra.mxu0 0.0
        %4226 = vmatprep.subr.mxu0 0.0
        %4227 = vmatpush1.msra.mxu0 0.0
        %4228 = vmatprep.subr.mxu0 0.0
        %4229 = vmatpush1.msra.mxu0 0.0
        %4230 = vmatprep.subr.mxu0 0.0
        %4231 = vmatpush1.msra.mxu0 0.0
        %4232 = vmatprep.subr.mxu0 0.0
        %4233 = vmatpush1.msra.mxu0 0.0
        %4234 = vmatprep.subr.mxu0 0.0
        %4235 = vmatpush1.msra.mxu0 0.0
        %4236 = vmatprep.subr.mxu0 0.0
        %4237 = vmatpush1.msra.mxu0 0.0
        %4238 = vmatprep.subr.mxu0 0.0
        %4239 = vmatpush1.msra.mxu0 0.0
        %4240 = vmatprep.subr.mxu0 0.0
        %4241 = vmatpush1.msra.mxu0 0.0
        %4242 = vmatprep.subr.mxu0 0.0
        %4243 = vmatpush1.msra.mxu0 0.0
        %4244 = vmatprep.subr.mxu0 0.0
        %4245 = vmatpush1.msra.mxu0 0.0
        %4246 = vmatprep.subr.mxu0 0.0
        %4247 = vmatpush1.msra.mxu0 0.0
        %4248 = vmatprep.subr.mxu0 0.0
        %4249 = vmatpush1.msra.mxu0 0.0
        %4250 = vmatprep.subr.mxu0 0.0
        %4251 = vmatpush1.msra.mxu0 0.0
        %4252 = vmatprep.subr.mxu0 0.0
        %4253 = vmatpush1.msra.mxu0 0.0
        %4254 = vmatprep.subr.mxu0 0.0
        %4255 = vmatpush1.msra.mxu0 0.0
        %4256 = vmatprep.subr.mxu0 0.0
        %4257 = vmatpush1.msra.mxu0 0.0
        %4258 = vmatprep.subr.mxu0 0.0
        %4259 = vmatpush1.msra.mxu0 0.0
        %4260 = vmatprep.mubr.f32.mxu0 0.0
        %4261 = vmatmul.mubr.f32.gmra.mrb[0].mxu0 %v4185
        %v4262 = vpop.f32.mrb[0].mxu0
        %v4263 = vadd.f32 0.0, %v4262
        %v4264 = vpop.f32.mrb[0].mxu0
        %4265 = vmatprep.mubr.f32.mxu0 0.0
        %4266 = vmatmul.mubr.f32.gmra.mrb[0].mxu0 %v4188
        %v4267 = vpop.f32.mrb[0].mxu0
        %v4268 = vadd.f32 0.0, %v4267
        %v4269 = vpop.f32.mrb[0].mxu0
        %4270 = vmatprep.mubr.f32.mxu0 0.0
        %4271 = vmatmul.mubr.f32.gmra.mrb[0].mxu0 %v4191
        %v4272 = vpop.f32.mrb[0].mxu0
        %v4273 = vadd.f32 0.0, %v4272
        %v4274 = vpop.f32.mrb[0].mxu0
        %4275 = vmatprep.mubr.f32.mxu0 0.0
        %4276 = vmatmul.mubr.f32.gmra.mrb[0].mxu0 %v4194
        %v4277 = vpop.f32.mrb[0].mxu0
        %v4278 = vadd.f32 0.0, %v4277
        %v4279 = vpop.f32.mrb[0].mxu0
        %4280 = vdwg.mxu0
        %v4281 = vadd.f32 %v4073, %v4263
        %v4282 = vadd.f32 %v4074, %v4268
        %v4283 = vadd.f32 %v4075, %v4273
        %v4284 = vadd.f32 %v4076, %v4278
        %s4285 = scalar_lea.vmem %s3, 480
        %v4286 = vld [vmem:[%s4285] sm:$0xff]
        %v4287 = vld [vmem:[%s4285 + $0x8] sm:$0xff]
        %v4288 = vld [vmem:[%s4285 + $0x10] sm:$0xff]
        %v4289 = vld [vmem:[%s4285 + $0x18] sm:$0x1]
        %v4291 = vsel %vm1173, %v4286, 0
        %v4294 = vsel %vm1173, %v4287, 0
        %v4297 = vsel %vm1173, %v4288, 0
        %v4300 = vsel %vm1173, %v4289, 0
        %4302 = vmatprep.subr.mxu0 0.0
        %4303 = vmatpush1.msra.mxu0 %v1156
        %4304 = vmatprep.subr.mxu0 0.0
        %4305 = vmatpush1.msra.mxu0 %v1157
        %4306 = vmatprep.subr.mxu0 0.0
        %4307 = vmatpush1.msra.mxu0 %v1158
        %4308 = vmatprep.subr.mxu0 0.0
        %4309 = vmatpush1.msra.mxu0 %v1159
        %4310 = vmatprep.subr.mxu0 0.0
        %4311 = vmatpush1.msra.mxu0 %v1160
        %4312 = vmatprep.subr.mxu0 0.0
        %4313 = vmatpush1.msra.mxu0 %v1161
        %4314 = vmatprep.subr.mxu0 0.0
        %4315 = vmatpush1.msra.mxu0 %v1162
        %4316 = vmatprep.subr.mxu0 0.0
        %4317 = vmatpush1.msra.mxu0 %v1163
        %4318 = vmatprep.subr.mxu0 0.0
        %4319 = vmatpush1.msra.mxu0 %v1164
        %4320 = vmatprep.subr.mxu0 0.0
        %4321 = vmatpush1.msra.mxu0 %v1165
        %4322 = vmatprep.subr.mxu0 0.0
        %4323 = vmatpush1.msra.mxu0 %v1166
        %4324 = vmatprep.subr.mxu0 0.0
        %4325 = vmatpush1.msra.mxu0 %v1167
        %4326 = vmatprep.subr.mxu0 0.0
        %4327 = vmatpush1.msra.mxu0 %v1188
        %4328 = vmatprep.subr.mxu0 0.0
        %4329 = vmatpush1.msra.mxu0 0.0
        %4330 = vmatprep.subr.mxu0 0.0
        %4331 = vmatpush1.msra.mxu0 0.0
        %4332 = vmatprep.subr.mxu0 0.0
        %4333 = vmatpush1.msra.mxu0 0.0
        %4334 = vmatprep.subr.mxu0 0.0
        %4335 = vmatpush1.msra.mxu0 0.0
        %4336 = vmatprep.subr.mxu0 0.0
        %4337 = vmatpush1.msra.mxu0 0.0
        %4338 = vmatprep.subr.mxu0 0.0
        %4339 = vmatpush1.msra.mxu0 0.0
        %4340 = vmatprep.subr.mxu0 0.0
        %4341 = vmatpush1.msra.mxu0 0.0
        %4342 = vmatprep.subr.mxu0 0.0
        %4343 = vmatpush1.msra.mxu0 0.0
        %4344 = vmatprep.subr.mxu0 0.0
        %4345 = vmatpush1.msra.mxu0 0.0
        %4346 = vmatprep.subr.mxu0 0.0
        %4347 = vmatpush1.msra.mxu0 0.0
        %4348 = vmatprep.subr.mxu0 0.0
        %4349 = vmatpush1.msra.mxu0 0.0
        %4350 = vmatprep.subr.mxu0 0.0
        %4351 = vmatpush1.msra.mxu0 0.0
        %4352 = vmatprep.subr.mxu0 0.0
        %4353 = vmatpush1.msra.mxu0 0.0
        %4354 = vmatprep.subr.mxu0 0.0
        %4355 = vmatpush1.msra.mxu0 0.0
        %4356 = vmatprep.subr.mxu0 0.0
        %4357 = vmatpush1.msra.mxu0 0.0
        %4358 = vmatprep.subr.mxu0 0.0
        %4359 = vmatpush1.msra.mxu0 0.0
        %4360 = vmatprep.subr.mxu0 0.0
        %4361 = vmatpush1.msra.mxu0 0.0
        %4362 = vmatprep.subr.mxu0 0.0
        %4363 = vmatpush1.msra.mxu0 0.0
        %4364 = vmatprep.subr.mxu0 0.0
        %4365 = vmatpush1.msra.mxu0 0.0
        %4366 = vmatprep.mubr.f32.mxu0 0.0
        %4367 = vmatmul.mubr.f32.gmra.mrb[0].mxu0 %v4291
        %v4368 = vpop.f32.mrb[0].mxu0
        %v4369 = vadd.f32 0.0, %v4368
        %v4370 = vpop.f32.mrb[0].mxu0
        %4371 = vmatprep.mubr.f32.mxu0 0.0
        %4372 = vmatmul.mubr.f32.gmra.mrb[0].mxu0 %v4294
        %v4373 = vpop.f32.mrb[0].mxu0
        %v4374 = vadd.f32 0.0, %v4373
        %v4375 = vpop.f32.mrb[0].mxu0
        %4376 = vmatprep.mubr.f32.mxu0 0.0
        %4377 = vmatmul.mubr.f32.gmra.mrb[0].mxu0 %v4297
        %v4378 = vpop.f32.mrb[0].mxu0
        %v4379 = vadd.f32 0.0, %v4378
        %v4380 = vpop.f32.mrb[0].mxu0
        %4381 = vmatprep.mubr.f32.mxu0 0.0
        %4382 = vmatmul.mubr.f32.gmra.mrb[0].mxu0 %v4300
        %v4383 = vpop.f32.mrb[0].mxu0
        %v4384 = vadd.f32 0.0, %v4383
        %v4385 = vpop.f32.mrb[0].mxu0
        %4386 = vdwg.mxu0
        %s4387 = scalar_lea.vmem %s4, 480
        %v4388 = vld [vmem:[%s4387] sm:$0xff]
        %v4389 = vld [vmem:[%s4387 + $0x8] sm:$0xff]
        %v4390 = vld [vmem:[%s4387 + $0x10] sm:$0xff]
        %v4391 = vld [vmem:[%s4387 + $0x18] sm:$0xff]
        %v4393 = vsel %vm1386, %v4369, 0
        %v4396 = vsel %vm1386, %v4374, 0
        %v4399 = vsel %vm1386, %v4379, 0
        %v4402 = vsel %vm1386, %v4384, 0
        %4404 = vmatprep.subr.mxu0 0.0
        %4405 = vmatpush1.msra.mxu0 %v4388
        %4406 = vmatprep.subr.mxu0 0.0
        %4407 = vmatpush1.msra.mxu0 %v4389
        %4408 = vmatprep.subr.mxu0 0.0
        %4409 = vmatpush1.msra.mxu0 %v4390
        %4410 = vmatprep.subr.mxu0 0.0
        %4411 = vmatpush1.msra.mxu0 %v4391
        %4412 = vmatprep.subr.mxu0 0.0
        %4413 = vmatpush1.msra.mxu0 0.0
        %4414 = vmatprep.subr.mxu0 0.0
        %4415 = vmatpush1.msra.mxu0 0.0
        %4416 = vmatprep.subr.mxu0 0.0
        %4417 = vmatpush1.msra.mxu0 0.0
        %4418 = vmatprep.subr.mxu0 0.0
        %4419 = vmatpush1.msra.mxu0 0.0
        %4420 = vmatprep.subr.mxu0 0.0
        %4421 = vmatpush1.msra.mxu0 0.0
        %4422 = vmatprep.subr.mxu0 0.0
        %4423 = vmatpush1.msra.mxu0 0.0
        %4424 = vmatprep.subr.mxu0 0.0
        %4425 = vmatpush1.msra.mxu0 0.0
        %4426 = vmatprep.subr.mxu0 0.0
        %4427 = vmatpush1.msra.mxu0 0.0
        %4428 = vmatprep.subr.mxu0 0.0
        %4429 = vmatpush1.msra.mxu0 0.0
        %4430 = vmatprep.subr.mxu0 0.0
        %4431 = vmatpush1.msra.mxu0 0.0
        %4432 = vmatprep.subr.mxu0 0.0
        %4433 = vmatpush1.msra.mxu0 0.0
        %4434 = vmatprep.subr.mxu0 0.0
        %4435 = vmatpush1.msra.mxu0 0.0
        %4436 = vmatprep.subr.mxu0 0.0
        %4437 = vmatpush1.msra.mxu0 0.0
        %4438 = vmatprep.subr.mxu0 0.0
        %4439 = vmatpush1.msra.mxu0 0.0
        %4440 = vmatprep.subr.mxu0 0.0
        %4441 = vmatpush1.msra.mxu0 0.0
        %4442 = vmatprep.subr.mxu0 0.0
        %4443 = vmatpush1.msra.mxu0 0.0
        %4444 = vmatprep.subr.mxu0 0.0
        %4445 = vmatpush1.msra.mxu0 0.0
        %4446 = vmatprep.subr.mxu0 0.0
        %4447 = vmatpush1.msra.mxu0 0.0
        %4448 = vmatprep.subr.mxu0 0.0
        %4449 = vmatpush1.msra.mxu0 0.0
        %4450 = vmatprep.subr.mxu0 0.0
        %4451 = vmatpush1.msra.mxu0 0.0
        %4452 = vmatprep.subr.mxu0 0.0
        %4453 = vmatpush1.msra.mxu0 0.0
        %4454 = vmatprep.subr.mxu0 0.0
        %4455 = vmatpush1.msra.mxu0 0.0
        %4456 = vmatprep.subr.mxu0 0.0
        %4457 = vmatpush1.msra.mxu0 0.0
        %4458 = vmatprep.subr.mxu0 0.0
        %4459 = vmatpush1.msra.mxu0 0.0
        %4460 = vmatprep.subr.mxu0 0.0
        %4461 = vmatpush1.msra.mxu0 0.0
        %4462 = vmatprep.subr.mxu0 0.0
        %4463 = vmatpush1.msra.mxu0 0.0
        %4464 = vmatprep.subr.mxu0 0.0
        %4465 = vmatpush1.msra.mxu0 0.0
        %4466 = vmatprep.subr.mxu0 0.0
        %4467 = vmatpush1.msra.mxu0 0.0
        %4468 = vmatprep.mubr.f32.mxu0 0.0
        %4469 = vmatmul.mubr.f32.gmra.mrb[0].mxu0 %v4393
        %v4470 = vpop.f32.mrb[0].mxu0
        %v4471 = vadd.f32 0.0, %v4470
        %v4472 = vpop.f32.mrb[0].mxu0
        %4473 = vmatprep.mubr.f32.mxu0 0.0
        %4474 = vmatmul.mubr.f32.gmra.mrb[0].mxu0 %v4396
        %v4475 = vpop.f32.mrb[0].mxu0
        %v4476 = vadd.f32 0.0, %v4475
        %v4477 = vpop.f32.mrb[0].mxu0
        %4478 = vmatprep.mubr.f32.mxu0 0.0
        %4479 = vmatmul.mubr.f32.gmra.mrb[0].mxu0 %v4399
        %v4480 = vpop.f32.mrb[0].mxu0
        %v4481 = vadd.f32 0.0, %v4480
        %v4482 = vpop.f32.mrb[0].mxu0
        %4483 = vmatprep.mubr.f32.mxu0 0.0
        %4484 = vmatmul.mubr.f32.gmra.mrb[0].mxu0 %v4402
        %v4485 = vpop.f32.mrb[0].mxu0
        %v4486 = vadd.f32 0.0, %v4485
        %v4487 = vpop.f32.mrb[0].mxu0
        %4488 = vdwg.mxu0
        %v4489 = vadd.f32 %v4281, %v4471
        %v4490 = vadd.f32 %v4282, %v4476
        %v4491 = vadd.f32 %v4283, %v4481
        %v4492 = vadd.f32 %v4284, %v4486
        %v4493 = vld [vmem:[%s5] sm:$0x1]
        %v4495 = vlaneseq
        %v4496 = vshrl.u32 %v4495, 7
        %v4497 = vsub.s32 0, %v4496
        %v4498 = vrot.slane %v4493, %v4497
        %v4500 = vadd.f32 %v4489, %v4498
        %v4501 = vadd.f32 %v4490, %v4498
        %v4502 = vadd.f32 %v4491, %v4498
        %v4503 = vadd.f32 %v4492, %v4498
        %v4504 = vmax.f32 %v4500, 0.0
        %v4505 = vmax.f32 %v4501, 0.0
        %v4506 = vmax.f32 %v4502, 0.0
        %v4507 = vmax.f32 %v4503, 0.0
        %v4508 = vld [vmem:[%s6] sm:$0xff]
        %v4509 = vld [vmem:[%s6 + $0x8] sm:$0xff]
        %v4510 = vld [vmem:[%s6 + $0x10] sm:$0xff]
        %v4511 = vld [vmem:[%s6 + $0x18] sm:$0x1]
        %vm4512 = vcmask 203776
        %v4514 = vsel %vm4512, %v4508, 0
        %v4517 = vsel %vm4512, %v4509, 0
        %v4520 = vsel %vm4512, %v4510, 0
        %v4523 = vsel %vm4512, %v4511, 0
        %vm4525 = vcmask 1040384
        %v4527 = vsel %vm4525, %v4507, 0
        %4529 = vmatprep.subr.mxu0 0.0
        %4530 = vmatpush1.msra.mxu0 %v4504
        %4531 = vmatprep.subr.mxu0 0.0
        %4532 = vmatpush1.msra.mxu0 %v4505
        %4533 = vmatprep.subr.mxu0 0.0
        %4534 = vmatpush1.msra.mxu0 %v4506
        %4535 = vmatprep.subr.mxu0 0.0
        %4536 = vmatpush1.msra.mxu0 %v4527
        %4537 = vmatprep.subr.mxu0 0.0
        %4538 = vmatpush1.msra.mxu0 0.0
        %4539 = vmatprep.subr.mxu0 0.0
        %4540 = vmatpush1.msra.mxu0 0.0
        %4541 = vmatprep.subr.mxu0 0.0
        %4542 = vmatpush1.msra.mxu0 0.0
        %4543 = vmatprep.subr.mxu0 0.0
        %4544 = vmatpush1.msra.mxu0 0.0
        %4545 = vmatprep.subr.mxu0 0.0
        %4546 = vmatpush1.msra.mxu0 0.0
        %4547 = vmatprep.subr.mxu0 0.0
        %4548 = vmatpush1.msra.mxu0 0.0
        %4549 = vmatprep.subr.mxu0 0.0
        %4550 = vmatpush1.msra.mxu0 0.0
        %4551 = vmatprep.subr.mxu0 0.0
        %4552 = vmatpush1.msra.mxu0 0.0
        %4553 = vmatprep.subr.mxu0 0.0
        %4554 = vmatpush1.msra.mxu0 0.0
        %4555 = vmatprep.subr.mxu0 0.0
        %4556 = vmatpush1.msra.mxu0 0.0
        %4557 = vmatprep.subr.mxu0 0.0
        %4558 = vmatpush1.msra.mxu0 0.0
        %4559 = vmatprep.subr.mxu0 0.0
        %4560 = vmatpush1.msra.mxu0 0.0
        %4561 = vmatprep.subr.mxu0 0.0
        %4562 = vmatpush1.msra.mxu0 0.0
        %4563 = vmatprep.subr.mxu0 0.0
        %4564 = vmatpush1.msra.mxu0 0.0
        %4565 = vmatprep.subr.mxu0 0.0
        %4566 = vmatpush1.msra.mxu0 0.0
        %4567 = vmatprep.subr.mxu0 0.0
        %4568 = vmatpush1.msra.mxu0 0.0
        %4569 = vmatprep.subr.mxu0 0.0
        %4570 = vmatpush1.msra.mxu0 0.0
        %4571 = vmatprep.subr.mxu0 0.0
        %4572 = vmatpush1.msra.mxu0 0.0
        %4573 = vmatprep.subr.mxu0 0.0
        %4574 = vmatpush1.msra.mxu0 0.0
        %4575 = vmatprep.subr.mxu0 0.0
        %4576 = vmatpush1.msra.mxu0 0.0
        %4577 = vmatprep.subr.mxu0 0.0
        %4578 = vmatpush1.msra.mxu0 0.0
        %4579 = vmatprep.subr.mxu0 0.0
        %4580 = vmatpush1.msra.mxu0 0.0
        %4581 = vmatprep.subr.mxu0 0.0
        %4582 = vmatpush1.msra.mxu0 0.0
        %4583 = vmatprep.subr.mxu0 0.0
        %4584 = vmatpush1.msra.mxu0 0.0
        %4585 = vmatprep.subr.mxu0 0.0
        %4586 = vmatpush1.msra.mxu0 0.0
        %4587 = vmatprep.subr.mxu0 0.0
        %4588 = vmatpush1.msra.mxu0 0.0
        %4589 = vmatprep.subr.mxu0 0.0
        %4590 = vmatpush1.msra.mxu0 0.0
        %4591 = vmatprep.subr.mxu0 0.0
        %4592 = vmatpush1.msra.mxu0 0.0
        %4593 = vmatprep.mubr.f32.mxu0 0.0
        %4594 = vmatmul.mubr.f32.gmra.mrb[0].mxu0 %v4514
        %v4595 = vpop.f32.mrb[0].mxu0
        %v4596 = vadd.f32 0.0, %v4595
        %v4597 = vpop.f32.mrb[0].mxu0
        %4598 = vmatprep.mubr.f32.mxu0 0.0
        %4599 = vmatmul.mubr.f32.gmra.mrb[0].mxu0 %v4517
        %v4600 = vpop.f32.mrb[0].mxu0
        %v4601 = vadd.f32 0.0, %v4600
        %v4602 = vpop.f32.mrb[0].mxu0
        %4603 = vmatprep.mubr.f32.mxu0 0.0
        %4604 = vmatmul.mubr.f32.gmra.mrb[0].mxu0 %v4520
        %v4605 = vpop.f32.mrb[0].mxu0
        %v4606 = vadd.f32 0.0, %v4605
        %v4607 = vpop.f32.mrb[0].mxu0
        %4608 = vmatprep.mubr.f32.mxu0 0.0
        %4609 = vmatmul.mubr.f32.gmra.mrb[0].mxu0 %v4523
        %v4610 = vpop.f32.mrb[0].mxu0
        %v4611 = vadd.f32 0.0, %v4610
        %v4612 = vpop.f32.mrb[0].mxu0
        %4613 = vdwg.mxu0
        %v4614 = vld [vmem:[%s7] sm:$0xff]
        %v4615 = vld [vmem:[%s7 + $0x8] sm:$0xff]
        %v4616 = vld [vmem:[%s7 + $0x10] sm:$0xff]
        %v4617 = vld [vmem:[%s7 + $0x18] sm:$0xff]
        %v4618 = vld [vmem:[%s7 + $0x20] sm:$0xff]
        %v4619 = vld [vmem:[%s7 + $0x28] sm:$0xff]
        %v4620 = vld [vmem:[%s7 + $0x30] sm:$0xff]
        %v4621 = vld [vmem:[%s7 + $0x38] sm:$0xff]
        %s4622 = scalar_lea.vmem %s6, 32
        %v4623 = vld [vmem:[%s4622] sm:$0xff]
        %v4624 = vld [vmem:[%s4622 + $0x8] sm:$0xff]
        %v4625 = vld [vmem:[%s4622 + $0x10] sm:$0xff]
        %v4626 = vld [vmem:[%s4622 + $0x18] sm:$0x1]
        %v4628 = vsel %vm4512, %v4623, 0
        %v4631 = vsel %vm4512, %v4624, 0
        %v4634 = vsel %vm4512, %v4625, 0
        %v4637 = vsel %vm4512, %v4626, 0
        %4639 = vmatprep.subr.mxu0 0.0
        %4640 = vmatpush1.msra.mxu0 %v4504
        %4641 = vmatprep.subr.mxu0 0.0
        %4642 = vmatpush1.msra.mxu0 %v4505
        %4643 = vmatprep.subr.mxu0 0.0
        %4644 = vmatpush1.msra.mxu0 %v4506
        %4645 = vmatprep.subr.mxu0 0.0
        %4646 = vmatpush1.msra.mxu0 %v4527
        %4647 = vmatprep.subr.mxu0 0.0
        %4648 = vmatpush1.msra.mxu0 0.0
        %4649 = vmatprep.subr.mxu0 0.0
        %4650 = vmatpush1.msra.mxu0 0.0
        %4651 = vmatprep.subr.mxu0 0.0
        %4652 = vmatpush1.msra.mxu0 0.0
        %4653 = vmatprep.subr.mxu0 0.0
        %4654 = vmatpush1.msra.mxu0 0.0
        %4655 = vmatprep.subr.mxu0 0.0
        %4656 = vmatpush1.msra.mxu0 0.0
        %4657 = vmatprep.subr.mxu0 0.0
        %4658 = vmatpush1.msra.mxu0 0.0
        %4659 = vmatprep.subr.mxu0 0.0
        %4660 = vmatpush1.msra.mxu0 0.0
        %4661 = vmatprep.subr.mxu0 0.0
        %4662 = vmatpush1.msra.mxu0 0.0
        %4663 = vmatprep.subr.mxu0 0.0
        %4664 = vmatpush1.msra.mxu0 0.0
        %4665 = vmatprep.subr.mxu0 0.0
        %4666 = vmatpush1.msra.mxu0 0.0
        %4667 = vmatprep.subr.mxu0 0.0
        %4668 = vmatpush1.msra.mxu0 0.0
        %4669 = vmatprep.subr.mxu0 0.0
        %4670 = vmatpush1.msra.mxu0 0.0
        %4671 = vmatprep.subr.mxu0 0.0
        %4672 = vmatpush1.msra.mxu0 0.0
        %4673 = vmatprep.subr.mxu0 0.0
        %4674 = vmatpush1.msra.mxu0 0.0
        %4675 = vmatprep.subr.mxu0 0.0
        %4676 = vmatpush1.msra.mxu0 0.0
        %4677 = vmatprep.subr.mxu0 0.0
        %4678 = vmatpush1.msra.mxu0 0.0
        %4679 = vmatprep.subr.mxu0 0.0
        %4680 = vmatpush1.msra.mxu0 0.0
        %4681 = vmatprep.subr.mxu0 0.0
        %4682 = vmatpush1.msra.mxu0 0.0
        %4683 = vmatprep.subr.mxu0 0.0
        %4684 = vmatpush1.msra.mxu0 0.0
        %4685 = vmatprep.subr.mxu0 0.0
        %4686 = vmatpush1.msra.mxu0 0.0
        %4687 = vmatprep.subr.mxu0 0.0
        %4688 = vmatpush1.msra.mxu0 0.0
        %4689 = vmatprep.subr.mxu0 0.0
        %4690 = vmatpush1.msra.mxu0 0.0
        %4691 = vmatprep.subr.mxu0 0.0
        %4692 = vmatpush1.msra.mxu0 0.0
        %4693 = vmatprep.subr.mxu0 0.0
        %4694 = vmatpush1.msra.mxu0 0.0
        %4695 = vmatprep.subr.mxu0 0.0
        %4696 = vmatpush1.msra.mxu0 0.0
        %4697 = vmatprep.subr.mxu0 0.0
        %4698 = vmatpush1.msra.mxu0 0.0
        %4699 = vmatprep.subr.mxu0 0.0
        %4700 = vmatpush1.msra.mxu0 0.0
        %4701 = vmatprep.subr.mxu0 0.0
        %4702 = vmatpush1.msra.mxu0 0.0
        %4703 = vmatprep.mubr.f32.mxu0 0.0
        %4704 = vmatmul.mubr.f32.gmra.mrb[0].mxu0 %v4628
        %v4705 = vpop.f32.mrb[0].mxu0
        %v4706 = vadd.f32 0.0, %v4705
        %v4707 = vpop.f32.mrb[0].mxu0
        %4708 = vmatprep.mubr.f32.mxu0 0.0
        %4709 = vmatmul.mubr.f32.gmra.mrb[0].mxu0 %v4631
        %v4710 = vpop.f32.mrb[0].mxu0
        %v4711 = vadd.f32 0.0, %v4710
        %v4712 = vpop.f32.mrb[0].mxu0
        %4713 = vmatprep.mubr.f32.mxu0 0.0
        %4714 = vmatmul.mubr.f32.gmra.mrb[0].mxu0 %v4634
        %v4715 = vpop.f32.mrb[0].mxu0
        %v4716 = vadd.f32 0.0, %v4715
        %v4717 = vpop.f32.mrb[0].mxu0
        %4718 = vmatprep.mubr.f32.mxu0 0.0
        %4719 = vmatmul.mubr.f32.gmra.mrb[0].mxu0 %v4637
        %v4720 = vpop.f32.mrb[0].mxu0
        %v4721 = vadd.f32 0.0, %v4720
        %v4722 = vpop.f32.mrb[0].mxu0
        %4723 = vdwg.mxu0
        %s4724 = scalar_lea.vmem %s7, 64
        %v4725 = vld [vmem:[%s4724] sm:$0xff]
        %v4726 = vld [vmem:[%s4724 + $0x8] sm:$0xff]
        %v4727 = vld [vmem:[%s4724 + $0x10] sm:$0xff]
        %v4728 = vld [vmem:[%s4724 + $0x18] sm:$0xff]
        %v4729 = vld [vmem:[%s4724 + $0x20] sm:$0xff]
        %v4730 = vld [vmem:[%s4724 + $0x28] sm:$0xff]
        %v4731 = vld [vmem:[%s4724 + $0x30] sm:$0xff]
        %v4732 = vld [vmem:[%s4724 + $0x38] sm:$0xff]
        %vm4733 = vcmask 523264
        %v4735 = vsel %vm4733, %v4706, 0
        %v4738 = vsel %vm4733, %v4711, 0
        %v4741 = vsel %vm4733, %v4716, 0
        %v4744 = vsel %vm4733, %v4721, 0
        %4746 = vmatprep.subr.mxu0 0.0
        %4747 = vmatpush1.msra.mxu0 %v4725
        %4748 = vmatprep.subr.mxu0 0.0
        %4749 = vmatpush1.msra.mxu0 %v4726
        %4750 = vmatprep.subr.mxu0 0.0
        %4751 = vmatpush1.msra.mxu0 %v4727
        %4752 = vmatprep.subr.mxu0 0.0
        %4753 = vmatpush1.msra.mxu0 %v4728
        %4754 = vmatprep.subr.mxu0 0.0
        %4755 = vmatpush1.msra.mxu0 %v4729
        %4756 = vmatprep.subr.mxu0 0.0
        %4757 = vmatpush1.msra.mxu0 %v4730
        %4758 = vmatprep.subr.mxu0 0.0
        %4759 = vmatpush1.msra.mxu0 %v4731
        %4760 = vmatprep.subr.mxu0 0.0
        %4761 = vmatpush1.msra.mxu0 %v4732
        %4762 = vmatprep.subr.mxu0 0.0
        %4763 = vmatpush1.msra.mxu0 0.0
        %4764 = vmatprep.subr.mxu0 0.0
        %4765 = vmatpush1.msra.mxu0 0.0
        %4766 = vmatprep.subr.mxu0 0.0
        %4767 = vmatpush1.msra.mxu0 0.0
        %4768 = vmatprep.subr.mxu0 0.0
        %4769 = vmatpush1.msra.mxu0 0.0
        %4770 = vmatprep.subr.mxu0 0.0
        %4771 = vmatpush1.msra.mxu0 0.0
        %4772 = vmatprep.subr.mxu0 0.0
        %4773 = vmatpush1.msra.mxu0 0.0
        %4774 = vmatprep.subr.mxu0 0.0
        %4775 = vmatpush1.msra.mxu0 0.0
        %4776 = vmatprep.subr.mxu0 0.0
        %4777 = vmatpush1.msra.mxu0 0.0
        %4778 = vmatprep.subr.mxu0 0.0
        %4779 = vmatpush1.msra.mxu0 0.0
        %4780 = vmatprep.subr.mxu0 0.0
        %4781 = vmatpush1.msra.mxu0 0.0
        %4782 = vmatprep.subr.mxu0 0.0
        %4783 = vmatpush1.msra.mxu0 0.0
        %4784 = vmatprep.subr.mxu0 0.0
        %4785 = vmatpush1.msra.mxu0 0.0
        %4786 = vmatprep.subr.mxu0 0.0
        %4787 = vmatpush1.msra.mxu0 0.0
        %4788 = vmatprep.subr.mxu0 0.0
        %4789 = vmatpush1.msra.mxu0 0.0
        %4790 = vmatprep.subr.mxu0 0.0
        %4791 = vmatpush1.msra.mxu0 0.0
        %4792 = vmatprep.subr.mxu0 0.0
        %4793 = vmatpush1.msra.mxu0 0.0
        %4794 = vmatprep.subr.mxu0 0.0
        %4795 = vmatpush1.msra.mxu0 0.0
        %4796 = vmatprep.subr.mxu0 0.0
        %4797 = vmatpush1.msra.mxu0 0.0
        %4798 = vmatprep.subr.mxu0 0.0
        %4799 = vmatpush1.msra.mxu0 0.0
        %4800 = vmatprep.subr.mxu0 0.0
        %4801 = vmatpush1.msra.mxu0 0.0
        %4802 = vmatprep.subr.mxu0 0.0
        %4803 = vmatpush1.msra.mxu0 0.0
        %4804 = vmatprep.subr.mxu0 0.0
        %4805 = vmatpush1.msra.mxu0 0.0
        %4806 = vmatprep.subr.mxu0 0.0
        %4807 = vmatpush1.msra.mxu0 0.0
        %4808 = vmatprep.subr.mxu0 0.0
        %4809 = vmatpush1.msra.mxu0 0.0
        %4810 = vmatprep.mubr.f32.mxu0 0.0
        %4811 = vmatmul.mubr.f32.gmra.mrb[0].mxu0 %v4735
        %v4812 = vpop.f32.mrb[0].mxu0
        %v4813 = vadd.f32 0.0, %v4812
        %v4814 = vpop.f32.mrb[0].mxu0
        %4815 = vmatprep.mubr.f32.mxu0 0.0
        %4816 = vmatmul.mubr.f32.gmra.mrb[0].mxu0 %v4738
        %v4817 = vpop.f32.mrb[0].mxu0
        %v4818 = vadd.f32 0.0, %v4817
        %v4819 = vpop.f32.mrb[0].mxu0
        %4820 = vmatprep.mubr.f32.mxu0 0.0
        %4821 = vmatmul.mubr.f32.gmra.mrb[0].mxu0 %v4741
        %v4822 = vpop.f32.mrb[0].mxu0
        %v4823 = vadd.f32 0.0, %v4822
        %v4824 = vpop.f32.mrb[0].mxu0
        %4825 = vmatprep.mubr.f32.mxu0 0.0
        %4826 = vmatmul.mubr.f32.gmra.mrb[0].mxu0 %v4744
        %v4827 = vpop.f32.mrb[0].mxu0
        %v4828 = vadd.f32 0.0, %v4827
        %v4829 = vpop.f32.mrb[0].mxu0
        %4830 = vdwg.mxu0
        %v4832 = vsel %vm4733, %v4596, 0
        %v4835 = vsel %vm4733, %v4601, 0
        %v4838 = vsel %vm4733, %v4606, 0
        %v4841 = vsel %vm4733, %v4611, 0
        %4843 = vmatprep.subr.mxu0 0.0
        %4844 = vmatpush1.msra.mxu0 %v4614
        %4845 = vmatprep.subr.mxu0 0.0
        %4846 = vmatpush1.msra.mxu0 %v4615
        %4847 = vmatprep.subr.mxu0 0.0
        %4848 = vmatpush1.msra.mxu0 %v4616
        %4849 = vmatprep.subr.mxu0 0.0
        %4850 = vmatpush1.msra.mxu0 %v4617
        %4851 = vmatprep.subr.mxu0 0.0
        %4852 = vmatpush1.msra.mxu0 %v4618
        %4853 = vmatprep.subr.mxu0 0.0
        %4854 = vmatpush1.msra.mxu0 %v4619
        %4855 = vmatprep.subr.mxu0 0.0
        %4856 = vmatpush1.msra.mxu0 %v4620
        %4857 = vmatprep.subr.mxu0 0.0
        %4858 = vmatpush1.msra.mxu0 %v4621
        %4859 = vmatprep.subr.mxu0 0.0
        %4860 = vmatpush1.msra.mxu0 0.0
        %4861 = vmatprep.subr.mxu0 0.0
        %4862 = vmatpush1.msra.mxu0 0.0
        %4863 = vmatprep.subr.mxu0 0.0
        %4864 = vmatpush1.msra.mxu0 0.0
        %4865 = vmatprep.subr.mxu0 0.0
        %4866 = vmatpush1.msra.mxu0 0.0
        %4867 = vmatprep.subr.mxu0 0.0
        %4868 = vmatpush1.msra.mxu0 0.0
        %4869 = vmatprep.subr.mxu0 0.0
        %4870 = vmatpush1.msra.mxu0 0.0
        %4871 = vmatprep.subr.mxu0 0.0
        %4872 = vmatpush1.msra.mxu0 0.0
        %4873 = vmatprep.subr.mxu0 0.0
        %4874 = vmatpush1.msra.mxu0 0.0
        %4875 = vmatprep.subr.mxu0 0.0
        %4876 = vmatpush1.msra.mxu0 0.0
        %4877 = vmatprep.subr.mxu0 0.0
        %4878 = vmatpush1.msra.mxu0 0.0
        %4879 = vmatprep.subr.mxu0 0.0
        %4880 = vmatpush1.msra.mxu0 0.0
        %4881 = vmatprep.subr.mxu0 0.0
        %4882 = vmatpush1.msra.mxu0 0.0
        %4883 = vmatprep.subr.mxu0 0.0
        %4884 = vmatpush1.msra.mxu0 0.0
        %4885 = vmatprep.subr.mxu0 0.0
        %4886 = vmatpush1.msra.mxu0 0.0
        %4887 = vmatprep.subr.mxu0 0.0
        %4888 = vmatpush1.msra.mxu0 0.0
        %4889 = vmatprep.subr.mxu0 0.0
        %4890 = vmatpush1.msra.mxu0 0.0
        %4891 = vmatprep.subr.mxu0 0.0
        %4892 = vmatpush1.msra.mxu0 0.0
        %4893 = vmatprep.subr.mxu0 0.0
        %4894 = vmatpush1.msra.mxu0 0.0
        %4895 = vmatprep.subr.mxu0 0.0
        %4896 = vmatpush1.msra.mxu0 0.0
        %4897 = vmatprep.subr.mxu0 0.0
        %4898 = vmatpush1.msra.mxu0 0.0
        %4899 = vmatprep.subr.mxu0 0.0
        %4900 = vmatpush1.msra.mxu0 0.0
        %4901 = vmatprep.subr.mxu0 0.0
        %4902 = vmatpush1.msra.mxu0 0.0
        %4903 = vmatprep.subr.mxu0 0.0
        %4904 = vmatpush1.msra.mxu0 0.0
        %4905 = vmatprep.subr.mxu0 0.0
        %4906 = vmatpush1.msra.mxu0 0.0
        %4907 = vmatprep.mubr.f32.mxu0 0.0
        %4908 = vmatmul.mubr.f32.gmra.mrb[0].mxu0 %v4832
        %v4909 = vpop.f32.mrb[0].mxu0
        %v4910 = vadd.f32 %v4813, %v4909
        %v4911 = vpop.f32.mrb[0].mxu0
        %4912 = vmatprep.mubr.f32.mxu0 0.0
        %4913 = vmatmul.mubr.f32.gmra.mrb[0].mxu0 %v4835
        %v4914 = vpop.f32.mrb[0].mxu0
        %v4915 = vadd.f32 %v4818, %v4914
        %v4916 = vpop.f32.mrb[0].mxu0
        %4917 = vmatprep.mubr.f32.mxu0 0.0
        %4918 = vmatmul.mubr.f32.gmra.mrb[0].mxu0 %v4838
        %v4919 = vpop.f32.mrb[0].mxu0
        %v4920 = vadd.f32 %v4823, %v4919
        %v4921 = vpop.f32.mrb[0].mxu0
        %4922 = vmatprep.mubr.f32.mxu0 0.0
        %4923 = vmatmul.mubr.f32.gmra.mrb[0].mxu0 %v4841
        %v4924 = vpop.f32.mrb[0].mxu0
        %v4925 = vadd.f32 %v4828, %v4924
        %v4926 = vpop.f32.mrb[0].mxu0
        %4927 = vdwg.mxu0
        %s4928 = scalar_lea.vmem %s6, 64
        %v4929 = vld [vmem:[%s4928] sm:$0xff]
        %v4930 = vld [vmem:[%s4928 + $0x8] sm:$0xff]
        %v4931 = vld [vmem:[%s4928 + $0x10] sm:$0xff]
        %v4932 = vld [vmem:[%s4928 + $0x18] sm:$0x1]
        %v4934 = vsel %vm4512, %v4929, 0
        %v4937 = vsel %vm4512, %v4930, 0
        %v4940 = vsel %vm4512, %v4931, 0
        %v4943 = vsel %vm4512, %v4932, 0
        %4945 = vmatprep.subr.mxu0 0.0
        %4946 = vmatpush1.msra.mxu0 %v4504
        %4947 = vmatprep.subr.mxu0 0.0
        %4948 = vmatpush1.msra.mxu0 %v4505
        %4949 = vmatprep.subr.mxu0 0.0
        %4950 = vmatpush1.msra.mxu0 %v4506
        %4951 = vmatprep.subr.mxu0 0.0
        %4952 = vmatpush1.msra.mxu0 %v4527
        %4953 = vmatprep.subr.mxu0 0.0
        %4954 = vmatpush1.msra.mxu0 0.0
        %4955 = vmatprep.subr.mxu0 0.0
        %4956 = vmatpush1.msra.mxu0 0.0
        %4957 = vmatprep.subr.mxu0 0.0
        %4958 = vmatpush1.msra.mxu0 0.0
        %4959 = vmatprep.subr.mxu0 0.0
        %4960 = vmatpush1.msra.mxu0 0.0
        %4961 = vmatprep.subr.mxu0 0.0
        %4962 = vmatpush1.msra.mxu0 0.0
        %4963 = vmatprep.subr.mxu0 0.0
        %4964 = vmatpush1.msra.mxu0 0.0
        %4965 = vmatprep.subr.mxu0 0.0
        %4966 = vmatpush1.msra.mxu0 0.0
        %4967 = vmatprep.subr.mxu0 0.0
        %4968 = vmatpush1.msra.mxu0 0.0
        %4969 = vmatprep.subr.mxu0 0.0
        %4970 = vmatpush1.msra.mxu0 0.0
        %4971 = vmatprep.subr.mxu0 0.0
        %4972 = vmatpush1.msra.mxu0 0.0
        %4973 = vmatprep.subr.mxu0 0.0
        %4974 = vmatpush1.msra.mxu0 0.0
        %4975 = vmatprep.subr.mxu0 0.0
        %4976 = vmatpush1.msra.mxu0 0.0
        %4977 = vmatprep.subr.mxu0 0.0
        %4978 = vmatpush1.msra.mxu0 0.0
        %4979 = vmatprep.subr.mxu0 0.0
        %4980 = vmatpush1.msra.mxu0 0.0
        %4981 = vmatprep.subr.mxu0 0.0
        %4982 = vmatpush1.msra.mxu0 0.0
        %4983 = vmatprep.subr.mxu0 0.0
        %4984 = vmatpush1.msra.mxu0 0.0
        %4985 = vmatprep.subr.mxu0 0.0
        %4986 = vmatpush1.msra.mxu0 0.0
        %4987 = vmatprep.subr.mxu0 0.0
        %4988 = vmatpush1.msra.mxu0 0.0
        %4989 = vmatprep.subr.mxu0 0.0
        %4990 = vmatpush1.msra.mxu0 0.0
        %4991 = vmatprep.subr.mxu0 0.0
        %4992 = vmatpush1.msra.mxu0 0.0
        %4993 = vmatprep.subr.mxu0 0.0
        %4994 = vmatpush1.msra.mxu0 0.0
        %4995 = vmatprep.subr.mxu0 0.0
        %4996 = vmatpush1.msra.mxu0 0.0
        %4997 = vmatprep.subr.mxu0 0.0
        %4998 = vmatpush1.msra.mxu0 0.0
        %4999 = vmatprep.subr.mxu0 0.0
        %5000 = vmatpush1.msra.mxu0 0.0
        %5001 = vmatprep.subr.mxu0 0.0
        %5002 = vmatpush1.msra.mxu0 0.0
        %5003 = vmatprep.subr.mxu0 0.0
        %5004 = vmatpush1.msra.mxu0 0.0
        %5005 = vmatprep.subr.mxu0 0.0
        %5006 = vmatpush1.msra.mxu0 0.0
        %5007 = vmatprep.subr.mxu0 0.0
        %5008 = vmatpush1.msra.mxu0 0.0
        %5009 = vmatprep.mubr.f32.mxu0 0.0
        %5010 = vmatmul.mubr.f32.gmra.mrb[0].mxu0 %v4934
        %v5011 = vpop.f32.mrb[0].mxu0
        %v5012 = vadd.f32 0.0, %v5011
        %v5013 = vpop.f32.mrb[0].mxu0
        %5014 = vmatprep.mubr.f32.mxu0 0.0
        %5015 = vmatmul.mubr.f32.gmra.mrb[0].mxu0 %v4937
        %v5016 = vpop.f32.mrb[0].mxu0
        %v5017 = vadd.f32 0.0, %v5016
        %v5018 = vpop.f32.mrb[0].mxu0
        %5019 = vmatprep.mubr.f32.mxu0 0.0
        %5020 = vmatmul.mubr.f32.gmra.mrb[0].mxu0 %v4940
        %v5021 = vpop.f32.mrb[0].mxu0
        %v5022 = vadd.f32 0.0, %v5021
        %v5023 = vpop.f32.mrb[0].mxu0
        %5024 = vmatprep.mubr.f32.mxu0 0.0
        %5025 = vmatmul.mubr.f32.gmra.mrb[0].mxu0 %v4943
        %v5026 = vpop.f32.mrb[0].mxu0
        %v5027 = vadd.f32 0.0, %v5026
        %v5028 = vpop.f32.mrb[0].mxu0
        %5029 = vdwg.mxu0
        %s5030 = scalar_lea.vmem %s7, 128
        %v5031 = vld [vmem:[%s5030] sm:$0xff]
        %v5032 = vld [vmem:[%s5030 + $0x8] sm:$0xff]
        %v5033 = vld [vmem:[%s5030 + $0x10] sm:$0xff]
        %v5034 = vld [vmem:[%s5030 + $0x18] sm:$0xff]
        %v5035 = vld [vmem:[%s5030 + $0x20] sm:$0xff]
        %v5036 = vld [vmem:[%s5030 + $0x28] sm:$0xff]
        %v5037 = vld [vmem:[%s5030 + $0x30] sm:$0xff]
        %v5038 = vld [vmem:[%s5030 + $0x38] sm:$0xff]
        %v5040 = vsel %vm4733, %v5012, 0
        %v5043 = vsel %vm4733, %v5017, 0
        %v5046 = vsel %vm4733, %v5022, 0
        %v5049 = vsel %vm4733, %v5027, 0
        %5051 = vmatprep.subr.mxu0 0.0
        %5052 = vmatpush1.msra.mxu0 %v5031
        %5053 = vmatprep.subr.mxu0 0.0
        %5054 = vmatpush1.msra.mxu0 %v5032
        %5055 = vmatprep.subr.mxu0 0.0
        %5056 = vmatpush1.msra.mxu0 %v5033
        %5057 = vmatprep.subr.mxu0 0.0
        %5058 = vmatpush1.msra.mxu0 %v5034
        %5059 = vmatprep.subr.mxu0 0.0
        %5060 = vmatpush1.msra.mxu0 %v5035
        %5061 = vmatprep.subr.mxu0 0.0
        %5062 = vmatpush1.msra.mxu0 %v5036
        %5063 = vmatprep.subr.mxu0 0.0
        %5064 = vmatpush1.msra.mxu0 %v5037
        %5065 = vmatprep.subr.mxu0 0.0
        %5066 = vmatpush1.msra.mxu0 %v5038
        %5067 = vmatprep.subr.mxu0 0.0
        %5068 = vmatpush1.msra.mxu0 0.0
        %5069 = vmatprep.subr.mxu0 0.0
        %5070 = vmatpush1.msra.mxu0 0.0
        %5071 = vmatprep.subr.mxu0 0.0
        %5072 = vmatpush1.msra.mxu0 0.0
        %5073 = vmatprep.subr.mxu0 0.0
        %5074 = vmatpush1.msra.mxu0 0.0
        %5075 = vmatprep.subr.mxu0 0.0
        %5076 = vmatpush1.msra.mxu0 0.0
        %5077 = vmatprep.subr.mxu0 0.0
        %5078 = vmatpush1.msra.mxu0 0.0
        %5079 = vmatprep.subr.mxu0 0.0
        %5080 = vmatpush1.msra.mxu0 0.0
        %5081 = vmatprep.subr.mxu0 0.0
        %5082 = vmatpush1.msra.mxu0 0.0
        %5083 = vmatprep.subr.mxu0 0.0
        %5084 = vmatpush1.msra.mxu0 0.0
        %5085 = vmatprep.subr.mxu0 0.0
        %5086 = vmatpush1.msra.mxu0 0.0
        %5087 = vmatprep.subr.mxu0 0.0
        %5088 = vmatpush1.msra.mxu0 0.0
        %5089 = vmatprep.subr.mxu0 0.0
        %5090 = vmatpush1.msra.mxu0 0.0
        %5091 = vmatprep.subr.mxu0 0.0
        %5092 = vmatpush1.msra.mxu0 0.0
        %5093 = vmatprep.subr.mxu0 0.0
        %5094 = vmatpush1.msra.mxu0 0.0
        %5095 = vmatprep.subr.mxu0 0.0
        %5096 = vmatpush1.msra.mxu0 0.0
        %5097 = vmatprep.subr.mxu0 0.0
        %5098 = vmatpush1.msra.mxu0 0.0
        %5099 = vmatprep.subr.mxu0 0.0
        %5100 = vmatpush1.msra.mxu0 0.0
        %5101 = vmatprep.subr.mxu0 0.0
        %5102 = vmatpush1.msra.mxu0 0.0
        %5103 = vmatprep.subr.mxu0 0.0
        %5104 = vmatpush1.msra.mxu0 0.0
        %5105 = vmatprep.subr.mxu0 0.0
        %5106 = vmatpush1.msra.mxu0 0.0
        %5107 = vmatprep.subr.mxu0 0.0
        %5108 = vmatpush1.msra.mxu0 0.0
        %5109 = vmatprep.subr.mxu0 0.0
        %5110 = vmatpush1.msra.mxu0 0.0
        %5111 = vmatprep.subr.mxu0 0.0
        %5112 = vmatpush1.msra.mxu0 0.0
        %5113 = vmatprep.subr.mxu0 0.0
        %5114 = vmatpush1.msra.mxu0 0.0
        %5115 = vmatprep.mubr.f32.mxu0 0.0
        %5116 = vmatmul.mubr.f32.gmra.mrb[0].mxu0 %v5040
        %v5117 = vpop.f32.mrb[0].mxu0
        %v5118 = vadd.f32 0.0, %v5117
        %v5119 = vpop.f32.mrb[0].mxu0
        %5120 = vmatprep.mubr.f32.mxu0 0.0
        %5121 = vmatmul.mubr.f32.gmra.mrb[0].mxu0 %v5043
        %v5122 = vpop.f32.mrb[0].mxu0
        %v5123 = vadd.f32 0.0, %v5122
        %v5124 = vpop.f32.mrb[0].mxu0
        %5125 = vmatprep.mubr.f32.mxu0 0.0
        %5126 = vmatmul.mubr.f32.gmra.mrb[0].mxu0 %v5046
        %v5127 = vpop.f32.mrb[0].mxu0
        %v5128 = vadd.f32 0.0, %v5127
        %v5129 = vpop.f32.mrb[0].mxu0
        %5130 = vmatprep.mubr.f32.mxu0 0.0
        %5131 = vmatmul.mubr.f32.gmra.mrb[0].mxu0 %v5049
        %v5132 = vpop.f32.mrb[0].mxu0
        %v5133 = vadd.f32 0.0, %v5132
        %v5134 = vpop.f32.mrb[0].mxu0
        %5135 = vdwg.mxu0
        %v5136 = vadd.f32 %v4910, %v5118
        %v5137 = vadd.f32 %v4915, %v5123
        %v5138 = vadd.f32 %v4920, %v5128
        %v5139 = vadd.f32 %v4925, %v5133
        %s5140 = scalar_lea.vmem %s6, 96
        %v5141 = vld [vmem:[%s5140] sm:$0xff]
        %v5142 = vld [vmem:[%s5140 + $0x8] sm:$0xff]
        %v5143 = vld [vmem:[%s5140 + $0x10] sm:$0xff]
        %v5144 = vld [vmem:[%s5140 + $0x18] sm:$0x1]
        %v5146 = vsel %vm4512, %v5141, 0
        %v5149 = vsel %vm4512, %v5142, 0
        %v5152 = vsel %vm4512, %v5143, 0
        %v5155 = vsel %vm4512, %v5144, 0
        %5157 = vmatprep.subr.mxu0 0.0
        %5158 = vmatpush1.msra.mxu0 %v4504
        %5159 = vmatprep.subr.mxu0 0.0
        %5160 = vmatpush1.msra.mxu0 %v4505
        %5161 = vmatprep.subr.mxu0 0.0
        %5162 = vmatpush1.msra.mxu0 %v4506
        %5163 = vmatprep.subr.mxu0 0.0
        %5164 = vmatpush1.msra.mxu0 %v4527
        %5165 = vmatprep.subr.mxu0 0.0
        %5166 = vmatpush1.msra.mxu0 0.0
        %5167 = vmatprep.subr.mxu0 0.0
        %5168 = vmatpush1.msra.mxu0 0.0
        %5169 = vmatprep.subr.mxu0 0.0
        %5170 = vmatpush1.msra.mxu0 0.0
        %5171 = vmatprep.subr.mxu0 0.0
        %5172 = vmatpush1.msra.mxu0 0.0
        %5173 = vmatprep.subr.mxu0 0.0
        %5174 = vmatpush1.msra.mxu0 0.0
        %5175 = vmatprep.subr.mxu0 0.0
        %5176 = vmatpush1.msra.mxu0 0.0
        %5177 = vmatprep.subr.mxu0 0.0
        %5178 = vmatpush1.msra.mxu0 0.0
        %5179 = vmatprep.subr.mxu0 0.0
        %5180 = vmatpush1.msra.mxu0 0.0
        %5181 = vmatprep.subr.mxu0 0.0
        %5182 = vmatpush1.msra.mxu0 0.0
        %5183 = vmatprep.subr.mxu0 0.0
        %5184 = vmatpush1.msra.mxu0 0.0
        %5185 = vmatprep.subr.mxu0 0.0
        %5186 = vmatpush1.msra.mxu0 0.0
        %5187 = vmatprep.subr.mxu0 0.0
        %5188 = vmatpush1.msra.mxu0 0.0
        %5189 = vmatprep.subr.mxu0 0.0
        %5190 = vmatpush1.msra.mxu0 0.0
        %5191 = vmatprep.subr.mxu0 0.0
        %5192 = vmatpush1.msra.mxu0 0.0
        %5193 = vmatprep.subr.mxu0 0.0
        %5194 = vmatpush1.msra.mxu0 0.0
        %5195 = vmatprep.subr.mxu0 0.0
        %5196 = vmatpush1.msra.mxu0 0.0
        %5197 = vmatprep.subr.mxu0 0.0
        %5198 = vmatpush1.msra.mxu0 0.0
        %5199 = vmatprep.subr.mxu0 0.0
        %5200 = vmatpush1.msra.mxu0 0.0
        %5201 = vmatprep.subr.mxu0 0.0
        %5202 = vmatpush1.msra.mxu0 0.0
        %5203 = vmatprep.subr.mxu0 0.0
        %5204 = vmatpush1.msra.mxu0 0.0
        %5205 = vmatprep.subr.mxu0 0.0
        %5206 = vmatpush1.msra.mxu0 0.0
        %5207 = vmatprep.subr.mxu0 0.0
        %5208 = vmatpush1.msra.mxu0 0.0
        %5209 = vmatprep.subr.mxu0 0.0
        %5210 = vmatpush1.msra.mxu0 0.0
        %5211 = vmatprep.subr.mxu0 0.0
        %5212 = vmatpush1.msra.mxu0 0.0
        %5213 = vmatprep.subr.mxu0 0.0
        %5214 = vmatpush1.msra.mxu0 0.0
        %5215 = vmatprep.subr.mxu0 0.0
        %5216 = vmatpush1.msra.mxu0 0.0
        %5217 = vmatprep.subr.mxu0 0.0
        %5218 = vmatpush1.msra.mxu0 0.0
        %5219 = vmatprep.subr.mxu0 0.0
        %5220 = vmatpush1.msra.mxu0 0.0
        %5221 = vmatprep.mubr.f32.mxu0 0.0
        %5222 = vmatmul.mubr.f32.gmra.mrb[0].mxu0 %v5146
        %v5223 = vpop.f32.mrb[0].mxu0
        %v5224 = vadd.f32 0.0, %v5223
        %v5225 = vpop.f32.mrb[0].mxu0
        %5226 = vmatprep.mubr.f32.mxu0 0.0
        %5227 = vmatmul.mubr.f32.gmra.mrb[0].mxu0 %v5149
        %v5228 = vpop.f32.mrb[0].mxu0
        %v5229 = vadd.f32 0.0, %v5228
        %v5230 = vpop.f32.mrb[0].mxu0
        %5231 = vmatprep.mubr.f32.mxu0 0.0
        %5232 = vmatmul.mubr.f32.gmra.mrb[0].mxu0 %v5152
        %v5233 = vpop.f32.mrb[0].mxu0
        %v5234 = vadd.f32 0.0, %v5233
        %v5235 = vpop.f32.mrb[0].mxu0
        %5236 = vmatprep.mubr.f32.mxu0 0.0
        %5237 = vmatmul.mubr.f32.gmra.mrb[0].mxu0 %v5155
        %v5238 = vpop.f32.mrb[0].mxu0
        %v5239 = vadd.f32 0.0, %v5238
        %v5240 = vpop.f32.mrb[0].mxu0
        %5241 = vdwg.mxu0
        %s5242 = scalar_lea.vmem %s7, 192
        %v5243 = vld [vmem:[%s5242] sm:$0xff]
        %v5244 = vld [vmem:[%s5242 + $0x8] sm:$0xff]
        %v5245 = vld [vmem:[%s5242 + $0x10] sm:$0xff]
        %v5246 = vld [vmem:[%s5242 + $0x18] sm:$0xff]
        %v5247 = vld [vmem:[%s5242 + $0x20] sm:$0xff]
        %v5248 = vld [vmem:[%s5242 + $0x28] sm:$0xff]
        %v5249 = vld [vmem:[%s5242 + $0x30] sm:$0xff]
        %v5250 = vld [vmem:[%s5242 + $0x38] sm:$0xff]
        %v5252 = vsel %vm4733, %v5224, 0
        %v5255 = vsel %vm4733, %v5229, 0
        %v5258 = vsel %vm4733, %v5234, 0
        %v5261 = vsel %vm4733, %v5239, 0
        %5263 = vmatprep.subr.mxu0 0.0
        %5264 = vmatpush1.msra.mxu0 %v5243
        %5265 = vmatprep.subr.mxu0 0.0
        %5266 = vmatpush1.msra.mxu0 %v5244
        %5267 = vmatprep.subr.mxu0 0.0
        %5268 = vmatpush1.msra.mxu0 %v5245
        %5269 = vmatprep.subr.mxu0 0.0
        %5270 = vmatpush1.msra.mxu0 %v5246
        %5271 = vmatprep.subr.mxu0 0.0
        %5272 = vmatpush1.msra.mxu0 %v5247
        %5273 = vmatprep.subr.mxu0 0.0
        %5274 = vmatpush1.msra.mxu0 %v5248
        %5275 = vmatprep.subr.mxu0 0.0
        %5276 = vmatpush1.msra.mxu0 %v5249
        %5277 = vmatprep.subr.mxu0 0.0
        %5278 = vmatpush1.msra.mxu0 %v5250
        %5279 = vmatprep.subr.mxu0 0.0
        %5280 = vmatpush1.msra.mxu0 0.0
        %5281 = vmatprep.subr.mxu0 0.0
        %5282 = vmatpush1.msra.mxu0 0.0
        %5283 = vmatprep.subr.mxu0 0.0
        %5284 = vmatpush1.msra.mxu0 0.0
        %5285 = vmatprep.subr.mxu0 0.0
        %5286 = vmatpush1.msra.mxu0 0.0
        %5287 = vmatprep.subr.mxu0 0.0
        %5288 = vmatpush1.msra.mxu0 0.0
        %5289 = vmatprep.subr.mxu0 0.0
        %5290 = vmatpush1.msra.mxu0 0.0
        %5291 = vmatprep.subr.mxu0 0.0
        %5292 = vmatpush1.msra.mxu0 0.0
        %5293 = vmatprep.subr.mxu0 0.0
        %5294 = vmatpush1.msra.mxu0 0.0
        %5295 = vmatprep.subr.mxu0 0.0
        %5296 = vmatpush1.msra.mxu0 0.0
        %5297 = vmatprep.subr.mxu0 0.0
        %5298 = vmatpush1.msra.mxu0 0.0
        %5299 = vmatprep.subr.mxu0 0.0
        %5300 = vmatpush1.msra.mxu0 0.0
        %5301 = vmatprep.subr.mxu0 0.0
        %5302 = vmatpush1.msra.mxu0 0.0
        %5303 = vmatprep.subr.mxu0 0.0
        %5304 = vmatpush1.msra.mxu0 0.0
        %5305 = vmatprep.subr.mxu0 0.0
        %5306 = vmatpush1.msra.mxu0 0.0
        %5307 = vmatprep.subr.mxu0 0.0
        %5308 = vmatpush1.msra.mxu0 0.0
        %5309 = vmatprep.subr.mxu0 0.0
        %5310 = vmatpush1.msra.mxu0 0.0
        %5311 = vmatprep.subr.mxu0 0.0
        %5312 = vmatpush1.msra.mxu0 0.0
        %5313 = vmatprep.subr.mxu0 0.0
        %5314 = vmatpush1.msra.mxu0 0.0
        %5315 = vmatprep.subr.mxu0 0.0
        %5316 = vmatpush1.msra.mxu0 0.0
        %5317 = vmatprep.subr.mxu0 0.0
        %5318 = vmatpush1.msra.mxu0 0.0
        %5319 = vmatprep.subr.mxu0 0.0
        %5320 = vmatpush1.msra.mxu0 0.0
        %5321 = vmatprep.subr.mxu0 0.0
        %5322 = vmatpush1.msra.mxu0 0.0
        %5323 = vmatprep.subr.mxu0 0.0
        %5324 = vmatpush1.msra.mxu0 0.0
        %5325 = vmatprep.subr.mxu0 0.0
        %5326 = vmatpush1.msra.mxu0 0.0
        %5327 = vmatprep.mubr.f32.mxu0 0.0
        %5328 = vmatmul.mubr.f32.gmra.mrb[0].mxu0 %v5252
        %v5329 = vpop.f32.mrb[0].mxu0
        %v5330 = vadd.f32 0.0, %v5329
        %v5331 = vpop.f32.mrb[0].mxu0
        %5332 = vmatprep.mubr.f32.mxu0 0.0
        %5333 = vmatmul.mubr.f32.gmra.mrb[0].mxu0 %v5255
        %v5334 = vpop.f32.mrb[0].mxu0
        %v5335 = vadd.f32 0.0, %v5334
        %v5336 = vpop.f32.mrb[0].mxu0
        %5337 = vmatprep.mubr.f32.mxu0 0.0
        %5338 = vmatmul.mubr.f32.gmra.mrb[0].mxu0 %v5258
        %v5339 = vpop.f32.mrb[0].mxu0
        %v5340 = vadd.f32 0.0, %v5339
        %v5341 = vpop.f32.mrb[0].mxu0
        %5342 = vmatprep.mubr.f32.mxu0 0.0
        %5343 = vmatmul.mubr.f32.gmra.mrb[0].mxu0 %v5261
        %v5344 = vpop.f32.mrb[0].mxu0
        %v5345 = vadd.f32 0.0, %v5344
        %v5346 = vpop.f32.mrb[0].mxu0
        %5347 = vdwg.mxu0
        %v5348 = vadd.f32 %v5136, %v5330
        %v5349 = vadd.f32 %v5137, %v5335
        %v5350 = vadd.f32 %v5138, %v5340
        %v5351 = vadd.f32 %v5139, %v5345
        %s5352 = scalar_lea.vmem %s6, 128
        %v5353 = vld [vmem:[%s5352] sm:$0xff]
        %v5354 = vld [vmem:[%s5352 + $0x8] sm:$0xff]
        %v5355 = vld [vmem:[%s5352 + $0x10] sm:$0xff]
        %v5356 = vld [vmem:[%s5352 + $0x18] sm:$0x1]
        %v5358 = vsel %vm4512, %v5353, 0
        %v5361 = vsel %vm4512, %v5354, 0
        %v5364 = vsel %vm4512, %v5355, 0
        %v5367 = vsel %vm4512, %v5356, 0
        %5369 = vmatprep.subr.mxu0 0.0
        %5370 = vmatpush1.msra.mxu0 %v4504
        %5371 = vmatprep.subr.mxu0 0.0
        %5372 = vmatpush1.msra.mxu0 %v4505
        %5373 = vmatprep.subr.mxu0 0.0
        %5374 = vmatpush1.msra.mxu0 %v4506
        %5375 = vmatprep.subr.mxu0 0.0
        %5376 = vmatpush1.msra.mxu0 %v4527
        %5377 = vmatprep.subr.mxu0 0.0
        %5378 = vmatpush1.msra.mxu0 0.0
        %5379 = vmatprep.subr.mxu0 0.0
        %5380 = vmatpush1.msra.mxu0 0.0
        %5381 = vmatprep.subr.mxu0 0.0
        %5382 = vmatpush1.msra.mxu0 0.0
        %5383 = vmatprep.subr.mxu0 0.0
        %5384 = vmatpush1.msra.mxu0 0.0
        %5385 = vmatprep.subr.mxu0 0.0
        %5386 = vmatpush1.msra.mxu0 0.0
        %5387 = vmatprep.subr.mxu0 0.0
        %5388 = vmatpush1.msra.mxu0 0.0
        %5389 = vmatprep.subr.mxu0 0.0
        %5390 = vmatpush1.msra.mxu0 0.0
        %5391 = vmatprep.subr.mxu0 0.0
        %5392 = vmatpush1.msra.mxu0 0.0
        %5393 = vmatprep.subr.mxu0 0.0
        %5394 = vmatpush1.msra.mxu0 0.0
        %5395 = vmatprep.subr.mxu0 0.0
        %5396 = vmatpush1.msra.mxu0 0.0
        %5397 = vmatprep.subr.mxu0 0.0
        %5398 = vmatpush1.msra.mxu0 0.0
        %5399 = vmatprep.subr.mxu0 0.0
        %5400 = vmatpush1.msra.mxu0 0.0
        %5401 = vmatprep.subr.mxu0 0.0
        %5402 = vmatpush1.msra.mxu0 0.0
        %5403 = vmatprep.subr.mxu0 0.0
        %5404 = vmatpush1.msra.mxu0 0.0
        %5405 = vmatprep.subr.mxu0 0.0
        %5406 = vmatpush1.msra.mxu0 0.0
        %5407 = vmatprep.subr.mxu0 0.0
        %5408 = vmatpush1.msra.mxu0 0.0
        %5409 = vmatprep.subr.mxu0 0.0
        %5410 = vmatpush1.msra.mxu0 0.0
        %5411 = vmatprep.subr.mxu0 0.0
        %5412 = vmatpush1.msra.mxu0 0.0
        %5413 = vmatprep.subr.mxu0 0.0
        %5414 = vmatpush1.msra.mxu0 0.0
        %5415 = vmatprep.subr.mxu0 0.0
        %5416 = vmatpush1.msra.mxu0 0.0
        %5417 = vmatprep.subr.mxu0 0.0
        %5418 = vmatpush1.msra.mxu0 0.0
        %5419 = vmatprep.subr.mxu0 0.0
        %5420 = vmatpush1.msra.mxu0 0.0
        %5421 = vmatprep.subr.mxu0 0.0
        %5422 = vmatpush1.msra.mxu0 0.0
        %5423 = vmatprep.subr.mxu0 0.0
        %5424 = vmatpush1.msra.mxu0 0.0
        %5425 = vmatprep.subr.mxu0 0.0
        %5426 = vmatpush1.msra.mxu0 0.0
        %5427 = vmatprep.subr.mxu0 0.0
        %5428 = vmatpush1.msra.mxu0 0.0
        %5429 = vmatprep.subr.mxu0 0.0
        %5430 = vmatpush1.msra.mxu0 0.0
        %5431 = vmatprep.subr.mxu0 0.0
        %5432 = vmatpush1.msra.mxu0 0.0
        %5433 = vmatprep.mubr.f32.mxu0 0.0
        %5434 = vmatmul.mubr.f32.gmra.mrb[0].mxu0 %v5358
        %v5435 = vpop.f32.mrb[0].mxu0
        %v5436 = vadd.f32 0.0, %v5435
        %v5437 = vpop.f32.mrb[0].mxu0
        %5438 = vmatprep.mubr.f32.mxu0 0.0
        %5439 = vmatmul.mubr.f32.gmra.mrb[0].mxu0 %v5361
        %v5440 = vpop.f32.mrb[0].mxu0
        %v5441 = vadd.f32 0.0, %v5440
        %v5442 = vpop.f32.mrb[0].mxu0
        %5443 = vmatprep.mubr.f32.mxu0 0.0
        %5444 = vmatmul.mubr.f32.gmra.mrb[0].mxu0 %v5364
        %v5445 = vpop.f32.mrb[0].mxu0
        %v5446 = vadd.f32 0.0, %v5445
        %v5447 = vpop.f32.mrb[0].mxu0
        %5448 = vmatprep.mubr.f32.mxu0 0.0
        %5449 = vmatmul.mubr.f32.gmra.mrb[0].mxu0 %v5367
        %v5450 = vpop.f32.mrb[0].mxu0
        %v5451 = vadd.f32 0.0, %v5450
        %v5452 = vpop.f32.mrb[0].mxu0
        %5453 = vdwg.mxu0
        %s5454 = scalar_lea.vmem %s7, 256
        %v5455 = vld [vmem:[%s5454] sm:$0xff]
        %v5456 = vld [vmem:[%s5454 + $0x8] sm:$0xff]
        %v5457 = vld [vmem:[%s5454 + $0x10] sm:$0xff]
        %v5458 = vld [vmem:[%s5454 + $0x18] sm:$0xff]
        %v5459 = vld [vmem:[%s5454 + $0x20] sm:$0xff]
        %v5460 = vld [vmem:[%s5454 + $0x28] sm:$0xff]
        %v5461 = vld [vmem:[%s5454 + $0x30] sm:$0xff]
        %v5462 = vld [vmem:[%s5454 + $0x38] sm:$0xff]
        %v5464 = vsel %vm4733, %v5436, 0
        %v5467 = vsel %vm4733, %v5441, 0
        %v5470 = vsel %vm4733, %v5446, 0
        %v5473 = vsel %vm4733, %v5451, 0
        %5475 = vmatprep.subr.mxu0 0.0
        %5476 = vmatpush1.msra.mxu0 %v5455
        %5477 = vmatprep.subr.mxu0 0.0
        %5478 = vmatpush1.msra.mxu0 %v5456
        %5479 = vmatprep.subr.mxu0 0.0
        %5480 = vmatpush1.msra.mxu0 %v5457
        %5481 = vmatprep.subr.mxu0 0.0
        %5482 = vmatpush1.msra.mxu0 %v5458
        %5483 = vmatprep.subr.mxu0 0.0
        %5484 = vmatpush1.msra.mxu0 %v5459
        %5485 = vmatprep.subr.mxu0 0.0
        %5486 = vmatpush1.msra.mxu0 %v5460
        %5487 = vmatprep.subr.mxu0 0.0
        %5488 = vmatpush1.msra.mxu0 %v5461
        %5489 = vmatprep.subr.mxu0 0.0
        %5490 = vmatpush1.msra.mxu0 %v5462
        %5491 = vmatprep.subr.mxu0 0.0
        %5492 = vmatpush1.msra.mxu0 0.0
        %5493 = vmatprep.subr.mxu0 0.0
        %5494 = vmatpush1.msra.mxu0 0.0
        %5495 = vmatprep.subr.mxu0 0.0
        %5496 = vmatpush1.msra.mxu0 0.0
        %5497 = vmatprep.subr.mxu0 0.0
        %5498 = vmatpush1.msra.mxu0 0.0
        %5499 = vmatprep.subr.mxu0 0.0
        %5500 = vmatpush1.msra.mxu0 0.0
        %5501 = vmatprep.subr.mxu0 0.0
        %5502 = vmatpush1.msra.mxu0 0.0
        %5503 = vmatprep.subr.mxu0 0.0
        %5504 = vmatpush1.msra.mxu0 0.0
        %5505 = vmatprep.subr.mxu0 0.0
        %5506 = vmatpush1.msra.mxu0 0.0
        %5507 = vmatprep.subr.mxu0 0.0
        %5508 = vmatpush1.msra.mxu0 0.0
        %5509 = vmatprep.subr.mxu0 0.0
        %5510 = vmatpush1.msra.mxu0 0.0
        %5511 = vmatprep.subr.mxu0 0.0
        %5512 = vmatpush1.msra.mxu0 0.0
        %5513 = vmatprep.subr.mxu0 0.0
        %5514 = vmatpush1.msra.mxu0 0.0
        %5515 = vmatprep.subr.mxu0 0.0
        %5516 = vmatpush1.msra.mxu0 0.0
        %5517 = vmatprep.subr.mxu0 0.0
        %5518 = vmatpush1.msra.mxu0 0.0
        %5519 = vmatprep.subr.mxu0 0.0
        %5520 = vmatpush1.msra.mxu0 0.0
        %5521 = vmatprep.subr.mxu0 0.0
        %5522 = vmatpush1.msra.mxu0 0.0
        %5523 = vmatprep.subr.mxu0 0.0
        %5524 = vmatpush1.msra.mxu0 0.0
        %5525 = vmatprep.subr.mxu0 0.0
        %5526 = vmatpush1.msra.mxu0 0.0
        %5527 = vmatprep.subr.mxu0 0.0
        %5528 = vmatpush1.msra.mxu0 0.0
        %5529 = vmatprep.subr.mxu0 0.0
        %5530 = vmatpush1.msra.mxu0 0.0
        %5531 = vmatprep.subr.mxu0 0.0
        %5532 = vmatpush1.msra.mxu0 0.0
        %5533 = vmatprep.subr.mxu0 0.0
        %5534 = vmatpush1.msra.mxu0 0.0
        %5535 = vmatprep.subr.mxu0 0.0
        %5536 = vmatpush1.msra.mxu0 0.0
        %5537 = vmatprep.subr.mxu0 0.0
        %5538 = vmatpush1.msra.mxu0 0.0
        %5539 = vmatprep.mubr.f32.mxu0 0.0
        %5540 = vmatmul.mubr.f32.gmra.mrb[0].mxu0 %v5464
        %v5541 = vpop.f32.mrb[0].mxu0
        %v5542 = vadd.f32 0.0, %v5541
        %v5543 = vpop.f32.mrb[0].mxu0
        %5544 = vmatprep.mubr.f32.mxu0 0.0
        %5545 = vmatmul.mubr.f32.gmra.mrb[0].mxu0 %v5467
        %v5546 = vpop.f32.mrb[0].mxu0
        %v5547 = vadd.f32 0.0, %v5546
        %v5548 = vpop.f32.mrb[0].mxu0
        %5549 = vmatprep.mubr.f32.mxu0 0.0
        %5550 = vmatmul.mubr.f32.gmra.mrb[0].mxu0 %v5470
        %v5551 = vpop.f32.mrb[0].mxu0
        %v5552 = vadd.f32 0.0, %v5551
        %v5553 = vpop.f32.mrb[0].mxu0
        %5554 = vmatprep.mubr.f32.mxu0 0.0
        %5555 = vmatmul.mubr.f32.gmra.mrb[0].mxu0 %v5473
        %v5556 = vpop.f32.mrb[0].mxu0
        %v5557 = vadd.f32 0.0, %v5556
        %v5558 = vpop.f32.mrb[0].mxu0
        %5559 = vdwg.mxu0
        %v5560 = vadd.f32 %v5348, %v5542
        %v5561 = vadd.f32 %v5349, %v5547
        %v5562 = vadd.f32 %v5350, %v5552
        %v5563 = vadd.f32 %v5351, %v5557
        %s5564 = scalar_lea.vmem %s6, 160
        %v5565 = vld [vmem:[%s5564] sm:$0xff]
        %v5566 = vld [vmem:[%s5564 + $0x8] sm:$0xff]
        %v5567 = vld [vmem:[%s5564 + $0x10] sm:$0xff]
        %v5568 = vld [vmem:[%s5564 + $0x18] sm:$0x1]
        %v5570 = vsel %vm4512, %v5565, 0
        %v5573 = vsel %vm4512, %v5566, 0
        %v5576 = vsel %vm4512, %v5567, 0
        %v5579 = vsel %vm4512, %v5568, 0
        %5581 = vmatprep.subr.mxu0 0.0
        %5582 = vmatpush1.msra.mxu0 %v4504
        %5583 = vmatprep.subr.mxu0 0.0
        %5584 = vmatpush1.msra.mxu0 %v4505
        %5585 = vmatprep.subr.mxu0 0.0
        %5586 = vmatpush1.msra.mxu0 %v4506
        %5587 = vmatprep.subr.mxu0 0.0
        %5588 = vmatpush1.msra.mxu0 %v4527
        %5589 = vmatprep.subr.mxu0 0.0
        %5590 = vmatpush1.msra.mxu0 0.0
        %5591 = vmatprep.subr.mxu0 0.0
        %5592 = vmatpush1.msra.mxu0 0.0
        %5593 = vmatprep.subr.mxu0 0.0
        %5594 = vmatpush1.msra.mxu0 0.0
        %5595 = vmatprep.subr.mxu0 0.0
        %5596 = vmatpush1.msra.mxu0 0.0
        %5597 = vmatprep.subr.mxu0 0.0
        %5598 = vmatpush1.msra.mxu0 0.0
        %5599 = vmatprep.subr.mxu0 0.0
        %5600 = vmatpush1.msra.mxu0 0.0
        %5601 = vmatprep.subr.mxu0 0.0
        %5602 = vmatpush1.msra.mxu0 0.0
        %5603 = vmatprep.subr.mxu0 0.0
        %5604 = vmatpush1.msra.mxu0 0.0
        %5605 = vmatprep.subr.mxu0 0.0
        %5606 = vmatpush1.msra.mxu0 0.0
        %5607 = vmatprep.subr.mxu0 0.0
        %5608 = vmatpush1.msra.mxu0 0.0
        %5609 = vmatprep.subr.mxu0 0.0
        %5610 = vmatpush1.msra.mxu0 0.0
        %5611 = vmatprep.subr.mxu0 0.0
        %5612 = vmatpush1.msra.mxu0 0.0
        %5613 = vmatprep.subr.mxu0 0.0
        %5614 = vmatpush1.msra.mxu0 0.0
        %5615 = vmatprep.subr.mxu0 0.0
        %5616 = vmatpush1.msra.mxu0 0.0
        %5617 = vmatprep.subr.mxu0 0.0
        %5618 = vmatpush1.msra.mxu0 0.0
        %5619 = vmatprep.subr.mxu0 0.0
        %5620 = vmatpush1.msra.mxu0 0.0
        %5621 = vmatprep.subr.mxu0 0.0
        %5622 = vmatpush1.msra.mxu0 0.0
        %5623 = vmatprep.subr.mxu0 0.0
        %5624 = vmatpush1.msra.mxu0 0.0
        %5625 = vmatprep.subr.mxu0 0.0
        %5626 = vmatpush1.msra.mxu0 0.0
        %5627 = vmatprep.subr.mxu0 0.0
        %5628 = vmatpush1.msra.mxu0 0.0
        %5629 = vmatprep.subr.mxu0 0.0
        %5630 = vmatpush1.msra.mxu0 0.0
        %5631 = vmatprep.subr.mxu0 0.0
        %5632 = vmatpush1.msra.mxu0 0.0
        %5633 = vmatprep.subr.mxu0 0.0
        %5634 = vmatpush1.msra.mxu0 0.0
        %5635 = vmatprep.subr.mxu0 0.0
        %5636 = vmatpush1.msra.mxu0 0.0
        %5637 = vmatprep.subr.mxu0 0.0
        %5638 = vmatpush1.msra.mxu0 0.0
        %5639 = vmatprep.subr.mxu0 0.0
        %5640 = vmatpush1.msra.mxu0 0.0
        %5641 = vmatprep.subr.mxu0 0.0
        %5642 = vmatpush1.msra.mxu0 0.0
        %5643 = vmatprep.subr.mxu0 0.0
        %5644 = vmatpush1.msra.mxu0 0.0
        %5645 = vmatprep.mubr.f32.mxu0 0.0
        %5646 = vmatmul.mubr.f32.gmra.mrb[0].mxu0 %v5570
        %v5647 = vpop.f32.mrb[0].mxu0
        %v5648 = vadd.f32 0.0, %v5647
        %v5649 = vpop.f32.mrb[0].mxu0
        %5650 = vmatprep.mubr.f32.mxu0 0.0
        %5651 = vmatmul.mubr.f32.gmra.mrb[0].mxu0 %v5573
        %v5652 = vpop.f32.mrb[0].mxu0
        %v5653 = vadd.f32 0.0, %v5652
        %v5654 = vpop.f32.mrb[0].mxu0
        %5655 = vmatprep.mubr.f32.mxu0 0.0
        %5656 = vmatmul.mubr.f32.gmra.mrb[0].mxu0 %v5576
        %v5657 = vpop.f32.mrb[0].mxu0
        %v5658 = vadd.f32 0.0, %v5657
        %v5659 = vpop.f32.mrb[0].mxu0
        %5660 = vmatprep.mubr.f32.mxu0 0.0
        %5661 = vmatmul.mubr.f32.gmra.mrb[0].mxu0 %v5579
        %v5662 = vpop.f32.mrb[0].mxu0
        %v5663 = vadd.f32 0.0, %v5662
        %v5664 = vpop.f32.mrb[0].mxu0
        %5665 = vdwg.mxu0
        %s5666 = scalar_lea.vmem %s7, 320
        %v5667 = vld [vmem:[%s5666] sm:$0xff]
        %v5668 = vld [vmem:[%s5666 + $0x8] sm:$0xff]
        %v5669 = vld [vmem:[%s5666 + $0x10] sm:$0xff]
        %v5670 = vld [vmem:[%s5666 + $0x18] sm:$0xff]
        %v5671 = vld [vmem:[%s5666 + $0x20] sm:$0xff]
        %v5672 = vld [vmem:[%s5666 + $0x28] sm:$0xff]
        %v5673 = vld [vmem:[%s5666 + $0x30] sm:$0xff]
        %v5674 = vld [vmem:[%s5666 + $0x38] sm:$0xff]
        %v5676 = vsel %vm4733, %v5648, 0
        %v5679 = vsel %vm4733, %v5653, 0
        %v5682 = vsel %vm4733, %v5658, 0
        %v5685 = vsel %vm4733, %v5663, 0
        %5687 = vmatprep.subr.mxu0 0.0
        %5688 = vmatpush1.msra.mxu0 %v5667
        %5689 = vmatprep.subr.mxu0 0.0
        %5690 = vmatpush1.msra.mxu0 %v5668
        %5691 = vmatprep.subr.mxu0 0.0
        %5692 = vmatpush1.msra.mxu0 %v5669
        %5693 = vmatprep.subr.mxu0 0.0
        %5694 = vmatpush1.msra.mxu0 %v5670
        %5695 = vmatprep.subr.mxu0 0.0
        %5696 = vmatpush1.msra.mxu0 %v5671
        %5697 = vmatprep.subr.mxu0 0.0
        %5698 = vmatpush1.msra.mxu0 %v5672
        %5699 = vmatprep.subr.mxu0 0.0
        %5700 = vmatpush1.msra.mxu0 %v5673
        %5701 = vmatprep.subr.mxu0 0.0
        %5702 = vmatpush1.msra.mxu0 %v5674
        %5703 = vmatprep.subr.mxu0 0.0
        %5704 = vmatpush1.msra.mxu0 0.0
        %5705 = vmatprep.subr.mxu0 0.0
        %5706 = vmatpush1.msra.mxu0 0.0
        %5707 = vmatprep.subr.mxu0 0.0
        %5708 = vmatpush1.msra.mxu0 0.0
        %5709 = vmatprep.subr.mxu0 0.0
        %5710 = vmatpush1.msra.mxu0 0.0
        %5711 = vmatprep.subr.mxu0 0.0
        %5712 = vmatpush1.msra.mxu0 0.0
        %5713 = vmatprep.subr.mxu0 0.0
        %5714 = vmatpush1.msra.mxu0 0.0
        %5715 = vmatprep.subr.mxu0 0.0
        %5716 = vmatpush1.msra.mxu0 0.0
        %5717 = vmatprep.subr.mxu0 0.0
        %5718 = vmatpush1.msra.mxu0 0.0
        %5719 = vmatprep.subr.mxu0 0.0
        %5720 = vmatpush1.msra.mxu0 0.0
        %5721 = vmatprep.subr.mxu0 0.0
        %5722 = vmatpush1.msra.mxu0 0.0
        %5723 = vmatprep.subr.mxu0 0.0
        %5724 = vmatpush1.msra.mxu0 0.0
        %5725 = vmatprep.subr.mxu0 0.0
        %5726 = vmatpush1.msra.mxu0 0.0
        %5727 = vmatprep.subr.mxu0 0.0
        %5728 = vmatpush1.msra.mxu0 0.0
        %5729 = vmatprep.subr.mxu0 0.0
        %5730 = vmatpush1.msra.mxu0 0.0
        %5731 = vmatprep.subr.mxu0 0.0
        %5732 = vmatpush1.msra.mxu0 0.0
        %5733 = vmatprep.subr.mxu0 0.0
        %5734 = vmatpush1.msra.mxu0 0.0
        %5735 = vmatprep.subr.mxu0 0.0
        %5736 = vmatpush1.msra.mxu0 0.0
        %5737 = vmatprep.subr.mxu0 0.0
        %5738 = vmatpush1.msra.mxu0 0.0
        %5739 = vmatprep.subr.mxu0 0.0
        %5740 = vmatpush1.msra.mxu0 0.0
        %5741 = vmatprep.subr.mxu0 0.0
        %5742 = vmatpush1.msra.mxu0 0.0
        %5743 = vmatprep.subr.mxu0 0.0
        %5744 = vmatpush1.msra.mxu0 0.0
        %5745 = vmatprep.subr.mxu0 0.0
        %5746 = vmatpush1.msra.mxu0 0.0
        %5747 = vmatprep.subr.mxu0 0.0
        %5748 = vmatpush1.msra.mxu0 0.0
        %5749 = vmatprep.subr.mxu0 0.0
        %5750 = vmatpush1.msra.mxu0 0.0
        %5751 = vmatprep.mubr.f32.mxu0 0.0
        %5752 = vmatmul.mubr.f32.gmra.mrb[0].mxu0 %v5676
        %v5753 = vpop.f32.mrb[0].mxu0
        %v5754 = vadd.f32 0.0, %v5753
        %v5755 = vpop.f32.mrb[0].mxu0
        %5756 = vmatprep.mubr.f32.mxu0 0.0
        %5757 = vmatmul.mubr.f32.gmra.mrb[0].mxu0 %v5679
        %v5758 = vpop.f32.mrb[0].mxu0
        %v5759 = vadd.f32 0.0, %v5758
        %v5760 = vpop.f32.mrb[0].mxu0
        %5761 = vmatprep.mubr.f32.mxu0 0.0
        %5762 = vmatmul.mubr.f32.gmra.mrb[0].mxu0 %v5682
        %v5763 = vpop.f32.mrb[0].mxu0
        %v5764 = vadd.f32 0.0, %v5763
        %v5765 = vpop.f32.mrb[0].mxu0
        %5766 = vmatprep.mubr.f32.mxu0 0.0
        %5767 = vmatmul.mubr.f32.gmra.mrb[0].mxu0 %v5685
        %v5768 = vpop.f32.mrb[0].mxu0
        %v5769 = vadd.f32 0.0, %v5768
        %v5770 = vpop.f32.mrb[0].mxu0
        %5771 = vdwg.mxu0
        %v5772 = vadd.f32 %v5560, %v5754
        %v5773 = vadd.f32 %v5561, %v5759
        %v5774 = vadd.f32 %v5562, %v5764
        %v5775 = vadd.f32 %v5563, %v5769
        %s5776 = scalar_lea.vmem %s6, 192
        %v5777 = vld [vmem:[%s5776] sm:$0xff]
        %v5778 = vld [vmem:[%s5776 + $0x8] sm:$0xff]
        %v5779 = vld [vmem:[%s5776 + $0x10] sm:$0xff]
        %v5780 = vld [vmem:[%s5776 + $0x18] sm:$0x1]
        %v5782 = vsel %vm4512, %v5777, 0
        %v5785 = vsel %vm4512, %v5778, 0
        %v5788 = vsel %vm4512, %v5779, 0
        %v5791 = vsel %vm4512, %v5780, 0
        %5793 = vmatprep.subr.mxu0 0.0
        %5794 = vmatpush1.msra.mxu0 %v4504
        %5795 = vmatprep.subr.mxu0 0.0
        %5796 = vmatpush1.msra.mxu0 %v4505
        %5797 = vmatprep.subr.mxu0 0.0
        %5798 = vmatpush1.msra.mxu0 %v4506
        %5799 = vmatprep.subr.mxu0 0.0
        %5800 = vmatpush1.msra.mxu0 %v4527
        %5801 = vmatprep.subr.mxu0 0.0
        %5802 = vmatpush1.msra.mxu0 0.0
        %5803 = vmatprep.subr.mxu0 0.0
        %5804 = vmatpush1.msra.mxu0 0.0
        %5805 = vmatprep.subr.mxu0 0.0
        %5806 = vmatpush1.msra.mxu0 0.0
        %5807 = vmatprep.subr.mxu0 0.0
        %5808 = vmatpush1.msra.mxu0 0.0
        %5809 = vmatprep.subr.mxu0 0.0
        %5810 = vmatpush1.msra.mxu0 0.0
        %5811 = vmatprep.subr.mxu0 0.0
        %5812 = vmatpush1.msra.mxu0 0.0
        %5813 = vmatprep.subr.mxu0 0.0
        %5814 = vmatpush1.msra.mxu0 0.0
        %5815 = vmatprep.subr.mxu0 0.0
        %5816 = vmatpush1.msra.mxu0 0.0
        %5817 = vmatprep.subr.mxu0 0.0
        %5818 = vmatpush1.msra.mxu0 0.0
        %5819 = vmatprep.subr.mxu0 0.0
        %5820 = vmatpush1.msra.mxu0 0.0
        %5821 = vmatprep.subr.mxu0 0.0
        %5822 = vmatpush1.msra.mxu0 0.0
        %5823 = vmatprep.subr.mxu0 0.0
        %5824 = vmatpush1.msra.mxu0 0.0
        %5825 = vmatprep.subr.mxu0 0.0
        %5826 = vmatpush1.msra.mxu0 0.0
        %5827 = vmatprep.subr.mxu0 0.0
        %5828 = vmatpush1.msra.mxu0 0.0
        %5829 = vmatprep.subr.mxu0 0.0
        %5830 = vmatpush1.msra.mxu0 0.0
        %5831 = vmatprep.subr.mxu0 0.0
        %5832 = vmatpush1.msra.mxu0 0.0
        %5833 = vmatprep.subr.mxu0 0.0
        %5834 = vmatpush1.msra.mxu0 0.0
        %5835 = vmatprep.subr.mxu0 0.0
        %5836 = vmatpush1.msra.mxu0 0.0
        %5837 = vmatprep.subr.mxu0 0.0
        %5838 = vmatpush1.msra.mxu0 0.0
        %5839 = vmatprep.subr.mxu0 0.0
        %5840 = vmatpush1.msra.mxu0 0.0
        %5841 = vmatprep.subr.mxu0 0.0
        %5842 = vmatpush1.msra.mxu0 0.0
        %5843 = vmatprep.subr.mxu0 0.0
        %5844 = vmatpush1.msra.mxu0 0.0
        %5845 = vmatprep.subr.mxu0 0.0
        %5846 = vmatpush1.msra.mxu0 0.0
        %5847 = vmatprep.subr.mxu0 0.0
        %5848 = vmatpush1.msra.mxu0 0.0
        %5849 = vmatprep.subr.mxu0 0.0
        %5850 = vmatpush1.msra.mxu0 0.0
        %5851 = vmatprep.subr.mxu0 0.0
        %5852 = vmatpush1.msra.mxu0 0.0
        %5853 = vmatprep.subr.mxu0 0.0
        %5854 = vmatpush1.msra.mxu0 0.0
        %5855 = vmatprep.subr.mxu0 0.0
        %5856 = vmatpush1.msra.mxu0 0.0
        %5857 = vmatprep.mubr.f32.mxu0 0.0
        %5858 = vmatmul.mubr.f32.gmra.mrb[0].mxu0 %v5782
        %v5859 = vpop.f32.mrb[0].mxu0
        %v5860 = vadd.f32 0.0, %v5859
        %v5861 = vpop.f32.mrb[0].mxu0
        %5862 = vmatprep.mubr.f32.mxu0 0.0
        %5863 = vmatmul.mubr.f32.gmra.mrb[0].mxu0 %v5785
        %v5864 = vpop.f32.mrb[0].mxu0
        %v5865 = vadd.f32 0.0, %v5864
        %v5866 = vpop.f32.mrb[0].mxu0
        %5867 = vmatprep.mubr.f32.mxu0 0.0
        %5868 = vmatmul.mubr.f32.gmra.mrb[0].mxu0 %v5788
        %v5869 = vpop.f32.mrb[0].mxu0
        %v5870 = vadd.f32 0.0, %v5869
        %v5871 = vpop.f32.mrb[0].mxu0
        %5872 = vmatprep.mubr.f32.mxu0 0.0
        %5873 = vmatmul.mubr.f32.gmra.mrb[0].mxu0 %v5791
        %v5874 = vpop.f32.mrb[0].mxu0
        %v5875 = vadd.f32 0.0, %v5874
        %v5876 = vpop.f32.mrb[0].mxu0
        %5877 = vdwg.mxu0
        %s5878 = scalar_lea.vmem %s7, 384
        %v5879 = vld [vmem:[%s5878] sm:$0xff]
        %v5880 = vld [vmem:[%s5878 + $0x8] sm:$0xff]
        %v5881 = vld [vmem:[%s5878 + $0x10] sm:$0xff]
        %v5882 = vld [vmem:[%s5878 + $0x18] sm:$0xff]
        %v5883 = vld [vmem:[%s5878 + $0x20] sm:$0xff]
        %v5884 = vld [vmem:[%s5878 + $0x28] sm:$0xff]
        %v5885 = vld [vmem:[%s5878 + $0x30] sm:$0xff]
        %v5886 = vld [vmem:[%s5878 + $0x38] sm:$0xff]
        %v5888 = vsel %vm4733, %v5860, 0
        %v5891 = vsel %vm4733, %v5865, 0
        %v5894 = vsel %vm4733, %v5870, 0
        %v5897 = vsel %vm4733, %v5875, 0
        %5899 = vmatprep.subr.mxu0 0.0
        %5900 = vmatpush1.msra.mxu0 %v5879
        %5901 = vmatprep.subr.mxu0 0.0
        %5902 = vmatpush1.msra.mxu0 %v5880
        %5903 = vmatprep.subr.mxu0 0.0
        %5904 = vmatpush1.msra.mxu0 %v5881
        %5905 = vmatprep.subr.mxu0 0.0
        %5906 = vmatpush1.msra.mxu0 %v5882
        %5907 = vmatprep.subr.mxu0 0.0
        %5908 = vmatpush1.msra.mxu0 %v5883
        %5909 = vmatprep.subr.mxu0 0.0
        %5910 = vmatpush1.msra.mxu0 %v5884
        %5911 = vmatprep.subr.mxu0 0.0
        %5912 = vmatpush1.msra.mxu0 %v5885
        %5913 = vmatprep.subr.mxu0 0.0
        %5914 = vmatpush1.msra.mxu0 %v5886
        %5915 = vmatprep.subr.mxu0 0.0
        %5916 = vmatpush1.msra.mxu0 0.0
        %5917 = vmatprep.subr.mxu0 0.0
        %5918 = vmatpush1.msra.mxu0 0.0
        %5919 = vmatprep.subr.mxu0 0.0
        %5920 = vmatpush1.msra.mxu0 0.0
        %5921 = vmatprep.subr.mxu0 0.0
        %5922 = vmatpush1.msra.mxu0 0.0
        %5923 = vmatprep.subr.mxu0 0.0
        %5924 = vmatpush1.msra.mxu0 0.0
        %5925 = vmatprep.subr.mxu0 0.0
        %5926 = vmatpush1.msra.mxu0 0.0
        %5927 = vmatprep.subr.mxu0 0.0
        %5928 = vmatpush1.msra.mxu0 0.0
        %5929 = vmatprep.subr.mxu0 0.0
        %5930 = vmatpush1.msra.mxu0 0.0
        %5931 = vmatprep.subr.mxu0 0.0
        %5932 = vmatpush1.msra.mxu0 0.0
        %5933 = vmatprep.subr.mxu0 0.0
        %5934 = vmatpush1.msra.mxu0 0.0
        %5935 = vmatprep.subr.mxu0 0.0
        %5936 = vmatpush1.msra.mxu0 0.0
        %5937 = vmatprep.subr.mxu0 0.0
        %5938 = vmatpush1.msra.mxu0 0.0
        %5939 = vmatprep.subr.mxu0 0.0
        %5940 = vmatpush1.msra.mxu0 0.0
        %5941 = vmatprep.subr.mxu0 0.0
        %5942 = vmatpush1.msra.mxu0 0.0
        %5943 = vmatprep.subr.mxu0 0.0
        %5944 = vmatpush1.msra.mxu0 0.0
        %5945 = vmatprep.subr.mxu0 0.0
        %5946 = vmatpush1.msra.mxu0 0.0
        %5947 = vmatprep.subr.mxu0 0.0
        %5948 = vmatpush1.msra.mxu0 0.0
        %5949 = vmatprep.subr.mxu0 0.0
        %5950 = vmatpush1.msra.mxu0 0.0
        %5951 = vmatprep.subr.mxu0 0.0
        %5952 = vmatpush1.msra.mxu0 0.0
        %5953 = vmatprep.subr.mxu0 0.0
        %5954 = vmatpush1.msra.mxu0 0.0
        %5955 = vmatprep.subr.mxu0 0.0
        %5956 = vmatpush1.msra.mxu0 0.0
        %5957 = vmatprep.subr.mxu0 0.0
        %5958 = vmatpush1.msra.mxu0 0.0
        %5959 = vmatprep.subr.mxu0 0.0
        %5960 = vmatpush1.msra.mxu0 0.0
        %5961 = vmatprep.subr.mxu0 0.0
        %5962 = vmatpush1.msra.mxu0 0.0
        %5963 = vmatprep.mubr.f32.mxu0 0.0
        %5964 = vmatmul.mubr.f32.gmra.mrb[0].mxu0 %v5888
        %v5965 = vpop.f32.mrb[0].mxu0
        %v5966 = vadd.f32 0.0, %v5965
        %v5967 = vpop.f32.mrb[0].mxu0
        %5968 = vmatprep.mubr.f32.mxu0 0.0
        %5969 = vmatmul.mubr.f32.gmra.mrb[0].mxu0 %v5891
        %v5970 = vpop.f32.mrb[0].mxu0
        %v5971 = vadd.f32 0.0, %v5970
        %v5972 = vpop.f32.mrb[0].mxu0
        %5973 = vmatprep.mubr.f32.mxu0 0.0
        %5974 = vmatmul.mubr.f32.gmra.mrb[0].mxu0 %v5894
        %v5975 = vpop.f32.mrb[0].mxu0
        %v5976 = vadd.f32 0.0, %v5975
        %v5977 = vpop.f32.mrb[0].mxu0
        %5978 = vmatprep.mubr.f32.mxu0 0.0
        %5979 = vmatmul.mubr.f32.gmra.mrb[0].mxu0 %v5897
        %v5980 = vpop.f32.mrb[0].mxu0
        %v5981 = vadd.f32 0.0, %v5980
        %v5982 = vpop.f32.mrb[0].mxu0
        %5983 = vdwg.mxu0
        %v5984 = vadd.f32 %v5772, %v5966
        %v5985 = vadd.f32 %v5773, %v5971
        %v5986 = vadd.f32 %v5774, %v5976
        %v5987 = vadd.f32 %v5775, %v5981
        %s5988 = scalar_lea.vmem %s6, 224
        %v5989 = vld [vmem:[%s5988] sm:$0xff]
        %v5990 = vld [vmem:[%s5988 + $0x8] sm:$0xff]
        %v5991 = vld [vmem:[%s5988 + $0x10] sm:$0xff]
        %v5992 = vld [vmem:[%s5988 + $0x18] sm:$0x1]
        %v5994 = vsel %vm4512, %v5989, 0
        %v5997 = vsel %vm4512, %v5990, 0
        %v6000 = vsel %vm4512, %v5991, 0
        %v6003 = vsel %vm4512, %v5992, 0
        %6005 = vmatprep.subr.mxu0 0.0
        %6006 = vmatpush1.msra.mxu0 %v4504
        %6007 = vmatprep.subr.mxu0 0.0
        %6008 = vmatpush1.msra.mxu0 %v4505
        %6009 = vmatprep.subr.mxu0 0.0
        %6010 = vmatpush1.msra.mxu0 %v4506
        %6011 = vmatprep.subr.mxu0 0.0
        %6012 = vmatpush1.msra.mxu0 %v4527
        %6013 = vmatprep.subr.mxu0 0.0
        %6014 = vmatpush1.msra.mxu0 0.0
        %6015 = vmatprep.subr.mxu0 0.0
        %6016 = vmatpush1.msra.mxu0 0.0
        %6017 = vmatprep.subr.mxu0 0.0
        %6018 = vmatpush1.msra.mxu0 0.0
        %6019 = vmatprep.subr.mxu0 0.0
        %6020 = vmatpush1.msra.mxu0 0.0
        %6021 = vmatprep.subr.mxu0 0.0
        %6022 = vmatpush1.msra.mxu0 0.0
        %6023 = vmatprep.subr.mxu0 0.0
        %6024 = vmatpush1.msra.mxu0 0.0
        %6025 = vmatprep.subr.mxu0 0.0
        %6026 = vmatpush1.msra.mxu0 0.0
        %6027 = vmatprep.subr.mxu0 0.0
        %6028 = vmatpush1.msra.mxu0 0.0
        %6029 = vmatprep.subr.mxu0 0.0
        %6030 = vmatpush1.msra.mxu0 0.0
        %6031 = vmatprep.subr.mxu0 0.0
        %6032 = vmatpush1.msra.mxu0 0.0
        %6033 = vmatprep.subr.mxu0 0.0
        %6034 = vmatpush1.msra.mxu0 0.0
        %6035 = vmatprep.subr.mxu0 0.0
        %6036 = vmatpush1.msra.mxu0 0.0
        %6037 = vmatprep.subr.mxu0 0.0
        %6038 = vmatpush1.msra.mxu0 0.0
        %6039 = vmatprep.subr.mxu0 0.0
        %6040 = vmatpush1.msra.mxu0 0.0
        %6041 = vmatprep.subr.mxu0 0.0
        %6042 = vmatpush1.msra.mxu0 0.0
        %6043 = vmatprep.subr.mxu0 0.0
        %6044 = vmatpush1.msra.mxu0 0.0
        %6045 = vmatprep.subr.mxu0 0.0
        %6046 = vmatpush1.msra.mxu0 0.0
        %6047 = vmatprep.subr.mxu0 0.0
        %6048 = vmatpush1.msra.mxu0 0.0
        %6049 = vmatprep.subr.mxu0 0.0
        %6050 = vmatpush1.msra.mxu0 0.0
        %6051 = vmatprep.subr.mxu0 0.0
        %6052 = vmatpush1.msra.mxu0 0.0
        %6053 = vmatprep.subr.mxu0 0.0
        %6054 = vmatpush1.msra.mxu0 0.0
        %6055 = vmatprep.subr.mxu0 0.0
        %6056 = vmatpush1.msra.mxu0 0.0
        %6057 = vmatprep.subr.mxu0 0.0
        %6058 = vmatpush1.msra.mxu0 0.0
        %6059 = vmatprep.subr.mxu0 0.0
        %6060 = vmatpush1.msra.mxu0 0.0
        %6061 = vmatprep.subr.mxu0 0.0
        %6062 = vmatpush1.msra.mxu0 0.0
        %6063 = vmatprep.subr.mxu0 0.0
        %6064 = vmatpush1.msra.mxu0 0.0
        %6065 = vmatprep.subr.mxu0 0.0
        %6066 = vmatpush1.msra.mxu0 0.0
        %6067 = vmatprep.subr.mxu0 0.0
        %6068 = vmatpush1.msra.mxu0 0.0
        %6069 = vmatprep.mubr.f32.mxu0 0.0
        %6070 = vmatmul.mubr.f32.gmra.mrb[0].mxu0 %v5994
        %v6071 = vpop.f32.mrb[0].mxu0
        %v6072 = vadd.f32 0.0, %v6071
        %v6073 = vpop.f32.mrb[0].mxu0
        %6074 = vmatprep.mubr.f32.mxu0 0.0
        %6075 = vmatmul.mubr.f32.gmra.mrb[0].mxu0 %v5997
        %v6076 = vpop.f32.mrb[0].mxu0
        %v6077 = vadd.f32 0.0, %v6076
        %v6078 = vpop.f32.mrb[0].mxu0
        %6079 = vmatprep.mubr.f32.mxu0 0.0
        %6080 = vmatmul.mubr.f32.gmra.mrb[0].mxu0 %v6000
        %v6081 = vpop.f32.mrb[0].mxu0
        %v6082 = vadd.f32 0.0, %v6081
        %v6083 = vpop.f32.mrb[0].mxu0
        %6084 = vmatprep.mubr.f32.mxu0 0.0
        %6085 = vmatmul.mubr.f32.gmra.mrb[0].mxu0 %v6003
        %v6086 = vpop.f32.mrb[0].mxu0
        %v6087 = vadd.f32 0.0, %v6086
        %v6088 = vpop.f32.mrb[0].mxu0
        %6089 = vdwg.mxu0
        %s6090 = scalar_lea.vmem %s7, 448
        %v6091 = vld [vmem:[%s6090] sm:$0xff]
        %v6092 = vld [vmem:[%s6090 + $0x8] sm:$0xff]
        %v6093 = vld [vmem:[%s6090 + $0x10] sm:$0xff]
        %v6094 = vld [vmem:[%s6090 + $0x18] sm:$0xff]
        %v6095 = vld [vmem:[%s6090 + $0x20] sm:$0xff]
        %v6096 = vld [vmem:[%s6090 + $0x28] sm:$0xff]
        %v6097 = vld [vmem:[%s6090 + $0x30] sm:$0xff]
        %v6098 = vld [vmem:[%s6090 + $0x38] sm:$0xff]
        %v6100 = vsel %vm4733, %v6072, 0
        %v6103 = vsel %vm4733, %v6077, 0
        %v6106 = vsel %vm4733, %v6082, 0
        %v6109 = vsel %vm4733, %v6087, 0
        %6111 = vmatprep.subr.mxu0 0.0
        %6112 = vmatpush1.msra.mxu0 %v6091
        %6113 = vmatprep.subr.mxu0 0.0
        %6114 = vmatpush1.msra.mxu0 %v6092
        %6115 = vmatprep.subr.mxu0 0.0
        %6116 = vmatpush1.msra.mxu0 %v6093
        %6117 = vmatprep.subr.mxu0 0.0
        %6118 = vmatpush1.msra.mxu0 %v6094
        %6119 = vmatprep.subr.mxu0 0.0
        %6120 = vmatpush1.msra.mxu0 %v6095
        %6121 = vmatprep.subr.mxu0 0.0
        %6122 = vmatpush1.msra.mxu0 %v6096
        %6123 = vmatprep.subr.mxu0 0.0
        %6124 = vmatpush1.msra.mxu0 %v6097
        %6125 = vmatprep.subr.mxu0 0.0
        %6126 = vmatpush1.msra.mxu0 %v6098
        %6127 = vmatprep.subr.mxu0 0.0
        %6128 = vmatpush1.msra.mxu0 0.0
        %6129 = vmatprep.subr.mxu0 0.0
        %6130 = vmatpush1.msra.mxu0 0.0
        %6131 = vmatprep.subr.mxu0 0.0
        %6132 = vmatpush1.msra.mxu0 0.0
        %6133 = vmatprep.subr.mxu0 0.0
        %6134 = vmatpush1.msra.mxu0 0.0
        %6135 = vmatprep.subr.mxu0 0.0
        %6136 = vmatpush1.msra.mxu0 0.0
        %6137 = vmatprep.subr.mxu0 0.0
        %6138 = vmatpush1.msra.mxu0 0.0
        %6139 = vmatprep.subr.mxu0 0.0
        %6140 = vmatpush1.msra.mxu0 0.0
        %6141 = vmatprep.subr.mxu0 0.0
        %6142 = vmatpush1.msra.mxu0 0.0
        %6143 = vmatprep.subr.mxu0 0.0
        %6144 = vmatpush1.msra.mxu0 0.0
        %6145 = vmatprep.subr.mxu0 0.0
        %6146 = vmatpush1.msra.mxu0 0.0
        %6147 = vmatprep.subr.mxu0 0.0
        %6148 = vmatpush1.msra.mxu0 0.0
        %6149 = vmatprep.subr.mxu0 0.0
        %6150 = vmatpush1.msra.mxu0 0.0
        %6151 = vmatprep.subr.mxu0 0.0
        %6152 = vmatpush1.msra.mxu0 0.0
        %6153 = vmatprep.subr.mxu0 0.0
        %6154 = vmatpush1.msra.mxu0 0.0
        %6155 = vmatprep.subr.mxu0 0.0
        %6156 = vmatpush1.msra.mxu0 0.0
        %6157 = vmatprep.subr.mxu0 0.0
        %6158 = vmatpush1.msra.mxu0 0.0
        %6159 = vmatprep.subr.mxu0 0.0
        %6160 = vmatpush1.msra.mxu0 0.0
        %6161 = vmatprep.subr.mxu0 0.0
        %6162 = vmatpush1.msra.mxu0 0.0
        %6163 = vmatprep.subr.mxu0 0.0
        %6164 = vmatpush1.msra.mxu0 0.0
        %6165 = vmatprep.subr.mxu0 0.0
        %6166 = vmatpush1.msra.mxu0 0.0
        %6167 = vmatprep.subr.mxu0 0.0
        %6168 = vmatpush1.msra.mxu0 0.0
        %6169 = vmatprep.subr.mxu0 0.0
        %6170 = vmatpush1.msra.mxu0 0.0
        %6171 = vmatprep.subr.mxu0 0.0
        %6172 = vmatpush1.msra.mxu0 0.0
        %6173 = vmatprep.subr.mxu0 0.0
        %6174 = vmatpush1.msra.mxu0 0.0
        %6175 = vmatprep.mubr.f32.mxu0 0.0
        %6176 = vmatmul.mubr.f32.gmra.mrb[0].mxu0 %v6100
        %v6177 = vpop.f32.mrb[0].mxu0
        %v6178 = vadd.f32 0.0, %v6177
        %v6179 = vpop.f32.mrb[0].mxu0
        %6180 = vmatprep.mubr.f32.mxu0 0.0
        %6181 = vmatmul.mubr.f32.gmra.mrb[0].mxu0 %v6103
        %v6182 = vpop.f32.mrb[0].mxu0
        %v6183 = vadd.f32 0.0, %v6182
        %v6184 = vpop.f32.mrb[0].mxu0
        %6185 = vmatprep.mubr.f32.mxu0 0.0
        %6186 = vmatmul.mubr.f32.gmra.mrb[0].mxu0 %v6106
        %v6187 = vpop.f32.mrb[0].mxu0
        %v6188 = vadd.f32 0.0, %v6187
        %v6189 = vpop.f32.mrb[0].mxu0
        %6190 = vmatprep.mubr.f32.mxu0 0.0
        %6191 = vmatmul.mubr.f32.gmra.mrb[0].mxu0 %v6109
        %v6192 = vpop.f32.mrb[0].mxu0
        %v6193 = vadd.f32 0.0, %v6192
        %v6194 = vpop.f32.mrb[0].mxu0
        %6195 = vdwg.mxu0
        %v6196 = vadd.f32 %v5984, %v6178
        %v6197 = vadd.f32 %v5985, %v6183
        %v6198 = vadd.f32 %v5986, %v6188
        %v6199 = vadd.f32 %v5987, %v6193
        %s6200 = scalar_lea.vmem %s6, 256
        %v6201 = vld [vmem:[%s6200] sm:$0xff]
        %v6202 = vld [vmem:[%s6200 + $0x8] sm:$0xff]
        %v6203 = vld [vmem:[%s6200 + $0x10] sm:$0xff]
        %v6204 = vld [vmem:[%s6200 + $0x18] sm:$0x1]
        %v6206 = vsel %vm4512, %v6201, 0
        %v6209 = vsel %vm4512, %v6202, 0
        %v6212 = vsel %vm4512, %v6203, 0
        %v6215 = vsel %vm4512, %v6204, 0
        %6217 = vmatprep.subr.mxu0 0.0
        %6218 = vmatpush1.msra.mxu0 %v4504
        %6219 = vmatprep.subr.mxu0 0.0
        %6220 = vmatpush1.msra.mxu0 %v4505
        %6221 = vmatprep.subr.mxu0 0.0
        %6222 = vmatpush1.msra.mxu0 %v4506
        %6223 = vmatprep.subr.mxu0 0.0
        %6224 = vmatpush1.msra.mxu0 %v4527
        %6225 = vmatprep.subr.mxu0 0.0
        %6226 = vmatpush1.msra.mxu0 0.0
        %6227 = vmatprep.subr.mxu0 0.0
        %6228 = vmatpush1.msra.mxu0 0.0
        %6229 = vmatprep.subr.mxu0 0.0
        %6230 = vmatpush1.msra.mxu0 0.0
        %6231 = vmatprep.subr.mxu0 0.0
        %6232 = vmatpush1.msra.mxu0 0.0
        %6233 = vmatprep.subr.mxu0 0.0
        %6234 = vmatpush1.msra.mxu0 0.0
        %6235 = vmatprep.subr.mxu0 0.0
        %6236 = vmatpush1.msra.mxu0 0.0
        %6237 = vmatprep.subr.mxu0 0.0
        %6238 = vmatpush1.msra.mxu0 0.0
        %6239 = vmatprep.subr.mxu0 0.0
        %6240 = vmatpush1.msra.mxu0 0.0
        %6241 = vmatprep.subr.mxu0 0.0
        %6242 = vmatpush1.msra.mxu0 0.0
        %6243 = vmatprep.subr.mxu0 0.0
        %6244 = vmatpush1.msra.mxu0 0.0
        %6245 = vmatprep.subr.mxu0 0.0
        %6246 = vmatpush1.msra.mxu0 0.0
        %6247 = vmatprep.subr.mxu0 0.0
        %6248 = vmatpush1.msra.mxu0 0.0
        %6249 = vmatprep.subr.mxu0 0.0
        %6250 = vmatpush1.msra.mxu0 0.0
        %6251 = vmatprep.subr.mxu0 0.0
        %6252 = vmatpush1.msra.mxu0 0.0
        %6253 = vmatprep.subr.mxu0 0.0
        %6254 = vmatpush1.msra.mxu0 0.0
        %6255 = vmatprep.subr.mxu0 0.0
        %6256 = vmatpush1.msra.mxu0 0.0
        %6257 = vmatprep.subr.mxu0 0.0
        %6258 = vmatpush1.msra.mxu0 0.0
        %6259 = vmatprep.subr.mxu0 0.0
        %6260 = vmatpush1.msra.mxu0 0.0
        %6261 = vmatprep.subr.mxu0 0.0
        %6262 = vmatpush1.msra.mxu0 0.0
        %6263 = vmatprep.subr.mxu0 0.0
        %6264 = vmatpush1.msra.mxu0 0.0
        %6265 = vmatprep.subr.mxu0 0.0
        %6266 = vmatpush1.msra.mxu0 0.0
        %6267 = vmatprep.subr.mxu0 0.0
        %6268 = vmatpush1.msra.mxu0 0.0
        %6269 = vmatprep.subr.mxu0 0.0
        %6270 = vmatpush1.msra.mxu0 0.0
        %6271 = vmatprep.subr.mxu0 0.0
        %6272 = vmatpush1.msra.mxu0 0.0
        %6273 = vmatprep.subr.mxu0 0.0
        %6274 = vmatpush1.msra.mxu0 0.0
        %6275 = vmatprep.subr.mxu0 0.0
        %6276 = vmatpush1.msra.mxu0 0.0
        %6277 = vmatprep.subr.mxu0 0.0
        %6278 = vmatpush1.msra.mxu0 0.0
        %6279 = vmatprep.subr.mxu0 0.0
        %6280 = vmatpush1.msra.mxu0 0.0
        %6281 = vmatprep.mubr.f32.mxu0 0.0
        %6282 = vmatmul.mubr.f32.gmra.mrb[0].mxu0 %v6206
        %v6283 = vpop.f32.mrb[0].mxu0
        %v6284 = vadd.f32 0.0, %v6283
        %v6285 = vpop.f32.mrb[0].mxu0
        %6286 = vmatprep.mubr.f32.mxu0 0.0
        %6287 = vmatmul.mubr.f32.gmra.mrb[0].mxu0 %v6209
        %v6288 = vpop.f32.mrb[0].mxu0
        %v6289 = vadd.f32 0.0, %v6288
        %v6290 = vpop.f32.mrb[0].mxu0
        %6291 = vmatprep.mubr.f32.mxu0 0.0
        %6292 = vmatmul.mubr.f32.gmra.mrb[0].mxu0 %v6212
        %v6293 = vpop.f32.mrb[0].mxu0
        %v6294 = vadd.f32 0.0, %v6293
        %v6295 = vpop.f32.mrb[0].mxu0
        %6296 = vmatprep.mubr.f32.mxu0 0.0
        %6297 = vmatmul.mubr.f32.gmra.mrb[0].mxu0 %v6215
        %v6298 = vpop.f32.mrb[0].mxu0
        %v6299 = vadd.f32 0.0, %v6298
        %v6300 = vpop.f32.mrb[0].mxu0
        %6301 = vdwg.mxu0
        %s6302 = scalar_lea.vmem %s7, 512
        %v6303 = vld [vmem:[%s6302] sm:$0xff]
        %v6304 = vld [vmem:[%s6302 + $0x8] sm:$0xff]
        %v6305 = vld [vmem:[%s6302 + $0x10] sm:$0xff]
        %v6306 = vld [vmem:[%s6302 + $0x18] sm:$0xff]
        %v6307 = vld [vmem:[%s6302 + $0x20] sm:$0xff]
        %v6308 = vld [vmem:[%s6302 + $0x28] sm:$0xff]
        %v6309 = vld [vmem:[%s6302 + $0x30] sm:$0xff]
        %v6310 = vld [vmem:[%s6302 + $0x38] sm:$0xff]
        %v6312 = vsel %vm4733, %v6284, 0
        %v6315 = vsel %vm4733, %v6289, 0
        %v6318 = vsel %vm4733, %v6294, 0
        %v6321 = vsel %vm4733, %v6299, 0
        %6323 = vmatprep.subr.mxu0 0.0
        %6324 = vmatpush1.msra.mxu0 %v6303
        %6325 = vmatprep.subr.mxu0 0.0
        %6326 = vmatpush1.msra.mxu0 %v6304
        %6327 = vmatprep.subr.mxu0 0.0
        %6328 = vmatpush1.msra.mxu0 %v6305
        %6329 = vmatprep.subr.mxu0 0.0
        %6330 = vmatpush1.msra.mxu0 %v6306
        %6331 = vmatprep.subr.mxu0 0.0
        %6332 = vmatpush1.msra.mxu0 %v6307
        %6333 = vmatprep.subr.mxu0 0.0
        %6334 = vmatpush1.msra.mxu0 %v6308
        %6335 = vmatprep.subr.mxu0 0.0
        %6336 = vmatpush1.msra.mxu0 %v6309
        %6337 = vmatprep.subr.mxu0 0.0
        %6338 = vmatpush1.msra.mxu0 %v6310
        %6339 = vmatprep.subr.mxu0 0.0
        %6340 = vmatpush1.msra.mxu0 0.0
        %6341 = vmatprep.subr.mxu0 0.0
        %6342 = vmatpush1.msra.mxu0 0.0
        %6343 = vmatprep.subr.mxu0 0.0
        %6344 = vmatpush1.msra.mxu0 0.0
        %6345 = vmatprep.subr.mxu0 0.0
        %6346 = vmatpush1.msra.mxu0 0.0
        %6347 = vmatprep.subr.mxu0 0.0
        %6348 = vmatpush1.msra.mxu0 0.0
        %6349 = vmatprep.subr.mxu0 0.0
        %6350 = vmatpush1.msra.mxu0 0.0
        %6351 = vmatprep.subr.mxu0 0.0
        %6352 = vmatpush1.msra.mxu0 0.0
        %6353 = vmatprep.subr.mxu0 0.0
        %6354 = vmatpush1.msra.mxu0 0.0
        %6355 = vmatprep.subr.mxu0 0.0
        %6356 = vmatpush1.msra.mxu0 0.0
        %6357 = vmatprep.subr.mxu0 0.0
        %6358 = vmatpush1.msra.mxu0 0.0
        %6359 = vmatprep.subr.mxu0 0.0
        %6360 = vmatpush1.msra.mxu0 0.0
        %6361 = vmatprep.subr.mxu0 0.0
        %6362 = vmatpush1.msra.mxu0 0.0
        %6363 = vmatprep.subr.mxu0 0.0
        %6364 = vmatpush1.msra.mxu0 0.0
        %6365 = vmatprep.subr.mxu0 0.0
        %6366 = vmatpush1.msra.mxu0 0.0
        %6367 = vmatprep.subr.mxu0 0.0
        %6368 = vmatpush1.msra.mxu0 0.0
        %6369 = vmatprep.subr.mxu0 0.0
        %6370 = vmatpush1.msra.mxu0 0.0
        %6371 = vmatprep.subr.mxu0 0.0
        %6372 = vmatpush1.msra.mxu0 0.0
        %6373 = vmatprep.subr.mxu0 0.0
        %6374 = vmatpush1.msra.mxu0 0.0
        %6375 = vmatprep.subr.mxu0 0.0
        %6376 = vmatpush1.msra.mxu0 0.0
        %6377 = vmatprep.subr.mxu0 0.0
        %6378 = vmatpush1.msra.mxu0 0.0
        %6379 = vmatprep.subr.mxu0 0.0
        %6380 = vmatpush1.msra.mxu0 0.0
        %6381 = vmatprep.subr.mxu0 0.0
        %6382 = vmatpush1.msra.mxu0 0.0
        %6383 = vmatprep.subr.mxu0 0.0
        %6384 = vmatpush1.msra.mxu0 0.0
        %6385 = vmatprep.subr.mxu0 0.0
        %6386 = vmatpush1.msra.mxu0 0.0
        %6387 = vmatprep.mubr.f32.mxu0 0.0
        %6388 = vmatmul.mubr.f32.gmra.mrb[0].mxu0 %v6312
        %v6389 = vpop.f32.mrb[0].mxu0
        %v6390 = vadd.f32 0.0, %v6389
        %v6391 = vpop.f32.mrb[0].mxu0
        %6392 = vmatprep.mubr.f32.mxu0 0.0
        %6393 = vmatmul.mubr.f32.gmra.mrb[0].mxu0 %v6315
        %v6394 = vpop.f32.mrb[0].mxu0
        %v6395 = vadd.f32 0.0, %v6394
        %v6396 = vpop.f32.mrb[0].mxu0
        %6397 = vmatprep.mubr.f32.mxu0 0.0
        %6398 = vmatmul.mubr.f32.gmra.mrb[0].mxu0 %v6318
        %v6399 = vpop.f32.mrb[0].mxu0
        %v6400 = vadd.f32 0.0, %v6399
        %v6401 = vpop.f32.mrb[0].mxu0
        %6402 = vmatprep.mubr.f32.mxu0 0.0
        %6403 = vmatmul.mubr.f32.gmra.mrb[0].mxu0 %v6321
        %v6404 = vpop.f32.mrb[0].mxu0
        %v6405 = vadd.f32 0.0, %v6404
        %v6406 = vpop.f32.mrb[0].mxu0
        %6407 = vdwg.mxu0
        %v6408 = vadd.f32 %v6196, %v6390
        %v6409 = vadd.f32 %v6197, %v6395
        %v6410 = vadd.f32 %v6198, %v6400
        %v6411 = vadd.f32 %v6199, %v6405
        %v6412 = vld [vmem:[%s8] sm:$0x1]
        %v6414 = vlaneseq
        %v6415 = vshrl.u32 %v6414, 7
        %v6416 = vsub.s32 0, %v6415
        %v6417 = vrot.slane %v6412, %v6416
        %v6419 = vadd.f32 %v6408, %v6417
        %v6420 = vadd.f32 %v6409, %v6417
        %v6421 = vadd.f32 %v6410, %v6417
        %v6422 = vadd.f32 %v6411, %v6417
        %v6423 = vmax.f32 %v6419, 0.0
        %v6424 = vmax.f32 %v6420, 0.0
        %v6425 = vmax.f32 %v6421, 0.0
        %v6426 = vmax.f32 %v6422, 0.0
        %v6427 = vld [vmem:[%s9] sm:$0xff]
        %v6428 = vld [vmem:[%s9 + $0x8] sm:$0xff]
        %v6429 = vld [vmem:[%s9 + $0x10] sm:$0xff]
        %v6430 = vld [vmem:[%s9 + $0x18] sm:$0xff]
        %v6431 = vld [vmem:[%s9 + $0x20] sm:$0xff]
        %v6432 = vld [vmem:[%s9 + $0x28] sm:$0xff]
        %v6433 = vld [vmem:[%s9 + $0x30] sm:$0xff]
        %v6434 = vld [vmem:[%s9 + $0x38] sm:$0xff]
        %v6435 = vld [vmem:[%s9 + $0x40] sm:$0xff]
        %v6436 = vld [vmem:[%s9 + $0x48] sm:$0xff]
        %v6437 = vld [vmem:[%s9 + $0x50] sm:$0xff]
        %v6438 = vld [vmem:[%s9 + $0x58] sm:$0xff]
        %v6439 = vld [vmem:[%s9 + $0x60] sm:$0xff]
        %v6440 = vld [vmem:[%s9 + $0x68] sm:$0xff]
        %v6441 = vld [vmem:[%s9 + $0x70] sm:$0xff]
        %v6442 = vld [vmem:[%s9 + $0x78] sm:$0xff]
        %s6443 = scalar_lea.vmem %s9, 128
        %v6444 = vld [vmem:[%s6443] sm:$0xff]
        %v6445 = vld [vmem:[%s6443 + $0x8] sm:$0xff]
        %v6446 = vld [vmem:[%s6443 + $0x10] sm:$0xff]
        %v6447 = vld [vmem:[%s6443 + $0x18] sm:$0xff]
        %v6448 = vld [vmem:[%s6443 + $0x20] sm:$0xff]
        %v6449 = vld [vmem:[%s6443 + $0x28] sm:$0xff]
        %v6450 = vld [vmem:[%s6443 + $0x30] sm:$0xff]
        %v6451 = vld [vmem:[%s6443 + $0x38] sm:$0xff]
        %v6452 = vld [vmem:[%s6443 + $0x40] sm:$0xff]
        %v6453 = vld [vmem:[%s6443 + $0x48] sm:$0xff]
        %v6454 = vld [vmem:[%s6443 + $0x50] sm:$0xff]
        %v6455 = vld [vmem:[%s6443 + $0x58] sm:$0xff]
        %v6456 = vld [vmem:[%s6443 + $0x60] sm:$0xff]
        %v6457 = vld [vmem:[%s6443 + $0x68] sm:$0xff]
        %v6458 = vld [vmem:[%s6443 + $0x70] sm:$0xff]
        %v6459 = vld [vmem:[%s6443 + $0x78] sm:$0xff]
        %v6461 = vrot.slane %v6423, 1
        %v6462 = vsel %vm4733, %v6461, 0
        %6464 = vmatprep.subr.mxu0 %v6445
        %6465 = vmatpush1.msra.mxu0 %v6444
        %6466 = vmatprep.subr.mxu0 %v6447
        %6467 = vmatpush1.msra.mxu0 %v6446
        %6468 = vmatprep.subr.mxu0 %v6449
        %6469 = vmatpush1.msra.mxu0 %v6448
        %6470 = vmatprep.subr.mxu0 %v6451
        %6471 = vmatpush1.msra.mxu0 %v6450
        %6472 = vmatprep.subr.mxu0 %v6453
        %6473 = vmatpush1.msra.mxu0 %v6452
        %6474 = vmatprep.subr.mxu0 %v6455
        %6475 = vmatpush1.msra.mxu0 %v6454
        %6476 = vmatprep.subr.mxu0 %v6457
        %6477 = vmatpush1.msra.mxu0 %v6456
        %6478 = vmatprep.subr.mxu0 %v6459
        %6479 = vmatpush1.msra.mxu0 %v6458
        %6480 = vmatprep.subr.mxu0 0.0
        %6481 = vmatpush1.msra.mxu0 0.0
        %6482 = vmatprep.subr.mxu0 0.0
        %6483 = vmatpush1.msra.mxu0 0.0
        %6484 = vmatprep.subr.mxu0 0.0
        %6485 = vmatpush1.msra.mxu0 0.0
        %6486 = vmatprep.subr.mxu0 0.0
        %6487 = vmatpush1.msra.mxu0 0.0
        %6488 = vmatprep.subr.mxu0 0.0
        %6489 = vmatpush1.msra.mxu0 0.0
        %6490 = vmatprep.subr.mxu0 0.0
        %6491 = vmatpush1.msra.mxu0 0.0
        %6492 = vmatprep.subr.mxu0 0.0
        %6493 = vmatpush1.msra.mxu0 0.0
        %6494 = vmatprep.subr.mxu0 0.0
        %6495 = vmatpush1.msra.mxu0 0.0
        %6496 = vmatprep.subr.mxu0 0.0
        %6497 = vmatpush1.msra.mxu0 0.0
        %6498 = vmatprep.subr.mxu0 0.0
        %6499 = vmatpush1.msra.mxu0 0.0
        %6500 = vmatprep.subr.mxu0 0.0
        %6501 = vmatpush1.msra.mxu0 0.0
        %6502 = vmatprep.subr.mxu0 0.0
        %6503 = vmatpush1.msra.mxu0 0.0
        %6504 = vmatprep.subr.mxu0 0.0
        %6505 = vmatpush1.msra.mxu0 0.0
        %6506 = vmatprep.subr.mxu0 0.0
        %6507 = vmatpush1.msra.mxu0 0.0
        %6508 = vmatprep.subr.mxu0 0.0
        %6509 = vmatpush1.msra.mxu0 0.0
        %6510 = vmatprep.subr.mxu0 0.0
        %6511 = vmatpush1.msra.mxu0 0.0
        %6512 = vmatprep.subr.mxu0 0.0
        %6513 = vmatpush1.msra.mxu0 0.0
        %6514 = vmatprep.subr.mxu0 0.0
        %6515 = vmatpush1.msra.mxu0 0.0
        %6516 = vmatprep.subr.mxu0 0.0
        %6517 = vmatpush1.msra.mxu0 0.0
        %6518 = vmatprep.subr.mxu0 0.0
        %6519 = vmatpush1.msra.mxu0 0.0
        %6520 = vmatprep.subr.mxu0 0.0
        %6521 = vmatpush1.msra.mxu0 0.0
        %6522 = vmatprep.subr.mxu0 0.0
        %6523 = vmatpush1.msra.mxu0 0.0
        %6524 = vmatprep.subr.mxu0 0.0
        %6525 = vmatpush1.msra.mxu0 0.0
        %6526 = vmatprep.subr.mxu0 0.0
        %6527 = vmatpush1.msra.mxu0 0.0
        %6528 = vmatprep.mubr.f32.mxu0 0.0
        %6529 = vmatmul.mubr.f32.gmra.mrb[0].mxu0 %v6462
        %v6530 = vpop.f32.mrb[0].mxu0
        %v6531 = vadd.f32 0.0, %v6530
        %v6532 = vpop.f32.mrb[0].mxu0
        %v6533 = vadd.f32 0.0, %v6532
        %6534 = vdwg.mxu0
        %v6535 = vsel %vm4733, %v6423, 0
        %6537 = vmatprep.subr.mxu0 %v6428
        %6538 = vmatpush1.msra.mxu0 %v6427
        %6539 = vmatprep.subr.mxu0 %v6430
        %6540 = vmatpush1.msra.mxu0 %v6429
        %6541 = vmatprep.subr.mxu0 %v6432
        %6542 = vmatpush1.msra.mxu0 %v6431
        %6543 = vmatprep.subr.mxu0 %v6434
        %6544 = vmatpush1.msra.mxu0 %v6433
        %6545 = vmatprep.subr.mxu0 %v6436
        %6546 = vmatpush1.msra.mxu0 %v6435
        %6547 = vmatprep.subr.mxu0 %v6438
        %6548 = vmatpush1.msra.mxu0 %v6437
        %6549 = vmatprep.subr.mxu0 %v6440
        %6550 = vmatpush1.msra.mxu0 %v6439
        %6551 = vmatprep.subr.mxu0 %v6442
        %6552 = vmatpush1.msra.mxu0 %v6441
        %6553 = vmatprep.subr.mxu0 0.0
        %6554 = vmatpush1.msra.mxu0 0.0
        %6555 = vmatprep.subr.mxu0 0.0
        %6556 = vmatpush1.msra.mxu0 0.0
        %6557 = vmatprep.subr.mxu0 0.0
        %6558 = vmatpush1.msra.mxu0 0.0
        %6559 = vmatprep.subr.mxu0 0.0
        %6560 = vmatpush1.msra.mxu0 0.0
        %6561 = vmatprep.subr.mxu0 0.0
        %6562 = vmatpush1.msra.mxu0 0.0
        %6563 = vmatprep.subr.mxu0 0.0
        %6564 = vmatpush1.msra.mxu0 0.0
        %6565 = vmatprep.subr.mxu0 0.0
        %6566 = vmatpush1.msra.mxu0 0.0
        %6567 = vmatprep.subr.mxu0 0.0
        %6568 = vmatpush1.msra.mxu0 0.0
        %6569 = vmatprep.subr.mxu0 0.0
        %6570 = vmatpush1.msra.mxu0 0.0
        %6571 = vmatprep.subr.mxu0 0.0
        %6572 = vmatpush1.msra.mxu0 0.0
        %6573 = vmatprep.subr.mxu0 0.0
        %6574 = vmatpush1.msra.mxu0 0.0
        %6575 = vmatprep.subr.mxu0 0.0
        %6576 = vmatpush1.msra.mxu0 0.0
        %6577 = vmatprep.subr.mxu0 0.0
        %6578 = vmatpush1.msra.mxu0 0.0
        %6579 = vmatprep.subr.mxu0 0.0
        %6580 = vmatpush1.msra.mxu0 0.0
        %6581 = vmatprep.subr.mxu0 0.0
        %6582 = vmatpush1.msra.mxu0 0.0
        %6583 = vmatprep.subr.mxu0 0.0
        %6584 = vmatpush1.msra.mxu0 0.0
        %6585 = vmatprep.subr.mxu0 0.0
        %6586 = vmatpush1.msra.mxu0 0.0
        %6587 = vmatprep.subr.mxu0 0.0
        %6588 = vmatpush1.msra.mxu0 0.0
        %6589 = vmatprep.subr.mxu0 0.0
        %6590 = vmatpush1.msra.mxu0 0.0
        %6591 = vmatprep.subr.mxu0 0.0
        %6592 = vmatpush1.msra.mxu0 0.0
        %6593 = vmatprep.subr.mxu0 0.0
        %6594 = vmatpush1.msra.mxu0 0.0
        %6595 = vmatprep.subr.mxu0 0.0
        %6596 = vmatpush1.msra.mxu0 0.0
        %6597 = vmatprep.subr.mxu0 0.0
        %6598 = vmatpush1.msra.mxu0 0.0
        %6599 = vmatprep.subr.mxu0 0.0
        %6600 = vmatpush1.msra.mxu0 0.0
        %6601 = vmatprep.mubr.f32.mxu0 0.0
        %6602 = vmatmul.mubr.f32.gmra.mrb[0].mxu0 %v6535
        %v6603 = vpop.f32.mrb[0].mxu0
        %v6604 = vadd.f32 %v6531, %v6603
        %v6605 = vpop.f32.mrb[0].mxu0
        %v6606 = vadd.f32 %v6533, %v6605
        %6607 = vdwg.mxu0
        %s6608 = scalar_lea.vmem %s9, 256
        %v6609 = vld [vmem:[%s6608] sm:$0xff]
        %v6610 = vld [vmem:[%s6608 + $0x8] sm:$0xff]
        %v6611 = vld [vmem:[%s6608 + $0x10] sm:$0xff]
        %v6612 = vld [vmem:[%s6608 + $0x18] sm:$0xff]
        %v6613 = vld [vmem:[%s6608 + $0x20] sm:$0xff]
        %v6614 = vld [vmem:[%s6608 + $0x28] sm:$0xff]
        %v6615 = vld [vmem:[%s6608 + $0x30] sm:$0xff]
        %v6616 = vld [vmem:[%s6608 + $0x38] sm:$0xff]
        %v6617 = vld [vmem:[%s6608 + $0x40] sm:$0xff]
        %v6618 = vld [vmem:[%s6608 + $0x48] sm:$0xff]
        %v6619 = vld [vmem:[%s6608 + $0x50] sm:$0xff]
        %v6620 = vld [vmem:[%s6608 + $0x58] sm:$0xff]
        %v6621 = vld [vmem:[%s6608 + $0x60] sm:$0xff]
        %v6622 = vld [vmem:[%s6608 + $0x68] sm:$0xff]
        %v6623 = vld [vmem:[%s6608 + $0x70] sm:$0xff]
        %v6624 = vld [vmem:[%s6608 + $0x78] sm:$0xff]
        %v6625 = vrot.slane %v6423, 2
        %v6626 = vsel %vm4733, %v6625, 0
        %6628 = vmatprep.subr.mxu0 %v6610
        %6629 = vmatpush1.msra.mxu0 %v6609
        %6630 = vmatprep.subr.mxu0 %v6612
        %6631 = vmatpush1.msra.mxu0 %v6611
        %6632 = vmatprep.subr.mxu0 %v6614
        %6633 = vmatpush1.msra.mxu0 %v6613
        %6634 = vmatprep.subr.mxu0 %v6616
        %6635 = vmatpush1.msra.mxu0 %v6615
        %6636 = vmatprep.subr.mxu0 %v6618
        %6637 = vmatpush1.msra.mxu0 %v6617
        %6638 = vmatprep.subr.mxu0 %v6620
        %6639 = vmatpush1.msra.mxu0 %v6619
        %6640 = vmatprep.subr.mxu0 %v6622
        %6641 = vmatpush1.msra.mxu0 %v6621
        %6642 = vmatprep.subr.mxu0 %v6624
        %6643 = vmatpush1.msra.mxu0 %v6623
        %6644 = vmatprep.subr.mxu0 0.0
        %6645 = vmatpush1.msra.mxu0 0.0
        %6646 = vmatprep.subr.mxu0 0.0
        %6647 = vmatpush1.msra.mxu0 0.0
        %6648 = vmatprep.subr.mxu0 0.0
        %6649 = vmatpush1.msra.mxu0 0.0
        %6650 = vmatprep.subr.mxu0 0.0
        %6651 = vmatpush1.msra.mxu0 0.0
        %6652 = vmatprep.subr.mxu0 0.0
        %6653 = vmatpush1.msra.mxu0 0.0
        %6654 = vmatprep.subr.mxu0 0.0
        %6655 = vmatpush1.msra.mxu0 0.0
        %6656 = vmatprep.subr.mxu0 0.0
        %6657 = vmatpush1.msra.mxu0 0.0
        %6658 = vmatprep.subr.mxu0 0.0
        %6659 = vmatpush1.msra.mxu0 0.0
        %6660 = vmatprep.subr.mxu0 0.0
        %6661 = vmatpush1.msra.mxu0 0.0
        %6662 = vmatprep.subr.mxu0 0.0
        %6663 = vmatpush1.msra.mxu0 0.0
        %6664 = vmatprep.subr.mxu0 0.0
        %6665 = vmatpush1.msra.mxu0 0.0
        %6666 = vmatprep.subr.mxu0 0.0
        %6667 = vmatpush1.msra.mxu0 0.0
        %6668 = vmatprep.subr.mxu0 0.0
        %6669 = vmatpush1.msra.mxu0 0.0
        %6670 = vmatprep.subr.mxu0 0.0
        %6671 = vmatpush1.msra.mxu0 0.0
        %6672 = vmatprep.subr.mxu0 0.0
        %6673 = vmatpush1.msra.mxu0 0.0
        %6674 = vmatprep.subr.mxu0 0.0
        %6675 = vmatpush1.msra.mxu0 0.0
        %6676 = vmatprep.subr.mxu0 0.0
        %6677 = vmatpush1.msra.mxu0 0.0
        %6678 = vmatprep.subr.mxu0 0.0
        %6679 = vmatpush1.msra.mxu0 0.0
        %6680 = vmatprep.subr.mxu0 0.0
        %6681 = vmatpush1.msra.mxu0 0.0
        %6682 = vmatprep.subr.mxu0 0.0
        %6683 = vmatpush1.msra.mxu0 0.0
        %6684 = vmatprep.subr.mxu0 0.0
        %6685 = vmatpush1.msra.mxu0 0.0
        %6686 = vmatprep.subr.mxu0 0.0
        %6687 = vmatpush1.msra.mxu0 0.0
        %6688 = vmatprep.subr.mxu0 0.0
        %6689 = vmatpush1.msra.mxu0 0.0
        %6690 = vmatprep.subr.mxu0 0.0
        %6691 = vmatpush1.msra.mxu0 0.0
        %6692 = vmatprep.mubr.f32.mxu0 0.0
        %6693 = vmatmul.mubr.f32.gmra.mrb[0].mxu0 %v6626
        %v6694 = vpop.f32.mrb[0].mxu0
        %v6695 = vadd.f32 0.0, %v6694
        %v6696 = vpop.f32.mrb[0].mxu0
        %v6697 = vadd.f32 0.0, %v6696
        %6698 = vdwg.mxu0
        %v6699 = vadd.f32 %v6604, %v6695
        %v6700 = vadd.f32 %v6606, %v6697
        %s6701 = scalar_lea.vmem %s9, 384
        %v6702 = vld [vmem:[%s6701] sm:$0xff]
        %v6703 = vld [vmem:[%s6701 + $0x8] sm:$0xff]
        %v6704 = vld [vmem:[%s6701 + $0x10] sm:$0xff]
        %v6705 = vld [vmem:[%s6701 + $0x18] sm:$0xff]
        %v6706 = vld [vmem:[%s6701 + $0x20] sm:$0xff]
        %v6707 = vld [vmem:[%s6701 + $0x28] sm:$0xff]
        %v6708 = vld [vmem:[%s6701 + $0x30] sm:$0xff]
        %v6709 = vld [vmem:[%s6701 + $0x38] sm:$0xff]
        %v6710 = vld [vmem:[%s6701 + $0x40] sm:$0xff]
        %v6711 = vld [vmem:[%s6701 + $0x48] sm:$0xff]
        %v6712 = vld [vmem:[%s6701 + $0x50] sm:$0xff]
        %v6713 = vld [vmem:[%s6701 + $0x58] sm:$0xff]
        %v6714 = vld [vmem:[%s6701 + $0x60] sm:$0xff]
        %v6715 = vld [vmem:[%s6701 + $0x68] sm:$0xff]
        %v6716 = vld [vmem:[%s6701 + $0x70] sm:$0xff]
        %v6717 = vld [vmem:[%s6701 + $0x78] sm:$0xff]
        %v6718 = vrot.slane %v6423, 3
        %v6719 = vsel %vm4733, %v6718, 0
        %6721 = vmatprep.subr.mxu0 %v6703
        %6722 = vmatpush1.msra.mxu0 %v6702
        %6723 = vmatprep.subr.mxu0 %v6705
        %6724 = vmatpush1.msra.mxu0 %v6704
        %6725 = vmatprep.subr.mxu0 %v6707
        %6726 = vmatpush1.msra.mxu0 %v6706
        %6727 = vmatprep.subr.mxu0 %v6709
        %6728 = vmatpush1.msra.mxu0 %v6708
        %6729 = vmatprep.subr.mxu0 %v6711
        %6730 = vmatpush1.msra.mxu0 %v6710
        %6731 = vmatprep.subr.mxu0 %v6713
        %6732 = vmatpush1.msra.mxu0 %v6712
        %6733 = vmatprep.subr.mxu0 %v6715
        %6734 = vmatpush1.msra.mxu0 %v6714
        %6735 = vmatprep.subr.mxu0 %v6717
        %6736 = vmatpush1.msra.mxu0 %v6716
        %6737 = vmatprep.subr.mxu0 0.0
        %6738 = vmatpush1.msra.mxu0 0.0
        %6739 = vmatprep.subr.mxu0 0.0
        %6740 = vmatpush1.msra.mxu0 0.0
        %6741 = vmatprep.subr.mxu0 0.0
        %6742 = vmatpush1.msra.mxu0 0.0
        %6743 = vmatprep.subr.mxu0 0.0
        %6744 = vmatpush1.msra.mxu0 0.0
        %6745 = vmatprep.subr.mxu0 0.0
        %6746 = vmatpush1.msra.mxu0 0.0
        %6747 = vmatprep.subr.mxu0 0.0
        %6748 = vmatpush1.msra.mxu0 0.0
        %6749 = vmatprep.subr.mxu0 0.0
        %6750 = vmatpush1.msra.mxu0 0.0
        %6751 = vmatprep.subr.mxu0 0.0
        %6752 = vmatpush1.msra.mxu0 0.0
        %6753 = vmatprep.subr.mxu0 0.0
        %6754 = vmatpush1.msra.mxu0 0.0
        %6755 = vmatprep.subr.mxu0 0.0
        %6756 = vmatpush1.msra.mxu0 0.0
        %6757 = vmatprep.subr.mxu0 0.0
        %6758 = vmatpush1.msra.mxu0 0.0
        %6759 = vmatprep.subr.mxu0 0.0
        %6760 = vmatpush1.msra.mxu0 0.0
        %6761 = vmatprep.subr.mxu0 0.0
        %6762 = vmatpush1.msra.mxu0 0.0
        %6763 = vmatprep.subr.mxu0 0.0
        %6764 = vmatpush1.msra.mxu0 0.0
        %6765 = vmatprep.subr.mxu0 0.0
        %6766 = vmatpush1.msra.mxu0 0.0
        %6767 = vmatprep.subr.mxu0 0.0
        %6768 = vmatpush1.msra.mxu0 0.0
        %6769 = vmatprep.subr.mxu0 0.0
        %6770 = vmatpush1.msra.mxu0 0.0
        %6771 = vmatprep.subr.mxu0 0.0
        %6772 = vmatpush1.msra.mxu0 0.0
        %6773 = vmatprep.subr.mxu0 0.0
        %6774 = vmatpush1.msra.mxu0 0.0
        %6775 = vmatprep.subr.mxu0 0.0
        %6776 = vmatpush1.msra.mxu0 0.0
        %6777 = vmatprep.subr.mxu0 0.0
        %6778 = vmatpush1.msra.mxu0 0.0
        %6779 = vmatprep.subr.mxu0 0.0
        %6780 = vmatpush1.msra.mxu0 0.0
        %6781 = vmatprep.subr.mxu0 0.0
        %6782 = vmatpush1.msra.mxu0 0.0
        %6783 = vmatprep.subr.mxu0 0.0
        %6784 = vmatpush1.msra.mxu0 0.0
        %6785 = vmatprep.mubr.f32.mxu0 0.0
        %6786 = vmatmul.mubr.f32.gmra.mrb[0].mxu0 %v6719
        %v6787 = vpop.f32.mrb[0].mxu0
        %v6788 = vadd.f32 0.0, %v6787
        %v6789 = vpop.f32.mrb[0].mxu0
        %v6790 = vadd.f32 0.0, %v6789
        %6791 = vdwg.mxu0
        %v6792 = vadd.f32 %v6699, %v6788
        %v6793 = vadd.f32 %v6700, %v6790
        %s6794 = scalar_lea.vmem %s9, 512
        %v6795 = vld [vmem:[%s6794] sm:$0xff]
        %v6796 = vld [vmem:[%s6794 + $0x8] sm:$0xff]
        %v6797 = vld [vmem:[%s6794 + $0x10] sm:$0xff]
        %v6798 = vld [vmem:[%s6794 + $0x18] sm:$0xff]
        %v6799 = vld [vmem:[%s6794 + $0x20] sm:$0xff]
        %v6800 = vld [vmem:[%s6794 + $0x28] sm:$0xff]
        %v6801 = vld [vmem:[%s6794 + $0x30] sm:$0xff]
        %v6802 = vld [vmem:[%s6794 + $0x38] sm:$0xff]
        %v6803 = vld [vmem:[%s6794 + $0x40] sm:$0xff]
        %v6804 = vld [vmem:[%s6794 + $0x48] sm:$0xff]
        %v6805 = vld [vmem:[%s6794 + $0x50] sm:$0xff]
        %v6806 = vld [vmem:[%s6794 + $0x58] sm:$0xff]
        %v6807 = vld [vmem:[%s6794 + $0x60] sm:$0xff]
        %v6808 = vld [vmem:[%s6794 + $0x68] sm:$0xff]
        %v6809 = vld [vmem:[%s6794 + $0x70] sm:$0xff]
        %v6810 = vld [vmem:[%s6794 + $0x78] sm:$0xff]
        %v6811 = vrot.slane %v6423, 4
        %v6812 = vsel %vm4733, %v6811, 0
        %6814 = vmatprep.subr.mxu0 %v6796
        %6815 = vmatpush1.msra.mxu0 %v6795
        %6816 = vmatprep.subr.mxu0 %v6798
        %6817 = vmatpush1.msra.mxu0 %v6797
        %6818 = vmatprep.subr.mxu0 %v6800
        %6819 = vmatpush1.msra.mxu0 %v6799
        %6820 = vmatprep.subr.mxu0 %v6802
        %6821 = vmatpush1.msra.mxu0 %v6801
        %6822 = vmatprep.subr.mxu0 %v6804
        %6823 = vmatpush1.msra.mxu0 %v6803
        %6824 = vmatprep.subr.mxu0 %v6806
        %6825 = vmatpush1.msra.mxu0 %v6805
        %6826 = vmatprep.subr.mxu0 %v6808
        %6827 = vmatpush1.msra.mxu0 %v6807
        %6828 = vmatprep.subr.mxu0 %v6810
        %6829 = vmatpush1.msra.mxu0 %v6809
        %6830 = vmatprep.subr.mxu0 0.0
        %6831 = vmatpush1.msra.mxu0 0.0
        %6832 = vmatprep.subr.mxu0 0.0
        %6833 = vmatpush1.msra.mxu0 0.0
        %6834 = vmatprep.subr.mxu0 0.0
        %6835 = vmatpush1.msra.mxu0 0.0
        %6836 = vmatprep.subr.mxu0 0.0
        %6837 = vmatpush1.msra.mxu0 0.0
        %6838 = vmatprep.subr.mxu0 0.0
        %6839 = vmatpush1.msra.mxu0 0.0
        %6840 = vmatprep.subr.mxu0 0.0
        %6841 = vmatpush1.msra.mxu0 0.0
        %6842 = vmatprep.subr.mxu0 0.0
        %6843 = vmatpush1.msra.mxu0 0.0
        %6844 = vmatprep.subr.mxu0 0.0
        %6845 = vmatpush1.msra.mxu0 0.0
        %6846 = vmatprep.subr.mxu0 0.0
        %6847 = vmatpush1.msra.mxu0 0.0
        %6848 = vmatprep.subr.mxu0 0.0
        %6849 = vmatpush1.msra.mxu0 0.0
        %6850 = vmatprep.subr.mxu0 0.0
        %6851 = vmatpush1.msra.mxu0 0.0
        %6852 = vmatprep.subr.mxu0 0.0
        %6853 = vmatpush1.msra.mxu0 0.0
        %6854 = vmatprep.subr.mxu0 0.0
        %6855 = vmatpush1.msra.mxu0 0.0
        %6856 = vmatprep.subr.mxu0 0.0
        %6857 = vmatpush1.msra.mxu0 0.0
        %6858 = vmatprep.subr.mxu0 0.0
        %6859 = vmatpush1.msra.mxu0 0.0
        %6860 = vmatprep.subr.mxu0 0.0
        %6861 = vmatpush1.msra.mxu0 0.0
        %6862 = vmatprep.subr.mxu0 0.0
        %6863 = vmatpush1.msra.mxu0 0.0
        %6864 = vmatprep.subr.mxu0 0.0
        %6865 = vmatpush1.msra.mxu0 0.0
        %6866 = vmatprep.subr.mxu0 0.0
        %6867 = vmatpush1.msra.mxu0 0.0
        %6868 = vmatprep.subr.mxu0 0.0
        %6869 = vmatpush1.msra.mxu0 0.0
        %6870 = vmatprep.subr.mxu0 0.0
        %6871 = vmatpush1.msra.mxu0 0.0
        %6872 = vmatprep.subr.mxu0 0.0
        %6873 = vmatpush1.msra.mxu0 0.0
        %6874 = vmatprep.subr.mxu0 0.0
        %6875 = vmatpush1.msra.mxu0 0.0
        %6876 = vmatprep.subr.mxu0 0.0
        %6877 = vmatpush1.msra.mxu0 0.0
        %6878 = vmatprep.mubr.f32.mxu0 0.0
        %6879 = vmatmul.mubr.f32.gmra.mrb[0].mxu0 %v6812
        %v6880 = vpop.f32.mrb[0].mxu0
        %v6881 = vadd.f32 0.0, %v6880
        %v6882 = vpop.f32.mrb[0].mxu0
        %v6883 = vadd.f32 0.0, %v6882
        %6884 = vdwg.mxu0
        %v6885 = vadd.f32 %v6792, %v6881
        %v6886 = vadd.f32 %v6793, %v6883
        %s6887 = scalar_lea.vmem %s9, 640
        %v6888 = vld [vmem:[%s6887] sm:$0xff]
        %v6889 = vld [vmem:[%s6887 + $0x8] sm:$0xff]
        %v6890 = vld [vmem:[%s6887 + $0x10] sm:$0xff]
        %v6891 = vld [vmem:[%s6887 + $0x18] sm:$0xff]
        %v6892 = vld [vmem:[%s6887 + $0x20] sm:$0xff]
        %v6893 = vld [vmem:[%s6887 + $0x28] sm:$0xff]
        %v6894 = vld [vmem:[%s6887 + $0x30] sm:$0xff]
        %v6895 = vld [vmem:[%s6887 + $0x38] sm:$0xff]
        %v6896 = vld [vmem:[%s6887 + $0x40] sm:$0xff]
        %v6897 = vld [vmem:[%s6887 + $0x48] sm:$0xff]
        %v6898 = vld [vmem:[%s6887 + $0x50] sm:$0xff]
        %v6899 = vld [vmem:[%s6887 + $0x58] sm:$0xff]
        %v6900 = vld [vmem:[%s6887 + $0x60] sm:$0xff]
        %v6901 = vld [vmem:[%s6887 + $0x68] sm:$0xff]
        %v6902 = vld [vmem:[%s6887 + $0x70] sm:$0xff]
        %v6903 = vld [vmem:[%s6887 + $0x78] sm:$0xff]
        %v6904 = vrot.slane %v6423, 5
        %v6905 = vsel %vm4733, %v6904, 0
        %6907 = vmatprep.subr.mxu0 %v6889
        %6908 = vmatpush1.msra.mxu0 %v6888
        %6909 = vmatprep.subr.mxu0 %v6891
        %6910 = vmatpush1.msra.mxu0 %v6890
        %6911 = vmatprep.subr.mxu0 %v6893
        %6912 = vmatpush1.msra.mxu0 %v6892
        %6913 = vmatprep.subr.mxu0 %v6895
        %6914 = vmatpush1.msra.mxu0 %v6894
        %6915 = vmatprep.subr.mxu0 %v6897
        %6916 = vmatpush1.msra.mxu0 %v6896
        %6917 = vmatprep.subr.mxu0 %v6899
        %6918 = vmatpush1.msra.mxu0 %v6898
        %6919 = vmatprep.subr.mxu0 %v6901
        %6920 = vmatpush1.msra.mxu0 %v6900
        %6921 = vmatprep.subr.mxu0 %v6903
        %6922 = vmatpush1.msra.mxu0 %v6902
        %6923 = vmatprep.subr.mxu0 0.0
        %6924 = vmatpush1.msra.mxu0 0.0
        %6925 = vmatprep.subr.mxu0 0.0
        %6926 = vmatpush1.msra.mxu0 0.0
        %6927 = vmatprep.subr.mxu0 0.0
        %6928 = vmatpush1.msra.mxu0 0.0
        %6929 = vmatprep.subr.mxu0 0.0
        %6930 = vmatpush1.msra.mxu0 0.0
        %6931 = vmatprep.subr.mxu0 0.0
        %6932 = vmatpush1.msra.mxu0 0.0
        %6933 = vmatprep.subr.mxu0 0.0
        %6934 = vmatpush1.msra.mxu0 0.0
        %6935 = vmatprep.subr.mxu0 0.0
        %6936 = vmatpush1.msra.mxu0 0.0
        %6937 = vmatprep.subr.mxu0 0.0
        %6938 = vmatpush1.msra.mxu0 0.0
        %6939 = vmatprep.subr.mxu0 0.0
        %6940 = vmatpush1.msra.mxu0 0.0
        %6941 = vmatprep.subr.mxu0 0.0
        %6942 = vmatpush1.msra.mxu0 0.0
        %6943 = vmatprep.subr.mxu0 0.0
        %6944 = vmatpush1.msra.mxu0 0.0
        %6945 = vmatprep.subr.mxu0 0.0
        %6946 = vmatpush1.msra.mxu0 0.0
        %6947 = vmatprep.subr.mxu0 0.0
        %6948 = vmatpush1.msra.mxu0 0.0
        %6949 = vmatprep.subr.mxu0 0.0
        %6950 = vmatpush1.msra.mxu0 0.0
        %6951 = vmatprep.subr.mxu0 0.0
        %6952 = vmatpush1.msra.mxu0 0.0
        %6953 = vmatprep.subr.mxu0 0.0
        %6954 = vmatpush1.msra.mxu0 0.0
        %6955 = vmatprep.subr.mxu0 0.0
        %6956 = vmatpush1.msra.mxu0 0.0
        %6957 = vmatprep.subr.mxu0 0.0
        %6958 = vmatpush1.msra.mxu0 0.0
        %6959 = vmatprep.subr.mxu0 0.0
        %6960 = vmatpush1.msra.mxu0 0.0
        %6961 = vmatprep.subr.mxu0 0.0
        %6962 = vmatpush1.msra.mxu0 0.0
        %6963 = vmatprep.subr.mxu0 0.0
        %6964 = vmatpush1.msra.mxu0 0.0
        %6965 = vmatprep.subr.mxu0 0.0
        %6966 = vmatpush1.msra.mxu0 0.0
        %6967 = vmatprep.subr.mxu0 0.0
        %6968 = vmatpush1.msra.mxu0 0.0
        %6969 = vmatprep.subr.mxu0 0.0
        %6970 = vmatpush1.msra.mxu0 0.0
        %6971 = vmatprep.mubr.f32.mxu0 0.0
        %6972 = vmatmul.mubr.f32.gmra.mrb[0].mxu0 %v6905
        %v6973 = vpop.f32.mrb[0].mxu0
        %v6974 = vadd.f32 0.0, %v6973
        %v6975 = vpop.f32.mrb[0].mxu0
        %v6976 = vadd.f32 0.0, %v6975
        %6977 = vdwg.mxu0
        %v6978 = vadd.f32 %v6885, %v6974
        %v6979 = vadd.f32 %v6886, %v6976
        %s6980 = scalar_lea.vmem %s9, 768
        %v6981 = vld [vmem:[%s6980] sm:$0xff]
        %v6982 = vld [vmem:[%s6980 + $0x8] sm:$0xff]
        %v6983 = vld [vmem:[%s6980 + $0x10] sm:$0xff]
        %v6984 = vld [vmem:[%s6980 + $0x18] sm:$0xff]
        %v6985 = vld [vmem:[%s6980 + $0x20] sm:$0xff]
        %v6986 = vld [vmem:[%s6980 + $0x28] sm:$0xff]
        %v6987 = vld [vmem:[%s6980 + $0x30] sm:$0xff]
        %v6988 = vld [vmem:[%s6980 + $0x38] sm:$0xff]
        %v6989 = vld [vmem:[%s6980 + $0x40] sm:$0xff]
        %v6990 = vld [vmem:[%s6980 + $0x48] sm:$0xff]
        %v6991 = vld [vmem:[%s6980 + $0x50] sm:$0xff]
        %v6992 = vld [vmem:[%s6980 + $0x58] sm:$0xff]
        %v6993 = vld [vmem:[%s6980 + $0x60] sm:$0xff]
        %v6994 = vld [vmem:[%s6980 + $0x68] sm:$0xff]
        %v6995 = vld [vmem:[%s6980 + $0x70] sm:$0xff]
        %v6996 = vld [vmem:[%s6980 + $0x78] sm:$0xff]
        %v6997 = vrot.slane %v6423, 6
        %v6998 = vsel %vm4733, %v6997, 0
        %7000 = vmatprep.subr.mxu0 %v6982
        %7001 = vmatpush1.msra.mxu0 %v6981
        %7002 = vmatprep.subr.mxu0 %v6984
        %7003 = vmatpush1.msra.mxu0 %v6983
        %7004 = vmatprep.subr.mxu0 %v6986
        %7005 = vmatpush1.msra.mxu0 %v6985
        %7006 = vmatprep.subr.mxu0 %v6988
        %7007 = vmatpush1.msra.mxu0 %v6987
        %7008 = vmatprep.subr.mxu0 %v6990
        %7009 = vmatpush1.msra.mxu0 %v6989
        %7010 = vmatprep.subr.mxu0 %v6992
        %7011 = vmatpush1.msra.mxu0 %v6991
        %7012 = vmatprep.subr.mxu0 %v6994
        %7013 = vmatpush1.msra.mxu0 %v6993
        %7014 = vmatprep.subr.mxu0 %v6996
        %7015 = vmatpush1.msra.mxu0 %v6995
        %7016 = vmatprep.subr.mxu0 0.0
        %7017 = vmatpush1.msra.mxu0 0.0
        %7018 = vmatprep.subr.mxu0 0.0
        %7019 = vmatpush1.msra.mxu0 0.0
        %7020 = vmatprep.subr.mxu0 0.0
        %7021 = vmatpush1.msra.mxu0 0.0
        %7022 = vmatprep.subr.mxu0 0.0
        %7023 = vmatpush1.msra.mxu0 0.0
        %7024 = vmatprep.subr.mxu0 0.0
        %7025 = vmatpush1.msra.mxu0 0.0
        %7026 = vmatprep.subr.mxu0 0.0
        %7027 = vmatpush1.msra.mxu0 0.0
        %7028 = vmatprep.subr.mxu0 0.0
        %7029 = vmatpush1.msra.mxu0 0.0
        %7030 = vmatprep.subr.mxu0 0.0
        %7031 = vmatpush1.msra.mxu0 0.0
        %7032 = vmatprep.subr.mxu0 0.0
        %7033 = vmatpush1.msra.mxu0 0.0
        %7034 = vmatprep.subr.mxu0 0.0
        %7035 = vmatpush1.msra.mxu0 0.0
        %7036 = vmatprep.subr.mxu0 0.0
        %7037 = vmatpush1.msra.mxu0 0.0
        %7038 = vmatprep.subr.mxu0 0.0
        %7039 = vmatpush1.msra.mxu0 0.0
        %7040 = vmatprep.subr.mxu0 0.0
        %7041 = vmatpush1.msra.mxu0 0.0
        %7042 = vmatprep.subr.mxu0 0.0
        %7043 = vmatpush1.msra.mxu0 0.0
        %7044 = vmatprep.subr.mxu0 0.0
        %7045 = vmatpush1.msra.mxu0 0.0
        %7046 = vmatprep.subr.mxu0 0.0
        %7047 = vmatpush1.msra.mxu0 0.0
        %7048 = vmatprep.subr.mxu0 0.0
        %7049 = vmatpush1.msra.mxu0 0.0
        %7050 = vmatprep.subr.mxu0 0.0
        %7051 = vmatpush1.msra.mxu0 0.0
        %7052 = vmatprep.subr.mxu0 0.0
        %7053 = vmatpush1.msra.mxu0 0.0
        %7054 = vmatprep.subr.mxu0 0.0
        %7055 = vmatpush1.msra.mxu0 0.0
        %7056 = vmatprep.subr.mxu0 0.0
        %7057 = vmatpush1.msra.mxu0 0.0
        %7058 = vmatprep.subr.mxu0 0.0
        %7059 = vmatpush1.msra.mxu0 0.0
        %7060 = vmatprep.subr.mxu0 0.0
        %7061 = vmatpush1.msra.mxu0 0.0
        %7062 = vmatprep.subr.mxu0 0.0
        %7063 = vmatpush1.msra.mxu0 0.0
        %7064 = vmatprep.mubr.f32.mxu0 0.0
        %7065 = vmatmul.mubr.f32.gmra.mrb[0].mxu0 %v6998
        %v7066 = vpop.f32.mrb[0].mxu0
        %v7067 = vadd.f32 0.0, %v7066
        %v7068 = vpop.f32.mrb[0].mxu0
        %v7069 = vadd.f32 0.0, %v7068
        %7070 = vdwg.mxu0
        %v7071 = vadd.f32 %v6978, %v7067
        %v7072 = vadd.f32 %v6979, %v7069
        %s7073 = scalar_lea.vmem %s9, 896
        %v7074 = vld [vmem:[%s7073] sm:$0xff]
        %v7075 = vld [vmem:[%s7073 + $0x8] sm:$0xff]
        %v7076 = vld [vmem:[%s7073 + $0x10] sm:$0xff]
        %v7077 = vld [vmem:[%s7073 + $0x18] sm:$0xff]
        %v7078 = vld [vmem:[%s7073 + $0x20] sm:$0xff]
        %v7079 = vld [vmem:[%s7073 + $0x28] sm:$0xff]
        %v7080 = vld [vmem:[%s7073 + $0x30] sm:$0xff]
        %v7081 = vld [vmem:[%s7073 + $0x38] sm:$0xff]
        %v7082 = vld [vmem:[%s7073 + $0x40] sm:$0xff]
        %v7083 = vld [vmem:[%s7073 + $0x48] sm:$0xff]
        %v7084 = vld [vmem:[%s7073 + $0x50] sm:$0xff]
        %v7085 = vld [vmem:[%s7073 + $0x58] sm:$0xff]
        %v7086 = vld [vmem:[%s7073 + $0x60] sm:$0xff]
        %v7087 = vld [vmem:[%s7073 + $0x68] sm:$0xff]
        %v7088 = vld [vmem:[%s7073 + $0x70] sm:$0xff]
        %v7089 = vld [vmem:[%s7073 + $0x78] sm:$0xff]
        %v7090 = vrot.slane %v6423, 7
        %v7091 = vsel %vm4733, %v7090, 0
        %7093 = vmatprep.subr.mxu0 %v7075
        %7094 = vmatpush1.msra.mxu0 %v7074
        %7095 = vmatprep.subr.mxu0 %v7077
        %7096 = vmatpush1.msra.mxu0 %v7076
        %7097 = vmatprep.subr.mxu0 %v7079
        %7098 = vmatpush1.msra.mxu0 %v7078
        %7099 = vmatprep.subr.mxu0 %v7081
        %7100 = vmatpush1.msra.mxu0 %v7080
        %7101 = vmatprep.subr.mxu0 %v7083
        %7102 = vmatpush1.msra.mxu0 %v7082
        %7103 = vmatprep.subr.mxu0 %v7085
        %7104 = vmatpush1.msra.mxu0 %v7084
        %7105 = vmatprep.subr.mxu0 %v7087
        %7106 = vmatpush1.msra.mxu0 %v7086
        %7107 = vmatprep.subr.mxu0 %v7089
        %7108 = vmatpush1.msra.mxu0 %v7088
        %7109 = vmatprep.subr.mxu0 0.0
        %7110 = vmatpush1.msra.mxu0 0.0
        %7111 = vmatprep.subr.mxu0 0.0
        %7112 = vmatpush1.msra.mxu0 0.0
        %7113 = vmatprep.subr.mxu0 0.0
        %7114 = vmatpush1.msra.mxu0 0.0
        %7115 = vmatprep.subr.mxu0 0.0
        %7116 = vmatpush1.msra.mxu0 0.0
        %7117 = vmatprep.subr.mxu0 0.0
        %7118 = vmatpush1.msra.mxu0 0.0
        %7119 = vmatprep.subr.mxu0 0.0
        %7120 = vmatpush1.msra.mxu0 0.0
        %7121 = vmatprep.subr.mxu0 0.0
        %7122 = vmatpush1.msra.mxu0 0.0
        %7123 = vmatprep.subr.mxu0 0.0
        %7124 = vmatpush1.msra.mxu0 0.0
        %7125 = vmatprep.subr.mxu0 0.0
        %7126 = vmatpush1.msra.mxu0 0.0
        %7127 = vmatprep.subr.mxu0 0.0
        %7128 = vmatpush1.msra.mxu0 0.0
        %7129 = vmatprep.subr.mxu0 0.0
        %7130 = vmatpush1.msra.mxu0 0.0
        %7131 = vmatprep.subr.mxu0 0.0
        %7132 = vmatpush1.msra.mxu0 0.0
        %7133 = vmatprep.subr.mxu0 0.0
        %7134 = vmatpush1.msra.mxu0 0.0
        %7135 = vmatprep.subr.mxu0 0.0
        %7136 = vmatpush1.msra.mxu0 0.0
        %7137 = vmatprep.subr.mxu0 0.0
        %7138 = vmatpush1.msra.mxu0 0.0
        %7139 = vmatprep.subr.mxu0 0.0
        %7140 = vmatpush1.msra.mxu0 0.0
        %7141 = vmatprep.subr.mxu0 0.0
        %7142 = vmatpush1.msra.mxu0 0.0
        %7143 = vmatprep.subr.mxu0 0.0
        %7144 = vmatpush1.msra.mxu0 0.0
        %7145 = vmatprep.subr.mxu0 0.0
        %7146 = vmatpush1.msra.mxu0 0.0
        %7147 = vmatprep.subr.mxu0 0.0
        %7148 = vmatpush1.msra.mxu0 0.0
        %7149 = vmatprep.subr.mxu0 0.0
        %7150 = vmatpush1.msra.mxu0 0.0
        %7151 = vmatprep.subr.mxu0 0.0
        %7152 = vmatpush1.msra.mxu0 0.0
        %7153 = vmatprep.subr.mxu0 0.0
        %7154 = vmatpush1.msra.mxu0 0.0
        %7155 = vmatprep.subr.mxu0 0.0
        %7156 = vmatpush1.msra.mxu0 0.0
        %7157 = vmatprep.mubr.f32.mxu0 0.0
        %7158 = vmatmul.mubr.f32.gmra.mrb[0].mxu0 %v7091
        %v7159 = vpop.f32.mrb[0].mxu0
        %v7160 = vadd.f32 0.0, %v7159
        %v7161 = vpop.f32.mrb[0].mxu0
        %v7162 = vadd.f32 0.0, %v7161
        %7163 = vdwg.mxu0
        %v7164 = vadd.f32 %v7071, %v7160
        %v7165 = vadd.f32 %v7072, %v7162
        %s7166 = scalar_lea.vmem %s9, 1024
        %v7167 = vld [vmem:[%s7166] sm:$0xff]
        %v7168 = vld [vmem:[%s7166 + $0x8] sm:$0xff]
        %v7169 = vld [vmem:[%s7166 + $0x10] sm:$0xff]
        %v7170 = vld [vmem:[%s7166 + $0x18] sm:$0xff]
        %v7171 = vld [vmem:[%s7166 + $0x20] sm:$0xff]
        %v7172 = vld [vmem:[%s7166 + $0x28] sm:$0xff]
        %v7173 = vld [vmem:[%s7166 + $0x30] sm:$0xff]
        %v7174 = vld [vmem:[%s7166 + $0x38] sm:$0xff]
        %v7175 = vld [vmem:[%s7166 + $0x40] sm:$0xff]
        %v7176 = vld [vmem:[%s7166 + $0x48] sm:$0xff]
        %v7177 = vld [vmem:[%s7166 + $0x50] sm:$0xff]
        %v7178 = vld [vmem:[%s7166 + $0x58] sm:$0xff]
        %v7179 = vld [vmem:[%s7166 + $0x60] sm:$0xff]
        %v7180 = vld [vmem:[%s7166 + $0x68] sm:$0xff]
        %v7181 = vld [vmem:[%s7166 + $0x70] sm:$0xff]
        %v7182 = vld [vmem:[%s7166 + $0x78] sm:$0xff]
        %v7184 = vsel %vm4733, %v6424, 0
        %7186 = vmatprep.subr.mxu0 %v7168
        %7187 = vmatpush1.msra.mxu0 %v7167
        %7188 = vmatprep.subr.mxu0 %v7170
        %7189 = vmatpush1.msra.mxu0 %v7169
        %7190 = vmatprep.subr.mxu0 %v7172
        %7191 = vmatpush1.msra.mxu0 %v7171
        %7192 = vmatprep.subr.mxu0 %v7174
        %7193 = vmatpush1.msra.mxu0 %v7173
        %7194 = vmatprep.subr.mxu0 %v7176
        %7195 = vmatpush1.msra.mxu0 %v7175
        %7196 = vmatprep.subr.mxu0 %v7178
        %7197 = vmatpush1.msra.mxu0 %v7177
        %7198 = vmatprep.subr.mxu0 %v7180
        %7199 = vmatpush1.msra.mxu0 %v7179
        %7200 = vmatprep.subr.mxu0 %v7182
        %7201 = vmatpush1.msra.mxu0 %v7181
        %7202 = vmatprep.subr.mxu0 0.0
        %7203 = vmatpush1.msra.mxu0 0.0
        %7204 = vmatprep.subr.mxu0 0.0
        %7205 = vmatpush1.msra.mxu0 0.0
        %7206 = vmatprep.subr.mxu0 0.0
        %7207 = vmatpush1.msra.mxu0 0.0
        %7208 = vmatprep.subr.mxu0 0.0
        %7209 = vmatpush1.msra.mxu0 0.0
        %7210 = vmatprep.subr.mxu0 0.0
        %7211 = vmatpush1.msra.mxu0 0.0
        %7212 = vmatprep.subr.mxu0 0.0
        %7213 = vmatpush1.msra.mxu0 0.0
        %7214 = vmatprep.subr.mxu0 0.0
        %7215 = vmatpush1.msra.mxu0 0.0
        %7216 = vmatprep.subr.mxu0 0.0
        %7217 = vmatpush1.msra.mxu0 0.0
        %7218 = vmatprep.subr.mxu0 0.0
        %7219 = vmatpush1.msra.mxu0 0.0
        %7220 = vmatprep.subr.mxu0 0.0
        %7221 = vmatpush1.msra.mxu0 0.0
        %7222 = vmatprep.subr.mxu0 0.0
        %7223 = vmatpush1.msra.mxu0 0.0
        %7224 = vmatprep.subr.mxu0 0.0
        %7225 = vmatpush1.msra.mxu0 0.0
        %7226 = vmatprep.subr.mxu0 0.0
        %7227 = vmatpush1.msra.mxu0 0.0
        %7228 = vmatprep.subr.mxu0 0.0
        %7229 = vmatpush1.msra.mxu0 0.0
        %7230 = vmatprep.subr.mxu0 0.0
        %7231 = vmatpush1.msra.mxu0 0.0
        %7232 = vmatprep.subr.mxu0 0.0
        %7233 = vmatpush1.msra.mxu0 0.0
        %7234 = vmatprep.subr.mxu0 0.0
        %7235 = vmatpush1.msra.mxu0 0.0
        %7236 = vmatprep.subr.mxu0 0.0
        %7237 = vmatpush1.msra.mxu0 0.0
        %7238 = vmatprep.subr.mxu0 0.0
        %7239 = vmatpush1.msra.mxu0 0.0
        %7240 = vmatprep.subr.mxu0 0.0
        %7241 = vmatpush1.msra.mxu0 0.0
        %7242 = vmatprep.subr.mxu0 0.0
        %7243 = vmatpush1.msra.mxu0 0.0
        %7244 = vmatprep.subr.mxu0 0.0
        %7245 = vmatpush1.msra.mxu0 0.0
        %7246 = vmatprep.subr.mxu0 0.0
        %7247 = vmatpush1.msra.mxu0 0.0
        %7248 = vmatprep.subr.mxu0 0.0
        %7249 = vmatpush1.msra.mxu0 0.0
        %7250 = vmatprep.mubr.f32.mxu0 0.0
        %7251 = vmatmul.mubr.f32.gmra.mrb[0].mxu0 %v7184
        %v7252 = vpop.f32.mrb[0].mxu0
        %v7253 = vadd.f32 0.0, %v7252
        %v7254 = vpop.f32.mrb[0].mxu0
        %v7255 = vadd.f32 0.0, %v7254
        %7256 = vdwg.mxu0
        %v7257 = vadd.f32 %v7164, %v7253
        %v7258 = vadd.f32 %v7165, %v7255
        %s7259 = scalar_lea.vmem %s9, 1152
        %v7260 = vld [vmem:[%s7259] sm:$0xff]
        %v7261 = vld [vmem:[%s7259 + $0x8] sm:$0xff]
        %v7262 = vld [vmem:[%s7259 + $0x10] sm:$0xff]
        %v7263 = vld [vmem:[%s7259 + $0x18] sm:$0xff]
        %v7264 = vld [vmem:[%s7259 + $0x20] sm:$0xff]
        %v7265 = vld [vmem:[%s7259 + $0x28] sm:$0xff]
        %v7266 = vld [vmem:[%s7259 + $0x30] sm:$0xff]
        %v7267 = vld [vmem:[%s7259 + $0x38] sm:$0xff]
        %v7268 = vld [vmem:[%s7259 + $0x40] sm:$0xff]
        %v7269 = vld [vmem:[%s7259 + $0x48] sm:$0xff]
        %v7270 = vld [vmem:[%s7259 + $0x50] sm:$0xff]
        %v7271 = vld [vmem:[%s7259 + $0x58] sm:$0xff]
        %v7272 = vld [vmem:[%s7259 + $0x60] sm:$0xff]
        %v7273 = vld [vmem:[%s7259 + $0x68] sm:$0xff]
        %v7274 = vld [vmem:[%s7259 + $0x70] sm:$0xff]
        %v7275 = vld [vmem:[%s7259 + $0x78] sm:$0xff]
        %v7276 = vrot.slane %v6424, 1
        %v7277 = vsel %vm4733, %v7276, 0
        %7279 = vmatprep.subr.mxu0 %v7261
        %7280 = vmatpush1.msra.mxu0 %v7260
        %7281 = vmatprep.subr.mxu0 %v7263
        %7282 = vmatpush1.msra.mxu0 %v7262
        %7283 = vmatprep.subr.mxu0 %v7265
        %7284 = vmatpush1.msra.mxu0 %v7264
        %7285 = vmatprep.subr.mxu0 %v7267
        %7286 = vmatpush1.msra.mxu0 %v7266
        %7287 = vmatprep.subr.mxu0 %v7269
        %7288 = vmatpush1.msra.mxu0 %v7268
        %7289 = vmatprep.subr.mxu0 %v7271
        %7290 = vmatpush1.msra.mxu0 %v7270
        %7291 = vmatprep.subr.mxu0 %v7273
        %7292 = vmatpush1.msra.mxu0 %v7272
        %7293 = vmatprep.subr.mxu0 %v7275
        %7294 = vmatpush1.msra.mxu0 %v7274
        %7295 = vmatprep.subr.mxu0 0.0
        %7296 = vmatpush1.msra.mxu0 0.0
        %7297 = vmatprep.subr.mxu0 0.0
        %7298 = vmatpush1.msra.mxu0 0.0
        %7299 = vmatprep.subr.mxu0 0.0
        %7300 = vmatpush1.msra.mxu0 0.0
        %7301 = vmatprep.subr.mxu0 0.0
        %7302 = vmatpush1.msra.mxu0 0.0
        %7303 = vmatprep.subr.mxu0 0.0
        %7304 = vmatpush1.msra.mxu0 0.0
        %7305 = vmatprep.subr.mxu0 0.0
        %7306 = vmatpush1.msra.mxu0 0.0
        %7307 = vmatprep.subr.mxu0 0.0
        %7308 = vmatpush1.msra.mxu0 0.0
        %7309 = vmatprep.subr.mxu0 0.0
        %7310 = vmatpush1.msra.mxu0 0.0
        %7311 = vmatprep.subr.mxu0 0.0
        %7312 = vmatpush1.msra.mxu0 0.0
        %7313 = vmatprep.subr.mxu0 0.0
        %7314 = vmatpush1.msra.mxu0 0.0
        %7315 = vmatprep.subr.mxu0 0.0
        %7316 = vmatpush1.msra.mxu0 0.0
        %7317 = vmatprep.subr.mxu0 0.0
        %7318 = vmatpush1.msra.mxu0 0.0
        %7319 = vmatprep.subr.mxu0 0.0
        %7320 = vmatpush1.msra.mxu0 0.0
        %7321 = vmatprep.subr.mxu0 0.0
        %7322 = vmatpush1.msra.mxu0 0.0
        %7323 = vmatprep.subr.mxu0 0.0
        %7324 = vmatpush1.msra.mxu0 0.0
        %7325 = vmatprep.subr.mxu0 0.0
        %7326 = vmatpush1.msra.mxu0 0.0
        %7327 = vmatprep.subr.mxu0 0.0
        %7328 = vmatpush1.msra.mxu0 0.0
        %7329 = vmatprep.subr.mxu0 0.0
        %7330 = vmatpush1.msra.mxu0 0.0
        %7331 = vmatprep.subr.mxu0 0.0
        %7332 = vmatpush1.msra.mxu0 0.0
        %7333 = vmatprep.subr.mxu0 0.0
        %7334 = vmatpush1.msra.mxu0 0.0
        %7335 = vmatprep.subr.mxu0 0.0
        %7336 = vmatpush1.msra.mxu0 0.0
        %7337 = vmatprep.subr.mxu0 0.0
        %7338 = vmatpush1.msra.mxu0 0.0
        %7339 = vmatprep.subr.mxu0 0.0
        %7340 = vmatpush1.msra.mxu0 0.0
        %7341 = vmatprep.subr.mxu0 0.0
        %7342 = vmatpush1.msra.mxu0 0.0
        %7343 = vmatprep.mubr.f32.mxu0 0.0
        %7344 = vmatmul.mubr.f32.gmra.mrb[0].mxu0 %v7277
        %v7345 = vpop.f32.mrb[0].mxu0
        %v7346 = vadd.f32 0.0, %v7345
        %v7347 = vpop.f32.mrb[0].mxu0
        %v7348 = vadd.f32 0.0, %v7347
        %7349 = vdwg.mxu0
        %v7350 = vadd.f32 %v7257, %v7346
        %v7351 = vadd.f32 %v7258, %v7348
        %s7352 = scalar_lea.vmem %s9, 1280
        %v7353 = vld [vmem:[%s7352] sm:$0xff]
        %v7354 = vld [vmem:[%s7352 + $0x8] sm:$0xff]
        %v7355 = vld [vmem:[%s7352 + $0x10] sm:$0xff]
        %v7356 = vld [vmem:[%s7352 + $0x18] sm:$0xff]
        %v7357 = vld [vmem:[%s7352 + $0x20] sm:$0xff]
        %v7358 = vld [vmem:[%s7352 + $0x28] sm:$0xff]
        %v7359 = vld [vmem:[%s7352 + $0x30] sm:$0xff]
        %v7360 = vld [vmem:[%s7352 + $0x38] sm:$0xff]
        %v7361 = vld [vmem:[%s7352 + $0x40] sm:$0xff]
        %v7362 = vld [vmem:[%s7352 + $0x48] sm:$0xff]
        %v7363 = vld [vmem:[%s7352 + $0x50] sm:$0xff]
        %v7364 = vld [vmem:[%s7352 + $0x58] sm:$0xff]
        %v7365 = vld [vmem:[%s7352 + $0x60] sm:$0xff]
        %v7366 = vld [vmem:[%s7352 + $0x68] sm:$0xff]
        %v7367 = vld [vmem:[%s7352 + $0x70] sm:$0xff]
        %v7368 = vld [vmem:[%s7352 + $0x78] sm:$0xff]
        %v7369 = vrot.slane %v6424, 2
        %v7370 = vsel %vm4733, %v7369, 0
        %7372 = vmatprep.subr.mxu0 %v7354
        %7373 = vmatpush1.msra.mxu0 %v7353
        %7374 = vmatprep.subr.mxu0 %v7356
        %7375 = vmatpush1.msra.mxu0 %v7355
        %7376 = vmatprep.subr.mxu0 %v7358
        %7377 = vmatpush1.msra.mxu0 %v7357
        %7378 = vmatprep.subr.mxu0 %v7360
        %7379 = vmatpush1.msra.mxu0 %v7359
        %7380 = vmatprep.subr.mxu0 %v7362
        %7381 = vmatpush1.msra.mxu0 %v7361
        %7382 = vmatprep.subr.mxu0 %v7364
        %7383 = vmatpush1.msra.mxu0 %v7363
        %7384 = vmatprep.subr.mxu0 %v7366
        %7385 = vmatpush1.msra.mxu0 %v7365
        %7386 = vmatprep.subr.mxu0 %v7368
        %7387 = vmatpush1.msra.mxu0 %v7367
        %7388 = vmatprep.subr.mxu0 0.0
        %7389 = vmatpush1.msra.mxu0 0.0
        %7390 = vmatprep.subr.mxu0 0.0
        %7391 = vmatpush1.msra.mxu0 0.0
        %7392 = vmatprep.subr.mxu0 0.0
        %7393 = vmatpush1.msra.mxu0 0.0
        %7394 = vmatprep.subr.mxu0 0.0
        %7395 = vmatpush1.msra.mxu0 0.0
        %7396 = vmatprep.subr.mxu0 0.0
        %7397 = vmatpush1.msra.mxu0 0.0
        %7398 = vmatprep.subr.mxu0 0.0
        %7399 = vmatpush1.msra.mxu0 0.0
        %7400 = vmatprep.subr.mxu0 0.0
        %7401 = vmatpush1.msra.mxu0 0.0
        %7402 = vmatprep.subr.mxu0 0.0
        %7403 = vmatpush1.msra.mxu0 0.0
        %7404 = vmatprep.subr.mxu0 0.0
        %7405 = vmatpush1.msra.mxu0 0.0
        %7406 = vmatprep.subr.mxu0 0.0
        %7407 = vmatpush1.msra.mxu0 0.0
        %7408 = vmatprep.subr.mxu0 0.0
        %7409 = vmatpush1.msra.mxu0 0.0
        %7410 = vmatprep.subr.mxu0 0.0
        %7411 = vmatpush1.msra.mxu0 0.0
        %7412 = vmatprep.subr.mxu0 0.0
        %7413 = vmatpush1.msra.mxu0 0.0
        %7414 = vmatprep.subr.mxu0 0.0
        %7415 = vmatpush1.msra.mxu0 0.0
        %7416 = vmatprep.subr.mxu0 0.0
        %7417 = vmatpush1.msra.mxu0 0.0
        %7418 = vmatprep.subr.mxu0 0.0
        %7419 = vmatpush1.msra.mxu0 0.0
        %7420 = vmatprep.subr.mxu0 0.0
        %7421 = vmatpush1.msra.mxu0 0.0
        %7422 = vmatprep.subr.mxu0 0.0
        %7423 = vmatpush1.msra.mxu0 0.0
        %7424 = vmatprep.subr.mxu0 0.0
        %7425 = vmatpush1.msra.mxu0 0.0
        %7426 = vmatprep.subr.mxu0 0.0
        %7427 = vmatpush1.msra.mxu0 0.0
        %7428 = vmatprep.subr.mxu0 0.0
        %7429 = vmatpush1.msra.mxu0 0.0
        %7430 = vmatprep.subr.mxu0 0.0
        %7431 = vmatpush1.msra.mxu0 0.0
        %7432 = vmatprep.subr.mxu0 0.0
        %7433 = vmatpush1.msra.mxu0 0.0
        %7434 = vmatprep.subr.mxu0 0.0
        %7435 = vmatpush1.msra.mxu0 0.0
        %7436 = vmatprep.mubr.f32.mxu0 0.0
        %7437 = vmatmul.mubr.f32.gmra.mrb[0].mxu0 %v7370
        %v7438 = vpop.f32.mrb[0].mxu0
        %v7439 = vadd.f32 0.0, %v7438
        %v7440 = vpop.f32.mrb[0].mxu0
        %v7441 = vadd.f32 0.0, %v7440
        %7442 = vdwg.mxu0
        %v7443 = vadd.f32 %v7350, %v7439
        %v7444 = vadd.f32 %v7351, %v7441
        %s7445 = scalar_lea.vmem %s9, 1408
        %v7446 = vld [vmem:[%s7445] sm:$0xff]
        %v7447 = vld [vmem:[%s7445 + $0x8] sm:$0xff]
        %v7448 = vld [vmem:[%s7445 + $0x10] sm:$0xff]
        %v7449 = vld [vmem:[%s7445 + $0x18] sm:$0xff]
        %v7450 = vld [vmem:[%s7445 + $0x20] sm:$0xff]
        %v7451 = vld [vmem:[%s7445 + $0x28] sm:$0xff]
        %v7452 = vld [vmem:[%s7445 + $0x30] sm:$0xff]
        %v7453 = vld [vmem:[%s7445 + $0x38] sm:$0xff]
        %v7454 = vld [vmem:[%s7445 + $0x40] sm:$0xff]
        %v7455 = vld [vmem:[%s7445 + $0x48] sm:$0xff]
        %v7456 = vld [vmem:[%s7445 + $0x50] sm:$0xff]
        %v7457 = vld [vmem:[%s7445 + $0x58] sm:$0xff]
        %v7458 = vld [vmem:[%s7445 + $0x60] sm:$0xff]
        %v7459 = vld [vmem:[%s7445 + $0x68] sm:$0xff]
        %v7460 = vld [vmem:[%s7445 + $0x70] sm:$0xff]
        %v7461 = vld [vmem:[%s7445 + $0x78] sm:$0xff]
        %v7462 = vrot.slane %v6424, 3
        %v7463 = vsel %vm4733, %v7462, 0
        %7465 = vmatprep.subr.mxu0 %v7447
        %7466 = vmatpush1.msra.mxu0 %v7446
        %7467 = vmatprep.subr.mxu0 %v7449
        %7468 = vmatpush1.msra.mxu0 %v7448
        %7469 = vmatprep.subr.mxu0 %v7451
        %7470 = vmatpush1.msra.mxu0 %v7450
        %7471 = vmatprep.subr.mxu0 %v7453
        %7472 = vmatpush1.msra.mxu0 %v7452
        %7473 = vmatprep.subr.mxu0 %v7455
        %7474 = vmatpush1.msra.mxu0 %v7454
        %7475 = vmatprep.subr.mxu0 %v7457
        %7476 = vmatpush1.msra.mxu0 %v7456
        %7477 = vmatprep.subr.mxu0 %v7459
        %7478 = vmatpush1.msra.mxu0 %v7458
        %7479 = vmatprep.subr.mxu0 %v7461
        %7480 = vmatpush1.msra.mxu0 %v7460
        %7481 = vmatprep.subr.mxu0 0.0
        %7482 = vmatpush1.msra.mxu0 0.0
        %7483 = vmatprep.subr.mxu0 0.0
        %7484 = vmatpush1.msra.mxu0 0.0
        %7485 = vmatprep.subr.mxu0 0.0
        %7486 = vmatpush1.msra.mxu0 0.0
        %7487 = vmatprep.subr.mxu0 0.0
        %7488 = vmatpush1.msra.mxu0 0.0
        %7489 = vmatprep.subr.mxu0 0.0
        %7490 = vmatpush1.msra.mxu0 0.0
        %7491 = vmatprep.subr.mxu0 0.0
        %7492 = vmatpush1.msra.mxu0 0.0
        %7493 = vmatprep.subr.mxu0 0.0
        %7494 = vmatpush1.msra.mxu0 0.0
        %7495 = vmatprep.subr.mxu0 0.0
        %7496 = vmatpush1.msra.mxu0 0.0
        %7497 = vmatprep.subr.mxu0 0.0
        %7498 = vmatpush1.msra.mxu0 0.0
        %7499 = vmatprep.subr.mxu0 0.0
        %7500 = vmatpush1.msra.mxu0 0.0
        %7501 = vmatprep.subr.mxu0 0.0
        %7502 = vmatpush1.msra.mxu0 0.0
        %7503 = vmatprep.subr.mxu0 0.0
        %7504 = vmatpush1.msra.mxu0 0.0
        %7505 = vmatprep.subr.mxu0 0.0
        %7506 = vmatpush1.msra.mxu0 0.0
        %7507 = vmatprep.subr.mxu0 0.0
        %7508 = vmatpush1.msra.mxu0 0.0
        %7509 = vmatprep.subr.mxu0 0.0
        %7510 = vmatpush1.msra.mxu0 0.0
        %7511 = vmatprep.subr.mxu0 0.0
        %7512 = vmatpush1.msra.mxu0 0.0
        %7513 = vmatprep.subr.mxu0 0.0
        %7514 = vmatpush1.msra.mxu0 0.0
        %7515 = vmatprep.subr.mxu0 0.0
        %7516 = vmatpush1.msra.mxu0 0.0
        %7517 = vmatprep.subr.mxu0 0.0
        %7518 = vmatpush1.msra.mxu0 0.0
        %7519 = vmatprep.subr.mxu0 0.0
        %7520 = vmatpush1.msra.mxu0 0.0
        %7521 = vmatprep.subr.mxu0 0.0
        %7522 = vmatpush1.msra.mxu0 0.0
        %7523 = vmatprep.subr.mxu0 0.0
        %7524 = vmatpush1.msra.mxu0 0.0
        %7525 = vmatprep.subr.mxu0 0.0
        %7526 = vmatpush1.msra.mxu0 0.0
        %7527 = vmatprep.subr.mxu0 0.0
        %7528 = vmatpush1.msra.mxu0 0.0
        %7529 = vmatprep.mubr.f32.mxu0 0.0
        %7530 = vmatmul.mubr.f32.gmra.mrb[0].mxu0 %v7463
        %v7531 = vpop.f32.mrb[0].mxu0
        %v7532 = vadd.f32 0.0, %v7531
        %v7533 = vpop.f32.mrb[0].mxu0
        %v7534 = vadd.f32 0.0, %v7533
        %7535 = vdwg.mxu0
        %v7536 = vadd.f32 %v7443, %v7532
        %v7537 = vadd.f32 %v7444, %v7534
        %s7538 = scalar_lea.vmem %s9, 1536
        %v7539 = vld [vmem:[%s7538] sm:$0xff]
        %v7540 = vld [vmem:[%s7538 + $0x8] sm:$0xff]
        %v7541 = vld [vmem:[%s7538 + $0x10] sm:$0xff]
        %v7542 = vld [vmem:[%s7538 + $0x18] sm:$0xff]
        %v7543 = vld [vmem:[%s7538 + $0x20] sm:$0xff]
        %v7544 = vld [vmem:[%s7538 + $0x28] sm:$0xff]
        %v7545 = vld [vmem:[%s7538 + $0x30] sm:$0xff]
        %v7546 = vld [vmem:[%s7538 + $0x38] sm:$0xff]
        %v7547 = vld [vmem:[%s7538 + $0x40] sm:$0xff]
        %v7548 = vld [vmem:[%s7538 + $0x48] sm:$0xff]
        %v7549 = vld [vmem:[%s7538 + $0x50] sm:$0xff]
        %v7550 = vld [vmem:[%s7538 + $0x58] sm:$0xff]
        %v7551 = vld [vmem:[%s7538 + $0x60] sm:$0xff]
        %v7552 = vld [vmem:[%s7538 + $0x68] sm:$0xff]
        %v7553 = vld [vmem:[%s7538 + $0x70] sm:$0xff]
        %v7554 = vld [vmem:[%s7538 + $0x78] sm:$0xff]
        %v7555 = vrot.slane %v6424, 4
        %v7556 = vsel %vm4733, %v7555, 0
        %7558 = vmatprep.subr.mxu0 %v7540
        %7559 = vmatpush1.msra.mxu0 %v7539
        %7560 = vmatprep.subr.mxu0 %v7542
        %7561 = vmatpush1.msra.mxu0 %v7541
        %7562 = vmatprep.subr.mxu0 %v7544
        %7563 = vmatpush1.msra.mxu0 %v7543
        %7564 = vmatprep.subr.mxu0 %v7546
        %7565 = vmatpush1.msra.mxu0 %v7545
        %7566 = vmatprep.subr.mxu0 %v7548
        %7567 = vmatpush1.msra.mxu0 %v7547
        %7568 = vmatprep.subr.mxu0 %v7550
        %7569 = vmatpush1.msra.mxu0 %v7549
        %7570 = vmatprep.subr.mxu0 %v7552
        %7571 = vmatpush1.msra.mxu0 %v7551
        %7572 = vmatprep.subr.mxu0 %v7554
        %7573 = vmatpush1.msra.mxu0 %v7553
        %7574 = vmatprep.subr.mxu0 0.0
        %7575 = vmatpush1.msra.mxu0 0.0
        %7576 = vmatprep.subr.mxu0 0.0
        %7577 = vmatpush1.msra.mxu0 0.0
        %7578 = vmatprep.subr.mxu0 0.0
        %7579 = vmatpush1.msra.mxu0 0.0
        %7580 = vmatprep.subr.mxu0 0.0
        %7581 = vmatpush1.msra.mxu0 0.0
        %7582 = vmatprep.subr.mxu0 0.0
        %7583 = vmatpush1.msra.mxu0 0.0
        %7584 = vmatprep.subr.mxu0 0.0
        %7585 = vmatpush1.msra.mxu0 0.0
        %7586 = vmatprep.subr.mxu0 0.0
        %7587 = vmatpush1.msra.mxu0 0.0
        %7588 = vmatprep.subr.mxu0 0.0
        %7589 = vmatpush1.msra.mxu0 0.0
        %7590 = vmatprep.subr.mxu0 0.0
        %7591 = vmatpush1.msra.mxu0 0.0
        %7592 = vmatprep.subr.mxu0 0.0
        %7593 = vmatpush1.msra.mxu0 0.0
        %7594 = vmatprep.subr.mxu0 0.0
        %7595 = vmatpush1.msra.mxu0 0.0
        %7596 = vmatprep.subr.mxu0 0.0
        %7597 = vmatpush1.msra.mxu0 0.0
        %7598 = vmatprep.subr.mxu0 0.0
        %7599 = vmatpush1.msra.mxu0 0.0
        %7600 = vmatprep.subr.mxu0 0.0
        %7601 = vmatpush1.msra.mxu0 0.0
        %7602 = vmatprep.subr.mxu0 0.0
        %7603 = vmatpush1.msra.mxu0 0.0
        %7604 = vmatprep.subr.mxu0 0.0
        %7605 = vmatpush1.msra.mxu0 0.0
        %7606 = vmatprep.subr.mxu0 0.0
        %7607 = vmatpush1.msra.mxu0 0.0
        %7608 = vmatprep.subr.mxu0 0.0
        %7609 = vmatpush1.msra.mxu0 0.0
        %7610 = vmatprep.subr.mxu0 0.0
        %7611 = vmatpush1.msra.mxu0 0.0
        %7612 = vmatprep.subr.mxu0 0.0
        %7613 = vmatpush1.msra.mxu0 0.0
        %7614 = vmatprep.subr.mxu0 0.0
        %7615 = vmatpush1.msra.mxu0 0.0
        %7616 = vmatprep.subr.mxu0 0.0
        %7617 = vmatpush1.msra.mxu0 0.0
        %7618 = vmatprep.subr.mxu0 0.0
        %7619 = vmatpush1.msra.mxu0 0.0
        %7620 = vmatprep.subr.mxu0 0.0
        %7621 = vmatpush1.msra.mxu0 0.0
        %7622 = vmatprep.mubr.f32.mxu0 0.0
        %7623 = vmatmul.mubr.f32.gmra.mrb[0].mxu0 %v7556
        %v7624 = vpop.f32.mrb[0].mxu0
        %v7625 = vadd.f32 0.0, %v7624
        %v7626 = vpop.f32.mrb[0].mxu0
        %v7627 = vadd.f32 0.0, %v7626
        %7628 = vdwg.mxu0
        %v7629 = vadd.f32 %v7536, %v7625
        %v7630 = vadd.f32 %v7537, %v7627
        %s7631 = scalar_lea.vmem %s9, 1664
        %v7632 = vld [vmem:[%s7631] sm:$0xff]
        %v7633 = vld [vmem:[%s7631 + $0x8] sm:$0xff]
        %v7634 = vld [vmem:[%s7631 + $0x10] sm:$0xff]
        %v7635 = vld [vmem:[%s7631 + $0x18] sm:$0xff]
        %v7636 = vld [vmem:[%s7631 + $0x20] sm:$0xff]
        %v7637 = vld [vmem:[%s7631 + $0x28] sm:$0xff]
        %v7638 = vld [vmem:[%s7631 + $0x30] sm:$0xff]
        %v7639 = vld [vmem:[%s7631 + $0x38] sm:$0xff]
        %v7640 = vld [vmem:[%s7631 + $0x40] sm:$0xff]
        %v7641 = vld [vmem:[%s7631 + $0x48] sm:$0xff]
        %v7642 = vld [vmem:[%s7631 + $0x50] sm:$0xff]
        %v7643 = vld [vmem:[%s7631 + $0x58] sm:$0xff]
        %v7644 = vld [vmem:[%s7631 + $0x60] sm:$0xff]
        %v7645 = vld [vmem:[%s7631 + $0x68] sm:$0xff]
        %v7646 = vld [vmem:[%s7631 + $0x70] sm:$0xff]
        %v7647 = vld [vmem:[%s7631 + $0x78] sm:$0xff]
        %v7648 = vrot.slane %v6424, 5
        %v7649 = vsel %vm4733, %v7648, 0
        %7651 = vmatprep.subr.mxu0 %v7633
        %7652 = vmatpush1.msra.mxu0 %v7632
        %7653 = vmatprep.subr.mxu0 %v7635
        %7654 = vmatpush1.msra.mxu0 %v7634
        %7655 = vmatprep.subr.mxu0 %v7637
        %7656 = vmatpush1.msra.mxu0 %v7636
        %7657 = vmatprep.subr.mxu0 %v7639
        %7658 = vmatpush1.msra.mxu0 %v7638
        %7659 = vmatprep.subr.mxu0 %v7641
        %7660 = vmatpush1.msra.mxu0 %v7640
        %7661 = vmatprep.subr.mxu0 %v7643
        %7662 = vmatpush1.msra.mxu0 %v7642
        %7663 = vmatprep.subr.mxu0 %v7645
        %7664 = vmatpush1.msra.mxu0 %v7644
        %7665 = vmatprep.subr.mxu0 %v7647
        %7666 = vmatpush1.msra.mxu0 %v7646
        %7667 = vmatprep.subr.mxu0 0.0
        %7668 = vmatpush1.msra.mxu0 0.0
        %7669 = vmatprep.subr.mxu0 0.0
        %7670 = vmatpush1.msra.mxu0 0.0
        %7671 = vmatprep.subr.mxu0 0.0
        %7672 = vmatpush1.msra.mxu0 0.0
        %7673 = vmatprep.subr.mxu0 0.0
        %7674 = vmatpush1.msra.mxu0 0.0
        %7675 = vmatprep.subr.mxu0 0.0
        %7676 = vmatpush1.msra.mxu0 0.0
        %7677 = vmatprep.subr.mxu0 0.0
        %7678 = vmatpush1.msra.mxu0 0.0
        %7679 = vmatprep.subr.mxu0 0.0
        %7680 = vmatpush1.msra.mxu0 0.0
        %7681 = vmatprep.subr.mxu0 0.0
        %7682 = vmatpush1.msra.mxu0 0.0
        %7683 = vmatprep.subr.mxu0 0.0
        %7684 = vmatpush1.msra.mxu0 0.0
        %7685 = vmatprep.subr.mxu0 0.0
        %7686 = vmatpush1.msra.mxu0 0.0
        %7687 = vmatprep.subr.mxu0 0.0
        %7688 = vmatpush1.msra.mxu0 0.0
        %7689 = vmatprep.subr.mxu0 0.0
        %7690 = vmatpush1.msra.mxu0 0.0
        %7691 = vmatprep.subr.mxu0 0.0
        %7692 = vmatpush1.msra.mxu0 0.0
        %7693 = vmatprep.subr.mxu0 0.0
        %7694 = vmatpush1.msra.mxu0 0.0
        %7695 = vmatprep.subr.mxu0 0.0
        %7696 = vmatpush1.msra.mxu0 0.0
        %7697 = vmatprep.subr.mxu0 0.0
        %7698 = vmatpush1.msra.mxu0 0.0
        %7699 = vmatprep.subr.mxu0 0.0
        %7700 = vmatpush1.msra.mxu0 0.0
        %7701 = vmatprep.subr.mxu0 0.0
        %7702 = vmatpush1.msra.mxu0 0.0
        %7703 = vmatprep.subr.mxu0 0.0
        %7704 = vmatpush1.msra.mxu0 0.0
        %7705 = vmatprep.subr.mxu0 0.0
        %7706 = vmatpush1.msra.mxu0 0.0
        %7707 = vmatprep.subr.mxu0 0.0
        %7708 = vmatpush1.msra.mxu0 0.0
        %7709 = vmatprep.subr.mxu0 0.0
        %7710 = vmatpush1.msra.mxu0 0.0
        %7711 = vmatprep.subr.mxu0 0.0
        %7712 = vmatpush1.msra.mxu0 0.0
        %7713 = vmatprep.subr.mxu0 0.0
        %7714 = vmatpush1.msra.mxu0 0.0
        %7715 = vmatprep.mubr.f32.mxu0 0.0
        %7716 = vmatmul.mubr.f32.gmra.mrb[0].mxu0 %v7649
        %v7717 = vpop.f32.mrb[0].mxu0
        %v7718 = vadd.f32 0.0, %v7717
        %v7719 = vpop.f32.mrb[0].mxu0
        %v7720 = vadd.f32 0.0, %v7719
        %7721 = vdwg.mxu0
        %v7722 = vadd.f32 %v7629, %v7718
        %v7723 = vadd.f32 %v7630, %v7720
        %s7724 = scalar_lea.vmem %s9, 1792
        %v7725 = vld [vmem:[%s7724] sm:$0xff]
        %v7726 = vld [vmem:[%s7724 + $0x8] sm:$0xff]
        %v7727 = vld [vmem:[%s7724 + $0x10] sm:$0xff]
        %v7728 = vld [vmem:[%s7724 + $0x18] sm:$0xff]
        %v7729 = vld [vmem:[%s7724 + $0x20] sm:$0xff]
        %v7730 = vld [vmem:[%s7724 + $0x28] sm:$0xff]
        %v7731 = vld [vmem:[%s7724 + $0x30] sm:$0xff]
        %v7732 = vld [vmem:[%s7724 + $0x38] sm:$0xff]
        %v7733 = vld [vmem:[%s7724 + $0x40] sm:$0xff]
        %v7734 = vld [vmem:[%s7724 + $0x48] sm:$0xff]
        %v7735 = vld [vmem:[%s7724 + $0x50] sm:$0xff]
        %v7736 = vld [vmem:[%s7724 + $0x58] sm:$0xff]
        %v7737 = vld [vmem:[%s7724 + $0x60] sm:$0xff]
        %v7738 = vld [vmem:[%s7724 + $0x68] sm:$0xff]
        %v7739 = vld [vmem:[%s7724 + $0x70] sm:$0xff]
        %v7740 = vld [vmem:[%s7724 + $0x78] sm:$0xff]
        %v7741 = vrot.slane %v6424, 6
        %v7742 = vsel %vm4733, %v7741, 0
        %7744 = vmatprep.subr.mxu0 %v7726
        %7745 = vmatpush1.msra.mxu0 %v7725
        %7746 = vmatprep.subr.mxu0 %v7728
        %7747 = vmatpush1.msra.mxu0 %v7727
        %7748 = vmatprep.subr.mxu0 %v7730
        %7749 = vmatpush1.msra.mxu0 %v7729
        %7750 = vmatprep.subr.mxu0 %v7732
        %7751 = vmatpush1.msra.mxu0 %v7731
        %7752 = vmatprep.subr.mxu0 %v7734
        %7753 = vmatpush1.msra.mxu0 %v7733
        %7754 = vmatprep.subr.mxu0 %v7736
        %7755 = vmatpush1.msra.mxu0 %v7735
        %7756 = vmatprep.subr.mxu0 %v7738
        %7757 = vmatpush1.msra.mxu0 %v7737
        %7758 = vmatprep.subr.mxu0 %v7740
        %7759 = vmatpush1.msra.mxu0 %v7739
        %7760 = vmatprep.subr.mxu0 0.0
        %7761 = vmatpush1.msra.mxu0 0.0
        %7762 = vmatprep.subr.mxu0 0.0
        %7763 = vmatpush1.msra.mxu0 0.0
        %7764 = vmatprep.subr.mxu0 0.0
        %7765 = vmatpush1.msra.mxu0 0.0
        %7766 = vmatprep.subr.mxu0 0.0
        %7767 = vmatpush1.msra.mxu0 0.0
        %7768 = vmatprep.subr.mxu0 0.0
        %7769 = vmatpush1.msra.mxu0 0.0
        %7770 = vmatprep.subr.mxu0 0.0
        %7771 = vmatpush1.msra.mxu0 0.0
        %7772 = vmatprep.subr.mxu0 0.0
        %7773 = vmatpush1.msra.mxu0 0.0
        %7774 = vmatprep.subr.mxu0 0.0
        %7775 = vmatpush1.msra.mxu0 0.0
        %7776 = vmatprep.subr.mxu0 0.0
        %7777 = vmatpush1.msra.mxu0 0.0
        %7778 = vmatprep.subr.mxu0 0.0
        %7779 = vmatpush1.msra.mxu0 0.0
        %7780 = vmatprep.subr.mxu0 0.0
        %7781 = vmatpush1.msra.mxu0 0.0
        %7782 = vmatprep.subr.mxu0 0.0
        %7783 = vmatpush1.msra.mxu0 0.0
        %7784 = vmatprep.subr.mxu0 0.0
        %7785 = vmatpush1.msra.mxu0 0.0
        %7786 = vmatprep.subr.mxu0 0.0
        %7787 = vmatpush1.msra.mxu0 0.0
        %7788 = vmatprep.subr.mxu0 0.0
        %7789 = vmatpush1.msra.mxu0 0.0
        %7790 = vmatprep.subr.mxu0 0.0
        %7791 = vmatpush1.msra.mxu0 0.0
        %7792 = vmatprep.subr.mxu0 0.0
        %7793 = vmatpush1.msra.mxu0 0.0
        %7794 = vmatprep.subr.mxu0 0.0
        %7795 = vmatpush1.msra.mxu0 0.0
        %7796 = vmatprep.subr.mxu0 0.0
        %7797 = vmatpush1.msra.mxu0 0.0
        %7798 = vmatprep.subr.mxu0 0.0
        %7799 = vmatpush1.msra.mxu0 0.0
        %7800 = vmatprep.subr.mxu0 0.0
        %7801 = vmatpush1.msra.mxu0 0.0
        %7802 = vmatprep.subr.mxu0 0.0
        %7803 = vmatpush1.msra.mxu0 0.0
        %7804 = vmatprep.subr.mxu0 0.0
        %7805 = vmatpush1.msra.mxu0 0.0
        %7806 = vmatprep.subr.mxu0 0.0
        %7807 = vmatpush1.msra.mxu0 0.0
        %7808 = vmatprep.mubr.f32.mxu0 0.0
        %7809 = vmatmul.mubr.f32.gmra.mrb[0].mxu0 %v7742
        %v7810 = vpop.f32.mrb[0].mxu0
        %v7811 = vadd.f32 0.0, %v7810
        %v7812 = vpop.f32.mrb[0].mxu0
        %v7813 = vadd.f32 0.0, %v7812
        %7814 = vdwg.mxu0
        %v7815 = vadd.f32 %v7722, %v7811
        %v7816 = vadd.f32 %v7723, %v7813
        %s7817 = scalar_lea.vmem %s9, 1920
        %v7818 = vld [vmem:[%s7817] sm:$0xff]
        %v7819 = vld [vmem:[%s7817 + $0x8] sm:$0xff]
        %v7820 = vld [vmem:[%s7817 + $0x10] sm:$0xff]
        %v7821 = vld [vmem:[%s7817 + $0x18] sm:$0xff]
        %v7822 = vld [vmem:[%s7817 + $0x20] sm:$0xff]
        %v7823 = vld [vmem:[%s7817 + $0x28] sm:$0xff]
        %v7824 = vld [vmem:[%s7817 + $0x30] sm:$0xff]
        %v7825 = vld [vmem:[%s7817 + $0x38] sm:$0xff]
        %v7826 = vld [vmem:[%s7817 + $0x40] sm:$0xff]
        %v7827 = vld [vmem:[%s7817 + $0x48] sm:$0xff]
        %v7828 = vld [vmem:[%s7817 + $0x50] sm:$0xff]
        %v7829 = vld [vmem:[%s7817 + $0x58] sm:$0xff]
        %v7830 = vld [vmem:[%s7817 + $0x60] sm:$0xff]
        %v7831 = vld [vmem:[%s7817 + $0x68] sm:$0xff]
        %v7832 = vld [vmem:[%s7817 + $0x70] sm:$0xff]
        %v7833 = vld [vmem:[%s7817 + $0x78] sm:$0xff]
        %v7834 = vrot.slane %v6424, 7
        %v7835 = vsel %vm4733, %v7834, 0
        %7837 = vmatprep.subr.mxu0 %v7819
        %7838 = vmatpush1.msra.mxu0 %v7818
        %7839 = vmatprep.subr.mxu0 %v7821
        %7840 = vmatpush1.msra.mxu0 %v7820
        %7841 = vmatprep.subr.mxu0 %v7823
        %7842 = vmatpush1.msra.mxu0 %v7822
        %7843 = vmatprep.subr.mxu0 %v7825
        %7844 = vmatpush1.msra.mxu0 %v7824
        %7845 = vmatprep.subr.mxu0 %v7827
        %7846 = vmatpush1.msra.mxu0 %v7826
        %7847 = vmatprep.subr.mxu0 %v7829
        %7848 = vmatpush1.msra.mxu0 %v7828
        %7849 = vmatprep.subr.mxu0 %v7831
        %7850 = vmatpush1.msra.mxu0 %v7830
        %7851 = vmatprep.subr.mxu0 %v7833
        %7852 = vmatpush1.msra.mxu0 %v7832
        %7853 = vmatprep.subr.mxu0 0.0
        %7854 = vmatpush1.msra.mxu0 0.0
        %7855 = vmatprep.subr.mxu0 0.0
        %7856 = vmatpush1.msra.mxu0 0.0
        %7857 = vmatprep.subr.mxu0 0.0
        %7858 = vmatpush1.msra.mxu0 0.0
        %7859 = vmatprep.subr.mxu0 0.0
        %7860 = vmatpush1.msra.mxu0 0.0
        %7861 = vmatprep.subr.mxu0 0.0
        %7862 = vmatpush1.msra.mxu0 0.0
        %7863 = vmatprep.subr.mxu0 0.0
        %7864 = vmatpush1.msra.mxu0 0.0
        %7865 = vmatprep.subr.mxu0 0.0
        %7866 = vmatpush1.msra.mxu0 0.0
        %7867 = vmatprep.subr.mxu0 0.0
        %7868 = vmatpush1.msra.mxu0 0.0
        %7869 = vmatprep.subr.mxu0 0.0
        %7870 = vmatpush1.msra.mxu0 0.0
        %7871 = vmatprep.subr.mxu0 0.0
        %7872 = vmatpush1.msra.mxu0 0.0
        %7873 = vmatprep.subr.mxu0 0.0
        %7874 = vmatpush1.msra.mxu0 0.0
        %7875 = vmatprep.subr.mxu0 0.0
        %7876 = vmatpush1.msra.mxu0 0.0
        %7877 = vmatprep.subr.mxu0 0.0
        %7878 = vmatpush1.msra.mxu0 0.0
        %7879 = vmatprep.subr.mxu0 0.0
        %7880 = vmatpush1.msra.mxu0 0.0
        %7881 = vmatprep.subr.mxu0 0.0
        %7882 = vmatpush1.msra.mxu0 0.0
        %7883 = vmatprep.subr.mxu0 0.0
        %7884 = vmatpush1.msra.mxu0 0.0
        %7885 = vmatprep.subr.mxu0 0.0
        %7886 = vmatpush1.msra.mxu0 0.0
        %7887 = vmatprep.subr.mxu0 0.0
        %7888 = vmatpush1.msra.mxu0 0.0
        %7889 = vmatprep.subr.mxu0 0.0
        %7890 = vmatpush1.msra.mxu0 0.0
        %7891 = vmatprep.subr.mxu0 0.0
        %7892 = vmatpush1.msra.mxu0 0.0
        %7893 = vmatprep.subr.mxu0 0.0
        %7894 = vmatpush1.msra.mxu0 0.0
        %7895 = vmatprep.subr.mxu0 0.0
        %7896 = vmatpush1.msra.mxu0 0.0
        %7897 = vmatprep.subr.mxu0 0.0
        %7898 = vmatpush1.msra.mxu0 0.0
        %7899 = vmatprep.subr.mxu0 0.0
        %7900 = vmatpush1.msra.mxu0 0.0
        %7901 = vmatprep.mubr.f32.mxu0 0.0
        %7902 = vmatmul.mubr.f32.gmra.mrb[0].mxu0 %v7835
        %v7903 = vpop.f32.mrb[0].mxu0
        %v7904 = vadd.f32 0.0, %v7903
        %v7905 = vpop.f32.mrb[0].mxu0
        %v7906 = vadd.f32 0.0, %v7905
        %7907 = vdwg.mxu0
        %v7908 = vadd.f32 %v7815, %v7904
        %v7909 = vadd.f32 %v7816, %v7906
        %s7910 = scalar_lea.vmem %s9, 2048
        %v7911 = vld [vmem:[%s7910] sm:$0xff]
        %v7912 = vld [vmem:[%s7910 + $0x8] sm:$0xff]
        %v7913 = vld [vmem:[%s7910 + $0x10] sm:$0xff]
        %v7914 = vld [vmem:[%s7910 + $0x18] sm:$0xff]
        %v7915 = vld [vmem:[%s7910 + $0x20] sm:$0xff]
        %v7916 = vld [vmem:[%s7910 + $0x28] sm:$0xff]
        %v7917 = vld [vmem:[%s7910 + $0x30] sm:$0xff]
        %v7918 = vld [vmem:[%s7910 + $0x38] sm:$0xff]
        %v7919 = vld [vmem:[%s7910 + $0x40] sm:$0xff]
        %v7920 = vld [vmem:[%s7910 + $0x48] sm:$0xff]
        %v7921 = vld [vmem:[%s7910 + $0x50] sm:$0xff]
        %v7922 = vld [vmem:[%s7910 + $0x58] sm:$0xff]
        %v7923 = vld [vmem:[%s7910 + $0x60] sm:$0xff]
        %v7924 = vld [vmem:[%s7910 + $0x68] sm:$0xff]
        %v7925 = vld [vmem:[%s7910 + $0x70] sm:$0xff]
        %v7926 = vld [vmem:[%s7910 + $0x78] sm:$0xff]
        %v7928 = vsel %vm4733, %v6425, 0
        %7930 = vmatprep.subr.mxu0 %v7912
        %7931 = vmatpush1.msra.mxu0 %v7911
        %7932 = vmatprep.subr.mxu0 %v7914
        %7933 = vmatpush1.msra.mxu0 %v7913
        %7934 = vmatprep.subr.mxu0 %v7916
        %7935 = vmatpush1.msra.mxu0 %v7915
        %7936 = vmatprep.subr.mxu0 %v7918
        %7937 = vmatpush1.msra.mxu0 %v7917
        %7938 = vmatprep.subr.mxu0 %v7920
        %7939 = vmatpush1.msra.mxu0 %v7919
        %7940 = vmatprep.subr.mxu0 %v7922
        %7941 = vmatpush1.msra.mxu0 %v7921
        %7942 = vmatprep.subr.mxu0 %v7924
        %7943 = vmatpush1.msra.mxu0 %v7923
        %7944 = vmatprep.subr.mxu0 %v7926
        %7945 = vmatpush1.msra.mxu0 %v7925
        %7946 = vmatprep.subr.mxu0 0.0
        %7947 = vmatpush1.msra.mxu0 0.0
        %7948 = vmatprep.subr.mxu0 0.0
        %7949 = vmatpush1.msra.mxu0 0.0
        %7950 = vmatprep.subr.mxu0 0.0
        %7951 = vmatpush1.msra.mxu0 0.0
        %7952 = vmatprep.subr.mxu0 0.0
        %7953 = vmatpush1.msra.mxu0 0.0
        %7954 = vmatprep.subr.mxu0 0.0
        %7955 = vmatpush1.msra.mxu0 0.0
        %7956 = vmatprep.subr.mxu0 0.0
        %7957 = vmatpush1.msra.mxu0 0.0
        %7958 = vmatprep.subr.mxu0 0.0
        %7959 = vmatpush1.msra.mxu0 0.0
        %7960 = vmatprep.subr.mxu0 0.0
        %7961 = vmatpush1.msra.mxu0 0.0
        %7962 = vmatprep.subr.mxu0 0.0
        %7963 = vmatpush1.msra.mxu0 0.0
        %7964 = vmatprep.subr.mxu0 0.0
        %7965 = vmatpush1.msra.mxu0 0.0
        %7966 = vmatprep.subr.mxu0 0.0
        %7967 = vmatpush1.msra.mxu0 0.0
        %7968 = vmatprep.subr.mxu0 0.0
        %7969 = vmatpush1.msra.mxu0 0.0
        %7970 = vmatprep.subr.mxu0 0.0
        %7971 = vmatpush1.msra.mxu0 0.0
        %7972 = vmatprep.subr.mxu0 0.0
        %7973 = vmatpush1.msra.mxu0 0.0
        %7974 = vmatprep.subr.mxu0 0.0
        %7975 = vmatpush1.msra.mxu0 0.0
        %7976 = vmatprep.subr.mxu0 0.0
        %7977 = vmatpush1.msra.mxu0 0.0
        %7978 = vmatprep.subr.mxu0 0.0
        %7979 = vmatpush1.msra.mxu0 0.0
        %7980 = vmatprep.subr.mxu0 0.0
        %7981 = vmatpush1.msra.mxu0 0.0
        %7982 = vmatprep.subr.mxu0 0.0
        %7983 = vmatpush1.msra.mxu0 0.0
        %7984 = vmatprep.subr.mxu0 0.0
        %7985 = vmatpush1.msra.mxu0 0.0
        %7986 = vmatprep.subr.mxu0 0.0
        %7987 = vmatpush1.msra.mxu0 0.0
        %7988 = vmatprep.subr.mxu0 0.0
        %7989 = vmatpush1.msra.mxu0 0.0
        %7990 = vmatprep.subr.mxu0 0.0
        %7991 = vmatpush1.msra.mxu0 0.0
        %7992 = vmatprep.subr.mxu0 0.0
        %7993 = vmatpush1.msra.mxu0 0.0
        %7994 = vmatprep.mubr.f32.mxu0 0.0
        %7995 = vmatmul.mubr.f32.gmra.mrb[0].mxu0 %v7928
        %v7996 = vpop.f32.mrb[0].mxu0
        %v7997 = vadd.f32 0.0, %v7996
        %v7998 = vpop.f32.mrb[0].mxu0
        %v7999 = vadd.f32 0.0, %v7998
        %8000 = vdwg.mxu0
        %v8001 = vadd.f32 %v7908, %v7997
        %v8002 = vadd.f32 %v7909, %v7999
        %s8003 = scalar_lea.vmem %s9, 2176
        %v8004 = vld [vmem:[%s8003] sm:$0xff]
        %v8005 = vld [vmem:[%s8003 + $0x8] sm:$0xff]
        %v8006 = vld [vmem:[%s8003 + $0x10] sm:$0xff]
        %v8007 = vld [vmem:[%s8003 + $0x18] sm:$0xff]
        %v8008 = vld [vmem:[%s8003 + $0x20] sm:$0xff]
        %v8009 = vld [vmem:[%s8003 + $0x28] sm:$0xff]
        %v8010 = vld [vmem:[%s8003 + $0x30] sm:$0xff]
        %v8011 = vld [vmem:[%s8003 + $0x38] sm:$0xff]
        %v8012 = vld [vmem:[%s8003 + $0x40] sm:$0xff]
        %v8013 = vld [vmem:[%s8003 + $0x48] sm:$0xff]
        %v8014 = vld [vmem:[%s8003 + $0x50] sm:$0xff]
        %v8015 = vld [vmem:[%s8003 + $0x58] sm:$0xff]
        %v8016 = vld [vmem:[%s8003 + $0x60] sm:$0xff]
        %v8017 = vld [vmem:[%s8003 + $0x68] sm:$0xff]
        %v8018 = vld [vmem:[%s8003 + $0x70] sm:$0xff]
        %v8019 = vld [vmem:[%s8003 + $0x78] sm:$0xff]
        %v8020 = vrot.slane %v6425, 1
        %v8021 = vsel %vm4733, %v8020, 0
        %8023 = vmatprep.subr.mxu0 %v8005
        %8024 = vmatpush1.msra.mxu0 %v8004
        %8025 = vmatprep.subr.mxu0 %v8007
        %8026 = vmatpush1.msra.mxu0 %v8006
        %8027 = vmatprep.subr.mxu0 %v8009
        %8028 = vmatpush1.msra.mxu0 %v8008
        %8029 = vmatprep.subr.mxu0 %v8011
        %8030 = vmatpush1.msra.mxu0 %v8010
        %8031 = vmatprep.subr.mxu0 %v8013
        %8032 = vmatpush1.msra.mxu0 %v8012
        %8033 = vmatprep.subr.mxu0 %v8015
        %8034 = vmatpush1.msra.mxu0 %v8014
        %8035 = vmatprep.subr.mxu0 %v8017
        %8036 = vmatpush1.msra.mxu0 %v8016
        %8037 = vmatprep.subr.mxu0 %v8019
        %8038 = vmatpush1.msra.mxu0 %v8018
        %8039 = vmatprep.subr.mxu0 0.0
        %8040 = vmatpush1.msra.mxu0 0.0
        %8041 = vmatprep.subr.mxu0 0.0
        %8042 = vmatpush1.msra.mxu0 0.0
        %8043 = vmatprep.subr.mxu0 0.0
        %8044 = vmatpush1.msra.mxu0 0.0
        %8045 = vmatprep.subr.mxu0 0.0
        %8046 = vmatpush1.msra.mxu0 0.0
        %8047 = vmatprep.subr.mxu0 0.0
        %8048 = vmatpush1.msra.mxu0 0.0
        %8049 = vmatprep.subr.mxu0 0.0
        %8050 = vmatpush1.msra.mxu0 0.0
        %8051 = vmatprep.subr.mxu0 0.0
        %8052 = vmatpush1.msra.mxu0 0.0
        %8053 = vmatprep.subr.mxu0 0.0
        %8054 = vmatpush1.msra.mxu0 0.0
        %8055 = vmatprep.subr.mxu0 0.0
        %8056 = vmatpush1.msra.mxu0 0.0
        %8057 = vmatprep.subr.mxu0 0.0
        %8058 = vmatpush1.msra.mxu0 0.0
        %8059 = vmatprep.subr.mxu0 0.0
        %8060 = vmatpush1.msra.mxu0 0.0
        %8061 = vmatprep.subr.mxu0 0.0
        %8062 = vmatpush1.msra.mxu0 0.0
        %8063 = vmatprep.subr.mxu0 0.0
        %8064 = vmatpush1.msra.mxu0 0.0
        %8065 = vmatprep.subr.mxu0 0.0
        %8066 = vmatpush1.msra.mxu0 0.0
        %8067 = vmatprep.subr.mxu0 0.0
        %8068 = vmatpush1.msra.mxu0 0.0
        %8069 = vmatprep.subr.mxu0 0.0
        %8070 = vmatpush1.msra.mxu0 0.0
        %8071 = vmatprep.subr.mxu0 0.0
        %8072 = vmatpush1.msra.mxu0 0.0
        %8073 = vmatprep.subr.mxu0 0.0
        %8074 = vmatpush1.msra.mxu0 0.0
        %8075 = vmatprep.subr.mxu0 0.0
        %8076 = vmatpush1.msra.mxu0 0.0
        %8077 = vmatprep.subr.mxu0 0.0
        %8078 = vmatpush1.msra.mxu0 0.0
        %8079 = vmatprep.subr.mxu0 0.0
        %8080 = vmatpush1.msra.mxu0 0.0
        %8081 = vmatprep.subr.mxu0 0.0
        %8082 = vmatpush1.msra.mxu0 0.0
        %8083 = vmatprep.subr.mxu0 0.0
        %8084 = vmatpush1.msra.mxu0 0.0
        %8085 = vmatprep.subr.mxu0 0.0
        %8086 = vmatpush1.msra.mxu0 0.0
        %8087 = vmatprep.mubr.f32.mxu0 0.0
        %8088 = vmatmul.mubr.f32.gmra.mrb[0].mxu0 %v8021
        %v8089 = vpop.f32.mrb[0].mxu0
        %v8090 = vadd.f32 0.0, %v8089
        %v8091 = vpop.f32.mrb[0].mxu0
        %v8092 = vadd.f32 0.0, %v8091
        %8093 = vdwg.mxu0
        %v8094 = vadd.f32 %v8001, %v8090
        %v8095 = vadd.f32 %v8002, %v8092
        %s8096 = scalar_lea.vmem %s9, 2304
        %v8097 = vld [vmem:[%s8096] sm:$0xff]
        %v8098 = vld [vmem:[%s8096 + $0x8] sm:$0xff]
        %v8099 = vld [vmem:[%s8096 + $0x10] sm:$0xff]
        %v8100 = vld [vmem:[%s8096 + $0x18] sm:$0xff]
        %v8101 = vld [vmem:[%s8096 + $0x20] sm:$0xff]
        %v8102 = vld [vmem:[%s8096 + $0x28] sm:$0xff]
        %v8103 = vld [vmem:[%s8096 + $0x30] sm:$0xff]
        %v8104 = vld [vmem:[%s8096 + $0x38] sm:$0xff]
        %v8105 = vld [vmem:[%s8096 + $0x40] sm:$0xff]
        %v8106 = vld [vmem:[%s8096 + $0x48] sm:$0xff]
        %v8107 = vld [vmem:[%s8096 + $0x50] sm:$0xff]
        %v8108 = vld [vmem:[%s8096 + $0x58] sm:$0xff]
        %v8109 = vld [vmem:[%s8096 + $0x60] sm:$0xff]
        %v8110 = vld [vmem:[%s8096 + $0x68] sm:$0xff]
        %v8111 = vld [vmem:[%s8096 + $0x70] sm:$0xff]
        %v8112 = vld [vmem:[%s8096 + $0x78] sm:$0xff]
        %v8113 = vrot.slane %v6425, 2
        %v8114 = vsel %vm4733, %v8113, 0
        %8116 = vmatprep.subr.mxu0 %v8098
        %8117 = vmatpush1.msra.mxu0 %v8097
        %8118 = vmatprep.subr.mxu0 %v8100
        %8119 = vmatpush1.msra.mxu0 %v8099
        %8120 = vmatprep.subr.mxu0 %v8102
        %8121 = vmatpush1.msra.mxu0 %v8101
        %8122 = vmatprep.subr.mxu0 %v8104
        %8123 = vmatpush1.msra.mxu0 %v8103
        %8124 = vmatprep.subr.mxu0 %v8106
        %8125 = vmatpush1.msra.mxu0 %v8105
        %8126 = vmatprep.subr.mxu0 %v8108
        %8127 = vmatpush1.msra.mxu0 %v8107
        %8128 = vmatprep.subr.mxu0 %v8110
        %8129 = vmatpush1.msra.mxu0 %v8109
        %8130 = vmatprep.subr.mxu0 %v8112
        %8131 = vmatpush1.msra.mxu0 %v8111
        %8132 = vmatprep.subr.mxu0 0.0
        %8133 = vmatpush1.msra.mxu0 0.0
        %8134 = vmatprep.subr.mxu0 0.0
        %8135 = vmatpush1.msra.mxu0 0.0
        %8136 = vmatprep.subr.mxu0 0.0
        %8137 = vmatpush1.msra.mxu0 0.0
        %8138 = vmatprep.subr.mxu0 0.0
        %8139 = vmatpush1.msra.mxu0 0.0
        %8140 = vmatprep.subr.mxu0 0.0
        %8141 = vmatpush1.msra.mxu0 0.0
        %8142 = vmatprep.subr.mxu0 0.0
        %8143 = vmatpush1.msra.mxu0 0.0
        %8144 = vmatprep.subr.mxu0 0.0
        %8145 = vmatpush1.msra.mxu0 0.0
        %8146 = vmatprep.subr.mxu0 0.0
        %8147 = vmatpush1.msra.mxu0 0.0
        %8148 = vmatprep.subr.mxu0 0.0
        %8149 = vmatpush1.msra.mxu0 0.0
        %8150 = vmatprep.subr.mxu0 0.0
        %8151 = vmatpush1.msra.mxu0 0.0
        %8152 = vmatprep.subr.mxu0 0.0
        %8153 = vmatpush1.msra.mxu0 0.0
        %8154 = vmatprep.subr.mxu0 0.0
        %8155 = vmatpush1.msra.mxu0 0.0
        %8156 = vmatprep.subr.mxu0 0.0
        %8157 = vmatpush1.msra.mxu0 0.0
        %8158 = vmatprep.subr.mxu0 0.0
        %8159 = vmatpush1.msra.mxu0 0.0
        %8160 = vmatprep.subr.mxu0 0.0
        %8161 = vmatpush1.msra.mxu0 0.0
        %8162 = vmatprep.subr.mxu0 0.0
        %8163 = vmatpush1.msra.mxu0 0.0
        %8164 = vmatprep.subr.mxu0 0.0
        %8165 = vmatpush1.msra.mxu0 0.0
        %8166 = vmatprep.subr.mxu0 0.0
        %8167 = vmatpush1.msra.mxu0 0.0
        %8168 = vmatprep.subr.mxu0 0.0
        %8169 = vmatpush1.msra.mxu0 0.0
        %8170 = vmatprep.subr.mxu0 0.0
        %8171 = vmatpush1.msra.mxu0 0.0
        %8172 = vmatprep.subr.mxu0 0.0
        %8173 = vmatpush1.msra.mxu0 0.0
        %8174 = vmatprep.subr.mxu0 0.0
        %8175 = vmatpush1.msra.mxu0 0.0
        %8176 = vmatprep.subr.mxu0 0.0
        %8177 = vmatpush1.msra.mxu0 0.0
        %8178 = vmatprep.subr.mxu0 0.0
        %8179 = vmatpush1.msra.mxu0 0.0
        %8180 = vmatprep.mubr.f32.mxu0 0.0
        %8181 = vmatmul.mubr.f32.gmra.mrb[0].mxu0 %v8114
        %v8182 = vpop.f32.mrb[0].mxu0
        %v8183 = vadd.f32 0.0, %v8182
        %v8184 = vpop.f32.mrb[0].mxu0
        %v8185 = vadd.f32 0.0, %v8184
        %8186 = vdwg.mxu0
        %v8187 = vadd.f32 %v8094, %v8183
        %v8188 = vadd.f32 %v8095, %v8185
        %s8189 = scalar_lea.vmem %s9, 2432
        %v8190 = vld [vmem:[%s8189] sm:$0xff]
        %v8191 = vld [vmem:[%s8189 + $0x8] sm:$0xff]
        %v8192 = vld [vmem:[%s8189 + $0x10] sm:$0xff]
        %v8193 = vld [vmem:[%s8189 + $0x18] sm:$0xff]
        %v8194 = vld [vmem:[%s8189 + $0x20] sm:$0xff]
        %v8195 = vld [vmem:[%s8189 + $0x28] sm:$0xff]
        %v8196 = vld [vmem:[%s8189 + $0x30] sm:$0xff]
        %v8197 = vld [vmem:[%s8189 + $0x38] sm:$0xff]
        %v8198 = vld [vmem:[%s8189 + $0x40] sm:$0xff]
        %v8199 = vld [vmem:[%s8189 + $0x48] sm:$0xff]
        %v8200 = vld [vmem:[%s8189 + $0x50] sm:$0xff]
        %v8201 = vld [vmem:[%s8189 + $0x58] sm:$0xff]
        %v8202 = vld [vmem:[%s8189 + $0x60] sm:$0xff]
        %v8203 = vld [vmem:[%s8189 + $0x68] sm:$0xff]
        %v8204 = vld [vmem:[%s8189 + $0x70] sm:$0xff]
        %v8205 = vld [vmem:[%s8189 + $0x78] sm:$0xff]
        %v8206 = vrot.slane %v6425, 3
        %v8207 = vsel %vm4733, %v8206, 0
        %8209 = vmatprep.subr.mxu0 %v8191
        %8210 = vmatpush1.msra.mxu0 %v8190
        %8211 = vmatprep.subr.mxu0 %v8193
        %8212 = vmatpush1.msra.mxu0 %v8192
        %8213 = vmatprep.subr.mxu0 %v8195
        %8214 = vmatpush1.msra.mxu0 %v8194
        %8215 = vmatprep.subr.mxu0 %v8197
        %8216 = vmatpush1.msra.mxu0 %v8196
        %8217 = vmatprep.subr.mxu0 %v8199
        %8218 = vmatpush1.msra.mxu0 %v8198
        %8219 = vmatprep.subr.mxu0 %v8201
        %8220 = vmatpush1.msra.mxu0 %v8200
        %8221 = vmatprep.subr.mxu0 %v8203
        %8222 = vmatpush1.msra.mxu0 %v8202
        %8223 = vmatprep.subr.mxu0 %v8205
        %8224 = vmatpush1.msra.mxu0 %v8204
        %8225 = vmatprep.subr.mxu0 0.0
        %8226 = vmatpush1.msra.mxu0 0.0
        %8227 = vmatprep.subr.mxu0 0.0
        %8228 = vmatpush1.msra.mxu0 0.0
        %8229 = vmatprep.subr.mxu0 0.0
        %8230 = vmatpush1.msra.mxu0 0.0
        %8231 = vmatprep.subr.mxu0 0.0
        %8232 = vmatpush1.msra.mxu0 0.0
        %8233 = vmatprep.subr.mxu0 0.0
        %8234 = vmatpush1.msra.mxu0 0.0
        %8235 = vmatprep.subr.mxu0 0.0
        %8236 = vmatpush1.msra.mxu0 0.0
        %8237 = vmatprep.subr.mxu0 0.0
        %8238 = vmatpush1.msra.mxu0 0.0
        %8239 = vmatprep.subr.mxu0 0.0
        %8240 = vmatpush1.msra.mxu0 0.0
        %8241 = vmatprep.subr.mxu0 0.0
        %8242 = vmatpush1.msra.mxu0 0.0
        %8243 = vmatprep.subr.mxu0 0.0
        %8244 = vmatpush1.msra.mxu0 0.0
        %8245 = vmatprep.subr.mxu0 0.0
        %8246 = vmatpush1.msra.mxu0 0.0
        %8247 = vmatprep.subr.mxu0 0.0
        %8248 = vmatpush1.msra.mxu0 0.0
        %8249 = vmatprep.subr.mxu0 0.0
        %8250 = vmatpush1.msra.mxu0 0.0
        %8251 = vmatprep.subr.mxu0 0.0
        %8252 = vmatpush1.msra.mxu0 0.0
        %8253 = vmatprep.subr.mxu0 0.0
        %8254 = vmatpush1.msra.mxu0 0.0
        %8255 = vmatprep.subr.mxu0 0.0
        %8256 = vmatpush1.msra.mxu0 0.0
        %8257 = vmatprep.subr.mxu0 0.0
        %8258 = vmatpush1.msra.mxu0 0.0
        %8259 = vmatprep.subr.mxu0 0.0
        %8260 = vmatpush1.msra.mxu0 0.0
        %8261 = vmatprep.subr.mxu0 0.0
        %8262 = vmatpush1.msra.mxu0 0.0
        %8263 = vmatprep.subr.mxu0 0.0
        %8264 = vmatpush1.msra.mxu0 0.0
        %8265 = vmatprep.subr.mxu0 0.0
        %8266 = vmatpush1.msra.mxu0 0.0
        %8267 = vmatprep.subr.mxu0 0.0
        %8268 = vmatpush1.msra.mxu0 0.0
        %8269 = vmatprep.subr.mxu0 0.0
        %8270 = vmatpush1.msra.mxu0 0.0
        %8271 = vmatprep.subr.mxu0 0.0
        %8272 = vmatpush1.msra.mxu0 0.0
        %8273 = vmatprep.mubr.f32.mxu0 0.0
        %8274 = vmatmul.mubr.f32.gmra.mrb[0].mxu0 %v8207
        %v8275 = vpop.f32.mrb[0].mxu0
        %v8276 = vadd.f32 0.0, %v8275
        %v8277 = vpop.f32.mrb[0].mxu0
        %v8278 = vadd.f32 0.0, %v8277
        %8279 = vdwg.mxu0
        %v8280 = vadd.f32 %v8187, %v8276
        %v8281 = vadd.f32 %v8188, %v8278
        %s8282 = scalar_lea.vmem %s9, 2560
        %v8283 = vld [vmem:[%s8282] sm:$0xff]
        %v8284 = vld [vmem:[%s8282 + $0x8] sm:$0xff]
        %v8285 = vld [vmem:[%s8282 + $0x10] sm:$0xff]
        %v8286 = vld [vmem:[%s8282 + $0x18] sm:$0xff]
        %v8287 = vld [vmem:[%s8282 + $0x20] sm:$0xff]
        %v8288 = vld [vmem:[%s8282 + $0x28] sm:$0xff]
        %v8289 = vld [vmem:[%s8282 + $0x30] sm:$0xff]
        %v8290 = vld [vmem:[%s8282 + $0x38] sm:$0xff]
        %v8291 = vld [vmem:[%s8282 + $0x40] sm:$0xff]
        %v8292 = vld [vmem:[%s8282 + $0x48] sm:$0xff]
        %v8293 = vld [vmem:[%s8282 + $0x50] sm:$0xff]
        %v8294 = vld [vmem:[%s8282 + $0x58] sm:$0xff]
        %v8295 = vld [vmem:[%s8282 + $0x60] sm:$0xff]
        %v8296 = vld [vmem:[%s8282 + $0x68] sm:$0xff]
        %v8297 = vld [vmem:[%s8282 + $0x70] sm:$0xff]
        %v8298 = vld [vmem:[%s8282 + $0x78] sm:$0xff]
        %v8299 = vrot.slane %v6425, 4
        %v8300 = vsel %vm4733, %v8299, 0
        %8302 = vmatprep.subr.mxu0 %v8284
        %8303 = vmatpush1.msra.mxu0 %v8283
        %8304 = vmatprep.subr.mxu0 %v8286
        %8305 = vmatpush1.msra.mxu0 %v8285
        %8306 = vmatprep.subr.mxu0 %v8288
        %8307 = vmatpush1.msra.mxu0 %v8287
        %8308 = vmatprep.subr.mxu0 %v8290
        %8309 = vmatpush1.msra.mxu0 %v8289
        %8310 = vmatprep.subr.mxu0 %v8292
        %8311 = vmatpush1.msra.mxu0 %v8291
        %8312 = vmatprep.subr.mxu0 %v8294
        %8313 = vmatpush1.msra.mxu0 %v8293
        %8314 = vmatprep.subr.mxu0 %v8296
        %8315 = vmatpush1.msra.mxu0 %v8295
        %8316 = vmatprep.subr.mxu0 %v8298
        %8317 = vmatpush1.msra.mxu0 %v8297
        %8318 = vmatprep.subr.mxu0 0.0
        %8319 = vmatpush1.msra.mxu0 0.0
        %8320 = vmatprep.subr.mxu0 0.0
        %8321 = vmatpush1.msra.mxu0 0.0
        %8322 = vmatprep.subr.mxu0 0.0
        %8323 = vmatpush1.msra.mxu0 0.0
        %8324 = vmatprep.subr.mxu0 0.0
        %8325 = vmatpush1.msra.mxu0 0.0
        %8326 = vmatprep.subr.mxu0 0.0
        %8327 = vmatpush1.msra.mxu0 0.0
        %8328 = vmatprep.subr.mxu0 0.0
        %8329 = vmatpush1.msra.mxu0 0.0
        %8330 = vmatprep.subr.mxu0 0.0
        %8331 = vmatpush1.msra.mxu0 0.0
        %8332 = vmatprep.subr.mxu0 0.0
        %8333 = vmatpush1.msra.mxu0 0.0
        %8334 = vmatprep.subr.mxu0 0.0
        %8335 = vmatpush1.msra.mxu0 0.0
        %8336 = vmatprep.subr.mxu0 0.0
        %8337 = vmatpush1.msra.mxu0 0.0
        %8338 = vmatprep.subr.mxu0 0.0
        %8339 = vmatpush1.msra.mxu0 0.0
        %8340 = vmatprep.subr.mxu0 0.0
        %8341 = vmatpush1.msra.mxu0 0.0
        %8342 = vmatprep.subr.mxu0 0.0
        %8343 = vmatpush1.msra.mxu0 0.0
        %8344 = vmatprep.subr.mxu0 0.0
        %8345 = vmatpush1.msra.mxu0 0.0
        %8346 = vmatprep.subr.mxu0 0.0
        %8347 = vmatpush1.msra.mxu0 0.0
        %8348 = vmatprep.subr.mxu0 0.0
        %8349 = vmatpush1.msra.mxu0 0.0
        %8350 = vmatprep.subr.mxu0 0.0
        %8351 = vmatpush1.msra.mxu0 0.0
        %8352 = vmatprep.subr.mxu0 0.0
        %8353 = vmatpush1.msra.mxu0 0.0
        %8354 = vmatprep.subr.mxu0 0.0
        %8355 = vmatpush1.msra.mxu0 0.0
        %8356 = vmatprep.subr.mxu0 0.0
        %8357 = vmatpush1.msra.mxu0 0.0
        %8358 = vmatprep.subr.mxu0 0.0
        %8359 = vmatpush1.msra.mxu0 0.0
        %8360 = vmatprep.subr.mxu0 0.0
        %8361 = vmatpush1.msra.mxu0 0.0
        %8362 = vmatprep.subr.mxu0 0.0
        %8363 = vmatpush1.msra.mxu0 0.0
        %8364 = vmatprep.subr.mxu0 0.0
        %8365 = vmatpush1.msra.mxu0 0.0
        %8366 = vmatprep.mubr.f32.mxu0 0.0
        %8367 = vmatmul.mubr.f32.gmra.mrb[0].mxu0 %v8300
        %v8368 = vpop.f32.mrb[0].mxu0
        %v8369 = vadd.f32 0.0, %v8368
        %v8370 = vpop.f32.mrb[0].mxu0
        %v8371 = vadd.f32 0.0, %v8370
        %8372 = vdwg.mxu0
        %v8373 = vadd.f32 %v8280, %v8369
        %v8374 = vadd.f32 %v8281, %v8371
        %s8375 = scalar_lea.vmem %s9, 2688
        %v8376 = vld [vmem:[%s8375] sm:$0xff]
        %v8377 = vld [vmem:[%s8375 + $0x8] sm:$0xff]
        %v8378 = vld [vmem:[%s8375 + $0x10] sm:$0xff]
        %v8379 = vld [vmem:[%s8375 + $0x18] sm:$0xff]
        %v8380 = vld [vmem:[%s8375 + $0x20] sm:$0xff]
        %v8381 = vld [vmem:[%s8375 + $0x28] sm:$0xff]
        %v8382 = vld [vmem:[%s8375 + $0x30] sm:$0xff]
        %v8383 = vld [vmem:[%s8375 + $0x38] sm:$0xff]
        %v8384 = vld [vmem:[%s8375 + $0x40] sm:$0xff]
        %v8385 = vld [vmem:[%s8375 + $0x48] sm:$0xff]
        %v8386 = vld [vmem:[%s8375 + $0x50] sm:$0xff]
        %v8387 = vld [vmem:[%s8375 + $0x58] sm:$0xff]
        %v8388 = vld [vmem:[%s8375 + $0x60] sm:$0xff]
        %v8389 = vld [vmem:[%s8375 + $0x68] sm:$0xff]
        %v8390 = vld [vmem:[%s8375 + $0x70] sm:$0xff]
        %v8391 = vld [vmem:[%s8375 + $0x78] sm:$0xff]
        %v8392 = vrot.slane %v6425, 5
        %v8393 = vsel %vm4733, %v8392, 0
        %8395 = vmatprep.subr.mxu0 %v8377
        %8396 = vmatpush1.msra.mxu0 %v8376
        %8397 = vmatprep.subr.mxu0 %v8379
        %8398 = vmatpush1.msra.mxu0 %v8378
        %8399 = vmatprep.subr.mxu0 %v8381
        %8400 = vmatpush1.msra.mxu0 %v8380
        %8401 = vmatprep.subr.mxu0 %v8383
        %8402 = vmatpush1.msra.mxu0 %v8382
        %8403 = vmatprep.subr.mxu0 %v8385
        %8404 = vmatpush1.msra.mxu0 %v8384
        %8405 = vmatprep.subr.mxu0 %v8387
        %8406 = vmatpush1.msra.mxu0 %v8386
        %8407 = vmatprep.subr.mxu0 %v8389
        %8408 = vmatpush1.msra.mxu0 %v8388
        %8409 = vmatprep.subr.mxu0 %v8391
        %8410 = vmatpush1.msra.mxu0 %v8390
        %8411 = vmatprep.subr.mxu0 0.0
        %8412 = vmatpush1.msra.mxu0 0.0
        %8413 = vmatprep.subr.mxu0 0.0
        %8414 = vmatpush1.msra.mxu0 0.0
        %8415 = vmatprep.subr.mxu0 0.0
        %8416 = vmatpush1.msra.mxu0 0.0
        %8417 = vmatprep.subr.mxu0 0.0
        %8418 = vmatpush1.msra.mxu0 0.0
        %8419 = vmatprep.subr.mxu0 0.0
        %8420 = vmatpush1.msra.mxu0 0.0
        %8421 = vmatprep.subr.mxu0 0.0
        %8422 = vmatpush1.msra.mxu0 0.0
        %8423 = vmatprep.subr.mxu0 0.0
        %8424 = vmatpush1.msra.mxu0 0.0
        %8425 = vmatprep.subr.mxu0 0.0
        %8426 = vmatpush1.msra.mxu0 0.0
        %8427 = vmatprep.subr.mxu0 0.0
        %8428 = vmatpush1.msra.mxu0 0.0
        %8429 = vmatprep.subr.mxu0 0.0
        %8430 = vmatpush1.msra.mxu0 0.0
        %8431 = vmatprep.subr.mxu0 0.0
        %8432 = vmatpush1.msra.mxu0 0.0
        %8433 = vmatprep.subr.mxu0 0.0
        %8434 = vmatpush1.msra.mxu0 0.0
        %8435 = vmatprep.subr.mxu0 0.0
        %8436 = vmatpush1.msra.mxu0 0.0
        %8437 = vmatprep.subr.mxu0 0.0
        %8438 = vmatpush1.msra.mxu0 0.0
        %8439 = vmatprep.subr.mxu0 0.0
        %8440 = vmatpush1.msra.mxu0 0.0
        %8441 = vmatprep.subr.mxu0 0.0
        %8442 = vmatpush1.msra.mxu0 0.0
        %8443 = vmatprep.subr.mxu0 0.0
        %8444 = vmatpush1.msra.mxu0 0.0
        %8445 = vmatprep.subr.mxu0 0.0
        %8446 = vmatpush1.msra.mxu0 0.0
        %8447 = vmatprep.subr.mxu0 0.0
        %8448 = vmatpush1.msra.mxu0 0.0
        %8449 = vmatprep.subr.mxu0 0.0
        %8450 = vmatpush1.msra.mxu0 0.0
        %8451 = vmatprep.subr.mxu0 0.0
        %8452 = vmatpush1.msra.mxu0 0.0
        %8453 = vmatprep.subr.mxu0 0.0
        %8454 = vmatpush1.msra.mxu0 0.0
        %8455 = vmatprep.subr.mxu0 0.0
        %8456 = vmatpush1.msra.mxu0 0.0
        %8457 = vmatprep.subr.mxu0 0.0
        %8458 = vmatpush1.msra.mxu0 0.0
        %8459 = vmatprep.mubr.f32.mxu0 0.0
        %8460 = vmatmul.mubr.f32.gmra.mrb[0].mxu0 %v8393
        %v8461 = vpop.f32.mrb[0].mxu0
        %v8462 = vadd.f32 0.0, %v8461
        %v8463 = vpop.f32.mrb[0].mxu0
        %v8464 = vadd.f32 0.0, %v8463
        %8465 = vdwg.mxu0
        %v8466 = vadd.f32 %v8373, %v8462
        %v8467 = vadd.f32 %v8374, %v8464
        %s8468 = scalar_lea.vmem %s9, 2816
        %v8469 = vld [vmem:[%s8468] sm:$0xff]
        %v8470 = vld [vmem:[%s8468 + $0x8] sm:$0xff]
        %v8471 = vld [vmem:[%s8468 + $0x10] sm:$0xff]
        %v8472 = vld [vmem:[%s8468 + $0x18] sm:$0xff]
        %v8473 = vld [vmem:[%s8468 + $0x20] sm:$0xff]
        %v8474 = vld [vmem:[%s8468 + $0x28] sm:$0xff]
        %v8475 = vld [vmem:[%s8468 + $0x30] sm:$0xff]
        %v8476 = vld [vmem:[%s8468 + $0x38] sm:$0xff]
        %v8477 = vld [vmem:[%s8468 + $0x40] sm:$0xff]
        %v8478 = vld [vmem:[%s8468 + $0x48] sm:$0xff]
        %v8479 = vld [vmem:[%s8468 + $0x50] sm:$0xff]
        %v8480 = vld [vmem:[%s8468 + $0x58] sm:$0xff]
        %v8481 = vld [vmem:[%s8468 + $0x60] sm:$0xff]
        %v8482 = vld [vmem:[%s8468 + $0x68] sm:$0xff]
        %v8483 = vld [vmem:[%s8468 + $0x70] sm:$0xff]
        %v8484 = vld [vmem:[%s8468 + $0x78] sm:$0xff]
        %v8485 = vrot.slane %v6425, 6
        %v8486 = vsel %vm4733, %v8485, 0
        %8488 = vmatprep.subr.mxu0 %v8470
        %8489 = vmatpush1.msra.mxu0 %v8469
        %8490 = vmatprep.subr.mxu0 %v8472
        %8491 = vmatpush1.msra.mxu0 %v8471
        %8492 = vmatprep.subr.mxu0 %v8474
        %8493 = vmatpush1.msra.mxu0 %v8473
        %8494 = vmatprep.subr.mxu0 %v8476
        %8495 = vmatpush1.msra.mxu0 %v8475
        %8496 = vmatprep.subr.mxu0 %v8478
        %8497 = vmatpush1.msra.mxu0 %v8477
        %8498 = vmatprep.subr.mxu0 %v8480
        %8499 = vmatpush1.msra.mxu0 %v8479
        %8500 = vmatprep.subr.mxu0 %v8482
        %8501 = vmatpush1.msra.mxu0 %v8481
        %8502 = vmatprep.subr.mxu0 %v8484
        %8503 = vmatpush1.msra.mxu0 %v8483
        %8504 = vmatprep.subr.mxu0 0.0
        %8505 = vmatpush1.msra.mxu0 0.0
        %8506 = vmatprep.subr.mxu0 0.0
        %8507 = vmatpush1.msra.mxu0 0.0
        %8508 = vmatprep.subr.mxu0 0.0
        %8509 = vmatpush1.msra.mxu0 0.0
        %8510 = vmatprep.subr.mxu0 0.0
        %8511 = vmatpush1.msra.mxu0 0.0
        %8512 = vmatprep.subr.mxu0 0.0
        %8513 = vmatpush1.msra.mxu0 0.0
        %8514 = vmatprep.subr.mxu0 0.0
        %8515 = vmatpush1.msra.mxu0 0.0
        %8516 = vmatprep.subr.mxu0 0.0
        %8517 = vmatpush1.msra.mxu0 0.0
        %8518 = vmatprep.subr.mxu0 0.0
        %8519 = vmatpush1.msra.mxu0 0.0
        %8520 = vmatprep.subr.mxu0 0.0
        %8521 = vmatpush1.msra.mxu0 0.0
        %8522 = vmatprep.subr.mxu0 0.0
        %8523 = vmatpush1.msra.mxu0 0.0
        %8524 = vmatprep.subr.mxu0 0.0
        %8525 = vmatpush1.msra.mxu0 0.0
        %8526 = vmatprep.subr.mxu0 0.0
        %8527 = vmatpush1.msra.mxu0 0.0
        %8528 = vmatprep.subr.mxu0 0.0
        %8529 = vmatpush1.msra.mxu0 0.0
        %8530 = vmatprep.subr.mxu0 0.0
        %8531 = vmatpush1.msra.mxu0 0.0
        %8532 = vmatprep.subr.mxu0 0.0
        %8533 = vmatpush1.msra.mxu0 0.0
        %8534 = vmatprep.subr.mxu0 0.0
        %8535 = vmatpush1.msra.mxu0 0.0
        %8536 = vmatprep.subr.mxu0 0.0
        %8537 = vmatpush1.msra.mxu0 0.0
        %8538 = vmatprep.subr.mxu0 0.0
        %8539 = vmatpush1.msra.mxu0 0.0
        %8540 = vmatprep.subr.mxu0 0.0
        %8541 = vmatpush1.msra.mxu0 0.0
        %8542 = vmatprep.subr.mxu0 0.0
        %8543 = vmatpush1.msra.mxu0 0.0
        %8544 = vmatprep.subr.mxu0 0.0
        %8545 = vmatpush1.msra.mxu0 0.0
        %8546 = vmatprep.subr.mxu0 0.0
        %8547 = vmatpush1.msra.mxu0 0.0
        %8548 = vmatprep.subr.mxu0 0.0
        %8549 = vmatpush1.msra.mxu0 0.0
        %8550 = vmatprep.subr.mxu0 0.0
        %8551 = vmatpush1.msra.mxu0 0.0
        %8552 = vmatprep.mubr.f32.mxu0 0.0
        %8553 = vmatmul.mubr.f32.gmra.mrb[0].mxu0 %v8486
        %v8554 = vpop.f32.mrb[0].mxu0
        %v8555 = vadd.f32 0.0, %v8554
        %v8556 = vpop.f32.mrb[0].mxu0
        %v8557 = vadd.f32 0.0, %v8556
        %8558 = vdwg.mxu0
        %v8559 = vadd.f32 %v8466, %v8555
        %v8560 = vadd.f32 %v8467, %v8557
        %s8561 = scalar_lea.vmem %s9, 2944
        %v8562 = vld [vmem:[%s8561] sm:$0xff]
        %v8563 = vld [vmem:[%s8561 + $0x8] sm:$0xff]
        %v8564 = vld [vmem:[%s8561 + $0x10] sm:$0xff]
        %v8565 = vld [vmem:[%s8561 + $0x18] sm:$0xff]
        %v8566 = vld [vmem:[%s8561 + $0x20] sm:$0xff]
        %v8567 = vld [vmem:[%s8561 + $0x28] sm:$0xff]
        %v8568 = vld [vmem:[%s8561 + $0x30] sm:$0xff]
        %v8569 = vld [vmem:[%s8561 + $0x38] sm:$0xff]
        %v8570 = vld [vmem:[%s8561 + $0x40] sm:$0xff]
        %v8571 = vld [vmem:[%s8561 + $0x48] sm:$0xff]
        %v8572 = vld [vmem:[%s8561 + $0x50] sm:$0xff]
        %v8573 = vld [vmem:[%s8561 + $0x58] sm:$0xff]
        %v8574 = vld [vmem:[%s8561 + $0x60] sm:$0xff]
        %v8575 = vld [vmem:[%s8561 + $0x68] sm:$0xff]
        %v8576 = vld [vmem:[%s8561 + $0x70] sm:$0xff]
        %v8577 = vld [vmem:[%s8561 + $0x78] sm:$0xff]
        %v8578 = vrot.slane %v6425, 7
        %v8579 = vsel %vm4733, %v8578, 0
        %8581 = vmatprep.subr.mxu0 %v8563
        %8582 = vmatpush1.msra.mxu0 %v8562
        %8583 = vmatprep.subr.mxu0 %v8565
        %8584 = vmatpush1.msra.mxu0 %v8564
        %8585 = vmatprep.subr.mxu0 %v8567
        %8586 = vmatpush1.msra.mxu0 %v8566
        %8587 = vmatprep.subr.mxu0 %v8569
        %8588 = vmatpush1.msra.mxu0 %v8568
        %8589 = vmatprep.subr.mxu0 %v8571
        %8590 = vmatpush1.msra.mxu0 %v8570
        %8591 = vmatprep.subr.mxu0 %v8573
        %8592 = vmatpush1.msra.mxu0 %v8572
        %8593 = vmatprep.subr.mxu0 %v8575
        %8594 = vmatpush1.msra.mxu0 %v8574
        %8595 = vmatprep.subr.mxu0 %v8577
        %8596 = vmatpush1.msra.mxu0 %v8576
        %8597 = vmatprep.subr.mxu0 0.0
        %8598 = vmatpush1.msra.mxu0 0.0
        %8599 = vmatprep.subr.mxu0 0.0
        %8600 = vmatpush1.msra.mxu0 0.0
        %8601 = vmatprep.subr.mxu0 0.0
        %8602 = vmatpush1.msra.mxu0 0.0
        %8603 = vmatprep.subr.mxu0 0.0
        %8604 = vmatpush1.msra.mxu0 0.0
        %8605 = vmatprep.subr.mxu0 0.0
        %8606 = vmatpush1.msra.mxu0 0.0
        %8607 = vmatprep.subr.mxu0 0.0
        %8608 = vmatpush1.msra.mxu0 0.0
        %8609 = vmatprep.subr.mxu0 0.0
        %8610 = vmatpush1.msra.mxu0 0.0
        %8611 = vmatprep.subr.mxu0 0.0
        %8612 = vmatpush1.msra.mxu0 0.0
        %8613 = vmatprep.subr.mxu0 0.0
        %8614 = vmatpush1.msra.mxu0 0.0
        %8615 = vmatprep.subr.mxu0 0.0
        %8616 = vmatpush1.msra.mxu0 0.0
        %8617 = vmatprep.subr.mxu0 0.0
        %8618 = vmatpush1.msra.mxu0 0.0
        %8619 = vmatprep.subr.mxu0 0.0
        %8620 = vmatpush1.msra.mxu0 0.0
        %8621 = vmatprep.subr.mxu0 0.0
        %8622 = vmatpush1.msra.mxu0 0.0
        %8623 = vmatprep.subr.mxu0 0.0
        %8624 = vmatpush1.msra.mxu0 0.0
        %8625 = vmatprep.subr.mxu0 0.0
        %8626 = vmatpush1.msra.mxu0 0.0
        %8627 = vmatprep.subr.mxu0 0.0
        %8628 = vmatpush1.msra.mxu0 0.0
        %8629 = vmatprep.subr.mxu0 0.0
        %8630 = vmatpush1.msra.mxu0 0.0
        %8631 = vmatprep.subr.mxu0 0.0
        %8632 = vmatpush1.msra.mxu0 0.0
        %8633 = vmatprep.subr.mxu0 0.0
        %8634 = vmatpush1.msra.mxu0 0.0
        %8635 = vmatprep.subr.mxu0 0.0
        %8636 = vmatpush1.msra.mxu0 0.0
        %8637 = vmatprep.subr.mxu0 0.0
        %8638 = vmatpush1.msra.mxu0 0.0
        %8639 = vmatprep.subr.mxu0 0.0
        %8640 = vmatpush1.msra.mxu0 0.0
        %8641 = vmatprep.subr.mxu0 0.0
        %8642 = vmatpush1.msra.mxu0 0.0
        %8643 = vmatprep.subr.mxu0 0.0
        %8644 = vmatpush1.msra.mxu0 0.0
        %8645 = vmatprep.mubr.f32.mxu0 0.0
        %8646 = vmatmul.mubr.f32.gmra.mrb[0].mxu0 %v8579
        %v8647 = vpop.f32.mrb[0].mxu0
        %v8648 = vadd.f32 0.0, %v8647
        %v8649 = vpop.f32.mrb[0].mxu0
        %v8650 = vadd.f32 0.0, %v8649
        %8651 = vdwg.mxu0
        %v8652 = vadd.f32 %v8559, %v8648
        %v8653 = vadd.f32 %v8560, %v8650
        %s8654 = scalar_lea.vmem %s9, 3072
        %v8655 = vld [vmem:[%s8654] sm:$0xff]
        %v8656 = vld [vmem:[%s8654 + $0x8] sm:$0xff]
        %v8657 = vld [vmem:[%s8654 + $0x10] sm:$0xff]
        %v8658 = vld [vmem:[%s8654 + $0x18] sm:$0xff]
        %v8659 = vld [vmem:[%s8654 + $0x20] sm:$0xff]
        %v8660 = vld [vmem:[%s8654 + $0x28] sm:$0xff]
        %v8661 = vld [vmem:[%s8654 + $0x30] sm:$0xff]
        %v8662 = vld [vmem:[%s8654 + $0x38] sm:$0xff]
        %v8663 = vld [vmem:[%s8654 + $0x40] sm:$0xff]
        %v8664 = vld [vmem:[%s8654 + $0x48] sm:$0xff]
        %v8665 = vld [vmem:[%s8654 + $0x50] sm:$0xff]
        %v8666 = vld [vmem:[%s8654 + $0x58] sm:$0xff]
        %v8667 = vld [vmem:[%s8654 + $0x60] sm:$0xff]
        %v8668 = vld [vmem:[%s8654 + $0x68] sm:$0xff]
        %v8669 = vld [vmem:[%s8654 + $0x70] sm:$0xff]
        %v8670 = vld [vmem:[%s8654 + $0x78] sm:$0xff]
        %v8672 = vsel %vm4733, %v6426, 0
        %8674 = vmatprep.subr.mxu0 %v8656
        %8675 = vmatpush1.msra.mxu0 %v8655
        %8676 = vmatprep.subr.mxu0 %v8658
        %8677 = vmatpush1.msra.mxu0 %v8657
        %8678 = vmatprep.subr.mxu0 %v8660
        %8679 = vmatpush1.msra.mxu0 %v8659
        %8680 = vmatprep.subr.mxu0 %v8662
        %8681 = vmatpush1.msra.mxu0 %v8661
        %8682 = vmatprep.subr.mxu0 %v8664
        %8683 = vmatpush1.msra.mxu0 %v8663
        %8684 = vmatprep.subr.mxu0 %v8666
        %8685 = vmatpush1.msra.mxu0 %v8665
        %8686 = vmatprep.subr.mxu0 %v8668
        %8687 = vmatpush1.msra.mxu0 %v8667
        %8688 = vmatprep.subr.mxu0 %v8670
        %8689 = vmatpush1.msra.mxu0 %v8669
        %8690 = vmatprep.subr.mxu0 0.0
        %8691 = vmatpush1.msra.mxu0 0.0
        %8692 = vmatprep.subr.mxu0 0.0
        %8693 = vmatpush1.msra.mxu0 0.0
        %8694 = vmatprep.subr.mxu0 0.0
        %8695 = vmatpush1.msra.mxu0 0.0
        %8696 = vmatprep.subr.mxu0 0.0
        %8697 = vmatpush1.msra.mxu0 0.0
        %8698 = vmatprep.subr.mxu0 0.0
        %8699 = vmatpush1.msra.mxu0 0.0
        %8700 = vmatprep.subr.mxu0 0.0
        %8701 = vmatpush1.msra.mxu0 0.0
        %8702 = vmatprep.subr.mxu0 0.0
        %8703 = vmatpush1.msra.mxu0 0.0
        %8704 = vmatprep.subr.mxu0 0.0
        %8705 = vmatpush1.msra.mxu0 0.0
        %8706 = vmatprep.subr.mxu0 0.0
        %8707 = vmatpush1.msra.mxu0 0.0
        %8708 = vmatprep.subr.mxu0 0.0
        %8709 = vmatpush1.msra.mxu0 0.0
        %8710 = vmatprep.subr.mxu0 0.0
        %8711 = vmatpush1.msra.mxu0 0.0
        %8712 = vmatprep.subr.mxu0 0.0
        %8713 = vmatpush1.msra.mxu0 0.0
        %8714 = vmatprep.subr.mxu0 0.0
        %8715 = vmatpush1.msra.mxu0 0.0
        %8716 = vmatprep.subr.mxu0 0.0
        %8717 = vmatpush1.msra.mxu0 0.0
        %8718 = vmatprep.subr.mxu0 0.0
        %8719 = vmatpush1.msra.mxu0 0.0
        %8720 = vmatprep.subr.mxu0 0.0
        %8721 = vmatpush1.msra.mxu0 0.0
        %8722 = vmatprep.subr.mxu0 0.0
        %8723 = vmatpush1.msra.mxu0 0.0
        %8724 = vmatprep.subr.mxu0 0.0
        %8725 = vmatpush1.msra.mxu0 0.0
        %8726 = vmatprep.subr.mxu0 0.0
        %8727 = vmatpush1.msra.mxu0 0.0
        %8728 = vmatprep.subr.mxu0 0.0
        %8729 = vmatpush1.msra.mxu0 0.0
        %8730 = vmatprep.subr.mxu0 0.0
        %8731 = vmatpush1.msra.mxu0 0.0
        %8732 = vmatprep.subr.mxu0 0.0
        %8733 = vmatpush1.msra.mxu0 0.0
        %8734 = vmatprep.subr.mxu0 0.0
        %8735 = vmatpush1.msra.mxu0 0.0
        %8736 = vmatprep.subr.mxu0 0.0
        %8737 = vmatpush1.msra.mxu0 0.0
        %8738 = vmatprep.mubr.f32.mxu0 0.0
        %8739 = vmatmul.mubr.f32.gmra.mrb[0].mxu0 %v8672
        %v8740 = vpop.f32.mrb[0].mxu0
        %v8741 = vadd.f32 0.0, %v8740
        %v8742 = vpop.f32.mrb[0].mxu0
        %v8743 = vadd.f32 0.0, %v8742
        %8744 = vdwg.mxu0
        %v8745 = vadd.f32 %v8652, %v8741
        %v8746 = vadd.f32 %v8653, %v8743
        %v8747 = vld [vmem:[%s10] sm:$0x3]
        %v8749 = vlaneseq
        %v8750 = vshrl.u32 %v8749, 7
        %v8751 = vsub.s32 0, %v8750
        %v8752 = vrot.slane %v8747, %v8751
        %v8753 = vlaneseq
        %v8754 = vshrl.u32 %v8753, 7
        %v8755 = vsub.s32 1, %v8754
        %v8756 = vrot.slane %v8747, %v8755
        %v8759 = vadd.f32 %v8745, %v8752
        %v8760 = vadd.f32 %v8746, %v8756
        %v8761 = vmax.f32 %v8759, 0.0
        %v8762 = vmax.f32 %v8760, 0.0
        %v8763 = vld [vmem:[%s11] sm:$0xff]
        %v8764 = vld [vmem:[%s11 + $0x8] sm:$0xff]
        %v8765 = vld [vmem:[%s11 + $0x10] sm:$0xff]
        %v8766 = vld [vmem:[%s11 + $0x18] sm:$0xff]
        %v8767 = vld [vmem:[%s11 + $0x20] sm:$0xff]
        %v8768 = vld [vmem:[%s11 + $0x28] sm:$0xff]
        %v8769 = vld [vmem:[%s11 + $0x30] sm:$0xff]
        %v8770 = vld [vmem:[%s11 + $0x38] sm:$0xff]
        %v8771 = vld [vmem:[%s11 + $0x40] sm:$0xff]
        %v8772 = vld [vmem:[%s11 + $0x48] sm:$0xff]
        %v8773 = vld [vmem:[%s11 + $0x50] sm:$0xff]
        %v8774 = vld [vmem:[%s11 + $0x58] sm:$0xff]
        %v8775 = vld [vmem:[%s11 + $0x60] sm:$0xff]
        %v8776 = vld [vmem:[%s11 + $0x68] sm:$0xff]
        %v8777 = vld [vmem:[%s11 + $0x70] sm:$0xff]
        %v8778 = vld [vmem:[%s11 + $0x78] sm:$0xff]
        %v8779 = vld [vmem:[%s11 + $0x80] sm:$0xff]
        %v8780 = vld [vmem:[%s11 + $0x88] sm:$0xff]
        %v8781 = vld [vmem:[%s11 + $0x90] sm:$0xff]
        %v8782 = vld [vmem:[%s11 + $0x98] sm:$0xff]
        %v8783 = vld [vmem:[%s11 + $0xa0] sm:$0xff]
        %v8784 = vld [vmem:[%s11 + $0xa8] sm:$0xff]
        %v8785 = vld [vmem:[%s11 + $0xb0] sm:$0xff]
        %v8786 = vld [vmem:[%s11 + $0xb8] sm:$0xff]
        %v8787 = vld [vmem:[%s11 + $0xc0] sm:$0xff]
        %v8788 = vld [vmem:[%s11 + $0xc8] sm:$0xff]
        %v8789 = vld [vmem:[%s11 + $0xd0] sm:$0xff]
        %v8790 = vld [vmem:[%s11 + $0xd8] sm:$0xff]
        %v8791 = vld [vmem:[%s11 + $0xe0] sm:$0xff]
        %v8792 = vld [vmem:[%s11 + $0xe8] sm:$0xff]
        %v8793 = vld [vmem:[%s11 + $0xf0] sm:$0xff]
        %v8794 = vld [vmem:[%s11 + $0xf8] sm:$0xff]
        %v8795 = vld [vmem:[%s12] sm:$0x1]
        %8796 = vmatprep.subr.mxu0 0.0
        %8797 = vmatpush1.msra.mxu0 %v8763
        %8798 = vmatprep.subr.mxu0 0.0
        %8799 = vmatpush1.msra.mxu0 %v8764
        %8800 = vmatprep.subr.mxu0 0.0
        %8801 = vmatpush1.msra.mxu0 %v8765
        %8802 = vmatprep.subr.mxu0 0.0
        %8803 = vmatpush1.msra.mxu0 %v8766
        %8804 = vmatprep.subr.mxu0 0.0
        %8805 = vmatpush1.msra.mxu0 %v8767
        %8806 = vmatprep.subr.mxu0 0.0
        %8807 = vmatpush1.msra.mxu0 %v8768
        %8808 = vmatprep.subr.mxu0 0.0
        %8809 = vmatpush1.msra.mxu0 %v8769
        %8810 = vmatprep.subr.mxu0 0.0
        %8811 = vmatpush1.msra.mxu0 %v8770
        %8812 = vmatprep.subr.mxu0 0.0
        %8813 = vmatpush1.msra.mxu0 %v8771
        %8814 = vmatprep.subr.mxu0 0.0
        %8815 = vmatpush1.msra.mxu0 %v8772
        %8816 = vmatprep.subr.mxu0 0.0
        %8817 = vmatpush1.msra.mxu0 %v8773
        %8818 = vmatprep.subr.mxu0 0.0
        %8819 = vmatpush1.msra.mxu0 %v8774
        %8820 = vmatprep.subr.mxu0 0.0
        %8821 = vmatpush1.msra.mxu0 %v8775
        %8822 = vmatprep.subr.mxu0 0.0
        %8823 = vmatpush1.msra.mxu0 %v8776
        %8824 = vmatprep.subr.mxu0 0.0
        %8825 = vmatpush1.msra.mxu0 %v8777
        %8826 = vmatprep.subr.mxu0 0.0
        %8827 = vmatpush1.msra.mxu0 %v8778
        %8828 = vmatprep.subr.mxu0 0.0
        %8829 = vmatpush1.msra.mxu0 %v8779
        %8830 = vmatprep.subr.mxu0 0.0
        %8831 = vmatpush1.msra.mxu0 %v8780
        %8832 = vmatprep.subr.mxu0 0.0
        %8833 = vmatpush1.msra.mxu0 %v8781
        %8834 = vmatprep.subr.mxu0 0.0
        %8835 = vmatpush1.msra.mxu0 %v8782
        %8836 = vmatprep.subr.mxu0 0.0
        %8837 = vmatpush1.msra.mxu0 %v8783
        %8838 = vmatprep.subr.mxu0 0.0
        %8839 = vmatpush1.msra.mxu0 %v8784
        %8840 = vmatprep.subr.mxu0 0.0
        %8841 = vmatpush1.msra.mxu0 %v8785
        %8842 = vmatprep.subr.mxu0 0.0
        %8843 = vmatpush1.msra.mxu0 %v8786
        %8844 = vmatprep.subr.mxu0 0.0
        %8845 = vmatpush1.msra.mxu0 %v8787
        %8846 = vmatprep.subr.mxu0 0.0
        %8847 = vmatpush1.msra.mxu0 %v8788
        %8848 = vmatprep.subr.mxu0 0.0
        %8849 = vmatpush1.msra.mxu0 %v8789
        %8850 = vmatprep.subr.mxu0 0.0
        %8851 = vmatpush1.msra.mxu0 %v8790
        %8852 = vmatprep.subr.mxu0 0.0
        %8853 = vmatpush1.msra.mxu0 %v8791
        %8854 = vmatprep.subr.mxu0 0.0
        %8855 = vmatpush1.msra.mxu0 %v8792
        %8856 = vmatprep.subr.mxu0 0.0
        %8857 = vmatpush1.msra.mxu0 %v8793
        %8858 = vmatprep.subr.mxu0 0.0
        %8859 = vmatpush1.msra.mxu0 %v8794
        %8860 = vmatprep.mubr.f32.mxu0 %v8762
        %8861 = vmatmul.mubr.f32.gmra.mrb[0].mxu0 %v8761
        %v8862 = vpop.f32.mrb[0].mxu0
        %v8863 = vadd.f32 %v8795, %v8862
        %v8864 = vpop.f32.mrb[0].mxu0
        %8865 = vdwg.mxu0
        %vm8866 = vcmask 8192
        %8867 = vst.msk [vmem:[%s432] sm:$0x1] %vm8866, %v8863
        %s8868 = sand.u32 %s313, 1
        %s8869 = scalar_lea.sflag [#allocation3], %s8868
        %s8870 = sand.u32 %s313, 1
        %s8871 = scalar_lea.vmem [#allocation2], %s8870
        // Predicated region
        $region73: #{deep_network_forward.1} parent=71 // pred_check
          %p8872 = pneg %p323
        $region74: #{deep_network_forward.1} parent=71 // pred_check_branch
          %8874 = sbr.rel (%p8872) target = $region76
        $region75: #{deep_network_forward.1} parent=71 // pred_region
          %s8876 = ssub.s32 16, 16
          %8877 = vsyncadd %s8869, %s8876
          %s8878 = smul.addr %s27, 16
          %s8879 = scalar_lea.hbm %s13, %s8878
          %s8881 = sshll.u32 %s8871, 4
          %s8882 = int_to_ptr.vmem [resolvable:$true] %s8881
          %8884 = dma.vmem_to_hbm [thread:$0]  %s8882, 16, %s8879, %s8869
        $region76: #{deep_network_forward.1} parent=71 // pred_fallthru
          _
      $region72: #{deep_network_forward.1} parent=5 // pred_fallthru
        _
      %p8885 = scmp.le.s32.totalorder 2, %s22
      // Predicated region
      $region77: #{deep_network_forward.1} parent=5 // pred_check
        %p8886 = pneg %p8885
      $region78: #{deep_network_forward.1} parent=5 // pred_check_branch
        %8888 = sbr.rel (%p8886) target = $region80
      $region79: #{deep_network_forward.1} parent=5 // pred_region
        %s8889 = ssub.s32 %s22, 2
        // Predicated region
        $region81: #{deep_network_forward.1} parent=79 // pred_check
          %p8890 = pneg %p329
        $region82: #{deep_network_forward.1} parent=79 // pred_check_branch
          %8892 = sbr.rel (%p8890) target = $region84
        $region83: #{deep_network_forward.1} parent=79 // pred_region
          %s8893 = sand.u32 %s314, 1
          %s8894 = scalar_lea.sflag [#allocation3], %s8893
          %s8895 = sand.u32 %s314, 1
          %s8896 = scalar_lea.vmem [#allocation2], %s8895
          %8897 = dma.done %s8894, 16
        $region84: #{deep_network_forward.1} parent=79 // pred_fallthru
          _
      $region80: #{deep_network_forward.1} parent=5 // pred_fallthru
        _
    $region6: #{deep_network_forward.1} parent=1 // loop_footer
      %s26 = sadd.s32 1, %s22
    $region7: #{deep_network_forward.1} parent=1 // loop_footer_branch
      %21 = sbr.rel target = $region3
    $region8: #{deep_network_forward.1} parent=1 // loop_exit
      _
    %8898 = vsyncpa [#allocation3], 1
    %s8899 = scalar_lea.sflag [#allocation3], 1
    %8900 = vsyncpa %s8899, 1

</llo_original>
